<compile_context>
chip_gen: v7x
topology: tpu7x:2x2x1
jax: 0.10.0
libtpu: 0.0.40
codegen_flags: <defaults>
</compile_context>

<pallas_src>
import functools

import jax
import jax.numpy as jnp
from jax.experimental import pallas as pl
from jax.experimental.pallas import tpu as pltpu

MAXPOOL = "M"
# 16x16 input -> conv(3->16) -> pool(8x8) -> conv(16->32) -> pool(4x4)
# flatten = 32 * 4 * 4 = 512, matching nn.Linear(512, n_class).
VGG_LAYER_DICT = {"vgg_tiny": [16, MAXPOOL, 32, MAXPOOL]}

N_PAD = 128          # classifier output padded to a full 128-lane store


def _round_up(x, m):
    return (x + m - 1) // m * m


# ---------------------------------------------------------------- fused kernel

def _make_fused_kernel(config, B_t, H0, W0, C0):
    """Build the fully-fused VGG forward kernel for a given layer config."""
    n_conv = sum(1 for v in config if v != MAXPOOL)

    def kernel(*refs):
        # refs = [x, (w, bias) * n_conv, fc_w, fc_b, out, *scratch]
        it = iter(refs)
        x_ref = next(it)
        conv_refs = [(next(it), next(it)) for _ in range(n_conv)]
        wfc_ref = next(it)
        fcb_ref = next(it)
        out_ref = next(it)
        scratch = list(it)

        # --- pre-walk: slice the flat scratch list into per-conv groups ------
        conv_scratch = []                       # (xpad, col, act_or_None) per conv
        si = 0
        for li, val in enumerate(config):
            if val == MAXPOOL:
                continue
            next_is_pool = li + 1 < len(config) and config[li + 1] == MAXPOOL
            xpad, col = scratch[si], scratch[si + 1]
            si += 2
            act = None
            if next_is_pool:
                act = scratch[si]
                si += 1
            conv_scratch.append((xpad, col, act))
        col_fc = scratch[si]

        # --- one-time zeroing of the padded buffers: the 1-pixel halo (and the
        # sublane-padding columns) stays zero forever; every grid step only
        # rewrites the interior.
        @pl.when(pl.program_id(0) == 0)
        def _zero_halos():
            for xpad, _, _ in conv_scratch:
                xpad[...] = jnp.zeros(xpad.shape, xpad.dtype)

        cur = x_ref[...]                         # bf16 (B_t, H, W, C)
        pool_src = None                          # f32 ref holding last conv output
        H, W, C = H0, W0, C0
        ci = 0
        for li, val in enumerate(config):
            if val == MAXPOOL:
                # ---- 2x2 / stride-2 max pool (f32, fully in VMEM) -----------
                H2, W2 = H // 2, W // 2
                lo = pool_src[:, :, pl.ds(0, W2, stride=2), :]   # even columns
                hi = pool_src[:, :, pl.ds(1, W2, stride=2), :]   # odd  columns
                m = jnp.maximum(lo, hi).reshape(B_t, H2, 2, W2, C)
                cur = jnp.maximum(m[:, :, 0], m[:, :, 1]).astype(jnp.bfloat16)
                H, W = H2, W2
                pool_src = None
            else:
                # ---- conv3x3 (pad=1) + folded BatchNorm + ReLU --------------
                Cout = val
                w_ref, b_ref = conv_refs[ci]
                xpad, col, act = conv_scratch[ci]
                ci += 1
                # interior write only; halo stays zero (see _zero_halos)
                xpad[:, 1:1 + H, 1:1 + W, :] = cur
                rows = B_t * H * W
                # in-VMEM im2col: 9 taps stacked along the K/lane axis
                for t in range(9):
                    dy, dx = divmod(t, 3)
                    col[:, t * C:(t + 1) * C] = (
                        xpad[:, dy:dy + H, dx:dx + W, :].reshape(rows, C))
                # ONE matmul per conv: (rows, 9C) @ (9C, Cout), f32 accumulate.
                y = jnp.dot(col[...], w_ref[...],
                            preferred_element_type=jnp.float32)
                y = jnp.maximum(y + b_ref[...], 0.0)     # BN scale folded into w
                if act is not None:                      # next layer is a maxpool
                    act[...] = y.reshape(B_t, H, W, Cout)
                    pool_src, cur = act, None
                else:                                    # next is conv / classifier
                    cur = y.astype(jnp.bfloat16).reshape(B_t, H, W, Cout)
                    pool_src = None
                C = Cout

        # ---- classifier (nn.AvgPool2d(1,1) is the identity -> no-op) --------
        # Build the (B_t, H*W*C) NHWC-flatten row buffer, then ONE matmul
        # against the pre-permuted, 128-lane-padded FC weight.
        feat = cur                                        # bf16 (B_t, H, W, C)
        for i in range(H * W):
            hh, ww = divmod(i, W)
            col_fc[:, i * C:(i + 1) * C] = feat[:, hh, ww, :]
        out_ref[...] = (jnp.dot(col_fc[...], wfc_ref[...],
                                preferred_element_type=jnp.float32)
                        + fcb_ref[...])                   # lane-dense (B_t, 128)

    return kernel


# ---------------------------------------------------------------- wrapper

def _scratch_plan(config, B_t, Hin, Win, Cin):
    """VMEM scratch plan (walked identically inside the kernel)."""
    shapes = []
    H, W, C = Hin, Win, Cin
    for li, val in enumerate(config):
        if val == MAXPOOL:
            H, W = H // 2, W // 2
        else:
            Wp = _round_up(W + 2, 8)                              # sublane-pad W
            shapes.append(pltpu.VMEM((B_t, H + 2, Wp, C), jnp.bfloat16))   # xpad
            shapes.append(pltpu.VMEM((B_t * H * W, 9 * C), jnp.bfloat16))  # im2col
            if li + 1 < len(config) and config[li + 1] == MAXPOOL:
                shapes.append(pltpu.VMEM((B_t, H, W, val), jnp.float32))   # pool src
            C = val
    shapes.append(pltpu.VMEM((B_t, H * W * C), jnp.bfloat16))              # FC im2col
    return shapes, (H, W, C)


def vgg_forward(kparams, x_nchw, config, n_class, batch_tile=None):
    # sanity: this kernel pools only from a conv output (true for all VGG configs)
    prev = None
    for val in config:
        if val == MAXPOOL:
            assert isinstance(prev, int), "MaxPool must directly follow a conv"
        prev = val
    assert n_class <= N_PAD

    B = x_nchw.shape[0]
    x = jnp.transpose(x_nchw, (0, 2, 3, 1)).astype(jnp.bfloat16)  # NCHW -> NHWC, bf16
    _, Hin, Win, C0 = x.shape
    B_t = B if batch_tile is None else batch_tile
    assert B % B_t == 0

    scratch_shapes, (Hf, Wf, Cf) = _scratch_plan(config, B_t, Hin, Win, C0)
    assert Hf * Wf * Cf == kparams["fc_w"].shape[0]               # == 512

    def full_spec(shape):
        return pl.BlockSpec(shape, lambda b: (0,) * len(shape))

    inputs = [x]
    in_specs = [pl.BlockSpec((B_t, Hin, Win, C0), lambda b: (b, 0, 0, 0))]
    for p in kparams["convs"]:
        inputs += [p["w"], p["bias"]]
        in_specs += [full_spec(p["w"].shape), full_spec(p["bias"].shape)]
    inputs += [kparams["fc_w"], kparams["fc_b"]]
    in_specs += [full_spec(kparams["fc_w"].shape), full_spec(kparams["fc_b"].shape)]

    kernel = _make_fused_kernel(config, B_t, Hin, Win, C0)
    out = pl.pallas_call(
        kernel,
        out_shape=jax.ShapeDtypeStruct((B, N_PAD), jnp.float32),
        grid=(B // B_t,),
        in_specs=in_specs,
        out_specs=pl.BlockSpec((B_t, N_PAD), lambda b: (b, 0)),
        scratch_shapes=scratch_shapes,
        compiler_params=pltpu.CompilerParams(
            dimension_semantics=("parallel",)),
    )(*inputs)
    return out[:, :n_class]


# ---------------------------------------------------------------- parameters

def init_torch_params(key, config, n_class, in_c=3):
    """Random parameters in PyTorch layouts (OIHW conv, (out,in) linear)."""
    params = {"convs": []}
    c = in_c
    for val in config:
        if val == MAXPOOL:
            continue
        out_c = val
        key, k1, k2, k3, k4, k5, k6 = jax.random.split(key, 7)
        params["convs"].append(dict(
            w=jax.random.normal(k1, (out_c, c, 3, 3), jnp.float32) * 0.1,
            b=jax.random.normal(k2, (out_c,), jnp.float32) * 0.1,
            gamma=jax.random.uniform(k3, (out_c,), jnp.float32, 0.5, 1.5),
            beta=jax.random.normal(k4, (out_c,), jnp.float32) * 0.1,
            rm=jax.random.normal(k5, (out_c,), jnp.float32) * 0.1,
            rv=jax.random.uniform(k6, (out_c,), jnp.float32, 0.5, 1.5)))
        c = out_c
    key, kw, kb = jax.random.split(key, 3)
    params["fc_w"] = jax.random.normal(kw, (n_class, 512), jnp.float32) * 0.05
    params["fc_b"] = jax.random.normal(kb, (n_class,), jnp.float32) * 0.05
    return params


def prepare_kernel_params(tparams, config, n_class, Hin, Win, in_c=3, eps=1e-5):
    """Fold eval-mode BN (scale -> weights, shift -> bias) and re-layout for MXU."""
    kp = {"convs": []}
    H, W, C = Hin, Win, in_c
    for val in config:
        if val == MAXPOOL:
            H, W = H // 2, W // 2
            continue
        p = tparams["convs"][len(kp["convs"])]
        scale = p["gamma"] / jnp.sqrt(p["rv"] + eps)
        bias = (p["b"] - p["rm"]) * scale + p["beta"]            # conv bias + BN folded
        # OIHW -> (ky,kx,Cin,Cout), scale folded per Cout (f32), -> (9*Cin, Cout) bf16
        w = jnp.transpose(p["w"], (2, 3, 1, 0)) * scale
        w = w.reshape(9 * C, val)
        kp["convs"].append(dict(
            w=w.astype(jnp.bfloat16),
            bias=bias[None, :].astype(jnp.float32)))
        C = val
    # classifier: PyTorch (n_class, C*H*W) NCHW-flatten -> (H*W*C, N_PAD) so the
    # kernel's NHWC flatten (row index (h*W + w)*C + c) matches out.view(B, -1).
    wt = tparams["fc_w"].reshape(n_class, C, H, W)
    wt = jnp.transpose(wt, (2, 3, 1, 0)).reshape(H * W * C, n_class)
    fc_w = jnp.zeros((H * W * C, N_PAD), jnp.float32).at[:, :n_class].set(wt)
    fc_b = jnp.zeros((1, N_PAD), jnp.float32).at[0, :n_class].set(tparams["fc_b"])
    kp["fc_w"] = fc_w.astype(jnp.bfloat16)
    kp["fc_b"] = fc_b
    return kp


# ---------------------------------------------------------------- pure-JAX reference

def reference_forward(tparams, x_nchw, config, eps=1e-5):
    x = jnp.transpose(x_nchw, (0, 2, 3, 1))
    ci = 0
    for val in config:
        if val == MAXPOOL:
            B, H, W, C = x.shape
            x = x.reshape(B, H // 2, 2, W // 2, 2, C).max(axis=(2, 4))
        else:
            p = tparams["convs"][ci]; ci += 1
            w = jnp.transpose(p["w"], (2, 3, 1, 0))              # OIHW -> HWIO
            y = jax.lax.conv_general_dilated(
                x, w, (1, 1), ((1, 1), (1, 1)),
                dimension_numbers=("NHWC", "HWIO", "NHWC"))
            y = y + p["b"]
            y = (y - p["rm"]) / jnp.sqrt(p["rv"] + eps) * p["gamma"] + p["beta"]
            x = jnp.maximum(y, 0.0)
    B = x.shape[0]
    feat = jnp.transpose(x, (0, 3, 1, 2)).reshape(B, -1)          # NCHW flatten
    return feat @ tparams["fc_w"].T + tparams["fc_b"]


# ---------------------------------------------------------------- main

if __name__ == "__main__":
    config = VGG_LAYER_DICT["vgg_tiny"]
    n_class = 10
    B, Hin, Win = 2, 16, 16

    key = jax.random.PRNGKey(0)
    kparam_key, kx = jax.random.split(key)
    tparams = init_torch_params(kparam_key, config, n_class)
    kparams = prepare_kernel_params(tparams, config, n_class, Hin, Win)
    x = jax.random.normal(kx, (B, 3, Hin, Win), jnp.float32)      # NCHW, like PyTorch

    fwd = jax.jit(functools.partial(vgg_forward, config=config, n_class=n_class))
    out = jax.block_until_ready(fwd(kparams, x))
    ref = jax.block_until_ready(reference_forward(tparams, x, config))

    assert out.shape == (B, n_class), out.shape
    assert bool(jnp.all(jnp.isfinite(out)))
    # bf16 MXU operands (f32 accumulate/epilogue) -> slightly looser tolerance
    # than a pure-f32 path; structural errors would be orders of magnitude larger.
    err = float(jnp.max(jnp.abs(out - ref)))
    assert bool(jnp.allclose(out, ref, rtol=5e-2, atol=5e-2)), err
    print("KERNEL_OK")
</pallas_src>

<mosaic_0001>
module attributes {stable_mosaic.version = 11 : i64} {
  func.func @kernel(%arg0: i32, %arg1: memref<2x16x16x3xbf16, #tpu.memory_space<vmem>>, %arg2: memref<27x16xbf16, #tpu.memory_space<vmem>>, %arg3: memref<1x16xf32, #tpu.memory_space<vmem>>, %arg4: memref<144x32xbf16, #tpu.memory_space<vmem>>, %arg5: memref<1x32xf32, #tpu.memory_space<vmem>>, %arg6: memref<512x128xbf16, #tpu.memory_space<vmem>>, %arg7: memref<1x128xf32, #tpu.memory_space<vmem>>, %arg8: memref<2x128xf32, #tpu.memory_space<vmem>>, %arg9: memref<2x18x24x3xbf16, #tpu.memory_space<vmem>>, %arg10: memref<512x27xbf16, #tpu.memory_space<vmem>>, %arg11: memref<2x16x16x16xf32, #tpu.memory_space<vmem>>, %arg12: memref<2x10x16x16xbf16, #tpu.memory_space<vmem>>, %arg13: memref<128x144xbf16, #tpu.memory_space<vmem>>, %arg14: memref<2x8x8x32xf32, #tpu.memory_space<vmem>>, %arg15: memref<2x512xbf16, #tpu.memory_space<vmem>>) attributes {dimension_semantics = [#tpu.dimension_semantics<parallel>], iteration_bounds = array<i64: 1>, scalar_prefetch = 0 : i64, scratch_operands = 7 : i64, tpu.core_type = #tpu.core_type<tc>, window_params = [{transform_indices = @transform_0, window_bounds = array<i64: 2, 16, 16, 3>}, {pipeline_mode = #tpu.pipeline_mode<synchronous>, transform_indices = @transform_1, window_bounds = array<i64: 27, 16>}, {pipeline_mode = #tpu.pipeline_mode<synchronous>, transform_indices = @transform_2, window_bounds = array<i64: 1, 16>}, {pipeline_mode = #tpu.pipeline_mode<synchronous>, transform_indices = @transform_3, window_bounds = array<i64: 144, 32>}, {pipeline_mode = #tpu.pipeline_mode<synchronous>, transform_indices = @transform_4, window_bounds = array<i64: 1, 32>}, {pipeline_mode = #tpu.pipeline_mode<synchronous>, transform_indices = @transform_5, window_bounds = array<i64: 512, 128>}, {pipeline_mode = #tpu.pipeline_mode<synchronous>, transform_indices = @transform_6, window_bounds = array<i64: 1, 128>}, {transform_indices = @transform_7, window_bounds = array<i64: 2, 128>}]} {
    %c0_i32 = arith.constant 0 : i32
    %0 = arith.cmpi eq, %arg0, %c0_i32 : i32
    %1 = arith.extui %0 : i1 to i32
    %c0_i32_0 = arith.constant 0 : i32
    %2 = arith.cmpi ne, %1, %c0_i32_0 : i32
    scf.if %2 {
      %cst_171 = arith.constant 0.000000e+00 : bf16
      %155 = vector.broadcast %cst_171 : bf16 to vector<2x18x24x3xbf16>
      %c0_172 = arith.constant 0 : index
      %c0_173 = arith.constant 0 : index
      %c0_174 = arith.constant 0 : index
      %c0_175 = arith.constant 0 : index
      %156 = vector.load %arg9[%c0_172, %c0_173, %c0_174, %c0_175] : memref<2x18x24x3xbf16, #tpu.memory_space<vmem>>, vector<2x18x24x3xbf16>
      tpu.vector_store %arg9[%c0_172, %c0_173, %c0_174, %c0_175], %155 {strides = array<i32>} : memref<2x18x24x3xbf16, #tpu.memory_space<vmem>>, vector<2x18x24x3xbf16>,
      %cst_176 = arith.constant 0.000000e+00 : bf16
      %157 = vector.broadcast %cst_176 : bf16 to vector<2x10x16x16xbf16>
      %c0_177 = arith.constant 0 : index
      %c0_178 = arith.constant 0 : index
      %c0_179 = arith.constant 0 : index
      %c0_180 = arith.constant 0 : index
      %158 = vector.load %arg12[%c0_177, %c0_178, %c0_179, %c0_180] : memref<2x10x16x16xbf16, #tpu.memory_space<vmem>>, vector<2x10x16x16xbf16>
      tpu.vector_store %arg12[%c0_177, %c0_178, %c0_179, %c0_180], %157 {strides = array<i32>} : memref<2x10x16x16xbf16, #tpu.memory_space<vmem>>, vector<2x10x16x16xbf16>,
    } else {
    }
    %c0 = arith.constant 0 : index
    %c0_1 = arith.constant 0 : index
    %c0_2 = arith.constant 0 : index
    %c0_3 = arith.constant 0 : index
    %3 = vector.load %arg1[%c0, %c0_1, %c0_2, %c0_3] : memref<2x16x16x3xbf16, #tpu.memory_space<vmem>>, vector<2x16x16x3xbf16>
    %c0_4 = arith.constant 0 : index
    %c1 = arith.constant 1 : index
    %c1_5 = arith.constant 1 : index
    %c0_6 = arith.constant 0 : index
    %4 = vector.load %arg9[%c0_4, %c1, %c1_5, %c0_6] : memref<2x18x24x3xbf16, #tpu.memory_space<vmem>>, vector<2x16x16x3xbf16>
    tpu.vector_store %arg9[%c0_4, %c1, %c1_5, %c0_6], %3 {strides = array<i32>} : memref<2x18x24x3xbf16, #tpu.memory_space<vmem>>, vector<2x16x16x3xbf16>,
    %c0_7 = arith.constant 0 : index
    %c0_8 = arith.constant 0 : index
    %c0_9 = arith.constant 0 : index
    %c0_10 = arith.constant 0 : index
    %5 = vector.load %arg9[%c0_7, %c0_8, %c0_9, %c0_10] : memref<2x18x24x3xbf16, #tpu.memory_space<vmem>>, vector<2x16x16x3xbf16>
    %6 = vector.shape_cast %5 : vector<2x16x16x3xbf16> to vector<512x3xbf16>
    %c0_11 = arith.constant 0 : index
    %c0_12 = arith.constant 0 : index
    %7 = vector.load %arg10[%c0_11, %c0_12] : memref<512x27xbf16, #tpu.memory_space<vmem>>, vector<512x3xbf16>
    tpu.vector_store %arg10[%c0_11, %c0_12], %6 {strides = array<i32>} : memref<512x27xbf16, #tpu.memory_space<vmem>>, vector<512x3xbf16>,
    %c0_13 = arith.constant 0 : index
    %c0_14 = arith.constant 0 : index
    %c1_15 = arith.constant 1 : index
    %c0_16 = arith.constant 0 : index
    %8 = vector.load %arg9[%c0_13, %c0_14, %c1_15, %c0_16] : memref<2x18x24x3xbf16, #tpu.memory_space<vmem>>, vector<2x16x16x3xbf16>
    %9 = vector.shape_cast %8 : vector<2x16x16x3xbf16> to vector<512x3xbf16>
    %c0_17 = arith.constant 0 : index
    %c3 = arith.constant 3 : index
    %10 = vector.load %arg10[%c0_17, %c3] : memref<512x27xbf16, #tpu.memory_space<vmem>>, vector<512x3xbf16>
    tpu.vector_store %arg10[%c0_17, %c3], %9 {strides = array<i32>} : memref<512x27xbf16, #tpu.memory_space<vmem>>, vector<512x3xbf16>,
    %c0_18 = arith.constant 0 : index
    %c0_19 = arith.constant 0 : index
    %c2 = arith.constant 2 : index
    %c0_20 = arith.constant 0 : index
    %11 = vector.load %arg9[%c0_18, %c0_19, %c2, %c0_20] : memref<2x18x24x3xbf16, #tpu.memory_space<vmem>>, vector<2x16x16x3xbf16>
    %12 = vector.shape_cast %11 : vector<2x16x16x3xbf16> to vector<512x3xbf16>
    %c0_21 = arith.constant 0 : index
    %c6 = arith.constant 6 : index
    %13 = vector.load %arg10[%c0_21, %c6] : memref<512x27xbf16, #tpu.memory_space<vmem>>, vector<512x3xbf16>
    tpu.vector_store %arg10[%c0_21, %c6], %12 {strides = array<i32>} : memref<512x27xbf16, #tpu.memory_space<vmem>>, vector<512x3xbf16>,
    %c0_22 = arith.constant 0 : index
    %c1_23 = arith.constant 1 : index
    %c0_24 = arith.constant 0 : index
    %c0_25 = arith.constant 0 : index
    %14 = vector.load %arg9[%c0_22, %c1_23, %c0_24, %c0_25] : memref<2x18x24x3xbf16, #tpu.memory_space<vmem>>, vector<2x16x16x3xbf16>
    %15 = vector.shape_cast %14 : vector<2x16x16x3xbf16> to vector<512x3xbf16>
    %c0_26 = arith.constant 0 : index
    %c9 = arith.constant 9 : index
    %16 = vector.load %arg10[%c0_26, %c9] : memref<512x27xbf16, #tpu.memory_space<vmem>>, vector<512x3xbf16>
    tpu.vector_store %arg10[%c0_26, %c9], %15 {strides = array<i32>} : memref<512x27xbf16, #tpu.memory_space<vmem>>, vector<512x3xbf16>,
    %c0_27 = arith.constant 0 : index
    %c1_28 = arith.constant 1 : index
    %c1_29 = arith.constant 1 : index
    %c0_30 = arith.constant 0 : index
    %17 = vector.load %arg9[%c0_27, %c1_28, %c1_29, %c0_30] : memref<2x18x24x3xbf16, #tpu.memory_space<vmem>>, vector<2x16x16x3xbf16>
    %18 = vector.shape_cast %17 : vector<2x16x16x3xbf16> to vector<512x3xbf16>
    %c0_31 = arith.constant 0 : index
    %c12 = arith.constant 12 : index
    %19 = vector.load %arg10[%c0_31, %c12] : memref<512x27xbf16, #tpu.memory_space<vmem>>, vector<512x3xbf16>
    tpu.vector_store %arg10[%c0_31, %c12], %18 {strides = array<i32>} : memref<512x27xbf16, #tpu.memory_space<vmem>>, vector<512x3xbf16>,
    %c0_32 = arith.constant 0 : index
    %c1_33 = arith.constant 1 : index
    %c2_34 = arith.constant 2 : index
    %c0_35 = arith.constant 0 : index
    %20 = vector.load %arg9[%c0_32, %c1_33, %c2_34, %c0_35] : memref<2x18x24x3xbf16, #tpu.memory_space<vmem>>, vector<2x16x16x3xbf16>
    %21 = vector.shape_cast %20 : vector<2x16x16x3xbf16> to vector<512x3xbf16>
    %c0_36 = arith.constant 0 : index
    %c15 = arith.constant 15 : index
    %22 = vector.load %arg10[%c0_36, %c15] : memref<512x27xbf16, #tpu.memory_space<vmem>>, vector<512x3xbf16>
    tpu.vector_store %arg10[%c0_36, %c15], %21 {strides = array<i32>} : memref<512x27xbf16, #tpu.memory_space<vmem>>, vector<512x3xbf16>,
    %c0_37 = arith.constant 0 : index
    %c2_38 = arith.constant 2 : index
    %c0_39 = arith.constant 0 : index
    %c0_40 = arith.constant 0 : index
    %23 = vector.load %arg9[%c0_37, %c2_38, %c0_39, %c0_40] : memref<2x18x24x3xbf16, #tpu.memory_space<vmem>>, vector<2x16x16x3xbf16>
    %24 = vector.shape_cast %23 : vector<2x16x16x3xbf16> to vector<512x3xbf16>
    %c0_41 = arith.constant 0 : index
    %c18 = arith.constant 18 : index
    %25 = vector.load %arg10[%c0_41, %c18] : memref<512x27xbf16, #tpu.memory_space<vmem>>, vector<512x3xbf16>
    tpu.vector_store %arg10[%c0_41, %c18], %24 {strides = array<i32>} : memref<512x27xbf16, #tpu.memory_space<vmem>>, vector<512x3xbf16>,
    %c0_42 = arith.constant 0 : index
    %c2_43 = arith.constant 2 : index
    %c1_44 = arith.constant 1 : index
    %c0_45 = arith.constant 0 : index
    %26 = vector.load %arg9[%c0_42, %c2_43, %c1_44, %c0_45] : memref<2x18x24x3xbf16, #tpu.memory_space<vmem>>, vector<2x16x16x3xbf16>
    %27 = vector.shape_cast %26 : vector<2x16x16x3xbf16> to vector<512x3xbf16>
    %c0_46 = arith.constant 0 : index
    %c21 = arith.constant 21 : index
    %28 = vector.load %arg10[%c0_46, %c21] : memref<512x27xbf16, #tpu.memory_space<vmem>>, vector<512x3xbf16>
    tpu.vector_store %arg10[%c0_46, %c21], %27 {strides = array<i32>} : memref<512x27xbf16, #tpu.memory_space<vmem>>, vector<512x3xbf16>,
    %c0_47 = arith.constant 0 : index
    %c2_48 = arith.constant 2 : index
    %c2_49 = arith.constant 2 : index
    %c0_50 = arith.constant 0 : index
    %29 = vector.load %arg9[%c0_47, %c2_48, %c2_49, %c0_50] : memref<2x18x24x3xbf16, #tpu.memory_space<vmem>>, vector<2x16x16x3xbf16>
    %30 = vector.shape_cast %29 : vector<2x16x16x3xbf16> to vector<512x3xbf16>
    %c0_51 = arith.constant 0 : index
    %c24 = arith.constant 24 : index
    %31 = vector.load %arg10[%c0_51, %c24] : memref<512x27xbf16, #tpu.memory_space<vmem>>, vector<512x3xbf16>
    tpu.vector_store %arg10[%c0_51, %c24], %30 {strides = array<i32>} : memref<512x27xbf16, #tpu.memory_space<vmem>>, vector<512x3xbf16>,
    %c0_52 = arith.constant 0 : index
    %c0_53 = arith.constant 0 : index
    %32 = vector.load %arg10[%c0_52, %c0_53] : memref<512x27xbf16, #tpu.memory_space<vmem>>, vector<512x27xbf16>
    %c0_54 = arith.constant 0 : index
    %c0_55 = arith.constant 0 : index
    %33 = vector.load %arg2[%c0_54, %c0_55] : memref<27x16xbf16, #tpu.memory_space<vmem>>, vector<27x16xbf16>
    %cst = arith.constant dense<0.000000e+00> : vector<512x16xf32>
    %34 = tpu.matmul %32, %33, %cst {dimension_numbers = #tpu.dot_dimension_numbers<[1], [0], [0], [1], [0, 0, 1, 1], [], []>} : vector<512x27xbf16>, vector<27x16xbf16>, vector<512x16xf32> -> vector<512x16xf32>
    %c0_56 = arith.constant 0 : index
    %c0_57 = arith.constant 0 : index
    %35 = vector.load %arg3[%c0_56, %c0_57] : memref<1x16xf32, #tpu.memory_space<vmem>>, vector<1x16xf32>
    %36 = vector.broadcast %35 : vector<1x16xf32> to vector<512x16xf32>
    %37 = arith.addf %34, %36 : vector<512x16xf32>
    %cst_58 = arith.constant 0.000000e+00 : f32
    %38 = vector.broadcast %cst_58 : f32 to vector<512x16xf32>
    %39 = arith.maximumf %37, %38 : vector<512x16xf32>
    %40 = vector.shape_cast %39 : vector<512x16xf32> to vector<2x16x16x16xf32>
    %c0_59 = arith.constant 0 : index
    %c0_60 = arith.constant 0 : index
    %c0_61 = arith.constant 0 : index
    %c0_62 = arith.constant 0 : index
    %41 = vector.load %arg11[%c0_59, %c0_60, %c0_61, %c0_62] : memref<2x16x16x16xf32, #tpu.memory_space<vmem>>, vector<2x16x16x16xf32>
    tpu.vector_store %arg11[%c0_59, %c0_60, %c0_61, %c0_62], %40 {strides = array<i32>} : memref<2x16x16x16xf32, #tpu.memory_space<vmem>>, vector<2x16x16x16xf32>,
    %c0_63 = arith.constant 0 : index
    %c0_64 = arith.constant 0 : index
    %c0_65 = arith.constant 0 : index
    %c0_66 = arith.constant 0 : index
    %42 = tpu.strided_load %arg11[%c0_63, %c0_64, %c0_65, %c0_66] {strides = array<i32: 1, 1, 2, 1>} : memref<2x16x16x16xf32, #tpu.memory_space<vmem>>, vector<2x16x8x16xf32>
    %c0_67 = arith.constant 0 : index
    %c0_68 = arith.constant 0 : index
    %c1_69 = arith.constant 1 : index
    %c0_70 = arith.constant 0 : index
    %43 = tpu.strided_load %arg11[%c0_67, %c0_68, %c1_69, %c0_70] {strides = array<i32: 1, 1, 2, 1>} : memref<2x16x16x16xf32, #tpu.memory_space<vmem>>, vector<2x16x8x16xf32>
    %44 = arith.maximumf %42, %43 : vector<2x16x8x16xf32>
    %45 = vector.shape_cast %44 : vector<2x16x8x16xf32> to vector<2x8x2x8x16xf32>
    %46 = vector.extract_strided_slice %45 {offsets = [0, 0, 0, 0, 0], sizes = [2, 8, 1, 8, 16], strides = [1, 1, 1, 1, 1]} : vector<2x8x2x8x16xf32> to vector<2x8x1x8x16xf32>
    %47 = vector.shape_cast %46 : vector<2x8x1x8x16xf32> to vector<2x8x8x16xf32>
    %48 = vector.extract_strided_slice %45 {offsets = [0, 0, 1, 0, 0], sizes = [2, 8, 1, 8, 16], strides = [1, 1, 1, 1, 1]} : vector<2x8x2x8x16xf32> to vector<2x8x1x8x16xf32>
    %49 = vector.shape_cast %48 : vector<2x8x1x8x16xf32> to vector<2x8x8x16xf32>
    %50 = arith.maximumf %47, %49 : vector<2x8x8x16xf32>
    %51 = arith.truncf %50 : vector<2x8x8x16xf32> to vector<2x8x8x16xbf16>
    %c0_71 = arith.constant 0 : index
    %c1_72 = arith.constant 1 : index
    %c1_73 = arith.constant 1 : index
    %c0_74 = arith.constant 0 : index
    %52 = vector.load %arg12[%c0_71, %c1_72, %c1_73, %c0_74] : memref<2x10x16x16xbf16, #tpu.memory_space<vmem>>, vector<2x8x8x16xbf16>
    tpu.vector_store %arg12[%c0_71, %c1_72, %c1_73, %c0_74], %51 {strides = array<i32>} : memref<2x10x16x16xbf16, #tpu.memory_space<vmem>>, vector<2x8x8x16xbf16>,
    %c0_75 = arith.constant 0 : index
    %c0_76 = arith.constant 0 : index
    %c0_77 = arith.constant 0 : index
    %c0_78 = arith.constant 0 : index
    %53 = vector.load %arg12[%c0_75, %c0_76, %c0_77, %c0_78] : memref<2x10x16x16xbf16, #tpu.memory_space<vmem>>, vector<2x8x8x16xbf16>
    %54 = vector.shape_cast %53 : vector<2x8x8x16xbf16> to vector<128x16xbf16>
    %c0_79 = arith.constant 0 : index
    %c0_80 = arith.constant 0 : index
    %55 = vector.load %arg13[%c0_79, %c0_80] : memref<128x144xbf16, #tpu.memory_space<vmem>>, vector<128x16xbf16>
    tpu.vector_store %arg13[%c0_79, %c0_80], %54 {strides = array<i32>} : memref<128x144xbf16, #tpu.memory_space<vmem>>, vector<128x16xbf16>,
    %c0_81 = arith.constant 0 : index
    %c0_82 = arith.constant 0 : index
    %c1_83 = arith.constant 1 : index
    %c0_84 = arith.constant 0 : index
    %56 = vector.load %arg12[%c0_81, %c0_82, %c1_83, %c0_84] : memref<2x10x16x16xbf16, #tpu.memory_space<vmem>>, vector<2x8x8x16xbf16>
    %57 = vector.shape_cast %56 : vector<2x8x8x16xbf16> to vector<128x16xbf16>
    %c0_85 = arith.constant 0 : index
    %c16 = arith.constant 16 : index
    %58 = vector.load %arg13[%c0_85, %c16] : memref<128x144xbf16, #tpu.memory_space<vmem>>, vector<128x16xbf16>
    tpu.vector_store %arg13[%c0_85, %c16], %57 {strides = array<i32>} : memref<128x144xbf16, #tpu.memory_space<vmem>>, vector<128x16xbf16>,
    %c0_86 = arith.constant 0 : index
    %c0_87 = arith.constant 0 : index
    %c2_88 = arith.constant 2 : index
    %c0_89 = arith.constant 0 : index
    %59 = vector.load %arg12[%c0_86, %c0_87, %c2_88, %c0_89] : memref<2x10x16x16xbf16, #tpu.memory_space<vmem>>, vector<2x8x8x16xbf16>
    %60 = vector.shape_cast %59 : vector<2x8x8x16xbf16> to vector<128x16xbf16>
    %c0_90 = arith.constant 0 : index
    %c32 = arith.constant 32 : index
    %61 = vector.load %arg13[%c0_90, %c32] : memref<128x144xbf16, #tpu.memory_space<vmem>>, vector<128x16xbf16>
    tpu.vector_store %arg13[%c0_90, %c32], %60 {strides = array<i32>} : memref<128x144xbf16, #tpu.memory_space<vmem>>, vector<128x16xbf16>,
    %c0_91 = arith.constant 0 : index
    %c1_92 = arith.constant 1 : index
    %c0_93 = arith.constant 0 : index
    %c0_94 = arith.constant 0 : index
    %62 = vector.load %arg12[%c0_91, %c1_92, %c0_93, %c0_94] : memref<2x10x16x16xbf16, #tpu.memory_space<vmem>>, vector<2x8x8x16xbf16>
    %63 = vector.shape_cast %62 : vector<2x8x8x16xbf16> to vector<128x16xbf16>
    %c0_95 = arith.constant 0 : index
    %c48 = arith.constant 48 : index
    %64 = vector.load %arg13[%c0_95, %c48] : memref<128x144xbf16, #tpu.memory_space<vmem>>, vector<128x16xbf16>
    tpu.vector_store %arg13[%c0_95, %c48], %63 {strides = array<i32>} : memref<128x144xbf16, #tpu.memory_space<vmem>>, vector<128x16xbf16>,
    %c0_96 = arith.constant 0 : index
    %c1_97 = arith.constant 1 : index
    %c1_98 = arith.constant 1 : index
    %c0_99 = arith.constant 0 : index
    %65 = vector.load %arg12[%c0_96, %c1_97, %c1_98, %c0_99] : memref<2x10x16x16xbf16, #tpu.memory_space<vmem>>, vector<2x8x8x16xbf16>
    %66 = vector.shape_cast %65 : vector<2x8x8x16xbf16> to vector<128x16xbf16>
    %c0_100 = arith.constant 0 : index
    %c64 = arith.constant 64 : index
    %67 = vector.load %arg13[%c0_100, %c64] : memref<128x144xbf16, #tpu.memory_space<vmem>>, vector<128x16xbf16>
    tpu.vector_store %arg13[%c0_100, %c64], %66 {strides = array<i32>} : memref<128x144xbf16, #tpu.memory_space<vmem>>, vector<128x16xbf16>,
    %c0_101 = arith.constant 0 : index
    %c1_102 = arith.constant 1 : index
    %c2_103 = arith.constant 2 : index
    %c0_104 = arith.constant 0 : index
    %68 = vector.load %arg12[%c0_101, %c1_102, %c2_103, %c0_104] : memref<2x10x16x16xbf16, #tpu.memory_space<vmem>>, vector<2x8x8x16xbf16>
    %69 = vector.shape_cast %68 : vector<2x8x8x16xbf16> to vector<128x16xbf16>
    %c0_105 = arith.constant 0 : index
    %c80 = arith.constant 80 : index
    %70 = vector.load %arg13[%c0_105, %c80] : memref<128x144xbf16, #tpu.memory_space<vmem>>, vector<128x16xbf16>
    tpu.vector_store %arg13[%c0_105, %c80], %69 {strides = array<i32>} : memref<128x144xbf16, #tpu.memory_space<vmem>>, vector<128x16xbf16>,
    %c0_106 = arith.constant 0 : index
    %c2_107 = arith.constant 2 : index
    %c0_108 = arith.constant 0 : index
    %c0_109 = arith.constant 0 : index
    %71 = vector.load %arg12[%c0_106, %c2_107, %c0_108, %c0_109] : memref<2x10x16x16xbf16, #tpu.memory_space<vmem>>, vector<2x8x8x16xbf16>
    %72 = vector.shape_cast %71 : vector<2x8x8x16xbf16> to vector<128x16xbf16>
    %c0_110 = arith.constant 0 : index
    %c96 = arith.constant 96 : index
    %73 = vector.load %arg13[%c0_110, %c96] : memref<128x144xbf16, #tpu.memory_space<vmem>>, vector<128x16xbf16>
    tpu.vector_store %arg13[%c0_110, %c96], %72 {strides = array<i32>} : memref<128x144xbf16, #tpu.memory_space<vmem>>, vector<128x16xbf16>,
    %c0_111 = arith.constant 0 : index
    %c2_112 = arith.constant 2 : index
    %c1_113 = arith.constant 1 : index
    %c0_114 = arith.constant 0 : index
    %74 = vector.load %arg12[%c0_111, %c2_112, %c1_113, %c0_114] : memref<2x10x16x16xbf16, #tpu.memory_space<vmem>>, vector<2x8x8x16xbf16>
    %75 = vector.shape_cast %74 : vector<2x8x8x16xbf16> to vector<128x16xbf16>
    %c0_115 = arith.constant 0 : index
    %c112 = arith.constant 112 : index
    %76 = vector.load %arg13[%c0_115, %c112] : memref<128x144xbf16, #tpu.memory_space<vmem>>, vector<128x16xbf16>
    tpu.vector_store %arg13[%c0_115, %c112], %75 {strides = array<i32>} : memref<128x144xbf16, #tpu.memory_space<vmem>>, vector<128x16xbf16>,
    %c0_116 = arith.constant 0 : index
    %c2_117 = arith.constant 2 : index
    %c2_118 = arith.constant 2 : index
    %c0_119 = arith.constant 0 : index
    %77 = vector.load %arg12[%c0_116, %c2_117, %c2_118, %c0_119] : memref<2x10x16x16xbf16, #tpu.memory_space<vmem>>, vector<2x8x8x16xbf16>
    %78 = vector.shape_cast %77 : vector<2x8x8x16xbf16> to vector<128x16xbf16>
    %c0_120 = arith.constant 0 : index
    %c128 = arith.constant 128 : index
    %79 = vector.load %arg13[%c0_120, %c128] : memref<128x144xbf16, #tpu.memory_space<vmem>>, vector<128x16xbf16>
    tpu.vector_store %arg13[%c0_120, %c128], %78 {strides = array<i32>} : memref<128x144xbf16, #tpu.memory_space<vmem>>, vector<128x16xbf16>,
    %c0_121 = arith.constant 0 : index
    %c0_122 = arith.constant 0 : index
    %80 = vector.load %arg13[%c0_121, %c0_122] : memref<128x144xbf16, #tpu.memory_space<vmem>>, vector<128x144xbf16>
    %c0_123 = arith.constant 0 : index
    %c0_124 = arith.constant 0 : index
    %81 = vector.load %arg4[%c0_123, %c0_124] : memref<144x32xbf16, #tpu.memory_space<vmem>>, vector<144x32xbf16>
    %cst_125 = arith.constant dense<0.000000e+00> : vector<128x32xf32>
    %82 = tpu.matmul %80, %81, %cst_125 {dimension_numbers = #tpu.dot_dimension_numbers<[1], [0], [0], [1], [0, 0, 1, 1], [], []>} : vector<128x144xbf16>, vector<144x32xbf16>, vector<128x32xf32> -> vector<128x32xf32>
    %c0_126 = arith.constant 0 : index
    %c0_127 = arith.constant 0 : index
    %83 = vector.load %arg5[%c0_126, %c0_127] : memref<1x32xf32, #tpu.memory_space<vmem>>, vector<1x32xf32>
    %84 = vector.broadcast %83 : vector<1x32xf32> to vector<128x32xf32>
    %85 = arith.addf %82, %84 : vector<128x32xf32>
    %cst_128 = arith.constant 0.000000e+00 : f32
    %86 = vector.broadcast %cst_128 : f32 to vector<128x32xf32>
    %87 = arith.maximumf %85, %86 : vector<128x32xf32>
    %88 = vector.shape_cast %87 : vector<128x32xf32> to vector<2x8x8x32xf32>
    %c0_129 = arith.constant 0 : index
    %c0_130 = arith.constant 0 : index
    %c0_131 = arith.constant 0 : index
    %c0_132 = arith.constant 0 : index
    %89 = vector.load %arg14[%c0_129, %c0_130, %c0_131, %c0_132] : memref<2x8x8x32xf32, #tpu.memory_space<vmem>>, vector<2x8x8x32xf32>
    tpu.vector_store %arg14[%c0_129, %c0_130, %c0_131, %c0_132], %88 {strides = array<i32>} : memref<2x8x8x32xf32, #tpu.memory_space<vmem>>, vector<2x8x8x32xf32>,
    %c0_133 = arith.constant 0 : index
    %c0_134 = arith.constant 0 : index
    %c0_135 = arith.constant 0 : index
    %c0_136 = arith.constant 0 : index
    %90 = tpu.strided_load %arg14[%c0_133, %c0_134, %c0_135, %c0_136] {strides = array<i32: 1, 1, 2, 1>} : memref<2x8x8x32xf32, #tpu.memory_space<vmem>>, vector<2x8x4x32xf32>
    %c0_137 = arith.constant 0 : index
    %c0_138 = arith.constant 0 : index
    %c1_139 = arith.constant 1 : index
    %c0_140 = arith.constant 0 : index
    %91 = tpu.strided_load %arg14[%c0_137, %c0_138, %c1_139, %c0_140] {strides = array<i32: 1, 1, 2, 1>} : memref<2x8x8x32xf32, #tpu.memory_space<vmem>>, vector<2x8x4x32xf32>
    %92 = arith.maximumf %90, %91 : vector<2x8x4x32xf32>
    %93 = vector.shape_cast %92 : vector<2x8x4x32xf32> to vector<2x4x2x4x32xf32>
    %94 = vector.extract_strided_slice %93 {offsets = [0, 0, 0, 0, 0], sizes = [2, 4, 1, 4, 32], strides = [1, 1, 1, 1, 1]} : vector<2x4x2x4x32xf32> to vector<2x4x1x4x32xf32>
    %95 = vector.shape_cast %94 : vector<2x4x1x4x32xf32> to vector<2x4x4x32xf32>
    %96 = vector.extract_strided_slice %93 {offsets = [0, 0, 1, 0, 0], sizes = [2, 4, 1, 4, 32], strides = [1, 1, 1, 1, 1]} : vector<2x4x2x4x32xf32> to vector<2x4x1x4x32xf32>
    %97 = vector.shape_cast %96 : vector<2x4x1x4x32xf32> to vector<2x4x4x32xf32>
    %98 = arith.maximumf %95, %97 : vector<2x4x4x32xf32>
    %99 = arith.truncf %98 : vector<2x4x4x32xf32> to vector<2x4x4x32xbf16>
    %100 = vector.extract_strided_slice %99 {offsets = [0, 0, 0, 0], sizes = [2, 1, 1, 32], strides = [1, 1, 1, 1]} : vector<2x4x4x32xbf16> to vector<2x1x1x32xbf16>
    %101 = vector.shape_cast %100 : vector<2x1x1x32xbf16> to vector<2x32xbf16>
    %c0_141 = arith.constant 0 : index
    %c0_142 = arith.constant 0 : index
    %102 = vector.load %arg15[%c0_141, %c0_142] : memref<2x512xbf16, #tpu.memory_space<vmem>>, vector<2x32xbf16>
    tpu.vector_store %arg15[%c0_141, %c0_142], %101 {strides = array<i32>} : memref<2x512xbf16, #tpu.memory_space<vmem>>, vector<2x32xbf16>,
    %103 = vector.extract_strided_slice %99 {offsets = [0, 0, 1, 0], sizes = [2, 1, 1, 32], strides = [1, 1, 1, 1]} : vector<2x4x4x32xbf16> to vector<2x1x1x32xbf16>
    %104 = vector.shape_cast %103 : vector<2x1x1x32xbf16> to vector<2x32xbf16>
    %c0_143 = arith.constant 0 : index
    %c32_144 = arith.constant 32 : index
    %105 = vector.load %arg15[%c0_143, %c32_144] : memref<2x512xbf16, #tpu.memory_space<vmem>>, vector<2x32xbf16>
    tpu.vector_store %arg15[%c0_143, %c32_144], %104 {strides = array<i32>} : memref<2x512xbf16, #tpu.memory_space<vmem>>, vector<2x32xbf16>,
    %106 = vector.extract_strided_slice %99 {offsets = [0, 0, 2, 0], sizes = [2, 1, 1, 32], strides = [1, 1, 1, 1]} : vector<2x4x4x32xbf16> to vector<2x1x1x32xbf16>
    %107 = vector.shape_cast %106 : vector<2x1x1x32xbf16> to vector<2x32xbf16>
    %c0_145 = arith.constant 0 : index
    %c64_146 = arith.constant 64 : index
    %108 = vector.load %arg15[%c0_145, %c64_146] : memref<2x512xbf16, #tpu.memory_space<vmem>>, vector<2x32xbf16>
    tpu.vector_store %arg15[%c0_145, %c64_146], %107 {strides = array<i32>} : memref<2x512xbf16, #tpu.memory_space<vmem>>, vector<2x32xbf16>,
    %109 = vector.extract_strided_slice %99 {offsets = [0, 0, 3, 0], sizes = [2, 1, 1, 32], strides = [1, 1, 1, 1]} : vector<2x4x4x32xbf16> to vector<2x1x1x32xbf16>
    %110 = vector.shape_cast %109 : vector<2x1x1x32xbf16> to vector<2x32xbf16>
    %c0_147 = arith.constant 0 : index
    %c96_148 = arith.constant 96 : index
    %111 = vector.load %arg15[%c0_147, %c96_148] : memref<2x512xbf16, #tpu.memory_space<vmem>>, vector<2x32xbf16>
    tpu.vector_store %arg15[%c0_147, %c96_148], %110 {strides = array<i32>} : memref<2x512xbf16, #tpu.memory_space<vmem>>, vector<2x32xbf16>,
    %112 = vector.extract_strided_slice %99 {offsets = [0, 1, 0, 0], sizes = [2, 1, 1, 32], strides = [1, 1, 1, 1]} : vector<2x4x4x32xbf16> to vector<2x1x1x32xbf16>
    %113 = vector.shape_cast %112 : vector<2x1x1x32xbf16> to vector<2x32xbf16>
    %c0_149 = arith.constant 0 : index
    %c128_150 = arith.constant 128 : index
    %114 = vector.load %arg15[%c0_149, %c128_150] : memref<2x512xbf16, #tpu.memory_space<vmem>>, vector<2x32xbf16>
    tpu.vector_store %arg15[%c0_149, %c128_150], %113 {strides = array<i32>} : memref<2x512xbf16, #tpu.memory_space<vmem>>, vector<2x32xbf16>,
    %115 = vector.extract_strided_slice %99 {offsets = [0, 1, 1, 0], sizes = [2, 1, 1, 32], strides = [1, 1, 1, 1]} : vector<2x4x4x32xbf16> to vector<2x1x1x32xbf16>
    %116 = vector.shape_cast %115 : vector<2x1x1x32xbf16> to vector<2x32xbf16>
    %c0_151 = arith.constant 0 : index
    %c160 = arith.constant 160 : index
    %117 = vector.load %arg15[%c0_151, %c160] : memref<2x512xbf16, #tpu.memory_space<vmem>>, vector<2x32xbf16>
    tpu.vector_store %arg15[%c0_151, %c160], %116 {strides = array<i32>} : memref<2x512xbf16, #tpu.memory_space<vmem>>, vector<2x32xbf16>,
    %118 = vector.extract_strided_slice %99 {offsets = [0, 1, 2, 0], sizes = [2, 1, 1, 32], strides = [1, 1, 1, 1]} : vector<2x4x4x32xbf16> to vector<2x1x1x32xbf16>
    %119 = vector.shape_cast %118 : vector<2x1x1x32xbf16> to vector<2x32xbf16>
    %c0_152 = arith.constant 0 : index
    %c192 = arith.constant 192 : index
    %120 = vector.load %arg15[%c0_152, %c192] : memref<2x512xbf16, #tpu.memory_space<vmem>>, vector<2x32xbf16>
    tpu.vector_store %arg15[%c0_152, %c192], %119 {strides = array<i32>} : memref<2x512xbf16, #tpu.memory_space<vmem>>, vector<2x32xbf16>,
    %121 = vector.extract_strided_slice %99 {offsets = [0, 1, 3, 0], sizes = [2, 1, 1, 32], strides = [1, 1, 1, 1]} : vector<2x4x4x32xbf16> to vector<2x1x1x32xbf16>
    %122 = vector.shape_cast %121 : vector<2x1x1x32xbf16> to vector<2x32xbf16>
    %c0_153 = arith.constant 0 : index
    %c224 = arith.constant 224 : index
    %123 = vector.load %arg15[%c0_153, %c224] : memref<2x512xbf16, #tpu.memory_space<vmem>>, vector<2x32xbf16>
    tpu.vector_store %arg15[%c0_153, %c224], %122 {strides = array<i32>} : memref<2x512xbf16, #tpu.memory_space<vmem>>, vector<2x32xbf16>,
    %124 = vector.extract_strided_slice %99 {offsets = [0, 2, 0, 0], sizes = [2, 1, 1, 32], strides = [1, 1, 1, 1]} : vector<2x4x4x32xbf16> to vector<2x1x1x32xbf16>
    %125 = vector.shape_cast %124 : vector<2x1x1x32xbf16> to vector<2x32xbf16>
    %c0_154 = arith.constant 0 : index
    %c256 = arith.constant 256 : index
    %126 = vector.load %arg15[%c0_154, %c256] : memref<2x512xbf16, #tpu.memory_space<vmem>>, vector<2x32xbf16>
    tpu.vector_store %arg15[%c0_154, %c256], %125 {strides = array<i32>} : memref<2x512xbf16, #tpu.memory_space<vmem>>, vector<2x32xbf16>,
    %127 = vector.extract_strided_slice %99 {offsets = [0, 2, 1, 0], sizes = [2, 1, 1, 32], strides = [1, 1, 1, 1]} : vector<2x4x4x32xbf16> to vector<2x1x1x32xbf16>
    %128 = vector.shape_cast %127 : vector<2x1x1x32xbf16> to vector<2x32xbf16>
    %c0_155 = arith.constant 0 : index
    %c288 = arith.constant 288 : index
    %129 = vector.load %arg15[%c0_155, %c288] : memref<2x512xbf16, #tpu.memory_space<vmem>>, vector<2x32xbf16>
    tpu.vector_store %arg15[%c0_155, %c288], %128 {strides = array<i32>} : memref<2x512xbf16, #tpu.memory_space<vmem>>, vector<2x32xbf16>,
    %130 = vector.extract_strided_slice %99 {offsets = [0, 2, 2, 0], sizes = [2, 1, 1, 32], strides = [1, 1, 1, 1]} : vector<2x4x4x32xbf16> to vector<2x1x1x32xbf16>
    %131 = vector.shape_cast %130 : vector<2x1x1x32xbf16> to vector<2x32xbf16>
    %c0_156 = arith.constant 0 : index
    %c320 = arith.constant 320 : index
    %132 = vector.load %arg15[%c0_156, %c320] : memref<2x512xbf16, #tpu.memory_space<vmem>>, vector<2x32xbf16>
    tpu.vector_store %arg15[%c0_156, %c320], %131 {strides = array<i32>} : memref<2x512xbf16, #tpu.memory_space<vmem>>, vector<2x32xbf16>,
    %133 = vector.extract_strided_slice %99 {offsets = [0, 2, 3, 0], sizes = [2, 1, 1, 32], strides = [1, 1, 1, 1]} : vector<2x4x4x32xbf16> to vector<2x1x1x32xbf16>
    %134 = vector.shape_cast %133 : vector<2x1x1x32xbf16> to vector<2x32xbf16>
    %c0_157 = arith.constant 0 : index
    %c352 = arith.constant 352 : index
    %135 = vector.load %arg15[%c0_157, %c352] : memref<2x512xbf16, #tpu.memory_space<vmem>>, vector<2x32xbf16>
    tpu.vector_store %arg15[%c0_157, %c352], %134 {strides = array<i32>} : memref<2x512xbf16, #tpu.memory_space<vmem>>, vector<2x32xbf16>,
    %136 = vector.extract_strided_slice %99 {offsets = [0, 3, 0, 0], sizes = [2, 1, 1, 32], strides = [1, 1, 1, 1]} : vector<2x4x4x32xbf16> to vector<2x1x1x32xbf16>
    %137 = vector.shape_cast %136 : vector<2x1x1x32xbf16> to vector<2x32xbf16>
    %c0_158 = arith.constant 0 : index
    %c384 = arith.constant 384 : index
    %138 = vector.load %arg15[%c0_158, %c384] : memref<2x512xbf16, #tpu.memory_space<vmem>>, vector<2x32xbf16>
    tpu.vector_store %arg15[%c0_158, %c384], %137 {strides = array<i32>} : memref<2x512xbf16, #tpu.memory_space<vmem>>, vector<2x32xbf16>,
    %139 = vector.extract_strided_slice %99 {offsets = [0, 3, 1, 0], sizes = [2, 1, 1, 32], strides = [1, 1, 1, 1]} : vector<2x4x4x32xbf16> to vector<2x1x1x32xbf16>
    %140 = vector.shape_cast %139 : vector<2x1x1x32xbf16> to vector<2x32xbf16>
    %c0_159 = arith.constant 0 : index
    %c416 = arith.constant 416 : index
    %141 = vector.load %arg15[%c0_159, %c416] : memref<2x512xbf16, #tpu.memory_space<vmem>>, vector<2x32xbf16>
    tpu.vector_store %arg15[%c0_159, %c416], %140 {strides = array<i32>} : memref<2x512xbf16, #tpu.memory_space<vmem>>, vector<2x32xbf16>,
    %142 = vector.extract_strided_slice %99 {offsets = [0, 3, 2, 0], sizes = [2, 1, 1, 32], strides = [1, 1, 1, 1]} : vector<2x4x4x32xbf16> to vector<2x1x1x32xbf16>
    %143 = vector.shape_cast %142 : vector<2x1x1x32xbf16> to vector<2x32xbf16>
    %c0_160 = arith.constant 0 : index
    %c448 = arith.constant 448 : index
    %144 = vector.load %arg15[%c0_160, %c448] : memref<2x512xbf16, #tpu.memory_space<vmem>>, vector<2x32xbf16>
    tpu.vector_store %arg15[%c0_160, %c448], %143 {strides = array<i32>} : memref<2x512xbf16, #tpu.memory_space<vmem>>, vector<2x32xbf16>,
    %145 = vector.extract_strided_slice %99 {offsets = [0, 3, 3, 0], sizes = [2, 1, 1, 32], strides = [1, 1, 1, 1]} : vector<2x4x4x32xbf16> to vector<2x1x1x32xbf16>
    %146 = vector.shape_cast %145 : vector<2x1x1x32xbf16> to vector<2x32xbf16>
    %c0_161 = arith.constant 0 : index
    %c480 = arith.constant 480 : index
    %147 = vector.load %arg15[%c0_161, %c480] : memref<2x512xbf16, #tpu.memory_space<vmem>>, vector<2x32xbf16>
    tpu.vector_store %arg15[%c0_161, %c480], %146 {strides = array<i32>} : memref<2x512xbf16, #tpu.memory_space<vmem>>, vector<2x32xbf16>,
    %c0_162 = arith.constant 0 : index
    %c0_163 = arith.constant 0 : index
    %148 = vector.load %arg15[%c0_162, %c0_163] : memref<2x512xbf16, #tpu.memory_space<vmem>>, vector<2x512xbf16>
    %c0_164 = arith.constant 0 : index
    %c0_165 = arith.constant 0 : index
    %149 = vector.load %arg6[%c0_164, %c0_165] : memref<512x128xbf16, #tpu.memory_space<vmem>>, vector<512x128xbf16>
    %cst_166 = arith.constant dense<0.000000e+00> : vector<2x128xf32>
    %150 = tpu.matmul %148, %149, %cst_166 {dimension_numbers = #tpu.dot_dimension_numbers<[1], [0], [0], [1], [0, 0, 1, 1], [], []>} : vector<2x512xbf16>, vector<512x128xbf16>, vector<2x128xf32> -> vector<2x128xf32>
    %c0_167 = arith.constant 0 : index
    %c0_168 = arith.constant 0 : index
    %151 = vector.load %arg7[%c0_167, %c0_168] : memref<1x128xf32, #tpu.memory_space<vmem>>, vector<1x128xf32>
    %152 = vector.broadcast %151 : vector<1x128xf32> to vector<2x128xf32>
    %153 = arith.addf %150, %152 : vector<2x128xf32>
    %c0_169 = arith.constant 0 : index
    %c0_170 = arith.constant 0 : index
    %154 = vector.load %arg8[%c0_169, %c0_170] : memref<2x128xf32, #tpu.memory_space<vmem>>, vector<2x128xf32>
    tpu.vector_store %arg8[%c0_169, %c0_170], %153 {strides = array<i32>} : memref<2x128xf32, #tpu.memory_space<vmem>>, vector<2x128xf32>,
    return
  }
  func.func @transform_0(%arg0: i32) -> (i32, i32, i32, i32) {
    %c0_i32 = arith.constant 0 : i32
    %c0_i32_0 = arith.constant 0 : i32
    %c0_i32_1 = arith.constant 0 : i32
    %c0_i32_2 = arith.constant 0 : i32
    return %arg0, %c0_i32, %c0_i32_0, %c0_i32_1 : i32, i32, i32, i32
  }
  func.func @transform_1(%arg0: i32) -> (i32, i32) {
    %c0_i32 = arith.constant 0 : i32
    %c0_i32_0 = arith.constant 0 : i32
    %c0_i32_1 = arith.constant 0 : i32
    return %c0_i32, %c0_i32_0 : i32, i32
  }
  func.func @transform_2(%arg0: i32) -> (i32, i32) {
    %c0_i32 = arith.constant 0 : i32
    %c0_i32_0 = arith.constant 0 : i32
    %c0_i32_1 = arith.constant 0 : i32
    return %c0_i32, %c0_i32_0 : i32, i32
  }
  func.func @transform_3(%arg0: i32) -> (i32, i32) {
    %c0_i32 = arith.constant 0 : i32
    %c0_i32_0 = arith.constant 0 : i32
    %c0_i32_1 = arith.constant 0 : i32
    return %c0_i32, %c0_i32_0 : i32, i32
  }
  func.func @transform_4(%arg0: i32) -> (i32, i32) {
    %c0_i32 = arith.constant 0 : i32
    %c0_i32_0 = arith.constant 0 : i32
    %c0_i32_1 = arith.constant 0 : i32
    return %c0_i32, %c0_i32_0 : i32, i32
  }
  func.func @transform_5(%arg0: i32) -> (i32, i32) {
    %c0_i32 = arith.constant 0 : i32
    %c0_i32_0 = arith.constant 0 : i32
    %c0_i32_1 = arith.constant 0 : i32
    return %c0_i32, %c0_i32_0 : i32, i32
  }
  func.func @transform_6(%arg0: i32) -> (i32, i32) {
    %c0_i32 = arith.constant 0 : i32
    %c0_i32_0 = arith.constant 0 : i32
    %c0_i32_1 = arith.constant 0 : i32
    return %c0_i32, %c0_i32_0 : i32, i32
  }
  func.func @transform_7(%arg0: i32) -> (i32, i32) {
    %c0_i32 = arith.constant 0 : i32
    %c0_i32_0 = arith.constant 0 : i32
    return %arg0, %c0_i32 : i32, i32
  }
}

</mosaic_0001>

<llo_original>
// kernel: vgg_forward.1
$region0: #{vgg_forward.1}
  #allocation0 [shape = 'u32[]', space=smem, size = 0x4, offset = 0x4, fixed_abs, tag = 'smem constant byte address 0x4 - core index']
  #allocation1 [shape = 'u32[144,128]{1,0:T(1,128)}', space=vmem, size = 0x12000, scoped, tag = 'internal scratch']
  #allocation2 [shape = 'bf16[2,18,24,3]{3,2,1,0:T(8,128)(2,1)}', space=vmem, size = 0x36000, scoped, tag = 'scratch operand']
  #allocation3 [shape = 'bf16[512,27]{1,0:T(16,128)(2,1)}', space=vmem, size = 0x20000, scoped, tag = 'scratch operand']
  #allocation4 [shape = 'f32[2,16,16,16]{3,2,1,0:T(8,128)}', space=vmem, size = 0x40000, scoped, tag = 'scratch operand']
  #allocation5 [shape = 'bf16[2,10,16,16]{3,2,1,0:T(16,128)(2,1)}', space=vmem, size = 0x14000, scoped, tag = 'scratch operand']
  #allocation6 [shape = 'bf16[128,144]{1,0:T(16,128)(2,1)}', space=vmem, size = 0x10000, scoped, tag = 'scratch operand']
  #allocation7 [shape = 'f32[2,8,8,32]{3,2,1,0:T(8,128)}', space=vmem, size = 0x10000, scoped, tag = 'scratch operand']
  #allocation8 [shape = 'bf16[2,512]{1,0:T(2,128)(2,1)}', space=vmem, size = 0x800, scoped, tag = 'scratch operand']
  %s0 = inlined_call_operand.vmem [shape: bf16[2,16,16,3], index: 0, kind: input, shape index: {}]
  %s1 = inlined_call_operand.vmem [shape: bf16[27,16], index: 1, kind: input, shape index: {}]
  %s2 = inlined_call_operand.vmem [shape: f32[1,16], index: 2, kind: input, shape index: {}]
  %s3 = inlined_call_operand.vmem [shape: bf16[144,32], index: 3, kind: input, shape index: {}]
  %s4 = inlined_call_operand.vmem [shape: f32[1,32], index: 4, kind: input, shape index: {}]
  %s5 = inlined_call_operand.vmem [shape: bf16[512,128], index: 5, kind: input, shape index: {}]
  %s6 = inlined_call_operand.vmem [shape: f32[1,128], index: 6, kind: input, shape index: {}]
  %s7 = inlined_call_operand.hbm [shape: f32[2,128], index: 7, kind: output, shape index: {}]
  %s8 = sld [smem:[#allocation0]]
  $region42: #{vgg_forward.1} parent=0
    _
  %s10 = ssub.s32 1, %s8
  %s11 = scalar_select 0, %s10, %s8
  $region1: #{vgg_forward.1} parent=0
    #allocation9 [shape = 'u8[1024]{0}', space=vmem, size = 0x400, scoped, tag = 'output window, operand 0, single buffered']
    #allocation10 [shape = 's32[1]{0}', space=sflag, size = 0x4, scoped, tag = 'scoped memory for vgg_forward.1']
    %12 = vsyncpa [#allocation10], 0
    // Predicated region
    $region2: #{vgg_forward.1} parent=1 // pred_check
      _
    $region3: #{vgg_forward.1} parent=1 // pred_check_branch
      %14 = sbr.rel (0) target = $region5
    $region4: #{vgg_forward.1} parent=1 // pred_region
      _
    $region5: #{vgg_forward.1} parent=1 // pred_fallthru
      _
    // Predicated region
    $region6: #{vgg_forward.1} parent=1 // pred_check
      _
    $region7: #{vgg_forward.1} parent=1 // pred_check_branch
      %16 = sbr.rel (0) target = $region9
    $region8: #{vgg_forward.1} parent=1 // pred_region
      _
    $region9: #{vgg_forward.1} parent=1 // pred_fallthru
      _
    // Predicated region
    $region10: #{vgg_forward.1} parent=1 // pred_check
      _
    $region11: #{vgg_forward.1} parent=1 // pred_check_branch
      %18 = sbr.rel (0) target = $region13
    $region12: #{vgg_forward.1} parent=1 // pred_region
      _
    $region13: #{vgg_forward.1} parent=1 // pred_fallthru
      _
    // Predicated region
    $region14: #{vgg_forward.1} parent=1 // pred_check
      _
    $region15: #{vgg_forward.1} parent=1 // pred_check_branch
      %20 = sbr.rel (0) target = $region17
    $region16: #{vgg_forward.1} parent=1 // pred_region
      _
    $region17: #{vgg_forward.1} parent=1 // pred_fallthru
      _
    // Predicated region
    $region18: #{vgg_forward.1} parent=1 // pred_check
      _
    $region19: #{vgg_forward.1} parent=1 // pred_check_branch
      %22 = sbr.rel (0) target = $region21
    $region20: #{vgg_forward.1} parent=1 // pred_region
      _
    $region21: #{vgg_forward.1} parent=1 // pred_fallthru
      _
    // Predicated region
    $region22: #{vgg_forward.1} parent=1 // pred_check
      _
    $region23: #{vgg_forward.1} parent=1 // pred_check_branch
      %24 = sbr.rel (0) target = $region25
    $region24: #{vgg_forward.1} parent=1 // pred_region
      _
    $region25: #{vgg_forward.1} parent=1 // pred_fallthru
      _
    // Predicated region
    $region26: #{vgg_forward.1} parent=1 // pred_check
      _
    $region27: #{vgg_forward.1} parent=1 // pred_check_branch
      %26 = sbr.rel (0) target = $region29
    $region28: #{vgg_forward.1} parent=1 // pred_region
      _
    $region29: #{vgg_forward.1} parent=1 // pred_fallthru
      _
    %p28 = scmp.eq.s32.totalorder 0, 0
    // Predicated region
    $region30: #{vgg_forward.1} parent=1 // pred_check
      %p29 = pneg %p28
    $region31: #{vgg_forward.1} parent=1 // pred_check_branch
      %31 = sbr.rel (%p29) target = $region33
    $region32: #{vgg_forward.1} parent=1 // pred_region
      %vm32 = vcmask 19456
      %33 = vst.msk [vmem:[#allocation2] sm:$0xf] %vm32, 0
      %34 = vst.msk [vmem:[#allocation2 + $0x4] sm:$0xf] %vm32, 0
      %35 = vst.msk [vmem:[#allocation2 + $0x8] sm:$0xf] %vm32, 0
      %36 = vst.msk [vmem:[#allocation2 + $0xc] sm:$0xf] %vm32, 0
      %37 = vst.msk [vmem:[#allocation2 + $0x10] sm:$0xf] %vm32, 0
      %38 = vst.msk [vmem:[#allocation2 + $0x14] sm:$0xf] %vm32, 0
      %39 = vst.msk [vmem:[#allocation2 + $0x18] sm:$0xf] %vm32, 0
      %40 = vst.msk [vmem:[#allocation2 + $0x1c] sm:$0xf] %vm32, 0
      %41 = vst.msk [vmem:[#allocation2 + $0x20] sm:$0xf] %vm32, 0
      %42 = vst.msk [vmem:[#allocation2 + $0x24] sm:$0xf] %vm32, 0
      %43 = vst.msk [vmem:[#allocation2 + $0x28] sm:$0xf] %vm32, 0
      %44 = vst.msk [vmem:[#allocation2 + $0x2c] sm:$0xf] %vm32, 0
      %45 = vst.msk [vmem:[#allocation2 + $0x30] sm:$0xf] %vm32, 0
      %46 = vst.msk [vmem:[#allocation2 + $0x34] sm:$0xf] %vm32, 0
      %47 = vst.msk [vmem:[#allocation2 + $0x38] sm:$0xf] %vm32, 0
      %48 = vst.msk [vmem:[#allocation2 + $0x3c] sm:$0xf] %vm32, 0
      %49 = vst.msk [vmem:[#allocation2 + $0x40] sm:$0xf] %vm32, 0
      %50 = vst.msk [vmem:[#allocation2 + $0x44] sm:$0xf] %vm32, 0
      %51 = vst.msk [vmem:[#allocation2 + $0x48] sm:$0xf] %vm32, 0
      %52 = vst.msk [vmem:[#allocation2 + $0x4c] sm:$0xf] %vm32, 0
      %53 = vst.msk [vmem:[#allocation2 + $0x50] sm:$0xf] %vm32, 0
      %54 = vst.msk [vmem:[#allocation2 + $0x54] sm:$0xf] %vm32, 0
      %55 = vst.msk [vmem:[#allocation2 + $0x58] sm:$0xf] %vm32, 0
      %56 = vst.msk [vmem:[#allocation2 + $0x5c] sm:$0xf] %vm32, 0
      %57 = vst.msk [vmem:[#allocation2 + $0x60] sm:$0xf] %vm32, 0
      %58 = vst.msk [vmem:[#allocation2 + $0x64] sm:$0xf] %vm32, 0
      %59 = vst.msk [vmem:[#allocation2 + $0x68] sm:$0xf] %vm32, 0
      %60 = vst.msk [vmem:[#allocation2 + $0x6c] sm:$0xf] %vm32, 0
      %61 = vst.msk [vmem:[#allocation2 + $0x70] sm:$0xf] %vm32, 0
      %62 = vst.msk [vmem:[#allocation2 + $0x74] sm:$0xf] %vm32, 0
      %63 = vst.msk [vmem:[#allocation2 + $0x78] sm:$0xf] %vm32, 0
      %64 = vst.msk [vmem:[#allocation2 + $0x7c] sm:$0xf] %vm32, 0
      %65 = vst.msk [vmem:[#allocation2 + $0x80] sm:$0xf] %vm32, 0
      %66 = vst.msk [vmem:[#allocation2 + $0x84] sm:$0xf] %vm32, 0
      %67 = vst.msk [vmem:[#allocation2 + $0x88] sm:$0xf] %vm32, 0
      %68 = vst.msk [vmem:[#allocation2 + $0x8c] sm:$0xf] %vm32, 0
      %69 = vst.msk [vmem:[#allocation2 + $0x90] sm:$0xf] %vm32, 0
      %70 = vst.msk [vmem:[#allocation2 + $0x94] sm:$0xf] %vm32, 0
      %71 = vst.msk [vmem:[#allocation2 + $0x98] sm:$0xf] %vm32, 0
      %72 = vst.msk [vmem:[#allocation2 + $0x9c] sm:$0xf] %vm32, 0
      %73 = vst.msk [vmem:[#allocation2 + $0xa0] sm:$0xf] %vm32, 0
      %74 = vst.msk [vmem:[#allocation2 + $0xa4] sm:$0xf] %vm32, 0
      %75 = vst.msk [vmem:[#allocation2 + $0xa8] sm:$0xf] %vm32, 0
      %76 = vst.msk [vmem:[#allocation2 + $0xac] sm:$0xf] %vm32, 0
      %77 = vst.msk [vmem:[#allocation2 + $0xb0] sm:$0xf] %vm32, 0
      %78 = vst.msk [vmem:[#allocation2 + $0xb4] sm:$0xf] %vm32, 0
      %79 = vst.msk [vmem:[#allocation2 + $0xb8] sm:$0xf] %vm32, 0
      %80 = vst.msk [vmem:[#allocation2 + $0xbc] sm:$0xf] %vm32, 0
      %81 = vst.msk [vmem:[#allocation2 + $0xc0] sm:$0xf] %vm32, 0
      %82 = vst.msk [vmem:[#allocation2 + $0xc4] sm:$0xf] %vm32, 0
      %83 = vst.msk [vmem:[#allocation2 + $0xc8] sm:$0xf] %vm32, 0
      %84 = vst.msk [vmem:[#allocation2 + $0xcc] sm:$0xf] %vm32, 0
      %85 = vst.msk [vmem:[#allocation2 + $0xd0] sm:$0xf] %vm32, 0
      %86 = vst.msk [vmem:[#allocation2 + $0xd4] sm:$0xf] %vm32, 0
      %87 = vst.msk [vmem:[#allocation2 + $0xd8] sm:$0xf] %vm32, 0
      %88 = vst.msk [vmem:[#allocation2 + $0xdc] sm:$0xf] %vm32, 0
      %89 = vst.msk [vmem:[#allocation2 + $0xe0] sm:$0xf] %vm32, 0
      %90 = vst.msk [vmem:[#allocation2 + $0xe4] sm:$0xf] %vm32, 0
      %91 = vst.msk [vmem:[#allocation2 + $0xe8] sm:$0xf] %vm32, 0
      %92 = vst.msk [vmem:[#allocation2 + $0xec] sm:$0xf] %vm32, 0
      %93 = vst.msk [vmem:[#allocation2 + $0xf0] sm:$0xf] %vm32, 0
      %94 = vst.msk [vmem:[#allocation2 + $0xf4] sm:$0xf] %vm32, 0
      %95 = vst.msk [vmem:[#allocation2 + $0xf8] sm:$0xf] %vm32, 0
      %96 = vst.msk [vmem:[#allocation2 + $0xfc] sm:$0xf] %vm32, 0
      %97 = vst.msk [vmem:[#allocation2 + $0x100] sm:$0xf] %vm32, 0
      %98 = vst.msk [vmem:[#allocation2 + $0x104] sm:$0xf] %vm32, 0
      %99 = vst.msk [vmem:[#allocation2 + $0x108] sm:$0xf] %vm32, 0
      %100 = vst.msk [vmem:[#allocation2 + $0x10c] sm:$0xf] %vm32, 0
      %101 = vst.msk [vmem:[#allocation2 + $0x110] sm:$0xf] %vm32, 0
      %102 = vst.msk [vmem:[#allocation2 + $0x114] sm:$0xf] %vm32, 0
      %103 = vst.msk [vmem:[#allocation2 + $0x118] sm:$0xf] %vm32, 0
      %104 = vst.msk [vmem:[#allocation2 + $0x11c] sm:$0xf] %vm32, 0
      %105 = vst.msk [vmem:[#allocation2 + $0x120] sm:$0xf] %vm32, 0
      %106 = vst.msk [vmem:[#allocation2 + $0x124] sm:$0xf] %vm32, 0
      %107 = vst.msk [vmem:[#allocation2 + $0x128] sm:$0xf] %vm32, 0
      %108 = vst.msk [vmem:[#allocation2 + $0x12c] sm:$0xf] %vm32, 0
      %109 = vst.msk [vmem:[#allocation2 + $0x130] sm:$0xf] %vm32, 0
      %110 = vst.msk [vmem:[#allocation2 + $0x134] sm:$0xf] %vm32, 0
      %111 = vst.msk [vmem:[#allocation2 + $0x138] sm:$0xf] %vm32, 0
      %112 = vst.msk [vmem:[#allocation2 + $0x13c] sm:$0xf] %vm32, 0
      %113 = vst.msk [vmem:[#allocation2 + $0x140] sm:$0xf] %vm32, 0
      %114 = vst.msk [vmem:[#allocation2 + $0x144] sm:$0xf] %vm32, 0
      %115 = vst.msk [vmem:[#allocation2 + $0x148] sm:$0xf] %vm32, 0
      %116 = vst.msk [vmem:[#allocation2 + $0x14c] sm:$0xf] %vm32, 0
      %117 = vst.msk [vmem:[#allocation2 + $0x150] sm:$0xf] %vm32, 0
      %118 = vst.msk [vmem:[#allocation2 + $0x154] sm:$0xf] %vm32, 0
      %119 = vst.msk [vmem:[#allocation2 + $0x158] sm:$0xf] %vm32, 0
      %120 = vst.msk [vmem:[#allocation2 + $0x15c] sm:$0xf] %vm32, 0
      %121 = vst.msk [vmem:[#allocation2 + $0x160] sm:$0xf] %vm32, 0
      %122 = vst.msk [vmem:[#allocation2 + $0x164] sm:$0xf] %vm32, 0
      %123 = vst.msk [vmem:[#allocation2 + $0x168] sm:$0xf] %vm32, 0
      %124 = vst.msk [vmem:[#allocation2 + $0x16c] sm:$0xf] %vm32, 0
      %125 = vst.msk [vmem:[#allocation2 + $0x170] sm:$0xf] %vm32, 0
      %126 = vst.msk [vmem:[#allocation2 + $0x174] sm:$0xf] %vm32, 0
      %127 = vst.msk [vmem:[#allocation2 + $0x178] sm:$0xf] %vm32, 0
      %128 = vst.msk [vmem:[#allocation2 + $0x17c] sm:$0xf] %vm32, 0
      %129 = vst.msk [vmem:[#allocation2 + $0x180] sm:$0xf] %vm32, 0
      %130 = vst.msk [vmem:[#allocation2 + $0x184] sm:$0xf] %vm32, 0
      %131 = vst.msk [vmem:[#allocation2 + $0x188] sm:$0xf] %vm32, 0
      %132 = vst.msk [vmem:[#allocation2 + $0x18c] sm:$0xf] %vm32, 0
      %133 = vst.msk [vmem:[#allocation2 + $0x190] sm:$0xf] %vm32, 0
      %134 = vst.msk [vmem:[#allocation2 + $0x194] sm:$0xf] %vm32, 0
      %135 = vst.msk [vmem:[#allocation2 + $0x198] sm:$0xf] %vm32, 0
      %136 = vst.msk [vmem:[#allocation2 + $0x19c] sm:$0xf] %vm32, 0
      %137 = vst.msk [vmem:[#allocation2 + $0x1a0] sm:$0xf] %vm32, 0
      %138 = vst.msk [vmem:[#allocation2 + $0x1a4] sm:$0xf] %vm32, 0
      %139 = vst.msk [vmem:[#allocation2 + $0x1a8] sm:$0xf] %vm32, 0
      %140 = vst.msk [vmem:[#allocation2 + $0x1ac] sm:$0xf] %vm32, 0
      %vm141 = vcmask 130048
      %142 = vst.msk [vmem:[#allocation5] sm:$0xff] %vm141, 0
      %143 = vst.msk [vmem:[#allocation5 + $0x8] sm:$0xff] %vm141, 0
      %144 = vst.msk [vmem:[#allocation5 + $0x10] sm:$0xff] %vm141, 0
      %145 = vst.msk [vmem:[#allocation5 + $0x18] sm:$0xff] %vm141, 0
      %146 = vst.msk [vmem:[#allocation5 + $0x20] sm:$0xff] %vm141, 0
      %147 = vst.msk [vmem:[#allocation5 + $0x28] sm:$0xff] %vm141, 0
      %148 = vst.msk [vmem:[#allocation5 + $0x30] sm:$0xff] %vm141, 0
      %149 = vst.msk [vmem:[#allocation5 + $0x38] sm:$0xff] %vm141, 0
      %150 = vst.msk [vmem:[#allocation5 + $0x40] sm:$0xff] %vm141, 0
      %151 = vst.msk [vmem:[#allocation5 + $0x48] sm:$0xff] %vm141, 0
      %152 = vst.msk [vmem:[#allocation5 + $0x50] sm:$0xff] %vm141, 0
      %153 = vst.msk [vmem:[#allocation5 + $0x58] sm:$0xff] %vm141, 0
      %154 = vst.msk [vmem:[#allocation5 + $0x60] sm:$0xff] %vm141, 0
      %155 = vst.msk [vmem:[#allocation5 + $0x68] sm:$0xff] %vm141, 0
      %156 = vst.msk [vmem:[#allocation5 + $0x70] sm:$0xff] %vm141, 0
      %157 = vst.msk [vmem:[#allocation5 + $0x78] sm:$0xff] %vm141, 0
      %158 = vst.msk [vmem:[#allocation5 + $0x80] sm:$0xff] %vm141, 0
      %159 = vst.msk [vmem:[#allocation5 + $0x88] sm:$0xff] %vm141, 0
      %160 = vst.msk [vmem:[#allocation5 + $0x90] sm:$0xff] %vm141, 0
      %161 = vst.msk [vmem:[#allocation5 + $0x98] sm:$0xff] %vm141, 0
    $region33: #{vgg_forward.1} parent=1 // pred_fallthru
      _
    %v162 = vld [vmem:[%s0] sm:$0xf]
    %v163 = vld [vmem:[%s0 + $0x4] sm:$0xf]
    %v164 = vld [vmem:[%s0 + $0x8] sm:$0xf]
    %v165 = vld [vmem:[%s0 + $0xc] sm:$0xf]
    %v166 = vld [vmem:[%s0 + $0x10] sm:$0xf]
    %v167 = vld [vmem:[%s0 + $0x14] sm:$0xf]
    %v168 = vld [vmem:[%s0 + $0x18] sm:$0xf]
    %v169 = vld [vmem:[%s0 + $0x1c] sm:$0xf]
    %v170 = vld [vmem:[%s0 + $0x20] sm:$0xf]
    %v171 = vld [vmem:[%s0 + $0x24] sm:$0xf]
    %v172 = vld [vmem:[%s0 + $0x28] sm:$0xf]
    %v173 = vld [vmem:[%s0 + $0x2c] sm:$0xf]
    %v174 = vld [vmem:[%s0 + $0x30] sm:$0xf]
    %v175 = vld [vmem:[%s0 + $0x34] sm:$0xf]
    %v176 = vld [vmem:[%s0 + $0x38] sm:$0xf]
    %v177 = vld [vmem:[%s0 + $0x3c] sm:$0xf]
    %v178 = vld [vmem:[%s0 + $0x40] sm:$0xf]
    %v179 = vld [vmem:[%s0 + $0x44] sm:$0xf]
    %v180 = vld [vmem:[%s0 + $0x48] sm:$0xf]
    %v181 = vld [vmem:[%s0 + $0x4c] sm:$0xf]
    %v182 = vld [vmem:[%s0 + $0x50] sm:$0xf]
    %v183 = vld [vmem:[%s0 + $0x54] sm:$0xf]
    %v184 = vld [vmem:[%s0 + $0x58] sm:$0xf]
    %v185 = vld [vmem:[%s0 + $0x5c] sm:$0xf]
    %v186 = vld [vmem:[%s0 + $0x60] sm:$0xf]
    %v187 = vld [vmem:[%s0 + $0x64] sm:$0xf]
    %v188 = vld [vmem:[%s0 + $0x68] sm:$0xf]
    %v189 = vld [vmem:[%s0 + $0x6c] sm:$0xf]
    %v190 = vld [vmem:[%s0 + $0x70] sm:$0xf]
    %v191 = vld [vmem:[%s0 + $0x74] sm:$0xf]
    %v192 = vld [vmem:[%s0 + $0x78] sm:$0xf]
    %v193 = vld [vmem:[%s0 + $0x7c] sm:$0xf]
    %v194 = vld [vmem:[%s0 + $0x80] sm:$0xf]
    %v195 = vld [vmem:[%s0 + $0x84] sm:$0xf]
    %v196 = vld [vmem:[%s0 + $0x88] sm:$0xf]
    %v197 = vld [vmem:[%s0 + $0x8c] sm:$0xf]
    %v198 = vld [vmem:[%s0 + $0x90] sm:$0xf]
    %v199 = vld [vmem:[%s0 + $0x94] sm:$0xf]
    %v200 = vld [vmem:[%s0 + $0x98] sm:$0xf]
    %v201 = vld [vmem:[%s0 + $0x9c] sm:$0xf]
    %v202 = vld [vmem:[%s0 + $0xa0] sm:$0xf]
    %v203 = vld [vmem:[%s0 + $0xa4] sm:$0xf]
    %v204 = vld [vmem:[%s0 + $0xa8] sm:$0xf]
    %v205 = vld [vmem:[%s0 + $0xac] sm:$0xf]
    %v206 = vld [vmem:[%s0 + $0xb0] sm:$0xf]
    %v207 = vld [vmem:[%s0 + $0xb4] sm:$0xf]
    %v208 = vld [vmem:[%s0 + $0xb8] sm:$0xf]
    %v209 = vld [vmem:[%s0 + $0xbc] sm:$0xf]
    %v210 = vld [vmem:[%s0 + $0xc0] sm:$0xf]
    %v211 = vld [vmem:[%s0 + $0xc4] sm:$0xf]
    %v212 = vld [vmem:[%s0 + $0xc8] sm:$0xf]
    %v213 = vld [vmem:[%s0 + $0xcc] sm:$0xf]
    %v214 = vld [vmem:[%s0 + $0xd0] sm:$0xf]
    %v215 = vld [vmem:[%s0 + $0xd4] sm:$0xf]
    %v216 = vld [vmem:[%s0 + $0xd8] sm:$0xf]
    %v217 = vld [vmem:[%s0 + $0xdc] sm:$0xf]
    %v218 = vld [vmem:[%s0 + $0xe0] sm:$0xf]
    %v219 = vld [vmem:[%s0 + $0xe4] sm:$0xf]
    %v220 = vld [vmem:[%s0 + $0xe8] sm:$0xf]
    %v221 = vld [vmem:[%s0 + $0xec] sm:$0xf]
    %v222 = vld [vmem:[%s0 + $0xf0] sm:$0xf]
    %v223 = vld [vmem:[%s0 + $0xf4] sm:$0xf]
    %v224 = vld [vmem:[%s0 + $0xf8] sm:$0xf]
    %v225 = vld [vmem:[%s0 + $0xfc] sm:$0xf]
    %vm226 = vsmask.f32 256
    %vm227 = vsmask.f32 4368
    %vm228 = vmor %vm226, %vm227
    %v230 = vshrl.u32 %v162, 16
    %v232 = vrot.slane %v230, 7
    %v233 = vshll.u32 %v162, 16
    %v235 = vor.u32 %v232, %v233
    %v236 = vrot.slane %v232, 4
    %v238 = vshrl.u32 %v163, 16
    %v240 = vrot.slane %v238, 7
    %v241 = vshll.u32 %v163, 16
    %v243 = vor.u32 %v240, %v241
    %v244 = vsel %vm228, %v236, %v243
    %v245 = vrot.slane %v240, 4
    %v247 = vshrl.u32 %v164, 16
    %v249 = vrot.slane %v247, 7
    %v250 = vshll.u32 %v164, 16
    %v252 = vor.u32 %v249, %v250
    %v253 = vrot.slane %v249, 4
    %v255 = vshrl.u32 %v165, 16
    %v257 = vrot.slane %v255, 7
    %v258 = vshll.u32 %v165, 16
    %v260 = vor.u32 %v257, %v258
    %v261 = vsel %vm228, %v253, %v260
    %v262 = vrot.slane %v257, 4
    %v264 = vshrl.u32 %v166, 16
    %v266 = vrot.slane %v264, 7
    %v267 = vshll.u32 %v166, 16
    %v269 = vor.u32 %v266, %v267
    %v270 = vrot.slane %v266, 4
    %v272 = vshrl.u32 %v167, 16
    %v274 = vrot.slane %v272, 7
    %v275 = vshll.u32 %v167, 16
    %v277 = vor.u32 %v274, %v275
    %v278 = vsel %vm228, %v270, %v277
    %v279 = vrot.slane %v274, 4
    %v281 = vshrl.u32 %v168, 16
    %v283 = vrot.slane %v281, 7
    %v284 = vshll.u32 %v168, 16
    %v286 = vor.u32 %v283, %v284
    %v287 = vrot.slane %v283, 4
    %v289 = vshrl.u32 %v169, 16
    %v291 = vrot.slane %v289, 7
    %v292 = vshll.u32 %v169, 16
    %v294 = vor.u32 %v291, %v292
    %v295 = vsel %vm228, %v287, %v294
    %v296 = vrot.slane %v291, 4
    %v298 = vshrl.u32 %v170, 16
    %v300 = vrot.slane %v298, 7
    %v301 = vshll.u32 %v170, 16
    %v303 = vor.u32 %v300, %v301
    %v304 = vrot.slane %v300, 4
    %v306 = vshrl.u32 %v171, 16
    %v308 = vrot.slane %v306, 7
    %v309 = vshll.u32 %v171, 16
    %v311 = vor.u32 %v308, %v309
    %v312 = vsel %vm228, %v304, %v311
    %v313 = vrot.slane %v308, 4
    %v315 = vshrl.u32 %v172, 16
    %v317 = vrot.slane %v315, 7
    %v318 = vshll.u32 %v172, 16
    %v320 = vor.u32 %v317, %v318
    %v321 = vrot.slane %v317, 4
    %v323 = vshrl.u32 %v173, 16
    %v325 = vrot.slane %v323, 7
    %v326 = vshll.u32 %v173, 16
    %v328 = vor.u32 %v325, %v326
    %v329 = vsel %vm228, %v321, %v328
    %v330 = vrot.slane %v325, 4
    %v332 = vshrl.u32 %v174, 16
    %v334 = vrot.slane %v332, 7
    %v335 = vshll.u32 %v174, 16
    %v337 = vor.u32 %v334, %v335
    %v338 = vrot.slane %v334, 4
    %v340 = vshrl.u32 %v175, 16
    %v342 = vrot.slane %v340, 7
    %v343 = vshll.u32 %v175, 16
    %v345 = vor.u32 %v342, %v343
    %v346 = vsel %vm228, %v338, %v345
    %v347 = vrot.slane %v342, 4
    %v349 = vshrl.u32 %v176, 16
    %v351 = vrot.slane %v349, 7
    %v352 = vshll.u32 %v176, 16
    %v354 = vor.u32 %v351, %v352
    %v355 = vrot.slane %v351, 4
    %v357 = vshrl.u32 %v177, 16
    %v359 = vrot.slane %v357, 7
    %v360 = vshll.u32 %v177, 16
    %v362 = vor.u32 %v359, %v360
    %v363 = vsel %vm228, %v355, %v362
    %v364 = vrot.slane %v359, 4
    %v366 = vshrl.u32 %v178, 16
    %v368 = vrot.slane %v366, 7
    %v369 = vshll.u32 %v178, 16
    %v371 = vor.u32 %v368, %v369
    %v372 = vrot.slane %v368, 4
    %v374 = vshrl.u32 %v179, 16
    %v376 = vrot.slane %v374, 7
    %v377 = vshll.u32 %v179, 16
    %v379 = vor.u32 %v376, %v377
    %v380 = vsel %vm228, %v372, %v379
    %v381 = vrot.slane %v376, 4
    %v383 = vshrl.u32 %v180, 16
    %v385 = vrot.slane %v383, 7
    %v386 = vshll.u32 %v180, 16
    %v388 = vor.u32 %v385, %v386
    %v389 = vrot.slane %v385, 4
    %v391 = vshrl.u32 %v181, 16
    %v393 = vrot.slane %v391, 7
    %v394 = vshll.u32 %v181, 16
    %v396 = vor.u32 %v393, %v394
    %v397 = vsel %vm228, %v389, %v396
    %v398 = vrot.slane %v393, 4
    %v400 = vshrl.u32 %v182, 16
    %v402 = vrot.slane %v400, 7
    %v403 = vshll.u32 %v182, 16
    %v405 = vor.u32 %v402, %v403
    %v406 = vrot.slane %v402, 4
    %v408 = vshrl.u32 %v183, 16
    %v410 = vrot.slane %v408, 7
    %v411 = vshll.u32 %v183, 16
    %v413 = vor.u32 %v410, %v411
    %v414 = vsel %vm228, %v406, %v413
    %v415 = vrot.slane %v410, 4
    %v417 = vshrl.u32 %v184, 16
    %v419 = vrot.slane %v417, 7
    %v420 = vshll.u32 %v184, 16
    %v422 = vor.u32 %v419, %v420
    %v423 = vrot.slane %v419, 4
    %v425 = vshrl.u32 %v185, 16
    %v427 = vrot.slane %v425, 7
    %v428 = vshll.u32 %v185, 16
    %v430 = vor.u32 %v427, %v428
    %v431 = vsel %vm228, %v423, %v430
    %v432 = vrot.slane %v427, 4
    %v434 = vshrl.u32 %v186, 16
    %v436 = vrot.slane %v434, 7
    %v437 = vshll.u32 %v186, 16
    %v439 = vor.u32 %v436, %v437
    %v440 = vrot.slane %v436, 4
    %v442 = vshrl.u32 %v187, 16
    %v444 = vrot.slane %v442, 7
    %v445 = vshll.u32 %v187, 16
    %v447 = vor.u32 %v444, %v445
    %v448 = vsel %vm228, %v440, %v447
    %v449 = vrot.slane %v444, 4
    %v451 = vshrl.u32 %v188, 16
    %v453 = vrot.slane %v451, 7
    %v454 = vshll.u32 %v188, 16
    %v456 = vor.u32 %v453, %v454
    %v457 = vrot.slane %v453, 4
    %v459 = vshrl.u32 %v189, 16
    %v461 = vrot.slane %v459, 7
    %v462 = vshll.u32 %v189, 16
    %v464 = vor.u32 %v461, %v462
    %v465 = vsel %vm228, %v457, %v464
    %v466 = vrot.slane %v461, 4
    %v468 = vshrl.u32 %v190, 16
    %v470 = vrot.slane %v468, 7
    %v471 = vshll.u32 %v190, 16
    %v473 = vor.u32 %v470, %v471
    %v474 = vrot.slane %v470, 4
    %v476 = vshrl.u32 %v191, 16
    %v478 = vrot.slane %v476, 7
    %v479 = vshll.u32 %v191, 16
    %v481 = vor.u32 %v478, %v479
    %v482 = vsel %vm228, %v474, %v481
    %v483 = vrot.slane %v478, 4
    %v485 = vshrl.u32 %v192, 16
    %v487 = vrot.slane %v485, 7
    %v488 = vshll.u32 %v192, 16
    %v490 = vor.u32 %v487, %v488
    %v491 = vrot.slane %v487, 4
    %v493 = vshrl.u32 %v193, 16
    %v495 = vrot.slane %v493, 7
    %v496 = vshll.u32 %v193, 16
    %v498 = vor.u32 %v495, %v496
    %v499 = vsel %vm228, %v491, %v498
    %v500 = vrot.slane %v495, 4
    %v502 = vshrl.u32 %v194, 16
    %v504 = vrot.slane %v502, 7
    %v505 = vshll.u32 %v194, 16
    %v507 = vor.u32 %v504, %v505
    %v508 = vrot.slane %v504, 4
    %v510 = vshrl.u32 %v195, 16
    %v512 = vrot.slane %v510, 7
    %v513 = vshll.u32 %v195, 16
    %v515 = vor.u32 %v512, %v513
    %v516 = vsel %vm228, %v508, %v515
    %v517 = vrot.slane %v512, 4
    %v519 = vshrl.u32 %v196, 16
    %v521 = vrot.slane %v519, 7
    %v522 = vshll.u32 %v196, 16
    %v524 = vor.u32 %v521, %v522
    %v525 = vrot.slane %v521, 4
    %v527 = vshrl.u32 %v197, 16
    %v529 = vrot.slane %v527, 7
    %v530 = vshll.u32 %v197, 16
    %v532 = vor.u32 %v529, %v530
    %v533 = vsel %vm228, %v525, %v532
    %v534 = vrot.slane %v529, 4
    %v536 = vshrl.u32 %v198, 16
    %v538 = vrot.slane %v536, 7
    %v539 = vshll.u32 %v198, 16
    %v541 = vor.u32 %v538, %v539
    %v542 = vrot.slane %v538, 4
    %v544 = vshrl.u32 %v199, 16
    %v546 = vrot.slane %v544, 7
    %v547 = vshll.u32 %v199, 16
    %v549 = vor.u32 %v546, %v547
    %v550 = vsel %vm228, %v542, %v549
    %v551 = vrot.slane %v546, 4
    %v553 = vshrl.u32 %v200, 16
    %v555 = vrot.slane %v553, 7
    %v556 = vshll.u32 %v200, 16
    %v558 = vor.u32 %v555, %v556
    %v559 = vrot.slane %v555, 4
    %v561 = vshrl.u32 %v201, 16
    %v563 = vrot.slane %v561, 7
    %v564 = vshll.u32 %v201, 16
    %v566 = vor.u32 %v563, %v564
    %v567 = vsel %vm228, %v559, %v566
    %v568 = vrot.slane %v563, 4
    %v570 = vshrl.u32 %v202, 16
    %v572 = vrot.slane %v570, 7
    %v573 = vshll.u32 %v202, 16
    %v575 = vor.u32 %v572, %v573
    %v576 = vrot.slane %v572, 4
    %v578 = vshrl.u32 %v203, 16
    %v580 = vrot.slane %v578, 7
    %v581 = vshll.u32 %v203, 16
    %v583 = vor.u32 %v580, %v581
    %v584 = vsel %vm228, %v576, %v583
    %v585 = vrot.slane %v580, 4
    %v587 = vshrl.u32 %v204, 16
    %v589 = vrot.slane %v587, 7
    %v590 = vshll.u32 %v204, 16
    %v592 = vor.u32 %v589, %v590
    %v593 = vrot.slane %v589, 4
    %v595 = vshrl.u32 %v205, 16
    %v597 = vrot.slane %v595, 7
    %v598 = vshll.u32 %v205, 16
    %v600 = vor.u32 %v597, %v598
    %v601 = vsel %vm228, %v593, %v600
    %v602 = vrot.slane %v597, 4
    %v604 = vshrl.u32 %v206, 16
    %v606 = vrot.slane %v604, 7
    %v607 = vshll.u32 %v206, 16
    %v609 = vor.u32 %v606, %v607
    %v610 = vrot.slane %v606, 4
    %v612 = vshrl.u32 %v207, 16
    %v614 = vrot.slane %v612, 7
    %v615 = vshll.u32 %v207, 16
    %v617 = vor.u32 %v614, %v615
    %v618 = vsel %vm228, %v610, %v617
    %v619 = vrot.slane %v614, 4
    %v621 = vshrl.u32 %v208, 16
    %v623 = vrot.slane %v621, 7
    %v624 = vshll.u32 %v208, 16
    %v626 = vor.u32 %v623, %v624
    %v627 = vrot.slane %v623, 4
    %v629 = vshrl.u32 %v209, 16
    %v631 = vrot.slane %v629, 7
    %v632 = vshll.u32 %v209, 16
    %v634 = vor.u32 %v631, %v632
    %v635 = vsel %vm228, %v627, %v634
    %v636 = vrot.slane %v631, 4
    %v638 = vshrl.u32 %v210, 16
    %v640 = vrot.slane %v638, 7
    %v641 = vshll.u32 %v210, 16
    %v643 = vor.u32 %v640, %v641
    %v644 = vrot.slane %v640, 4
    %v646 = vshrl.u32 %v211, 16
    %v648 = vrot.slane %v646, 7
    %v649 = vshll.u32 %v211, 16
    %v651 = vor.u32 %v648, %v649
    %v652 = vsel %vm228, %v644, %v651
    %v653 = vrot.slane %v648, 4
    %v655 = vshrl.u32 %v212, 16
    %v657 = vrot.slane %v655, 7
    %v658 = vshll.u32 %v212, 16
    %v660 = vor.u32 %v657, %v658
    %v661 = vrot.slane %v657, 4
    %v663 = vshrl.u32 %v213, 16
    %v665 = vrot.slane %v663, 7
    %v666 = vshll.u32 %v213, 16
    %v668 = vor.u32 %v665, %v666
    %v669 = vsel %vm228, %v661, %v668
    %v670 = vrot.slane %v665, 4
    %v672 = vshrl.u32 %v214, 16
    %v674 = vrot.slane %v672, 7
    %v675 = vshll.u32 %v214, 16
    %v677 = vor.u32 %v674, %v675
    %v678 = vrot.slane %v674, 4
    %v680 = vshrl.u32 %v215, 16
    %v682 = vrot.slane %v680, 7
    %v683 = vshll.u32 %v215, 16
    %v685 = vor.u32 %v682, %v683
    %v686 = vsel %vm228, %v678, %v685
    %v687 = vrot.slane %v682, 4
    %v689 = vshrl.u32 %v216, 16
    %v691 = vrot.slane %v689, 7
    %v692 = vshll.u32 %v216, 16
    %v694 = vor.u32 %v691, %v692
    %v695 = vrot.slane %v691, 4
    %v697 = vshrl.u32 %v217, 16
    %v699 = vrot.slane %v697, 7
    %v700 = vshll.u32 %v217, 16
    %v702 = vor.u32 %v699, %v700
    %v703 = vsel %vm228, %v695, %v702
    %v704 = vrot.slane %v699, 4
    %v706 = vshrl.u32 %v218, 16
    %v708 = vrot.slane %v706, 7
    %v709 = vshll.u32 %v218, 16
    %v711 = vor.u32 %v708, %v709
    %v712 = vrot.slane %v708, 4
    %v714 = vshrl.u32 %v219, 16
    %v716 = vrot.slane %v714, 7
    %v717 = vshll.u32 %v219, 16
    %v719 = vor.u32 %v716, %v717
    %v720 = vsel %vm228, %v712, %v719
    %v721 = vrot.slane %v716, 4
    %v723 = vshrl.u32 %v220, 16
    %v725 = vrot.slane %v723, 7
    %v726 = vshll.u32 %v220, 16
    %v728 = vor.u32 %v725, %v726
    %v729 = vrot.slane %v725, 4
    %v731 = vshrl.u32 %v221, 16
    %v733 = vrot.slane %v731, 7
    %v734 = vshll.u32 %v221, 16
    %v736 = vor.u32 %v733, %v734
    %v737 = vsel %vm228, %v729, %v736
    %v738 = vrot.slane %v733, 4
    %v740 = vshrl.u32 %v222, 16
    %v742 = vrot.slane %v740, 7
    %v743 = vshll.u32 %v222, 16
    %v745 = vor.u32 %v742, %v743
    %v746 = vrot.slane %v742, 4
    %v748 = vshrl.u32 %v223, 16
    %v750 = vrot.slane %v748, 7
    %v751 = vshll.u32 %v223, 16
    %v753 = vor.u32 %v750, %v751
    %v754 = vsel %vm228, %v746, %v753
    %v755 = vrot.slane %v750, 4
    %v757 = vshrl.u32 %v224, 16
    %v759 = vrot.slane %v757, 7
    %v760 = vshll.u32 %v224, 16
    %v762 = vor.u32 %v759, %v760
    %v763 = vrot.slane %v759, 4
    %v765 = vshrl.u32 %v225, 16
    %v767 = vrot.slane %v765, 7
    %v768 = vshll.u32 %v225, 16
    %v770 = vor.u32 %v767, %v768
    %v771 = vsel %vm228, %v763, %v770
    %v772 = vrot.slane %v767, 4
    %s869 = scalar_lea.vmem [#allocation2], 12
    %vm870 = vcmask 19456
    %vm871 = vsmask.f32 7938
    %vm872 = vmand %vm870, %vm871
    %v873 = vld [vmem:[%s869] sm:$0xf]
    %v874 = vsel %vm872, %v235, %v873
    %875 = vst [vmem:[%s869] sm:$0xf] %v874
    %vm876 = vcmask 19456
    %877 = vst.msk [vmem:[%s869 + $0x4] sm:$0xf] %vm876, %v244
    %vm878 = vcmask 16384
    %vm879 = vmand %vm878, %vm226
    %v880 = vld [vmem:[%s869 + $0x8] sm:$0x1]
    %v881 = vsel %vm879, %v245, %v880
    %882 = vst [vmem:[%s869 + $0x8] sm:$0x1] %v881
    %v883 = vld [vmem:[%s869 + $0xc] sm:$0xf]
    %v884 = vsel %vm872, %v252, %v883
    %885 = vst [vmem:[%s869 + $0xc] sm:$0xf] %v884
    %886 = vst.msk [vmem:[%s869 + $0x10] sm:$0xf] %vm876, %v261
    %v887 = vld [vmem:[%s869 + $0x14] sm:$0x1]
    %v888 = vsel %vm879, %v262, %v887
    %889 = vst [vmem:[%s869 + $0x14] sm:$0x1] %v888
    %v890 = vld [vmem:[%s869 + $0x18] sm:$0xf]
    %v891 = vsel %vm872, %v269, %v890
    %892 = vst [vmem:[%s869 + $0x18] sm:$0xf] %v891
    %893 = vst.msk [vmem:[%s869 + $0x1c] sm:$0xf] %vm876, %v278
    %v894 = vld [vmem:[%s869 + $0x20] sm:$0x1]
    %v895 = vsel %vm879, %v279, %v894
    %896 = vst [vmem:[%s869 + $0x20] sm:$0x1] %v895
    %v897 = vld [vmem:[%s869 + $0x24] sm:$0xf]
    %v898 = vsel %vm872, %v286, %v897
    %899 = vst [vmem:[%s869 + $0x24] sm:$0xf] %v898
    %900 = vst.msk [vmem:[%s869 + $0x28] sm:$0xf] %vm876, %v295
    %v901 = vld [vmem:[%s869 + $0x2c] sm:$0x1]
    %v902 = vsel %vm879, %v296, %v901
    %903 = vst [vmem:[%s869 + $0x2c] sm:$0x1] %v902
    %v904 = vld [vmem:[%s869 + $0x30] sm:$0xf]
    %v905 = vsel %vm872, %v303, %v904
    %906 = vst [vmem:[%s869 + $0x30] sm:$0xf] %v905
    %907 = vst.msk [vmem:[%s869 + $0x34] sm:$0xf] %vm876, %v312
    %v908 = vld [vmem:[%s869 + $0x38] sm:$0x1]
    %v909 = vsel %vm879, %v313, %v908
    %910 = vst [vmem:[%s869 + $0x38] sm:$0x1] %v909
    %v911 = vld [vmem:[%s869 + $0x3c] sm:$0xf]
    %v912 = vsel %vm872, %v320, %v911
    %913 = vst [vmem:[%s869 + $0x3c] sm:$0xf] %v912
    %914 = vst.msk [vmem:[%s869 + $0x40] sm:$0xf] %vm876, %v329
    %v915 = vld [vmem:[%s869 + $0x44] sm:$0x1]
    %v916 = vsel %vm879, %v330, %v915
    %917 = vst [vmem:[%s869 + $0x44] sm:$0x1] %v916
    %v918 = vld [vmem:[%s869 + $0x48] sm:$0xf]
    %v919 = vsel %vm872, %v337, %v918
    %920 = vst [vmem:[%s869 + $0x48] sm:$0xf] %v919
    %921 = vst.msk [vmem:[%s869 + $0x4c] sm:$0xf] %vm876, %v346
    %v922 = vld [vmem:[%s869 + $0x50] sm:$0x1]
    %v923 = vsel %vm879, %v347, %v922
    %924 = vst [vmem:[%s869 + $0x50] sm:$0x1] %v923
    %v925 = vld [vmem:[%s869 + $0x54] sm:$0xf]
    %v926 = vsel %vm872, %v354, %v925
    %927 = vst [vmem:[%s869 + $0x54] sm:$0xf] %v926
    %928 = vst.msk [vmem:[%s869 + $0x58] sm:$0xf] %vm876, %v363
    %v929 = vld [vmem:[%s869 + $0x5c] sm:$0x1]
    %v930 = vsel %vm879, %v364, %v929
    %931 = vst [vmem:[%s869 + $0x5c] sm:$0x1] %v930
    %v932 = vld [vmem:[%s869 + $0x60] sm:$0xf]
    %v933 = vsel %vm872, %v371, %v932
    %934 = vst [vmem:[%s869 + $0x60] sm:$0xf] %v933
    %935 = vst.msk [vmem:[%s869 + $0x64] sm:$0xf] %vm876, %v380
    %v936 = vld [vmem:[%s869 + $0x68] sm:$0x1]
    %v937 = vsel %vm879, %v381, %v936
    %938 = vst [vmem:[%s869 + $0x68] sm:$0x1] %v937
    %v939 = vld [vmem:[%s869 + $0x6c] sm:$0xf]
    %v940 = vsel %vm872, %v388, %v939
    %941 = vst [vmem:[%s869 + $0x6c] sm:$0xf] %v940
    %942 = vst.msk [vmem:[%s869 + $0x70] sm:$0xf] %vm876, %v397
    %v943 = vld [vmem:[%s869 + $0x74] sm:$0x1]
    %v944 = vsel %vm879, %v398, %v943
    %945 = vst [vmem:[%s869 + $0x74] sm:$0x1] %v944
    %v946 = vld [vmem:[%s869 + $0x78] sm:$0xf]
    %v947 = vsel %vm872, %v405, %v946
    %948 = vst [vmem:[%s869 + $0x78] sm:$0xf] %v947
    %949 = vst.msk [vmem:[%s869 + $0x7c] sm:$0xf] %vm876, %v414
    %v950 = vld [vmem:[%s869 + $0x80] sm:$0x1]
    %v951 = vsel %vm879, %v415, %v950
    %952 = vst [vmem:[%s869 + $0x80] sm:$0x1] %v951
    %v953 = vld [vmem:[%s869 + $0x84] sm:$0xf]
    %v954 = vsel %vm872, %v422, %v953
    %955 = vst [vmem:[%s869 + $0x84] sm:$0xf] %v954
    %956 = vst.msk [vmem:[%s869 + $0x88] sm:$0xf] %vm876, %v431
    %v957 = vld [vmem:[%s869 + $0x8c] sm:$0x1]
    %v958 = vsel %vm879, %v432, %v957
    %959 = vst [vmem:[%s869 + $0x8c] sm:$0x1] %v958
    %v960 = vld [vmem:[%s869 + $0x90] sm:$0xf]
    %v961 = vsel %vm872, %v439, %v960
    %962 = vst [vmem:[%s869 + $0x90] sm:$0xf] %v961
    %963 = vst.msk [vmem:[%s869 + $0x94] sm:$0xf] %vm876, %v448
    %v964 = vld [vmem:[%s869 + $0x98] sm:$0x1]
    %v965 = vsel %vm879, %v449, %v964
    %966 = vst [vmem:[%s869 + $0x98] sm:$0x1] %v965
    %v967 = vld [vmem:[%s869 + $0x9c] sm:$0xf]
    %v968 = vsel %vm872, %v456, %v967
    %969 = vst [vmem:[%s869 + $0x9c] sm:$0xf] %v968
    %970 = vst.msk [vmem:[%s869 + $0xa0] sm:$0xf] %vm876, %v465
    %v971 = vld [vmem:[%s869 + $0xa4] sm:$0x1]
    %v972 = vsel %vm879, %v466, %v971
    %973 = vst [vmem:[%s869 + $0xa4] sm:$0x1] %v972
    %v974 = vld [vmem:[%s869 + $0xa8] sm:$0xf]
    %v975 = vsel %vm872, %v473, %v974
    %976 = vst [vmem:[%s869 + $0xa8] sm:$0xf] %v975
    %977 = vst.msk [vmem:[%s869 + $0xac] sm:$0xf] %vm876, %v482
    %v978 = vld [vmem:[%s869 + $0xb0] sm:$0x1]
    %v979 = vsel %vm879, %v483, %v978
    %980 = vst [vmem:[%s869 + $0xb0] sm:$0x1] %v979
    %v981 = vld [vmem:[%s869 + $0xb4] sm:$0xf]
    %v982 = vsel %vm872, %v490, %v981
    %983 = vst [vmem:[%s869 + $0xb4] sm:$0xf] %v982
    %984 = vst.msk [vmem:[%s869 + $0xb8] sm:$0xf] %vm876, %v499
    %v985 = vld [vmem:[%s869 + $0xbc] sm:$0x1]
    %v986 = vsel %vm879, %v500, %v985
    %987 = vst [vmem:[%s869 + $0xbc] sm:$0x1] %v986
    %v988 = vld [vmem:[%s869 + $0xd8] sm:$0xf]
    %v989 = vsel %vm872, %v507, %v988
    %990 = vst [vmem:[%s869 + $0xd8] sm:$0xf] %v989
    %991 = vst.msk [vmem:[%s869 + $0xdc] sm:$0xf] %vm876, %v516
    %v992 = vld [vmem:[%s869 + $0xe0] sm:$0x1]
    %v993 = vsel %vm879, %v517, %v992
    %994 = vst [vmem:[%s869 + $0xe0] sm:$0x1] %v993
    %v995 = vld [vmem:[%s869 + $0xe4] sm:$0xf]
    %v996 = vsel %vm872, %v524, %v995
    %997 = vst [vmem:[%s869 + $0xe4] sm:$0xf] %v996
    %998 = vst.msk [vmem:[%s869 + $0xe8] sm:$0xf] %vm876, %v533
    %v999 = vld [vmem:[%s869 + $0xec] sm:$0x1]
    %v1000 = vsel %vm879, %v534, %v999
    %1001 = vst [vmem:[%s869 + $0xec] sm:$0x1] %v1000
    %v1002 = vld [vmem:[%s869 + $0xf0] sm:$0xf]
    %v1003 = vsel %vm872, %v541, %v1002
    %1004 = vst [vmem:[%s869 + $0xf0] sm:$0xf] %v1003
    %1005 = vst.msk [vmem:[%s869 + $0xf4] sm:$0xf] %vm876, %v550
    %v1006 = vld [vmem:[%s869 + $0xf8] sm:$0x1]
    %v1007 = vsel %vm879, %v551, %v1006
    %1008 = vst [vmem:[%s869 + $0xf8] sm:$0x1] %v1007
    %v1009 = vld [vmem:[%s869 + $0xfc] sm:$0xf]
    %v1010 = vsel %vm872, %v558, %v1009
    %1011 = vst [vmem:[%s869 + $0xfc] sm:$0xf] %v1010
    %1012 = vst.msk [vmem:[%s869 + $0x100] sm:$0xf] %vm876, %v567
    %v1013 = vld [vmem:[%s869 + $0x104] sm:$0x1]
    %v1014 = vsel %vm879, %v568, %v1013
    %1015 = vst [vmem:[%s869 + $0x104] sm:$0x1] %v1014
    %v1016 = vld [vmem:[%s869 + $0x108] sm:$0xf]
    %v1017 = vsel %vm872, %v575, %v1016
    %1018 = vst [vmem:[%s869 + $0x108] sm:$0xf] %v1017
    %1019 = vst.msk [vmem:[%s869 + $0x10c] sm:$0xf] %vm876, %v584
    %v1020 = vld [vmem:[%s869 + $0x110] sm:$0x1]
    %v1021 = vsel %vm879, %v585, %v1020
    %1022 = vst [vmem:[%s869 + $0x110] sm:$0x1] %v1021
    %v1023 = vld [vmem:[%s869 + $0x114] sm:$0xf]
    %v1024 = vsel %vm872, %v592, %v1023
    %1025 = vst [vmem:[%s869 + $0x114] sm:$0xf] %v1024
    %1026 = vst.msk [vmem:[%s869 + $0x118] sm:$0xf] %vm876, %v601
    %v1027 = vld [vmem:[%s869 + $0x11c] sm:$0x1]
    %v1028 = vsel %vm879, %v602, %v1027
    %1029 = vst [vmem:[%s869 + $0x11c] sm:$0x1] %v1028
    %v1030 = vld [vmem:[%s869 + $0x120] sm:$0xf]
    %v1031 = vsel %vm872, %v609, %v1030
    %1032 = vst [vmem:[%s869 + $0x120] sm:$0xf] %v1031
    %1033 = vst.msk [vmem:[%s869 + $0x124] sm:$0xf] %vm876, %v618
    %v1034 = vld [vmem:[%s869 + $0x128] sm:$0x1]
    %v1035 = vsel %vm879, %v619, %v1034
    %1036 = vst [vmem:[%s869 + $0x128] sm:$0x1] %v1035
    %v1037 = vld [vmem:[%s869 + $0x12c] sm:$0xf]
    %v1038 = vsel %vm872, %v626, %v1037
    %1039 = vst [vmem:[%s869 + $0x12c] sm:$0xf] %v1038
    %1040 = vst.msk [vmem:[%s869 + $0x130] sm:$0xf] %vm876, %v635
    %v1041 = vld [vmem:[%s869 + $0x134] sm:$0x1]
    %v1042 = vsel %vm879, %v636, %v1041
    %1043 = vst [vmem:[%s869 + $0x134] sm:$0x1] %v1042
    %v1044 = vld [vmem:[%s869 + $0x138] sm:$0xf]
    %v1045 = vsel %vm872, %v643, %v1044
    %1046 = vst [vmem:[%s869 + $0x138] sm:$0xf] %v1045
    %1047 = vst.msk [vmem:[%s869 + $0x13c] sm:$0xf] %vm876, %v652
    %v1048 = vld [vmem:[%s869 + $0x140] sm:$0x1]
    %v1049 = vsel %vm879, %v653, %v1048
    %1050 = vst [vmem:[%s869 + $0x140] sm:$0x1] %v1049
    %v1051 = vld [vmem:[%s869 + $0x144] sm:$0xf]
    %v1052 = vsel %vm872, %v660, %v1051
    %1053 = vst [vmem:[%s869 + $0x144] sm:$0xf] %v1052
    %1054 = vst.msk [vmem:[%s869 + $0x148] sm:$0xf] %vm876, %v669
    %v1055 = vld [vmem:[%s869 + $0x14c] sm:$0x1]
    %v1056 = vsel %vm879, %v670, %v1055
    %1057 = vst [vmem:[%s869 + $0x14c] sm:$0x1] %v1056
    %v1058 = vld [vmem:[%s869 + $0x150] sm:$0xf]
    %v1059 = vsel %vm872, %v677, %v1058
    %1060 = vst [vmem:[%s869 + $0x150] sm:$0xf] %v1059
    %1061 = vst.msk [vmem:[%s869 + $0x154] sm:$0xf] %vm876, %v686
    %v1062 = vld [vmem:[%s869 + $0x158] sm:$0x1]
    %v1063 = vsel %vm879, %v687, %v1062
    %1064 = vst [vmem:[%s869 + $0x158] sm:$0x1] %v1063
    %v1065 = vld [vmem:[%s869 + $0x15c] sm:$0xf]
    %v1066 = vsel %vm872, %v694, %v1065
    %1067 = vst [vmem:[%s869 + $0x15c] sm:$0xf] %v1066
    %1068 = vst.msk [vmem:[%s869 + $0x160] sm:$0xf] %vm876, %v703
    %v1069 = vld [vmem:[%s869 + $0x164] sm:$0x1]
    %v1070 = vsel %vm879, %v704, %v1069
    %1071 = vst [vmem:[%s869 + $0x164] sm:$0x1] %v1070
    %v1072 = vld [vmem:[%s869 + $0x168] sm:$0xf]
    %v1073 = vsel %vm872, %v711, %v1072
    %1074 = vst [vmem:[%s869 + $0x168] sm:$0xf] %v1073
    %1075 = vst.msk [vmem:[%s869 + $0x16c] sm:$0xf] %vm876, %v720
    %v1076 = vld [vmem:[%s869 + $0x170] sm:$0x1]
    %v1077 = vsel %vm879, %v721, %v1076
    %1078 = vst [vmem:[%s869 + $0x170] sm:$0x1] %v1077
    %v1079 = vld [vmem:[%s869 + $0x174] sm:$0xf]
    %v1080 = vsel %vm872, %v728, %v1079
    %1081 = vst [vmem:[%s869 + $0x174] sm:$0xf] %v1080
    %1082 = vst.msk [vmem:[%s869 + $0x178] sm:$0xf] %vm876, %v737
    %v1083 = vld [vmem:[%s869 + $0x17c] sm:$0x1]
    %v1084 = vsel %vm879, %v738, %v1083
    %1085 = vst [vmem:[%s869 + $0x17c] sm:$0x1] %v1084
    %v1086 = vld [vmem:[%s869 + $0x180] sm:$0xf]
    %v1087 = vsel %vm872, %v745, %v1086
    %1088 = vst [vmem:[%s869 + $0x180] sm:$0xf] %v1087
    %1089 = vst.msk [vmem:[%s869 + $0x184] sm:$0xf] %vm876, %v754
    %v1090 = vld [vmem:[%s869 + $0x188] sm:$0x1]
    %v1091 = vsel %vm879, %v755, %v1090
    %1092 = vst [vmem:[%s869 + $0x188] sm:$0x1] %v1091
    %v1093 = vld [vmem:[%s869 + $0x18c] sm:$0xf]
    %v1094 = vsel %vm872, %v762, %v1093
    %1095 = vst [vmem:[%s869 + $0x18c] sm:$0xf] %v1094
    %1096 = vst.msk [vmem:[%s869 + $0x190] sm:$0xf] %vm876, %v771
    %v1097 = vld [vmem:[%s869 + $0x194] sm:$0x1]
    %v1098 = vsel %vm879, %v772, %v1097
    %1099 = vst [vmem:[%s869 + $0x194] sm:$0x1] %v1098
    %v1100 = vld [vmem:[#allocation2] sm:$0xf]
    %v1101 = vld [vmem:[#allocation2 + $0x4] sm:$0xf]
    %v1102 = vld [vmem:[#allocation2 + $0xc] sm:$0xf]
    %v1103 = vld [vmem:[#allocation2 + $0x10] sm:$0xf]
    %v1104 = vld [vmem:[#allocation2 + $0x18] sm:$0xf]
    %v1105 = vld [vmem:[#allocation2 + $0x1c] sm:$0xf]
    %v1106 = vld [vmem:[#allocation2 + $0x24] sm:$0xf]
    %v1107 = vld [vmem:[#allocation2 + $0x28] sm:$0xf]
    %v1108 = vld [vmem:[#allocation2 + $0x30] sm:$0xf]
    %v1109 = vld [vmem:[#allocation2 + $0x34] sm:$0xf]
    %v1110 = vld [vmem:[#allocation2 + $0x3c] sm:$0xf]
    %v1111 = vld [vmem:[#allocation2 + $0x40] sm:$0xf]
    %v1112 = vld [vmem:[#allocation2 + $0x48] sm:$0xf]
    %v1113 = vld [vmem:[#allocation2 + $0x4c] sm:$0xf]
    %v1114 = vld [vmem:[#allocation2 + $0x54] sm:$0xf]
    %v1115 = vld [vmem:[#allocation2 + $0x58] sm:$0xf]
    %v1116 = vld [vmem:[#allocation2 + $0x60] sm:$0xf]
    %v1117 = vld [vmem:[#allocation2 + $0x64] sm:$0xf]
    %v1118 = vld [vmem:[#allocation2 + $0x6c] sm:$0xf]
    %v1119 = vld [vmem:[#allocation2 + $0x70] sm:$0xf]
    %v1120 = vld [vmem:[#allocation2 + $0x78] sm:$0xf]
    %v1121 = vld [vmem:[#allocation2 + $0x7c] sm:$0xf]
    %v1122 = vld [vmem:[#allocation2 + $0x84] sm:$0xf]
    %v1123 = vld [vmem:[#allocation2 + $0x88] sm:$0xf]
    %v1124 = vld [vmem:[#allocation2 + $0x90] sm:$0xf]
    %v1125 = vld [vmem:[#allocation2 + $0x94] sm:$0xf]
    %v1126 = vld [vmem:[#allocation2 + $0x9c] sm:$0xf]
    %v1127 = vld [vmem:[#allocation2 + $0xa0] sm:$0xf]
    %v1128 = vld [vmem:[#allocation2 + $0xa8] sm:$0xf]
    %v1129 = vld [vmem:[#allocation2 + $0xac] sm:$0xf]
    %v1130 = vld [vmem:[#allocation2 + $0xb4] sm:$0xf]
    %v1131 = vld [vmem:[#allocation2 + $0xb8] sm:$0xf]
    %v1132 = vld [vmem:[#allocation2 + $0xd8] sm:$0xf]
    %v1133 = vld [vmem:[#allocation2 + $0xdc] sm:$0xf]
    %v1134 = vld [vmem:[#allocation2 + $0xe4] sm:$0xf]
    %v1135 = vld [vmem:[#allocation2 + $0xe8] sm:$0xf]
    %v1136 = vld [vmem:[#allocation2 + $0xf0] sm:$0xf]
    %v1137 = vld [vmem:[#allocation2 + $0xf4] sm:$0xf]
    %v1138 = vld [vmem:[#allocation2 + $0xfc] sm:$0xf]
    %v1139 = vld [vmem:[#allocation2 + $0x100] sm:$0xf]
    %v1140 = vld [vmem:[#allocation2 + $0x108] sm:$0xf]
    %v1141 = vld [vmem:[#allocation2 + $0x10c] sm:$0xf]
    %v1142 = vld [vmem:[#allocation2 + $0x114] sm:$0xf]
    %v1143 = vld [vmem:[#allocation2 + $0x118] sm:$0xf]
    %v1144 = vld [vmem:[#allocation2 + $0x120] sm:$0xf]
    %v1145 = vld [vmem:[#allocation2 + $0x124] sm:$0xf]
    %v1146 = vld [vmem:[#allocation2 + $0x12c] sm:$0xf]
    %v1147 = vld [vmem:[#allocation2 + $0x130] sm:$0xf]
    %v1148 = vld [vmem:[#allocation2 + $0x138] sm:$0xf]
    %v1149 = vld [vmem:[#allocation2 + $0x13c] sm:$0xf]
    %v1150 = vld [vmem:[#allocation2 + $0x144] sm:$0xf]
    %v1151 = vld [vmem:[#allocation2 + $0x148] sm:$0xf]
    %v1152 = vld [vmem:[#allocation2 + $0x150] sm:$0xf]
    %v1153 = vld [vmem:[#allocation2 + $0x154] sm:$0xf]
    %v1154 = vld [vmem:[#allocation2 + $0x15c] sm:$0xf]
    %v1155 = vld [vmem:[#allocation2 + $0x160] sm:$0xf]
    %v1156 = vld [vmem:[#allocation2 + $0x168] sm:$0xf]
    %v1157 = vld [vmem:[#allocation2 + $0x16c] sm:$0xf]
    %v1158 = vld [vmem:[#allocation2 + $0x174] sm:$0xf]
    %v1159 = vld [vmem:[#allocation2 + $0x178] sm:$0xf]
    %v1160 = vld [vmem:[#allocation2 + $0x180] sm:$0xf]
    %v1161 = vld [vmem:[#allocation2 + $0x184] sm:$0xf]
    %v1162 = vld [vmem:[#allocation2 + $0x18c] sm:$0xf]
    %v1163 = vld [vmem:[#allocation2 + $0x190] sm:$0xf]
    %v1228 = vunpack.c.l.b16 %v1100
    %v1229 = vunpack.c.l.b16 %v1101
    %v1230 = vunpack.c.l.b16 %v1102
    %v1231 = vunpack.c.l.b16 %v1103
    %v1232 = vunpack.c.l.b16 %v1104
    %v1233 = vunpack.c.l.b16 %v1105
    %v1234 = vunpack.c.l.b16 %v1106
    %v1235 = vunpack.c.l.b16 %v1107
    %v1236 = vunpack.c.l.b16 %v1108
    %v1237 = vunpack.c.l.b16 %v1109
    %v1238 = vunpack.c.l.b16 %v1110
    %v1239 = vunpack.c.l.b16 %v1111
    %v1240 = vunpack.c.l.b16 %v1112
    %v1241 = vunpack.c.l.b16 %v1113
    %v1242 = vunpack.c.l.b16 %v1114
    %v1243 = vunpack.c.l.b16 %v1115
    %v1244 = vunpack.c.l.b16 %v1116
    %v1245 = vunpack.c.l.b16 %v1117
    %v1246 = vunpack.c.l.b16 %v1118
    %v1247 = vunpack.c.l.b16 %v1119
    %v1248 = vunpack.c.l.b16 %v1120
    %v1249 = vunpack.c.l.b16 %v1121
    %v1250 = vunpack.c.l.b16 %v1122
    %v1251 = vunpack.c.l.b16 %v1123
    %v1252 = vunpack.c.l.b16 %v1124
    %v1253 = vunpack.c.l.b16 %v1125
    %v1254 = vunpack.c.l.b16 %v1126
    %v1255 = vunpack.c.l.b16 %v1127
    %v1256 = vunpack.c.l.b16 %v1128
    %v1257 = vunpack.c.l.b16 %v1129
    %v1258 = vunpack.c.l.b16 %v1130
    %v1259 = vunpack.c.l.b16 %v1131
    %v1260 = vunpack.c.l.b16 %v1132
    %v1261 = vunpack.c.l.b16 %v1133
    %v1262 = vunpack.c.l.b16 %v1134
    %v1263 = vunpack.c.l.b16 %v1135
    %v1264 = vunpack.c.l.b16 %v1136
    %v1265 = vunpack.c.l.b16 %v1137
    %v1266 = vunpack.c.l.b16 %v1138
    %v1267 = vunpack.c.l.b16 %v1139
    %v1268 = vunpack.c.l.b16 %v1140
    %v1269 = vunpack.c.l.b16 %v1141
    %v1270 = vunpack.c.l.b16 %v1142
    %v1271 = vunpack.c.l.b16 %v1143
    %v1272 = vunpack.c.l.b16 %v1144
    %v1273 = vunpack.c.l.b16 %v1145
    %v1274 = vunpack.c.l.b16 %v1146
    %v1275 = vunpack.c.l.b16 %v1147
    %v1276 = vunpack.c.l.b16 %v1148
    %v1277 = vunpack.c.l.b16 %v1149
    %v1278 = vunpack.c.l.b16 %v1150
    %v1279 = vunpack.c.l.b16 %v1151
    %v1280 = vunpack.c.l.b16 %v1152
    %v1281 = vunpack.c.l.b16 %v1153
    %v1282 = vunpack.c.l.b16 %v1154
    %v1283 = vunpack.c.l.b16 %v1155
    %v1284 = vunpack.c.l.b16 %v1156
    %v1285 = vunpack.c.l.b16 %v1157
    %v1286 = vunpack.c.l.b16 %v1158
    %v1287 = vunpack.c.l.b16 %v1159
    %v1288 = vunpack.c.l.b16 %v1160
    %v1289 = vunpack.c.l.b16 %v1161
    %v1290 = vunpack.c.l.b16 %v1162
    %v1291 = vunpack.c.l.b16 %v1163
    %v1292 = vpack.c.b16 %v1229, %v1228
    %v1293 = vpack.c.b16 %v1231, %v1230
    %v1294 = vpack.c.b16 %v1233, %v1232
    %v1295 = vpack.c.b16 %v1235, %v1234
    %v1296 = vpack.c.b16 %v1237, %v1236
    %v1297 = vpack.c.b16 %v1239, %v1238
    %v1298 = vpack.c.b16 %v1241, %v1240
    %v1299 = vpack.c.b16 %v1243, %v1242
    %v1300 = vpack.c.b16 %v1245, %v1244
    %v1301 = vpack.c.b16 %v1247, %v1246
    %v1302 = vpack.c.b16 %v1249, %v1248
    %v1303 = vpack.c.b16 %v1251, %v1250
    %v1304 = vpack.c.b16 %v1253, %v1252
    %v1305 = vpack.c.b16 %v1255, %v1254
    %v1306 = vpack.c.b16 %v1257, %v1256
    %v1307 = vpack.c.b16 %v1259, %v1258
    %v1308 = vpack.c.b16 %v1261, %v1260
    %v1309 = vpack.c.b16 %v1263, %v1262
    %v1310 = vpack.c.b16 %v1265, %v1264
    %v1311 = vpack.c.b16 %v1267, %v1266
    %v1312 = vpack.c.b16 %v1269, %v1268
    %v1313 = vpack.c.b16 %v1271, %v1270
    %v1314 = vpack.c.b16 %v1273, %v1272
    %v1315 = vpack.c.b16 %v1275, %v1274
    %v1316 = vpack.c.b16 %v1277, %v1276
    %v1317 = vpack.c.b16 %v1279, %v1278
    %v1318 = vpack.c.b16 %v1281, %v1280
    %v1319 = vpack.c.b16 %v1283, %v1282
    %v1320 = vpack.c.b16 %v1285, %v1284
    %v1321 = vpack.c.b16 %v1287, %v1286
    %v1322 = vpack.c.b16 %v1289, %v1288
    %v1323 = vpack.c.b16 %v1291, %v1290
    %vm1356 = vcmask 23552
    %1357 = vst.msk [vmem:[#allocation3] sm:$0xff] %vm1356, %v1292
    %1358 = vst.msk [vmem:[#allocation3 + $0x8] sm:$0xff] %vm1356, %v1293
    %1359 = vst.msk [vmem:[#allocation3 + $0x10] sm:$0xff] %vm1356, %v1294
    %1360 = vst.msk [vmem:[#allocation3 + $0x18] sm:$0xff] %vm1356, %v1295
    %1361 = vst.msk [vmem:[#allocation3 + $0x20] sm:$0xff] %vm1356, %v1296
    %1362 = vst.msk [vmem:[#allocation3 + $0x28] sm:$0xff] %vm1356, %v1297
    %1363 = vst.msk [vmem:[#allocation3 + $0x30] sm:$0xff] %vm1356, %v1298
    %1364 = vst.msk [vmem:[#allocation3 + $0x38] sm:$0xff] %vm1356, %v1299
    %1365 = vst.msk [vmem:[#allocation3 + $0x40] sm:$0xff] %vm1356, %v1300
    %1366 = vst.msk [vmem:[#allocation3 + $0x48] sm:$0xff] %vm1356, %v1301
    %1367 = vst.msk [vmem:[#allocation3 + $0x50] sm:$0xff] %vm1356, %v1302
    %1368 = vst.msk [vmem:[#allocation3 + $0x58] sm:$0xff] %vm1356, %v1303
    %1369 = vst.msk [vmem:[#allocation3 + $0x60] sm:$0xff] %vm1356, %v1304
    %1370 = vst.msk [vmem:[#allocation3 + $0x68] sm:$0xff] %vm1356, %v1305
    %1371 = vst.msk [vmem:[#allocation3 + $0x70] sm:$0xff] %vm1356, %v1306
    %1372 = vst.msk [vmem:[#allocation3 + $0x78] sm:$0xff] %vm1356, %v1307
    %1373 = vst.msk [vmem:[#allocation3 + $0x80] sm:$0xff] %vm1356, %v1308
    %1374 = vst.msk [vmem:[#allocation3 + $0x88] sm:$0xff] %vm1356, %v1309
    %1375 = vst.msk [vmem:[#allocation3 + $0x90] sm:$0xff] %vm1356, %v1310
    %1376 = vst.msk [vmem:[#allocation3 + $0x98] sm:$0xff] %vm1356, %v1311
    %1377 = vst.msk [vmem:[#allocation3 + $0xa0] sm:$0xff] %vm1356, %v1312
    %1378 = vst.msk [vmem:[#allocation3 + $0xa8] sm:$0xff] %vm1356, %v1313
    %1379 = vst.msk [vmem:[#allocation3 + $0xb0] sm:$0xff] %vm1356, %v1314
    %1380 = vst.msk [vmem:[#allocation3 + $0xb8] sm:$0xff] %vm1356, %v1315
    %1381 = vst.msk [vmem:[#allocation3 + $0xc0] sm:$0xff] %vm1356, %v1316
    %1382 = vst.msk [vmem:[#allocation3 + $0xc8] sm:$0xff] %vm1356, %v1317
    %1383 = vst.msk [vmem:[#allocation3 + $0xd0] sm:$0xff] %vm1356, %v1318
    %1384 = vst.msk [vmem:[#allocation3 + $0xd8] sm:$0xff] %vm1356, %v1319
    %1385 = vst.msk [vmem:[#allocation3 + $0xe0] sm:$0xff] %vm1356, %v1320
    %1386 = vst.msk [vmem:[#allocation3 + $0xe8] sm:$0xff] %vm1356, %v1321
    %1387 = vst.msk [vmem:[#allocation3 + $0xf0] sm:$0xff] %vm1356, %v1322
    %1388 = vst.msk [vmem:[#allocation3 + $0xf8] sm:$0xff] %vm1356, %v1323
    %v1389 = vld [vmem:[#allocation2] sm:$0xf]
    %v1390 = vld [vmem:[#allocation2 + $0x4] sm:$0xf]
    %v1391 = vld [vmem:[#allocation2 + $0x8] sm:$0x1]
    %v1392 = vld [vmem:[#allocation2 + $0xc] sm:$0xf]
    %v1393 = vld [vmem:[#allocation2 + $0x10] sm:$0xf]
    %v1394 = vld [vmem:[#allocation2 + $0x14] sm:$0x1]
    %v1395 = vld [vmem:[#allocation2 + $0x18] sm:$0xf]
    %v1396 = vld [vmem:[#allocation2 + $0x1c] sm:$0xf]
    %v1397 = vld [vmem:[#allocation2 + $0x20] sm:$0x1]
    %v1398 = vld [vmem:[#allocation2 + $0x24] sm:$0xf]
    %v1399 = vld [vmem:[#allocation2 + $0x28] sm:$0xf]
    %v1400 = vld [vmem:[#allocation2 + $0x2c] sm:$0x1]
    %v1401 = vld [vmem:[#allocation2 + $0x30] sm:$0xf]
    %v1402 = vld [vmem:[#allocation2 + $0x34] sm:$0xf]
    %v1403 = vld [vmem:[#allocation2 + $0x38] sm:$0x1]
    %v1404 = vld [vmem:[#allocation2 + $0x3c] sm:$0xf]
    %v1405 = vld [vmem:[#allocation2 + $0x40] sm:$0xf]
    %v1406 = vld [vmem:[#allocation2 + $0x44] sm:$0x1]
    %v1407 = vld [vmem:[#allocation2 + $0x48] sm:$0xf]
    %v1408 = vld [vmem:[#allocation2 + $0x4c] sm:$0xf]
    %v1409 = vld [vmem:[#allocation2 + $0x50] sm:$0x1]
    %v1410 = vld [vmem:[#allocation2 + $0x54] sm:$0xf]
    %v1411 = vld [vmem:[#allocation2 + $0x58] sm:$0xf]
    %v1412 = vld [vmem:[#allocation2 + $0x5c] sm:$0x1]
    %v1413 = vld [vmem:[#allocation2 + $0x60] sm:$0xf]
    %v1414 = vld [vmem:[#allocation2 + $0x64] sm:$0xf]
    %v1415 = vld [vmem:[#allocation2 + $0x68] sm:$0x1]
    %v1416 = vld [vmem:[#allocation2 + $0x6c] sm:$0xf]
    %v1417 = vld [vmem:[#allocation2 + $0x70] sm:$0xf]
    %v1418 = vld [vmem:[#allocation2 + $0x74] sm:$0x1]
    %v1419 = vld [vmem:[#allocation2 + $0x78] sm:$0xf]
    %v1420 = vld [vmem:[#allocation2 + $0x7c] sm:$0xf]
    %v1421 = vld [vmem:[#allocation2 + $0x80] sm:$0x1]
    %v1422 = vld [vmem:[#allocation2 + $0x84] sm:$0xf]
    %v1423 = vld [vmem:[#allocation2 + $0x88] sm:$0xf]
    %v1424 = vld [vmem:[#allocation2 + $0x8c] sm:$0x1]
    %v1425 = vld [vmem:[#allocation2 + $0x90] sm:$0xf]
    %v1426 = vld [vmem:[#allocation2 + $0x94] sm:$0xf]
    %v1427 = vld [vmem:[#allocation2 + $0x98] sm:$0x1]
    %v1428 = vld [vmem:[#allocation2 + $0x9c] sm:$0xf]
    %v1429 = vld [vmem:[#allocation2 + $0xa0] sm:$0xf]
    %v1430 = vld [vmem:[#allocation2 + $0xa4] sm:$0x1]
    %v1431 = vld [vmem:[#allocation2 + $0xa8] sm:$0xf]
    %v1432 = vld [vmem:[#allocation2 + $0xac] sm:$0xf]
    %v1433 = vld [vmem:[#allocation2 + $0xb0] sm:$0x1]
    %v1434 = vld [vmem:[#allocation2 + $0xb4] sm:$0xf]
    %v1435 = vld [vmem:[#allocation2 + $0xb8] sm:$0xf]
    %v1436 = vld [vmem:[#allocation2 + $0xbc] sm:$0x1]
    %v1437 = vld [vmem:[#allocation2 + $0xd8] sm:$0xf]
    %v1438 = vld [vmem:[#allocation2 + $0xdc] sm:$0xf]
    %v1439 = vld [vmem:[#allocation2 + $0xe0] sm:$0x1]
    %v1440 = vld [vmem:[#allocation2 + $0xe4] sm:$0xf]
    %v1441 = vld [vmem:[#allocation2 + $0xe8] sm:$0xf]
    %v1442 = vld [vmem:[#allocation2 + $0xec] sm:$0x1]
    %v1443 = vld [vmem:[#allocation2 + $0xf0] sm:$0xf]
    %v1444 = vld [vmem:[#allocation2 + $0xf4] sm:$0xf]
    %v1445 = vld [vmem:[#allocation2 + $0xf8] sm:$0x1]
    %v1446 = vld [vmem:[#allocation2 + $0xfc] sm:$0xf]
    %v1447 = vld [vmem:[#allocation2 + $0x100] sm:$0xf]
    %v1448 = vld [vmem:[#allocation2 + $0x104] sm:$0x1]
    %v1449 = vld [vmem:[#allocation2 + $0x108] sm:$0xf]
    %v1450 = vld [vmem:[#allocation2 + $0x10c] sm:$0xf]
    %v1451 = vld [vmem:[#allocation2 + $0x110] sm:$0x1]
    %v1452 = vld [vmem:[#allocation2 + $0x114] sm:$0xf]
    %v1453 = vld [vmem:[#allocation2 + $0x118] sm:$0xf]
    %v1454 = vld [vmem:[#allocation2 + $0x11c] sm:$0x1]
    %v1455 = vld [vmem:[#allocation2 + $0x120] sm:$0xf]
    %v1456 = vld [vmem:[#allocation2 + $0x124] sm:$0xf]
    %v1457 = vld [vmem:[#allocation2 + $0x128] sm:$0x1]
    %v1458 = vld [vmem:[#allocation2 + $0x12c] sm:$0xf]
    %v1459 = vld [vmem:[#allocation2 + $0x130] sm:$0xf]
    %v1460 = vld [vmem:[#allocation2 + $0x134] sm:$0x1]
    %v1461 = vld [vmem:[#allocation2 + $0x138] sm:$0xf]
    %v1462 = vld [vmem:[#allocation2 + $0x13c] sm:$0xf]
    %v1463 = vld [vmem:[#allocation2 + $0x140] sm:$0x1]
    %v1464 = vld [vmem:[#allocation2 + $0x144] sm:$0xf]
    %v1465 = vld [vmem:[#allocation2 + $0x148] sm:$0xf]
    %v1466 = vld [vmem:[#allocation2 + $0x14c] sm:$0x1]
    %v1467 = vld [vmem:[#allocation2 + $0x150] sm:$0xf]
    %v1468 = vld [vmem:[#allocation2 + $0x154] sm:$0xf]
    %v1469 = vld [vmem:[#allocation2 + $0x158] sm:$0x1]
    %v1470 = vld [vmem:[#allocation2 + $0x15c] sm:$0xf]
    %v1471 = vld [vmem:[#allocation2 + $0x160] sm:$0xf]
    %v1472 = vld [vmem:[#allocation2 + $0x164] sm:$0x1]
    %v1473 = vld [vmem:[#allocation2 + $0x168] sm:$0xf]
    %v1474 = vld [vmem:[#allocation2 + $0x16c] sm:$0xf]
    %v1475 = vld [vmem:[#allocation2 + $0x170] sm:$0x1]
    %v1476 = vld [vmem:[#allocation2 + $0x174] sm:$0xf]
    %v1477 = vld [vmem:[#allocation2 + $0x178] sm:$0xf]
    %v1478 = vld [vmem:[#allocation2 + $0x17c] sm:$0x1]
    %v1479 = vld [vmem:[#allocation2 + $0x180] sm:$0xf]
    %v1480 = vld [vmem:[#allocation2 + $0x184] sm:$0xf]
    %v1481 = vld [vmem:[#allocation2 + $0x188] sm:$0x1]
    %v1482 = vld [vmem:[#allocation2 + $0x18c] sm:$0xf]
    %v1483 = vld [vmem:[#allocation2 + $0x190] sm:$0xf]
    %v1484 = vld [vmem:[#allocation2 + $0x194] sm:$0x1]
    %vm1485 = vsmask.f32 3328
    %vm1486 = vsmask.f32 7440
    %vm1487 = vmor %vm1485, %vm1486
    %v1489 = vshrl.u32 %v1389, 16
    %v1491 = vrot.slane %v1489, 4
    %v1492 = vshll.u32 %v1389, 16
    %v1494 = vrot.slane %v1492, 5
    %v1495 = vor.u32 %v1491, %v1494
    %v1496 = vrot.slane %v1495, 4
    %v1498 = vshll.u32 %v1390, 16
    %v1500 = vrot.slane %v1498, 5
    %v1501 = vsel %vm1487, %v1496, %v1500
    %v1502 = vshrl.u32 %v1390, 16
    %v1504 = vrot.slane %v1502, 4
    %v1505 = vor.u32 %v1504, %v1500
    %v1506 = vrot.slane %v1505, 4
    %v1508 = vshll.u32 %v1391, 16
    %v1510 = vrot.slane %v1508, 5
    %v1511 = vsel %vm1487, %v1506, %v1510
    %v1513 = vshrl.u32 %v1392, 16
    %v1515 = vrot.slane %v1513, 4
    %v1516 = vshll.u32 %v1392, 16
    %v1518 = vrot.slane %v1516, 5
    %v1519 = vor.u32 %v1515, %v1518
    %v1520 = vrot.slane %v1519, 4
    %v1522 = vshll.u32 %v1393, 16
    %v1524 = vrot.slane %v1522, 5
    %v1525 = vsel %vm1487, %v1520, %v1524
    %v1526 = vshrl.u32 %v1393, 16
    %v1528 = vrot.slane %v1526, 4
    %v1529 = vor.u32 %v1528, %v1524
    %v1530 = vrot.slane %v1529, 4
    %v1532 = vshll.u32 %v1394, 16
    %v1534 = vrot.slane %v1532, 5
    %v1535 = vsel %vm1487, %v1530, %v1534
    %v1537 = vshrl.u32 %v1395, 16
    %v1539 = vrot.slane %v1537, 4
    %v1540 = vshll.u32 %v1395, 16
    %v1542 = vrot.slane %v1540, 5
    %v1543 = vor.u32 %v1539, %v1542
    %v1544 = vrot.slane %v1543, 4
    %v1546 = vshll.u32 %v1396, 16
    %v1548 = vrot.slane %v1546, 5
    %v1549 = vsel %vm1487, %v1544, %v1548
    %v1550 = vshrl.u32 %v1396, 16
    %v1552 = vrot.slane %v1550, 4
    %v1553 = vor.u32 %v1552, %v1548
    %v1554 = vrot.slane %v1553, 4
    %v1556 = vshll.u32 %v1397, 16
    %v1558 = vrot.slane %v1556, 5
    %v1559 = vsel %vm1487, %v1554, %v1558
    %v1561 = vshrl.u32 %v1398, 16
    %v1563 = vrot.slane %v1561, 4
    %v1564 = vshll.u32 %v1398, 16
    %v1566 = vrot.slane %v1564, 5
    %v1567 = vor.u32 %v1563, %v1566
    %v1568 = vrot.slane %v1567, 4
    %v1570 = vshll.u32 %v1399, 16
    %v1572 = vrot.slane %v1570, 5
    %v1573 = vsel %vm1487, %v1568, %v1572
    %v1574 = vshrl.u32 %v1399, 16
    %v1576 = vrot.slane %v1574, 4
    %v1577 = vor.u32 %v1576, %v1572
    %v1578 = vrot.slane %v1577, 4
    %v1580 = vshll.u32 %v1400, 16
    %v1582 = vrot.slane %v1580, 5
    %v1583 = vsel %vm1487, %v1578, %v1582
    %v1585 = vshrl.u32 %v1401, 16
    %v1587 = vrot.slane %v1585, 4
    %v1588 = vshll.u32 %v1401, 16
    %v1590 = vrot.slane %v1588, 5
    %v1591 = vor.u32 %v1587, %v1590
    %v1592 = vrot.slane %v1591, 4
    %v1594 = vshll.u32 %v1402, 16
    %v1596 = vrot.slane %v1594, 5
    %v1597 = vsel %vm1487, %v1592, %v1596
    %v1598 = vshrl.u32 %v1402, 16
    %v1600 = vrot.slane %v1598, 4
    %v1601 = vor.u32 %v1600, %v1596
    %v1602 = vrot.slane %v1601, 4
    %v1604 = vshll.u32 %v1403, 16
    %v1606 = vrot.slane %v1604, 5
    %v1607 = vsel %vm1487, %v1602, %v1606
    %v1609 = vshrl.u32 %v1404, 16
    %v1611 = vrot.slane %v1609, 4
    %v1612 = vshll.u32 %v1404, 16
    %v1614 = vrot.slane %v1612, 5
    %v1615 = vor.u32 %v1611, %v1614
    %v1616 = vrot.slane %v1615, 4
    %v1618 = vshll.u32 %v1405, 16
    %v1620 = vrot.slane %v1618, 5
    %v1621 = vsel %vm1487, %v1616, %v1620
    %v1622 = vshrl.u32 %v1405, 16
    %v1624 = vrot.slane %v1622, 4
    %v1625 = vor.u32 %v1624, %v1620
    %v1626 = vrot.slane %v1625, 4
    %v1628 = vshll.u32 %v1406, 16
    %v1630 = vrot.slane %v1628, 5
    %v1631 = vsel %vm1487, %v1626, %v1630
    %v1633 = vshrl.u32 %v1407, 16
    %v1635 = vrot.slane %v1633, 4
    %v1636 = vshll.u32 %v1407, 16
    %v1638 = vrot.slane %v1636, 5
    %v1639 = vor.u32 %v1635, %v1638
    %v1640 = vrot.slane %v1639, 4
    %v1642 = vshll.u32 %v1408, 16
    %v1644 = vrot.slane %v1642, 5
    %v1645 = vsel %vm1487, %v1640, %v1644
    %v1646 = vshrl.u32 %v1408, 16
    %v1648 = vrot.slane %v1646, 4
    %v1649 = vor.u32 %v1648, %v1644
    %v1650 = vrot.slane %v1649, 4
    %v1652 = vshll.u32 %v1409, 16
    %v1654 = vrot.slane %v1652, 5
    %v1655 = vsel %vm1487, %v1650, %v1654
    %v1657 = vshrl.u32 %v1410, 16
    %v1659 = vrot.slane %v1657, 4
    %v1660 = vshll.u32 %v1410, 16
    %v1662 = vrot.slane %v1660, 5
    %v1663 = vor.u32 %v1659, %v1662
    %v1664 = vrot.slane %v1663, 4
    %v1666 = vshll.u32 %v1411, 16
    %v1668 = vrot.slane %v1666, 5
    %v1669 = vsel %vm1487, %v1664, %v1668
    %v1670 = vshrl.u32 %v1411, 16
    %v1672 = vrot.slane %v1670, 4
    %v1673 = vor.u32 %v1672, %v1668
    %v1674 = vrot.slane %v1673, 4
    %v1676 = vshll.u32 %v1412, 16
    %v1678 = vrot.slane %v1676, 5
    %v1679 = vsel %vm1487, %v1674, %v1678
    %v1681 = vshrl.u32 %v1413, 16
    %v1683 = vrot.slane %v1681, 4
    %v1684 = vshll.u32 %v1413, 16
    %v1686 = vrot.slane %v1684, 5
    %v1687 = vor.u32 %v1683, %v1686
    %v1688 = vrot.slane %v1687, 4
    %v1690 = vshll.u32 %v1414, 16
    %v1692 = vrot.slane %v1690, 5
    %v1693 = vsel %vm1487, %v1688, %v1692
    %v1694 = vshrl.u32 %v1414, 16
    %v1696 = vrot.slane %v1694, 4
    %v1697 = vor.u32 %v1696, %v1692
    %v1698 = vrot.slane %v1697, 4
    %v1700 = vshll.u32 %v1415, 16
    %v1702 = vrot.slane %v1700, 5
    %v1703 = vsel %vm1487, %v1698, %v1702
    %v1705 = vshrl.u32 %v1416, 16
    %v1707 = vrot.slane %v1705, 4
    %v1708 = vshll.u32 %v1416, 16
    %v1710 = vrot.slane %v1708, 5
    %v1711 = vor.u32 %v1707, %v1710
    %v1712 = vrot.slane %v1711, 4
    %v1714 = vshll.u32 %v1417, 16
    %v1716 = vrot.slane %v1714, 5
    %v1717 = vsel %vm1487, %v1712, %v1716
    %v1718 = vshrl.u32 %v1417, 16
    %v1720 = vrot.slane %v1718, 4
    %v1721 = vor.u32 %v1720, %v1716
    %v1722 = vrot.slane %v1721, 4
    %v1724 = vshll.u32 %v1418, 16
    %v1726 = vrot.slane %v1724, 5
    %v1727 = vsel %vm1487, %v1722, %v1726
    %v1729 = vshrl.u32 %v1419, 16
    %v1731 = vrot.slane %v1729, 4
    %v1732 = vshll.u32 %v1419, 16
    %v1734 = vrot.slane %v1732, 5
    %v1735 = vor.u32 %v1731, %v1734
    %v1736 = vrot.slane %v1735, 4
    %v1738 = vshll.u32 %v1420, 16
    %v1740 = vrot.slane %v1738, 5
    %v1741 = vsel %vm1487, %v1736, %v1740
    %v1742 = vshrl.u32 %v1420, 16
    %v1744 = vrot.slane %v1742, 4
    %v1745 = vor.u32 %v1744, %v1740
    %v1746 = vrot.slane %v1745, 4
    %v1748 = vshll.u32 %v1421, 16
    %v1750 = vrot.slane %v1748, 5
    %v1751 = vsel %vm1487, %v1746, %v1750
    %v1753 = vshrl.u32 %v1422, 16
    %v1755 = vrot.slane %v1753, 4
    %v1756 = vshll.u32 %v1422, 16
    %v1758 = vrot.slane %v1756, 5
    %v1759 = vor.u32 %v1755, %v1758
    %v1760 = vrot.slane %v1759, 4
    %v1762 = vshll.u32 %v1423, 16
    %v1764 = vrot.slane %v1762, 5
    %v1765 = vsel %vm1487, %v1760, %v1764
    %v1766 = vshrl.u32 %v1423, 16
    %v1768 = vrot.slane %v1766, 4
    %v1769 = vor.u32 %v1768, %v1764
    %v1770 = vrot.slane %v1769, 4
    %v1772 = vshll.u32 %v1424, 16
    %v1774 = vrot.slane %v1772, 5
    %v1775 = vsel %vm1487, %v1770, %v1774
    %v1777 = vshrl.u32 %v1425, 16
    %v1779 = vrot.slane %v1777, 4
    %v1780 = vshll.u32 %v1425, 16
    %v1782 = vrot.slane %v1780, 5
    %v1783 = vor.u32 %v1779, %v1782
    %v1784 = vrot.slane %v1783, 4
    %v1786 = vshll.u32 %v1426, 16
    %v1788 = vrot.slane %v1786, 5
    %v1789 = vsel %vm1487, %v1784, %v1788
    %v1790 = vshrl.u32 %v1426, 16
    %v1792 = vrot.slane %v1790, 4
    %v1793 = vor.u32 %v1792, %v1788
    %v1794 = vrot.slane %v1793, 4
    %v1796 = vshll.u32 %v1427, 16
    %v1798 = vrot.slane %v1796, 5
    %v1799 = vsel %vm1487, %v1794, %v1798
    %v1801 = vshrl.u32 %v1428, 16
    %v1803 = vrot.slane %v1801, 4
    %v1804 = vshll.u32 %v1428, 16
    %v1806 = vrot.slane %v1804, 5
    %v1807 = vor.u32 %v1803, %v1806
    %v1808 = vrot.slane %v1807, 4
    %v1810 = vshll.u32 %v1429, 16
    %v1812 = vrot.slane %v1810, 5
    %v1813 = vsel %vm1487, %v1808, %v1812
    %v1814 = vshrl.u32 %v1429, 16
    %v1816 = vrot.slane %v1814, 4
    %v1817 = vor.u32 %v1816, %v1812
    %v1818 = vrot.slane %v1817, 4
    %v1820 = vshll.u32 %v1430, 16
    %v1822 = vrot.slane %v1820, 5
    %v1823 = vsel %vm1487, %v1818, %v1822
    %v1825 = vshrl.u32 %v1431, 16
    %v1827 = vrot.slane %v1825, 4
    %v1828 = vshll.u32 %v1431, 16
    %v1830 = vrot.slane %v1828, 5
    %v1831 = vor.u32 %v1827, %v1830
    %v1832 = vrot.slane %v1831, 4
    %v1834 = vshll.u32 %v1432, 16
    %v1836 = vrot.slane %v1834, 5
    %v1837 = vsel %vm1487, %v1832, %v1836
    %v1838 = vshrl.u32 %v1432, 16
    %v1840 = vrot.slane %v1838, 4
    %v1841 = vor.u32 %v1840, %v1836
    %v1842 = vrot.slane %v1841, 4
    %v1844 = vshll.u32 %v1433, 16
    %v1846 = vrot.slane %v1844, 5
    %v1847 = vsel %vm1487, %v1842, %v1846
    %v1849 = vshrl.u32 %v1434, 16
    %v1851 = vrot.slane %v1849, 4
    %v1852 = vshll.u32 %v1434, 16
    %v1854 = vrot.slane %v1852, 5
    %v1855 = vor.u32 %v1851, %v1854
    %v1856 = vrot.slane %v1855, 4
    %v1858 = vshll.u32 %v1435, 16
    %v1860 = vrot.slane %v1858, 5
    %v1861 = vsel %vm1487, %v1856, %v1860
    %v1862 = vshrl.u32 %v1435, 16
    %v1864 = vrot.slane %v1862, 4
    %v1865 = vor.u32 %v1864, %v1860
    %v1866 = vrot.slane %v1865, 4
    %v1868 = vshll.u32 %v1436, 16
    %v1870 = vrot.slane %v1868, 5
    %v1871 = vsel %vm1487, %v1866, %v1870
    %v1873 = vshrl.u32 %v1437, 16
    %v1875 = vrot.slane %v1873, 4
    %v1876 = vshll.u32 %v1437, 16
    %v1878 = vrot.slane %v1876, 5
    %v1879 = vor.u32 %v1875, %v1878
    %v1880 = vrot.slane %v1879, 4
    %v1882 = vshll.u32 %v1438, 16
    %v1884 = vrot.slane %v1882, 5
    %v1885 = vsel %vm1487, %v1880, %v1884
    %v1886 = vshrl.u32 %v1438, 16
    %v1888 = vrot.slane %v1886, 4
    %v1889 = vor.u32 %v1888, %v1884
    %v1890 = vrot.slane %v1889, 4
    %v1892 = vshll.u32 %v1439, 16
    %v1894 = vrot.slane %v1892, 5
    %v1895 = vsel %vm1487, %v1890, %v1894
    %v1897 = vshrl.u32 %v1440, 16
    %v1899 = vrot.slane %v1897, 4
    %v1900 = vshll.u32 %v1440, 16
    %v1902 = vrot.slane %v1900, 5
    %v1903 = vor.u32 %v1899, %v1902
    %v1904 = vrot.slane %v1903, 4
    %v1906 = vshll.u32 %v1441, 16
    %v1908 = vrot.slane %v1906, 5
    %v1909 = vsel %vm1487, %v1904, %v1908
    %v1910 = vshrl.u32 %v1441, 16
    %v1912 = vrot.slane %v1910, 4
    %v1913 = vor.u32 %v1912, %v1908
    %v1914 = vrot.slane %v1913, 4
    %v1916 = vshll.u32 %v1442, 16
    %v1918 = vrot.slane %v1916, 5
    %v1919 = vsel %vm1487, %v1914, %v1918
    %v1921 = vshrl.u32 %v1443, 16
    %v1923 = vrot.slane %v1921, 4
    %v1924 = vshll.u32 %v1443, 16
    %v1926 = vrot.slane %v1924, 5
    %v1927 = vor.u32 %v1923, %v1926
    %v1928 = vrot.slane %v1927, 4
    %v1930 = vshll.u32 %v1444, 16
    %v1932 = vrot.slane %v1930, 5
    %v1933 = vsel %vm1487, %v1928, %v1932
    %v1934 = vshrl.u32 %v1444, 16
    %v1936 = vrot.slane %v1934, 4
    %v1937 = vor.u32 %v1936, %v1932
    %v1938 = vrot.slane %v1937, 4
    %v1940 = vshll.u32 %v1445, 16
    %v1942 = vrot.slane %v1940, 5
    %v1943 = vsel %vm1487, %v1938, %v1942
    %v1945 = vshrl.u32 %v1446, 16
    %v1947 = vrot.slane %v1945, 4
    %v1948 = vshll.u32 %v1446, 16
    %v1950 = vrot.slane %v1948, 5
    %v1951 = vor.u32 %v1947, %v1950
    %v1952 = vrot.slane %v1951, 4
    %v1954 = vshll.u32 %v1447, 16
    %v1956 = vrot.slane %v1954, 5
    %v1957 = vsel %vm1487, %v1952, %v1956
    %v1958 = vshrl.u32 %v1447, 16
    %v1960 = vrot.slane %v1958, 4
    %v1961 = vor.u32 %v1960, %v1956
    %v1962 = vrot.slane %v1961, 4
    %v1964 = vshll.u32 %v1448, 16
    %v1966 = vrot.slane %v1964, 5
    %v1967 = vsel %vm1487, %v1962, %v1966
    %v1969 = vshrl.u32 %v1449, 16
    %v1971 = vrot.slane %v1969, 4
    %v1972 = vshll.u32 %v1449, 16
    %v1974 = vrot.slane %v1972, 5
    %v1975 = vor.u32 %v1971, %v1974
    %v1976 = vrot.slane %v1975, 4
    %v1978 = vshll.u32 %v1450, 16
    %v1980 = vrot.slane %v1978, 5
    %v1981 = vsel %vm1487, %v1976, %v1980
    %v1982 = vshrl.u32 %v1450, 16
    %v1984 = vrot.slane %v1982, 4
    %v1985 = vor.u32 %v1984, %v1980
    %v1986 = vrot.slane %v1985, 4
    %v1988 = vshll.u32 %v1451, 16
    %v1990 = vrot.slane %v1988, 5
    %v1991 = vsel %vm1487, %v1986, %v1990
    %v1993 = vshrl.u32 %v1452, 16
    %v1995 = vrot.slane %v1993, 4
    %v1996 = vshll.u32 %v1452, 16
    %v1998 = vrot.slane %v1996, 5
    %v1999 = vor.u32 %v1995, %v1998
    %v2000 = vrot.slane %v1999, 4
    %v2002 = vshll.u32 %v1453, 16
    %v2004 = vrot.slane %v2002, 5
    %v2005 = vsel %vm1487, %v2000, %v2004
    %v2006 = vshrl.u32 %v1453, 16
    %v2008 = vrot.slane %v2006, 4
    %v2009 = vor.u32 %v2008, %v2004
    %v2010 = vrot.slane %v2009, 4
    %v2012 = vshll.u32 %v1454, 16
    %v2014 = vrot.slane %v2012, 5
    %v2015 = vsel %vm1487, %v2010, %v2014
    %v2017 = vshrl.u32 %v1455, 16
    %v2019 = vrot.slane %v2017, 4
    %v2020 = vshll.u32 %v1455, 16
    %v2022 = vrot.slane %v2020, 5
    %v2023 = vor.u32 %v2019, %v2022
    %v2024 = vrot.slane %v2023, 4
    %v2026 = vshll.u32 %v1456, 16
    %v2028 = vrot.slane %v2026, 5
    %v2029 = vsel %vm1487, %v2024, %v2028
    %v2030 = vshrl.u32 %v1456, 16
    %v2032 = vrot.slane %v2030, 4
    %v2033 = vor.u32 %v2032, %v2028
    %v2034 = vrot.slane %v2033, 4
    %v2036 = vshll.u32 %v1457, 16
    %v2038 = vrot.slane %v2036, 5
    %v2039 = vsel %vm1487, %v2034, %v2038
    %v2041 = vshrl.u32 %v1458, 16
    %v2043 = vrot.slane %v2041, 4
    %v2044 = vshll.u32 %v1458, 16
    %v2046 = vrot.slane %v2044, 5
    %v2047 = vor.u32 %v2043, %v2046
    %v2048 = vrot.slane %v2047, 4
    %v2050 = vshll.u32 %v1459, 16
    %v2052 = vrot.slane %v2050, 5
    %v2053 = vsel %vm1487, %v2048, %v2052
    %v2054 = vshrl.u32 %v1459, 16
    %v2056 = vrot.slane %v2054, 4
    %v2057 = vor.u32 %v2056, %v2052
    %v2058 = vrot.slane %v2057, 4
    %v2060 = vshll.u32 %v1460, 16
    %v2062 = vrot.slane %v2060, 5
    %v2063 = vsel %vm1487, %v2058, %v2062
    %v2065 = vshrl.u32 %v1461, 16
    %v2067 = vrot.slane %v2065, 4
    %v2068 = vshll.u32 %v1461, 16
    %v2070 = vrot.slane %v2068, 5
    %v2071 = vor.u32 %v2067, %v2070
    %v2072 = vrot.slane %v2071, 4
    %v2074 = vshll.u32 %v1462, 16
    %v2076 = vrot.slane %v2074, 5
    %v2077 = vsel %vm1487, %v2072, %v2076
    %v2078 = vshrl.u32 %v1462, 16
    %v2080 = vrot.slane %v2078, 4
    %v2081 = vor.u32 %v2080, %v2076
    %v2082 = vrot.slane %v2081, 4
    %v2084 = vshll.u32 %v1463, 16
    %v2086 = vrot.slane %v2084, 5
    %v2087 = vsel %vm1487, %v2082, %v2086
    %v2089 = vshrl.u32 %v1464, 16
    %v2091 = vrot.slane %v2089, 4
    %v2092 = vshll.u32 %v1464, 16
    %v2094 = vrot.slane %v2092, 5
    %v2095 = vor.u32 %v2091, %v2094
    %v2096 = vrot.slane %v2095, 4
    %v2098 = vshll.u32 %v1465, 16
    %v2100 = vrot.slane %v2098, 5
    %v2101 = vsel %vm1487, %v2096, %v2100
    %v2102 = vshrl.u32 %v1465, 16
    %v2104 = vrot.slane %v2102, 4
    %v2105 = vor.u32 %v2104, %v2100
    %v2106 = vrot.slane %v2105, 4
    %v2108 = vshll.u32 %v1466, 16
    %v2110 = vrot.slane %v2108, 5
    %v2111 = vsel %vm1487, %v2106, %v2110
    %v2113 = vshrl.u32 %v1467, 16
    %v2115 = vrot.slane %v2113, 4
    %v2116 = vshll.u32 %v1467, 16
    %v2118 = vrot.slane %v2116, 5
    %v2119 = vor.u32 %v2115, %v2118
    %v2120 = vrot.slane %v2119, 4
    %v2122 = vshll.u32 %v1468, 16
    %v2124 = vrot.slane %v2122, 5
    %v2125 = vsel %vm1487, %v2120, %v2124
    %v2126 = vshrl.u32 %v1468, 16
    %v2128 = vrot.slane %v2126, 4
    %v2129 = vor.u32 %v2128, %v2124
    %v2130 = vrot.slane %v2129, 4
    %v2132 = vshll.u32 %v1469, 16
    %v2134 = vrot.slane %v2132, 5
    %v2135 = vsel %vm1487, %v2130, %v2134
    %v2137 = vshrl.u32 %v1470, 16
    %v2139 = vrot.slane %v2137, 4
    %v2140 = vshll.u32 %v1470, 16
    %v2142 = vrot.slane %v2140, 5
    %v2143 = vor.u32 %v2139, %v2142
    %v2144 = vrot.slane %v2143, 4
    %v2146 = vshll.u32 %v1471, 16
    %v2148 = vrot.slane %v2146, 5
    %v2149 = vsel %vm1487, %v2144, %v2148
    %v2150 = vshrl.u32 %v1471, 16
    %v2152 = vrot.slane %v2150, 4
    %v2153 = vor.u32 %v2152, %v2148
    %v2154 = vrot.slane %v2153, 4
    %v2156 = vshll.u32 %v1472, 16
    %v2158 = vrot.slane %v2156, 5
    %v2159 = vsel %vm1487, %v2154, %v2158
    %v2161 = vshrl.u32 %v1473, 16
    %v2163 = vrot.slane %v2161, 4
    %v2164 = vshll.u32 %v1473, 16
    %v2166 = vrot.slane %v2164, 5
    %v2167 = vor.u32 %v2163, %v2166
    %v2168 = vrot.slane %v2167, 4
    %v2170 = vshll.u32 %v1474, 16
    %v2172 = vrot.slane %v2170, 5
    %v2173 = vsel %vm1487, %v2168, %v2172
    %v2174 = vshrl.u32 %v1474, 16
    %v2176 = vrot.slane %v2174, 4
    %v2177 = vor.u32 %v2176, %v2172
    %v2178 = vrot.slane %v2177, 4
    %v2180 = vshll.u32 %v1475, 16
    %v2182 = vrot.slane %v2180, 5
    %v2183 = vsel %vm1487, %v2178, %v2182
    %v2185 = vshrl.u32 %v1476, 16
    %v2187 = vrot.slane %v2185, 4
    %v2188 = vshll.u32 %v1476, 16
    %v2190 = vrot.slane %v2188, 5
    %v2191 = vor.u32 %v2187, %v2190
    %v2192 = vrot.slane %v2191, 4
    %v2194 = vshll.u32 %v1477, 16
    %v2196 = vrot.slane %v2194, 5
    %v2197 = vsel %vm1487, %v2192, %v2196
    %v2198 = vshrl.u32 %v1477, 16
    %v2200 = vrot.slane %v2198, 4
    %v2201 = vor.u32 %v2200, %v2196
    %v2202 = vrot.slane %v2201, 4
    %v2204 = vshll.u32 %v1478, 16
    %v2206 = vrot.slane %v2204, 5
    %v2207 = vsel %vm1487, %v2202, %v2206
    %v2209 = vshrl.u32 %v1479, 16
    %v2211 = vrot.slane %v2209, 4
    %v2212 = vshll.u32 %v1479, 16
    %v2214 = vrot.slane %v2212, 5
    %v2215 = vor.u32 %v2211, %v2214
    %v2216 = vrot.slane %v2215, 4
    %v2218 = vshll.u32 %v1480, 16
    %v2220 = vrot.slane %v2218, 5
    %v2221 = vsel %vm1487, %v2216, %v2220
    %v2222 = vshrl.u32 %v1480, 16
    %v2224 = vrot.slane %v2222, 4
    %v2225 = vor.u32 %v2224, %v2220
    %v2226 = vrot.slane %v2225, 4
    %v2228 = vshll.u32 %v1481, 16
    %v2230 = vrot.slane %v2228, 5
    %v2231 = vsel %vm1487, %v2226, %v2230
    %v2233 = vshrl.u32 %v1482, 16
    %v2235 = vrot.slane %v2233, 4
    %v2236 = vshll.u32 %v1482, 16
    %v2238 = vrot.slane %v2236, 5
    %v2239 = vor.u32 %v2235, %v2238
    %v2240 = vrot.slane %v2239, 4
    %v2242 = vshll.u32 %v1483, 16
    %v2244 = vrot.slane %v2242, 5
    %v2245 = vsel %vm1487, %v2240, %v2244
    %v2246 = vshrl.u32 %v1483, 16
    %v2248 = vrot.slane %v2246, 4
    %v2249 = vor.u32 %v2248, %v2244
    %v2250 = vrot.slane %v2249, 4
    %v2252 = vshll.u32 %v1484, 16
    %v2254 = vrot.slane %v2252, 5
    %v2255 = vsel %vm1487, %v2250, %v2254
    %v2256 = vunpack.c.l.b16 %v1501
    %v2257 = vunpack.c.l.b16 %v1511
    %v2258 = vunpack.c.l.b16 %v1525
    %v2259 = vunpack.c.l.b16 %v1535
    %v2260 = vunpack.c.l.b16 %v1549
    %v2261 = vunpack.c.l.b16 %v1559
    %v2262 = vunpack.c.l.b16 %v1573
    %v2263 = vunpack.c.l.b16 %v1583
    %v2264 = vunpack.c.l.b16 %v1597
    %v2265 = vunpack.c.l.b16 %v1607
    %v2266 = vunpack.c.l.b16 %v1621
    %v2267 = vunpack.c.l.b16 %v1631
    %v2268 = vunpack.c.l.b16 %v1645
    %v2269 = vunpack.c.l.b16 %v1655
    %v2270 = vunpack.c.l.b16 %v1669
    %v2271 = vunpack.c.l.b16 %v1679
    %v2272 = vunpack.c.l.b16 %v1693
    %v2273 = vunpack.c.l.b16 %v1703
    %v2274 = vunpack.c.l.b16 %v1717
    %v2275 = vunpack.c.l.b16 %v1727
    %v2276 = vunpack.c.l.b16 %v1741
    %v2277 = vunpack.c.l.b16 %v1751
    %v2278 = vunpack.c.l.b16 %v1765
    %v2279 = vunpack.c.l.b16 %v1775
    %v2280 = vunpack.c.l.b16 %v1789
    %v2281 = vunpack.c.l.b16 %v1799
    %v2282 = vunpack.c.l.b16 %v1813
    %v2283 = vunpack.c.l.b16 %v1823
    %v2284 = vunpack.c.l.b16 %v1837
    %v2285 = vunpack.c.l.b16 %v1847
    %v2286 = vunpack.c.l.b16 %v1861
    %v2287 = vunpack.c.l.b16 %v1871
    %v2288 = vunpack.c.l.b16 %v1885
    %v2289 = vunpack.c.l.b16 %v1895
    %v2290 = vunpack.c.l.b16 %v1909
    %v2291 = vunpack.c.l.b16 %v1919
    %v2292 = vunpack.c.l.b16 %v1933
    %v2293 = vunpack.c.l.b16 %v1943
    %v2294 = vunpack.c.l.b16 %v1957
    %v2295 = vunpack.c.l.b16 %v1967
    %v2296 = vunpack.c.l.b16 %v1981
    %v2297 = vunpack.c.l.b16 %v1991
    %v2298 = vunpack.c.l.b16 %v2005
    %v2299 = vunpack.c.l.b16 %v2015
    %v2300 = vunpack.c.l.b16 %v2029
    %v2301 = vunpack.c.l.b16 %v2039
    %v2302 = vunpack.c.l.b16 %v2053
    %v2303 = vunpack.c.l.b16 %v2063
    %v2304 = vunpack.c.l.b16 %v2077
    %v2305 = vunpack.c.l.b16 %v2087
    %v2306 = vunpack.c.l.b16 %v2101
    %v2307 = vunpack.c.l.b16 %v2111
    %v2308 = vunpack.c.l.b16 %v2125
    %v2309 = vunpack.c.l.b16 %v2135
    %v2310 = vunpack.c.l.b16 %v2149
    %v2311 = vunpack.c.l.b16 %v2159
    %v2312 = vunpack.c.l.b16 %v2173
    %v2313 = vunpack.c.l.b16 %v2183
    %v2314 = vunpack.c.l.b16 %v2197
    %v2315 = vunpack.c.l.b16 %v2207
    %v2316 = vunpack.c.l.b16 %v2221
    %v2317 = vunpack.c.l.b16 %v2231
    %v2318 = vunpack.c.l.b16 %v2245
    %v2319 = vunpack.c.l.b16 %v2255
    %v2320 = vpack.c.b16 %v2257, %v2256
    %v2321 = vpack.c.b16 %v2259, %v2258
    %v2322 = vpack.c.b16 %v2261, %v2260
    %v2323 = vpack.c.b16 %v2263, %v2262
    %v2324 = vpack.c.b16 %v2265, %v2264
    %v2325 = vpack.c.b16 %v2267, %v2266
    %v2326 = vpack.c.b16 %v2269, %v2268
    %v2327 = vpack.c.b16 %v2271, %v2270
    %v2328 = vpack.c.b16 %v2273, %v2272
    %v2329 = vpack.c.b16 %v2275, %v2274
    %v2330 = vpack.c.b16 %v2277, %v2276
    %v2331 = vpack.c.b16 %v2279, %v2278
    %v2332 = vpack.c.b16 %v2281, %v2280
    %v2333 = vpack.c.b16 %v2283, %v2282
    %v2334 = vpack.c.b16 %v2285, %v2284
    %v2335 = vpack.c.b16 %v2287, %v2286
    %v2336 = vpack.c.b16 %v2289, %v2288
    %v2337 = vpack.c.b16 %v2291, %v2290
    %v2338 = vpack.c.b16 %v2293, %v2292
    %v2339 = vpack.c.b16 %v2295, %v2294
    %v2340 = vpack.c.b16 %v2297, %v2296
    %v2341 = vpack.c.b16 %v2299, %v2298
    %v2342 = vpack.c.b16 %v2301, %v2300
    %v2343 = vpack.c.b16 %v2303, %v2302
    %v2344 = vpack.c.b16 %v2305, %v2304
    %v2345 = vpack.c.b16 %v2307, %v2306
    %v2346 = vpack.c.b16 %v2309, %v2308
    %v2347 = vpack.c.b16 %v2311, %v2310
    %v2348 = vpack.c.b16 %v2313, %v2312
    %v2349 = vpack.c.b16 %v2315, %v2314
    %v2350 = vpack.c.b16 %v2317, %v2316
    %v2351 = vpack.c.b16 %v2319, %v2318
    %2352 = vrot.lane.b32.xlu0 %v2320, 3
    %v2353 = vpop.permute.xlu0 %2352
    %2354 = vrot.lane.b32.xlu0 %v2321, 3
    %v2355 = vpop.permute.xlu0 %2354
    %2356 = vrot.lane.b32.xlu0 %v2322, 3
    %v2357 = vpop.permute.xlu0 %2356
    %2358 = vrot.lane.b32.xlu0 %v2323, 3
    %v2359 = vpop.permute.xlu0 %2358
    %2360 = vrot.lane.b32.xlu0 %v2324, 3
    %v2361 = vpop.permute.xlu0 %2360
    %2362 = vrot.lane.b32.xlu0 %v2325, 3
    %v2363 = vpop.permute.xlu0 %2362
    %2364 = vrot.lane.b32.xlu0 %v2326, 3
    %v2365 = vpop.permute.xlu0 %2364
    %2366 = vrot.lane.b32.xlu0 %v2327, 3
    %v2367 = vpop.permute.xlu0 %2366
    %2368 = vrot.lane.b32.xlu0 %v2328, 3
    %v2369 = vpop.permute.xlu0 %2368
    %2370 = vrot.lane.b32.xlu0 %v2329, 3
    %v2371 = vpop.permute.xlu0 %2370
    %2372 = vrot.lane.b32.xlu0 %v2330, 3
    %v2373 = vpop.permute.xlu0 %2372
    %2374 = vrot.lane.b32.xlu0 %v2331, 3
    %v2375 = vpop.permute.xlu0 %2374
    %2376 = vrot.lane.b32.xlu0 %v2332, 3
    %v2377 = vpop.permute.xlu0 %2376
    %2378 = vrot.lane.b32.xlu0 %v2333, 3
    %v2379 = vpop.permute.xlu0 %2378
    %2380 = vrot.lane.b32.xlu0 %v2334, 3
    %v2381 = vpop.permute.xlu0 %2380
    %2382 = vrot.lane.b32.xlu0 %v2335, 3
    %v2383 = vpop.permute.xlu0 %2382
    %2384 = vrot.lane.b32.xlu0 %v2336, 3
    %v2385 = vpop.permute.xlu0 %2384
    %2386 = vrot.lane.b32.xlu0 %v2337, 3
    %v2387 = vpop.permute.xlu0 %2386
    %2388 = vrot.lane.b32.xlu0 %v2338, 3
    %v2389 = vpop.permute.xlu0 %2388
    %2390 = vrot.lane.b32.xlu0 %v2339, 3
    %v2391 = vpop.permute.xlu0 %2390
    %2392 = vrot.lane.b32.xlu0 %v2340, 3
    %v2393 = vpop.permute.xlu0 %2392
    %2394 = vrot.lane.b32.xlu0 %v2341, 3
    %v2395 = vpop.permute.xlu0 %2394
    %2396 = vrot.lane.b32.xlu0 %v2342, 3
    %v2397 = vpop.permute.xlu0 %2396
    %2398 = vrot.lane.b32.xlu0 %v2343, 3
    %v2399 = vpop.permute.xlu0 %2398
    %2400 = vrot.lane.b32.xlu0 %v2344, 3
    %v2401 = vpop.permute.xlu0 %2400
    %2402 = vrot.lane.b32.xlu0 %v2345, 3
    %v2403 = vpop.permute.xlu0 %2402
    %2404 = vrot.lane.b32.xlu0 %v2346, 3
    %v2405 = vpop.permute.xlu0 %2404
    %2406 = vrot.lane.b32.xlu0 %v2347, 3
    %v2407 = vpop.permute.xlu0 %2406
    %2408 = vrot.lane.b32.xlu0 %v2348, 3
    %v2409 = vpop.permute.xlu0 %2408
    %2410 = vrot.lane.b32.xlu0 %v2349, 3
    %v2411 = vpop.permute.xlu0 %2410
    %2412 = vrot.lane.b32.xlu0 %v2350, 3
    %v2413 = vpop.permute.xlu0 %2412
    %2414 = vrot.lane.b32.xlu0 %v2351, 3
    %v2415 = vpop.permute.xlu0 %2414
    %vm2448 = vcmask 48152
    %2449 = vst.msk [vmem:[#allocation3] sm:$0xff] %vm2448, %v2353
    %2450 = vst.msk [vmem:[#allocation3 + $0x8] sm:$0xff] %vm2448, %v2355
    %2451 = vst.msk [vmem:[#allocation3 + $0x10] sm:$0xff] %vm2448, %v2357
    %2452 = vst.msk [vmem:[#allocation3 + $0x18] sm:$0xff] %vm2448, %v2359
    %2453 = vst.msk [vmem:[#allocation3 + $0x20] sm:$0xff] %vm2448, %v2361
    %2454 = vst.msk [vmem:[#allocation3 + $0x28] sm:$0xff] %vm2448, %v2363
    %2455 = vst.msk [vmem:[#allocation3 + $0x30] sm:$0xff] %vm2448, %v2365
    %2456 = vst.msk [vmem:[#allocation3 + $0x38] sm:$0xff] %vm2448, %v2367
    %2457 = vst.msk [vmem:[#allocation3 + $0x40] sm:$0xff] %vm2448, %v2369
    %2458 = vst.msk [vmem:[#allocation3 + $0x48] sm:$0xff] %vm2448, %v2371
    %2459 = vst.msk [vmem:[#allocation3 + $0x50] sm:$0xff] %vm2448, %v2373
    %2460 = vst.msk [vmem:[#allocation3 + $0x58] sm:$0xff] %vm2448, %v2375
    %2461 = vst.msk [vmem:[#allocation3 + $0x60] sm:$0xff] %vm2448, %v2377
    %2462 = vst.msk [vmem:[#allocation3 + $0x68] sm:$0xff] %vm2448, %v2379
    %2463 = vst.msk [vmem:[#allocation3 + $0x70] sm:$0xff] %vm2448, %v2381
    %2464 = vst.msk [vmem:[#allocation3 + $0x78] sm:$0xff] %vm2448, %v2383
    %2465 = vst.msk [vmem:[#allocation3 + $0x80] sm:$0xff] %vm2448, %v2385
    %2466 = vst.msk [vmem:[#allocation3 + $0x88] sm:$0xff] %vm2448, %v2387
    %2467 = vst.msk [vmem:[#allocation3 + $0x90] sm:$0xff] %vm2448, %v2389
    %2468 = vst.msk [vmem:[#allocation3 + $0x98] sm:$0xff] %vm2448, %v2391
    %2469 = vst.msk [vmem:[#allocation3 + $0xa0] sm:$0xff] %vm2448, %v2393
    %2470 = vst.msk [vmem:[#allocation3 + $0xa8] sm:$0xff] %vm2448, %v2395
    %2471 = vst.msk [vmem:[#allocation3 + $0xb0] sm:$0xff] %vm2448, %v2397
    %2472 = vst.msk [vmem:[#allocation3 + $0xb8] sm:$0xff] %vm2448, %v2399
    %2473 = vst.msk [vmem:[#allocation3 + $0xc0] sm:$0xff] %vm2448, %v2401
    %2474 = vst.msk [vmem:[#allocation3 + $0xc8] sm:$0xff] %vm2448, %v2403
    %2475 = vst.msk [vmem:[#allocation3 + $0xd0] sm:$0xff] %vm2448, %v2405
    %2476 = vst.msk [vmem:[#allocation3 + $0xd8] sm:$0xff] %vm2448, %v2407
    %2477 = vst.msk [vmem:[#allocation3 + $0xe0] sm:$0xff] %vm2448, %v2409
    %2478 = vst.msk [vmem:[#allocation3 + $0xe8] sm:$0xff] %vm2448, %v2411
    %2479 = vst.msk [vmem:[#allocation3 + $0xf0] sm:$0xff] %vm2448, %v2413
    %2480 = vst.msk [vmem:[#allocation3 + $0xf8] sm:$0xff] %vm2448, %v2415
    %v2481 = vld [vmem:[#allocation2] sm:$0xe]
    %v2482 = vld [vmem:[#allocation2 + $0x4] sm:$0xf]
    %v2483 = vld [vmem:[#allocation2 + $0x8] sm:$0x1]
    %v2484 = vld [vmem:[#allocation2 + $0xc] sm:$0xe]
    %v2485 = vld [vmem:[#allocation2 + $0x10] sm:$0xf]
    %v2486 = vld [vmem:[#allocation2 + $0x14] sm:$0x1]
    %v2487 = vld [vmem:[#allocation2 + $0x18] sm:$0xe]
    %v2488 = vld [vmem:[#allocation2 + $0x1c] sm:$0xf]
    %v2489 = vld [vmem:[#allocation2 + $0x20] sm:$0x1]
    %v2490 = vld [vmem:[#allocation2 + $0x24] sm:$0xe]
    %v2491 = vld [vmem:[#allocation2 + $0x28] sm:$0xf]
    %v2492 = vld [vmem:[#allocation2 + $0x2c] sm:$0x1]
    %v2493 = vld [vmem:[#allocation2 + $0x30] sm:$0xe]
    %v2494 = vld [vmem:[#allocation2 + $0x34] sm:$0xf]
    %v2495 = vld [vmem:[#allocation2 + $0x38] sm:$0x1]
    %v2496 = vld [vmem:[#allocation2 + $0x3c] sm:$0xe]
    %v2497 = vld [vmem:[#allocation2 + $0x40] sm:$0xf]
    %v2498 = vld [vmem:[#allocation2 + $0x44] sm:$0x1]
    %v2499 = vld [vmem:[#allocation2 + $0x48] sm:$0xe]
    %v2500 = vld [vmem:[#allocation2 + $0x4c] sm:$0xf]
    %v2501 = vld [vmem:[#allocation2 + $0x50] sm:$0x1]
    %v2502 = vld [vmem:[#allocation2 + $0x54] sm:$0xe]
    %v2503 = vld [vmem:[#allocation2 + $0x58] sm:$0xf]
    %v2504 = vld [vmem:[#allocation2 + $0x5c] sm:$0x1]
    %v2505 = vld [vmem:[#allocation2 + $0x60] sm:$0xe]
    %v2506 = vld [vmem:[#allocation2 + $0x64] sm:$0xf]
    %v2507 = vld [vmem:[#allocation2 + $0x68] sm:$0x1]
    %v2508 = vld [vmem:[#allocation2 + $0x6c] sm:$0xe]
    %v2509 = vld [vmem:[#allocation2 + $0x70] sm:$0xf]
    %v2510 = vld [vmem:[#allocation2 + $0x74] sm:$0x1]
    %v2511 = vld [vmem:[#allocation2 + $0x78] sm:$0xe]
    %v2512 = vld [vmem:[#allocation2 + $0x7c] sm:$0xf]
    %v2513 = vld [vmem:[#allocation2 + $0x80] sm:$0x1]
    %v2514 = vld [vmem:[#allocation2 + $0x84] sm:$0xe]
    %v2515 = vld [vmem:[#allocation2 + $0x88] sm:$0xf]
    %v2516 = vld [vmem:[#allocation2 + $0x8c] sm:$0x1]
    %v2517 = vld [vmem:[#allocation2 + $0x90] sm:$0xe]
    %v2518 = vld [vmem:[#allocation2 + $0x94] sm:$0xf]
    %v2519 = vld [vmem:[#allocation2 + $0x98] sm:$0x1]
    %v2520 = vld [vmem:[#allocation2 + $0x9c] sm:$0xe]
    %v2521 = vld [vmem:[#allocation2 + $0xa0] sm:$0xf]
    %v2522 = vld [vmem:[#allocation2 + $0xa4] sm:$0x1]
    %v2523 = vld [vmem:[#allocation2 + $0xa8] sm:$0xe]
    %v2524 = vld [vmem:[#allocation2 + $0xac] sm:$0xf]
    %v2525 = vld [vmem:[#allocation2 + $0xb0] sm:$0x1]
    %v2526 = vld [vmem:[#allocation2 + $0xb4] sm:$0xe]
    %v2527 = vld [vmem:[#allocation2 + $0xb8] sm:$0xf]
    %v2528 = vld [vmem:[#allocation2 + $0xbc] sm:$0x1]
    %v2529 = vld [vmem:[#allocation2 + $0xd8] sm:$0xe]
    %v2530 = vld [vmem:[#allocation2 + $0xdc] sm:$0xf]
    %v2531 = vld [vmem:[#allocation2 + $0xe0] sm:$0x1]
    %v2532 = vld [vmem:[#allocation2 + $0xe4] sm:$0xe]
    %v2533 = vld [vmem:[#allocation2 + $0xe8] sm:$0xf]
    %v2534 = vld [vmem:[#allocation2 + $0xec] sm:$0x1]
    %v2535 = vld [vmem:[#allocation2 + $0xf0] sm:$0xe]
    %v2536 = vld [vmem:[#allocation2 + $0xf4] sm:$0xf]
    %v2537 = vld [vmem:[#allocation2 + $0xf8] sm:$0x1]
    %v2538 = vld [vmem:[#allocation2 + $0xfc] sm:$0xe]
    %v2539 = vld [vmem:[#allocation2 + $0x100] sm:$0xf]
    %v2540 = vld [vmem:[#allocation2 + $0x104] sm:$0x1]
    %v2541 = vld [vmem:[#allocation2 + $0x108] sm:$0xe]
    %v2542 = vld [vmem:[#allocation2 + $0x10c] sm:$0xf]
    %v2543 = vld [vmem:[#allocation2 + $0x110] sm:$0x1]
    %v2544 = vld [vmem:[#allocation2 + $0x114] sm:$0xe]
    %v2545 = vld [vmem:[#allocation2 + $0x118] sm:$0xf]
    %v2546 = vld [vmem:[#allocation2 + $0x11c] sm:$0x1]
    %v2547 = vld [vmem:[#allocation2 + $0x120] sm:$0xe]
    %v2548 = vld [vmem:[#allocation2 + $0x124] sm:$0xf]
    %v2549 = vld [vmem:[#allocation2 + $0x128] sm:$0x1]
    %v2550 = vld [vmem:[#allocation2 + $0x12c] sm:$0xe]
    %v2551 = vld [vmem:[#allocation2 + $0x130] sm:$0xf]
    %v2552 = vld [vmem:[#allocation2 + $0x134] sm:$0x1]
    %v2553 = vld [vmem:[#allocation2 + $0x138] sm:$0xe]
    %v2554 = vld [vmem:[#allocation2 + $0x13c] sm:$0xf]
    %v2555 = vld [vmem:[#allocation2 + $0x140] sm:$0x1]
    %v2556 = vld [vmem:[#allocation2 + $0x144] sm:$0xe]
    %v2557 = vld [vmem:[#allocation2 + $0x148] sm:$0xf]
    %v2558 = vld [vmem:[#allocation2 + $0x14c] sm:$0x1]
    %v2559 = vld [vmem:[#allocation2 + $0x150] sm:$0xe]
    %v2560 = vld [vmem:[#allocation2 + $0x154] sm:$0xf]
    %v2561 = vld [vmem:[#allocation2 + $0x158] sm:$0x1]
    %v2562 = vld [vmem:[#allocation2 + $0x15c] sm:$0xe]
    %v2563 = vld [vmem:[#allocation2 + $0x160] sm:$0xf]
    %v2564 = vld [vmem:[#allocation2 + $0x164] sm:$0x1]
    %v2565 = vld [vmem:[#allocation2 + $0x168] sm:$0xe]
    %v2566 = vld [vmem:[#allocation2 + $0x16c] sm:$0xf]
    %v2567 = vld [vmem:[#allocation2 + $0x170] sm:$0x1]
    %v2568 = vld [vmem:[#allocation2 + $0x174] sm:$0xe]
    %v2569 = vld [vmem:[#allocation2 + $0x178] sm:$0xf]
    %v2570 = vld [vmem:[#allocation2 + $0x17c] sm:$0x1]
    %v2571 = vld [vmem:[#allocation2 + $0x180] sm:$0xe]
    %v2572 = vld [vmem:[#allocation2 + $0x184] sm:$0xf]
    %v2573 = vld [vmem:[#allocation2 + $0x188] sm:$0x1]
    %v2574 = vld [vmem:[#allocation2 + $0x18c] sm:$0xe]
    %v2575 = vld [vmem:[#allocation2 + $0x190] sm:$0xf]
    %v2576 = vld [vmem:[#allocation2 + $0x194] sm:$0x1]
    %vm2673 = vcmask 1042432
    %vm2674 = vcmask 1046532
    %vm2675 = vmor %vm2673, %vm2674
    %v2676 = vrot.slane %v2481, 5
    %v2677 = vrot.slane %v2676, 4
    %v2678 = vrot.slane %v2482, 5
    %v2679 = vsel %vm2675, %v2677, %v2678
    %v2680 = vrot.slane %v2678, 4
    %v2681 = vrot.slane %v2483, 5
    %v2682 = vsel %vm2675, %v2680, %v2681
    %v2683 = vrot.slane %v2484, 5
    %v2684 = vrot.slane %v2683, 4
    %v2685 = vrot.slane %v2485, 5
    %v2686 = vsel %vm2675, %v2684, %v2685
    %v2687 = vrot.slane %v2685, 4
    %v2688 = vrot.slane %v2486, 5
    %v2689 = vsel %vm2675, %v2687, %v2688
    %v2690 = vrot.slane %v2487, 5
    %v2691 = vrot.slane %v2690, 4
    %v2692 = vrot.slane %v2488, 5
    %v2693 = vsel %vm2675, %v2691, %v2692
    %v2694 = vrot.slane %v2692, 4
    %v2695 = vrot.slane %v2489, 5
    %v2696 = vsel %vm2675, %v2694, %v2695
    %v2697 = vrot.slane %v2490, 5
    %v2698 = vrot.slane %v2697, 4
    %v2699 = vrot.slane %v2491, 5
    %v2700 = vsel %vm2675, %v2698, %v2699
    %v2701 = vrot.slane %v2699, 4
    %v2702 = vrot.slane %v2492, 5
    %v2703 = vsel %vm2675, %v2701, %v2702
    %v2704 = vrot.slane %v2493, 5
    %v2705 = vrot.slane %v2704, 4
    %v2706 = vrot.slane %v2494, 5
    %v2707 = vsel %vm2675, %v2705, %v2706
    %v2708 = vrot.slane %v2706, 4
    %v2709 = vrot.slane %v2495, 5
    %v2710 = vsel %vm2675, %v2708, %v2709
    %v2711 = vrot.slane %v2496, 5
    %v2712 = vrot.slane %v2711, 4
    %v2713 = vrot.slane %v2497, 5
    %v2714 = vsel %vm2675, %v2712, %v2713
    %v2715 = vrot.slane %v2713, 4
    %v2716 = vrot.slane %v2498, 5
    %v2717 = vsel %vm2675, %v2715, %v2716
    %v2718 = vrot.slane %v2499, 5
    %v2719 = vrot.slane %v2718, 4
    %v2720 = vrot.slane %v2500, 5
    %v2721 = vsel %vm2675, %v2719, %v2720
    %v2722 = vrot.slane %v2720, 4
    %v2723 = vrot.slane %v2501, 5
    %v2724 = vsel %vm2675, %v2722, %v2723
    %v2725 = vrot.slane %v2502, 5
    %v2726 = vrot.slane %v2725, 4
    %v2727 = vrot.slane %v2503, 5
    %v2728 = vsel %vm2675, %v2726, %v2727
    %v2729 = vrot.slane %v2727, 4
    %v2730 = vrot.slane %v2504, 5
    %v2731 = vsel %vm2675, %v2729, %v2730
    %v2732 = vrot.slane %v2505, 5
    %v2733 = vrot.slane %v2732, 4
    %v2734 = vrot.slane %v2506, 5
    %v2735 = vsel %vm2675, %v2733, %v2734
    %v2736 = vrot.slane %v2734, 4
    %v2737 = vrot.slane %v2507, 5
    %v2738 = vsel %vm2675, %v2736, %v2737
    %v2739 = vrot.slane %v2508, 5
    %v2740 = vrot.slane %v2739, 4
    %v2741 = vrot.slane %v2509, 5
    %v2742 = vsel %vm2675, %v2740, %v2741
    %v2743 = vrot.slane %v2741, 4
    %v2744 = vrot.slane %v2510, 5
    %v2745 = vsel %vm2675, %v2743, %v2744
    %v2746 = vrot.slane %v2511, 5
    %v2747 = vrot.slane %v2746, 4
    %v2748 = vrot.slane %v2512, 5
    %v2749 = vsel %vm2675, %v2747, %v2748
    %v2750 = vrot.slane %v2748, 4
    %v2751 = vrot.slane %v2513, 5
    %v2752 = vsel %vm2675, %v2750, %v2751
    %v2753 = vrot.slane %v2514, 5
    %v2754 = vrot.slane %v2753, 4
    %v2755 = vrot.slane %v2515, 5
    %v2756 = vsel %vm2675, %v2754, %v2755
    %v2757 = vrot.slane %v2755, 4
    %v2758 = vrot.slane %v2516, 5
    %v2759 = vsel %vm2675, %v2757, %v2758
    %v2760 = vrot.slane %v2517, 5
    %v2761 = vrot.slane %v2760, 4
    %v2762 = vrot.slane %v2518, 5
    %v2763 = vsel %vm2675, %v2761, %v2762
    %v2764 = vrot.slane %v2762, 4
    %v2765 = vrot.slane %v2519, 5
    %v2766 = vsel %vm2675, %v2764, %v2765
    %v2767 = vrot.slane %v2520, 5
    %v2768 = vrot.slane %v2767, 4
    %v2769 = vrot.slane %v2521, 5
    %v2770 = vsel %vm2675, %v2768, %v2769
    %v2771 = vrot.slane %v2769, 4
    %v2772 = vrot.slane %v2522, 5
    %v2773 = vsel %vm2675, %v2771, %v2772
    %v2774 = vrot.slane %v2523, 5
    %v2775 = vrot.slane %v2774, 4
    %v2776 = vrot.slane %v2524, 5
    %v2777 = vsel %vm2675, %v2775, %v2776
    %v2778 = vrot.slane %v2776, 4
    %v2779 = vrot.slane %v2525, 5
    %v2780 = vsel %vm2675, %v2778, %v2779
    %v2781 = vrot.slane %v2526, 5
    %v2782 = vrot.slane %v2781, 4
    %v2783 = vrot.slane %v2527, 5
    %v2784 = vsel %vm2675, %v2782, %v2783
    %v2785 = vrot.slane %v2783, 4
    %v2786 = vrot.slane %v2528, 5
    %v2787 = vsel %vm2675, %v2785, %v2786
    %v2788 = vrot.slane %v2529, 5
    %v2789 = vrot.slane %v2788, 4
    %v2790 = vrot.slane %v2530, 5
    %v2791 = vsel %vm2675, %v2789, %v2790
    %v2792 = vrot.slane %v2790, 4
    %v2793 = vrot.slane %v2531, 5
    %v2794 = vsel %vm2675, %v2792, %v2793
    %v2795 = vrot.slane %v2532, 5
    %v2796 = vrot.slane %v2795, 4
    %v2797 = vrot.slane %v2533, 5
    %v2798 = vsel %vm2675, %v2796, %v2797
    %v2799 = vrot.slane %v2797, 4
    %v2800 = vrot.slane %v2534, 5
    %v2801 = vsel %vm2675, %v2799, %v2800
    %v2802 = vrot.slane %v2535, 5
    %v2803 = vrot.slane %v2802, 4
    %v2804 = vrot.slane %v2536, 5
    %v2805 = vsel %vm2675, %v2803, %v2804
    %v2806 = vrot.slane %v2804, 4
    %v2807 = vrot.slane %v2537, 5
    %v2808 = vsel %vm2675, %v2806, %v2807
    %v2809 = vrot.slane %v2538, 5
    %v2810 = vrot.slane %v2809, 4
    %v2811 = vrot.slane %v2539, 5
    %v2812 = vsel %vm2675, %v2810, %v2811
    %v2813 = vrot.slane %v2811, 4
    %v2814 = vrot.slane %v2540, 5
    %v2815 = vsel %vm2675, %v2813, %v2814
    %v2816 = vrot.slane %v2541, 5
    %v2817 = vrot.slane %v2816, 4
    %v2818 = vrot.slane %v2542, 5
    %v2819 = vsel %vm2675, %v2817, %v2818
    %v2820 = vrot.slane %v2818, 4
    %v2821 = vrot.slane %v2543, 5
    %v2822 = vsel %vm2675, %v2820, %v2821
    %v2823 = vrot.slane %v2544, 5
    %v2824 = vrot.slane %v2823, 4
    %v2825 = vrot.slane %v2545, 5
    %v2826 = vsel %vm2675, %v2824, %v2825
    %v2827 = vrot.slane %v2825, 4
    %v2828 = vrot.slane %v2546, 5
    %v2829 = vsel %vm2675, %v2827, %v2828
    %v2830 = vrot.slane %v2547, 5
    %v2831 = vrot.slane %v2830, 4
    %v2832 = vrot.slane %v2548, 5
    %v2833 = vsel %vm2675, %v2831, %v2832
    %v2834 = vrot.slane %v2832, 4
    %v2835 = vrot.slane %v2549, 5
    %v2836 = vsel %vm2675, %v2834, %v2835
    %v2837 = vrot.slane %v2550, 5
    %v2838 = vrot.slane %v2837, 4
    %v2839 = vrot.slane %v2551, 5
    %v2840 = vsel %vm2675, %v2838, %v2839
    %v2841 = vrot.slane %v2839, 4
    %v2842 = vrot.slane %v2552, 5
    %v2843 = vsel %vm2675, %v2841, %v2842
    %v2844 = vrot.slane %v2553, 5
    %v2845 = vrot.slane %v2844, 4
    %v2846 = vrot.slane %v2554, 5
    %v2847 = vsel %vm2675, %v2845, %v2846
    %v2848 = vrot.slane %v2846, 4
    %v2849 = vrot.slane %v2555, 5
    %v2850 = vsel %vm2675, %v2848, %v2849
    %v2851 = vrot.slane %v2556, 5
    %v2852 = vrot.slane %v2851, 4
    %v2853 = vrot.slane %v2557, 5
    %v2854 = vsel %vm2675, %v2852, %v2853
    %v2855 = vrot.slane %v2853, 4
    %v2856 = vrot.slane %v2558, 5
    %v2857 = vsel %vm2675, %v2855, %v2856
    %v2858 = vrot.slane %v2559, 5
    %v2859 = vrot.slane %v2858, 4
    %v2860 = vrot.slane %v2560, 5
    %v2861 = vsel %vm2675, %v2859, %v2860
    %v2862 = vrot.slane %v2860, 4
    %v2863 = vrot.slane %v2561, 5
    %v2864 = vsel %vm2675, %v2862, %v2863
    %v2865 = vrot.slane %v2562, 5
    %v2866 = vrot.slane %v2865, 4
    %v2867 = vrot.slane %v2563, 5
    %v2868 = vsel %vm2675, %v2866, %v2867
    %v2869 = vrot.slane %v2867, 4
    %v2870 = vrot.slane %v2564, 5
    %v2871 = vsel %vm2675, %v2869, %v2870
    %v2872 = vrot.slane %v2565, 5
    %v2873 = vrot.slane %v2872, 4
    %v2874 = vrot.slane %v2566, 5
    %v2875 = vsel %vm2675, %v2873, %v2874
    %v2876 = vrot.slane %v2874, 4
    %v2877 = vrot.slane %v2567, 5
    %v2878 = vsel %vm2675, %v2876, %v2877
    %v2879 = vrot.slane %v2568, 5
    %v2880 = vrot.slane %v2879, 4
    %v2881 = vrot.slane %v2569, 5
    %v2882 = vsel %vm2675, %v2880, %v2881
    %v2883 = vrot.slane %v2881, 4
    %v2884 = vrot.slane %v2570, 5
    %v2885 = vsel %vm2675, %v2883, %v2884
    %v2886 = vrot.slane %v2571, 5
    %v2887 = vrot.slane %v2886, 4
    %v2888 = vrot.slane %v2572, 5
    %v2889 = vsel %vm2675, %v2887, %v2888
    %v2890 = vrot.slane %v2888, 4
    %v2891 = vrot.slane %v2573, 5
    %v2892 = vsel %vm2675, %v2890, %v2891
    %v2893 = vrot.slane %v2574, 5
    %v2894 = vrot.slane %v2893, 4
    %v2895 = vrot.slane %v2575, 5
    %v2896 = vsel %vm2675, %v2894, %v2895
    %v2897 = vrot.slane %v2895, 4
    %v2898 = vrot.slane %v2576, 5
    %v2899 = vsel %vm2675, %v2897, %v2898
    %v2900 = vunpack.c.l.b16 %v2679
    %v2901 = vunpack.c.l.b16 %v2682
    %v2902 = vunpack.c.l.b16 %v2686
    %v2903 = vunpack.c.l.b16 %v2689
    %v2904 = vunpack.c.l.b16 %v2693
    %v2905 = vunpack.c.l.b16 %v2696
    %v2906 = vunpack.c.l.b16 %v2700
    %v2907 = vunpack.c.l.b16 %v2703
    %v2908 = vunpack.c.l.b16 %v2707
    %v2909 = vunpack.c.l.b16 %v2710
    %v2910 = vunpack.c.l.b16 %v2714
    %v2911 = vunpack.c.l.b16 %v2717
    %v2912 = vunpack.c.l.b16 %v2721
    %v2913 = vunpack.c.l.b16 %v2724
    %v2914 = vunpack.c.l.b16 %v2728
    %v2915 = vunpack.c.l.b16 %v2731
    %v2916 = vunpack.c.l.b16 %v2735
    %v2917 = vunpack.c.l.b16 %v2738
    %v2918 = vunpack.c.l.b16 %v2742
    %v2919 = vunpack.c.l.b16 %v2745
    %v2920 = vunpack.c.l.b16 %v2749
    %v2921 = vunpack.c.l.b16 %v2752
    %v2922 = vunpack.c.l.b16 %v2756
    %v2923 = vunpack.c.l.b16 %v2759
    %v2924 = vunpack.c.l.b16 %v2763
    %v2925 = vunpack.c.l.b16 %v2766
    %v2926 = vunpack.c.l.b16 %v2770
    %v2927 = vunpack.c.l.b16 %v2773
    %v2928 = vunpack.c.l.b16 %v2777
    %v2929 = vunpack.c.l.b16 %v2780
    %v2930 = vunpack.c.l.b16 %v2784
    %v2931 = vunpack.c.l.b16 %v2787
    %v2932 = vunpack.c.l.b16 %v2791
    %v2933 = vunpack.c.l.b16 %v2794
    %v2934 = vunpack.c.l.b16 %v2798
    %v2935 = vunpack.c.l.b16 %v2801
    %v2936 = vunpack.c.l.b16 %v2805
    %v2937 = vunpack.c.l.b16 %v2808
    %v2938 = vunpack.c.l.b16 %v2812
    %v2939 = vunpack.c.l.b16 %v2815
    %v2940 = vunpack.c.l.b16 %v2819
    %v2941 = vunpack.c.l.b16 %v2822
    %v2942 = vunpack.c.l.b16 %v2826
    %v2943 = vunpack.c.l.b16 %v2829
    %v2944 = vunpack.c.l.b16 %v2833
    %v2945 = vunpack.c.l.b16 %v2836
    %v2946 = vunpack.c.l.b16 %v2840
    %v2947 = vunpack.c.l.b16 %v2843
    %v2948 = vunpack.c.l.b16 %v2847
    %v2949 = vunpack.c.l.b16 %v2850
    %v2950 = vunpack.c.l.b16 %v2854
    %v2951 = vunpack.c.l.b16 %v2857
    %v2952 = vunpack.c.l.b16 %v2861
    %v2953 = vunpack.c.l.b16 %v2864
    %v2954 = vunpack.c.l.b16 %v2868
    %v2955 = vunpack.c.l.b16 %v2871
    %v2956 = vunpack.c.l.b16 %v2875
    %v2957 = vunpack.c.l.b16 %v2878
    %v2958 = vunpack.c.l.b16 %v2882
    %v2959 = vunpack.c.l.b16 %v2885
    %v2960 = vunpack.c.l.b16 %v2889
    %v2961 = vunpack.c.l.b16 %v2892
    %v2962 = vunpack.c.l.b16 %v2896
    %v2963 = vunpack.c.l.b16 %v2899
    %v2964 = vpack.c.b16 %v2901, %v2900
    %v2965 = vpack.c.b16 %v2903, %v2902
    %v2966 = vpack.c.b16 %v2905, %v2904
    %v2967 = vpack.c.b16 %v2907, %v2906
    %v2968 = vpack.c.b16 %v2909, %v2908
    %v2969 = vpack.c.b16 %v2911, %v2910
    %v2970 = vpack.c.b16 %v2913, %v2912
    %v2971 = vpack.c.b16 %v2915, %v2914
    %v2972 = vpack.c.b16 %v2917, %v2916
    %v2973 = vpack.c.b16 %v2919, %v2918
    %v2974 = vpack.c.b16 %v2921, %v2920
    %v2975 = vpack.c.b16 %v2923, %v2922
    %v2976 = vpack.c.b16 %v2925, %v2924
    %v2977 = vpack.c.b16 %v2927, %v2926
    %v2978 = vpack.c.b16 %v2929, %v2928
    %v2979 = vpack.c.b16 %v2931, %v2930
    %v2980 = vpack.c.b16 %v2933, %v2932
    %v2981 = vpack.c.b16 %v2935, %v2934
    %v2982 = vpack.c.b16 %v2937, %v2936
    %v2983 = vpack.c.b16 %v2939, %v2938
    %v2984 = vpack.c.b16 %v2941, %v2940
    %v2985 = vpack.c.b16 %v2943, %v2942
    %v2986 = vpack.c.b16 %v2945, %v2944
    %v2987 = vpack.c.b16 %v2947, %v2946
    %v2988 = vpack.c.b16 %v2949, %v2948
    %v2989 = vpack.c.b16 %v2951, %v2950
    %v2990 = vpack.c.b16 %v2953, %v2952
    %v2991 = vpack.c.b16 %v2955, %v2954
    %v2992 = vpack.c.b16 %v2957, %v2956
    %v2993 = vpack.c.b16 %v2959, %v2958
    %v2994 = vpack.c.b16 %v2961, %v2960
    %v2995 = vpack.c.b16 %v2963, %v2962
    %2996 = vrot.lane.b32.xlu0 %v2964, 6
    %v2997 = vpop.permute.xlu0 %2996
    %2998 = vrot.lane.b32.xlu0 %v2965, 6
    %v2999 = vpop.permute.xlu0 %2998
    %3000 = vrot.lane.b32.xlu0 %v2966, 6
    %v3001 = vpop.permute.xlu0 %3000
    %3002 = vrot.lane.b32.xlu0 %v2967, 6
    %v3003 = vpop.permute.xlu0 %3002
    %3004 = vrot.lane.b32.xlu0 %v2968, 6
    %v3005 = vpop.permute.xlu0 %3004
    %3006 = vrot.lane.b32.xlu0 %v2969, 6
    %v3007 = vpop.permute.xlu0 %3006
    %3008 = vrot.lane.b32.xlu0 %v2970, 6
    %v3009 = vpop.permute.xlu0 %3008
    %3010 = vrot.lane.b32.xlu0 %v2971, 6
    %v3011 = vpop.permute.xlu0 %3010
    %3012 = vrot.lane.b32.xlu0 %v2972, 6
    %v3013 = vpop.permute.xlu0 %3012
    %3014 = vrot.lane.b32.xlu0 %v2973, 6
    %v3015 = vpop.permute.xlu0 %3014
    %3016 = vrot.lane.b32.xlu0 %v2974, 6
    %v3017 = vpop.permute.xlu0 %3016
    %3018 = vrot.lane.b32.xlu0 %v2975, 6
    %v3019 = vpop.permute.xlu0 %3018
    %3020 = vrot.lane.b32.xlu0 %v2976, 6
    %v3021 = vpop.permute.xlu0 %3020
    %3022 = vrot.lane.b32.xlu0 %v2977, 6
    %v3023 = vpop.permute.xlu0 %3022
    %3024 = vrot.lane.b32.xlu0 %v2978, 6
    %v3025 = vpop.permute.xlu0 %3024
    %3026 = vrot.lane.b32.xlu0 %v2979, 6
    %v3027 = vpop.permute.xlu0 %3026
    %3028 = vrot.lane.b32.xlu0 %v2980, 6
    %v3029 = vpop.permute.xlu0 %3028
    %3030 = vrot.lane.b32.xlu0 %v2981, 6
    %v3031 = vpop.permute.xlu0 %3030
    %3032 = vrot.lane.b32.xlu0 %v2982, 6
    %v3033 = vpop.permute.xlu0 %3032
    %3034 = vrot.lane.b32.xlu0 %v2983, 6
    %v3035 = vpop.permute.xlu0 %3034
    %3036 = vrot.lane.b32.xlu0 %v2984, 6
    %v3037 = vpop.permute.xlu0 %3036
    %3038 = vrot.lane.b32.xlu0 %v2985, 6
    %v3039 = vpop.permute.xlu0 %3038
    %3040 = vrot.lane.b32.xlu0 %v2986, 6
    %v3041 = vpop.permute.xlu0 %3040
    %3042 = vrot.lane.b32.xlu0 %v2987, 6
    %v3043 = vpop.permute.xlu0 %3042
    %3044 = vrot.lane.b32.xlu0 %v2988, 6
    %v3045 = vpop.permute.xlu0 %3044
    %3046 = vrot.lane.b32.xlu0 %v2989, 6
    %v3047 = vpop.permute.xlu0 %3046
    %3048 = vrot.lane.b32.xlu0 %v2990, 6
    %v3049 = vpop.permute.xlu0 %3048
    %3050 = vrot.lane.b32.xlu0 %v2991, 6
    %v3051 = vpop.permute.xlu0 %3050
    %3052 = vrot.lane.b32.xlu0 %v2992, 6
    %v3053 = vpop.permute.xlu0 %3052
    %3054 = vrot.lane.b32.xlu0 %v2993, 6
    %v3055 = vpop.permute.xlu0 %3054
    %3056 = vrot.lane.b32.xlu0 %v2994, 6
    %v3057 = vpop.permute.xlu0 %3056
    %3058 = vrot.lane.b32.xlu0 %v2995, 6
    %v3059 = vpop.permute.xlu0 %3058
    %vm3092 = vcmask 72752
    %3093 = vst.msk [vmem:[#allocation3] sm:$0xff] %vm3092, %v2997
    %3094 = vst.msk [vmem:[#allocation3 + $0x8] sm:$0xff] %vm3092, %v2999
    %3095 = vst.msk [vmem:[#allocation3 + $0x10] sm:$0xff] %vm3092, %v3001
    %3096 = vst.msk [vmem:[#allocation3 + $0x18] sm:$0xff] %vm3092, %v3003
    %3097 = vst.msk [vmem:[#allocation3 + $0x20] sm:$0xff] %vm3092, %v3005
    %3098 = vst.msk [vmem:[#allocation3 + $0x28] sm:$0xff] %vm3092, %v3007
    %3099 = vst.msk [vmem:[#allocation3 + $0x30] sm:$0xff] %vm3092, %v3009
    %3100 = vst.msk [vmem:[#allocation3 + $0x38] sm:$0xff] %vm3092, %v3011
    %3101 = vst.msk [vmem:[#allocation3 + $0x40] sm:$0xff] %vm3092, %v3013
    %3102 = vst.msk [vmem:[#allocation3 + $0x48] sm:$0xff] %vm3092, %v3015
    %3103 = vst.msk [vmem:[#allocation3 + $0x50] sm:$0xff] %vm3092, %v3017
    %3104 = vst.msk [vmem:[#allocation3 + $0x58] sm:$0xff] %vm3092, %v3019
    %3105 = vst.msk [vmem:[#allocation3 + $0x60] sm:$0xff] %vm3092, %v3021
    %3106 = vst.msk [vmem:[#allocation3 + $0x68] sm:$0xff] %vm3092, %v3023
    %3107 = vst.msk [vmem:[#allocation3 + $0x70] sm:$0xff] %vm3092, %v3025
    %3108 = vst.msk [vmem:[#allocation3 + $0x78] sm:$0xff] %vm3092, %v3027
    %3109 = vst.msk [vmem:[#allocation3 + $0x80] sm:$0xff] %vm3092, %v3029
    %3110 = vst.msk [vmem:[#allocation3 + $0x88] sm:$0xff] %vm3092, %v3031
    %3111 = vst.msk [vmem:[#allocation3 + $0x90] sm:$0xff] %vm3092, %v3033
    %3112 = vst.msk [vmem:[#allocation3 + $0x98] sm:$0xff] %vm3092, %v3035
    %3113 = vst.msk [vmem:[#allocation3 + $0xa0] sm:$0xff] %vm3092, %v3037
    %3114 = vst.msk [vmem:[#allocation3 + $0xa8] sm:$0xff] %vm3092, %v3039
    %3115 = vst.msk [vmem:[#allocation3 + $0xb0] sm:$0xff] %vm3092, %v3041
    %3116 = vst.msk [vmem:[#allocation3 + $0xb8] sm:$0xff] %vm3092, %v3043
    %3117 = vst.msk [vmem:[#allocation3 + $0xc0] sm:$0xff] %vm3092, %v3045
    %3118 = vst.msk [vmem:[#allocation3 + $0xc8] sm:$0xff] %vm3092, %v3047
    %3119 = vst.msk [vmem:[#allocation3 + $0xd0] sm:$0xff] %vm3092, %v3049
    %3120 = vst.msk [vmem:[#allocation3 + $0xd8] sm:$0xff] %vm3092, %v3051
    %3121 = vst.msk [vmem:[#allocation3 + $0xe0] sm:$0xff] %vm3092, %v3053
    %3122 = vst.msk [vmem:[#allocation3 + $0xe8] sm:$0xff] %vm3092, %v3055
    %3123 = vst.msk [vmem:[#allocation3 + $0xf0] sm:$0xff] %vm3092, %v3057
    %3124 = vst.msk [vmem:[#allocation3 + $0xf8] sm:$0xff] %vm3092, %v3059
    %v3125 = vld [vmem:[%s869] sm:$0xf]
    %v3126 = vld [vmem:[%s869 + $0x4] sm:$0xf]
    %v3127 = vld [vmem:[%s869 + $0xc] sm:$0xf]
    %v3128 = vld [vmem:[%s869 + $0x10] sm:$0xf]
    %v3129 = vld [vmem:[%s869 + $0x18] sm:$0xf]
    %v3130 = vld [vmem:[%s869 + $0x1c] sm:$0xf]
    %v3131 = vld [vmem:[%s869 + $0x24] sm:$0xf]
    %v3132 = vld [vmem:[%s869 + $0x28] sm:$0xf]
    %v3133 = vld [vmem:[%s869 + $0x30] sm:$0xf]
    %v3134 = vld [vmem:[%s869 + $0x34] sm:$0xf]
    %v3135 = vld [vmem:[%s869 + $0x3c] sm:$0xf]
    %v3136 = vld [vmem:[%s869 + $0x40] sm:$0xf]
    %v3137 = vld [vmem:[%s869 + $0x48] sm:$0xf]
    %v3138 = vld [vmem:[%s869 + $0x4c] sm:$0xf]
    %v3139 = vld [vmem:[%s869 + $0x54] sm:$0xf]
    %v3140 = vld [vmem:[%s869 + $0x58] sm:$0xf]
    %v3141 = vld [vmem:[%s869 + $0x60] sm:$0xf]
    %v3142 = vld [vmem:[%s869 + $0x64] sm:$0xf]
    %v3143 = vld [vmem:[%s869 + $0x6c] sm:$0xf]
    %v3144 = vld [vmem:[%s869 + $0x70] sm:$0xf]
    %v3145 = vld [vmem:[%s869 + $0x78] sm:$0xf]
    %v3146 = vld [vmem:[%s869 + $0x7c] sm:$0xf]
    %v3147 = vld [vmem:[%s869 + $0x84] sm:$0xf]
    %v3148 = vld [vmem:[%s869 + $0x88] sm:$0xf]
    %v3149 = vld [vmem:[%s869 + $0x90] sm:$0xf]
    %v3150 = vld [vmem:[%s869 + $0x94] sm:$0xf]
    %v3151 = vld [vmem:[%s869 + $0x9c] sm:$0xf]
    %v3152 = vld [vmem:[%s869 + $0xa0] sm:$0xf]
    %v3153 = vld [vmem:[%s869 + $0xa8] sm:$0xf]
    %v3154 = vld [vmem:[%s869 + $0xac] sm:$0xf]
    %v3155 = vld [vmem:[%s869 + $0xb4] sm:$0xf]
    %v3156 = vld [vmem:[%s869 + $0xb8] sm:$0xf]
    %v3157 = vld [vmem:[%s869 + $0xd8] sm:$0xf]
    %v3158 = vld [vmem:[%s869 + $0xdc] sm:$0xf]
    %v3159 = vld [vmem:[%s869 + $0xe4] sm:$0xf]
    %v3160 = vld [vmem:[%s869 + $0xe8] sm:$0xf]
    %v3161 = vld [vmem:[%s869 + $0xf0] sm:$0xf]
    %v3162 = vld [vmem:[%s869 + $0xf4] sm:$0xf]
    %v3163 = vld [vmem:[%s869 + $0xfc] sm:$0xf]
    %v3164 = vld [vmem:[%s869 + $0x100] sm:$0xf]
    %v3165 = vld [vmem:[%s869 + $0x108] sm:$0xf]
    %v3166 = vld [vmem:[%s869 + $0x10c] sm:$0xf]
    %v3167 = vld [vmem:[%s869 + $0x114] sm:$0xf]
    %v3168 = vld [vmem:[%s869 + $0x118] sm:$0xf]
    %v3169 = vld [vmem:[%s869 + $0x120] sm:$0xf]
    %v3170 = vld [vmem:[%s869 + $0x124] sm:$0xf]
    %v3171 = vld [vmem:[%s869 + $0x12c] sm:$0xf]
    %v3172 = vld [vmem:[%s869 + $0x130] sm:$0xf]
    %v3173 = vld [vmem:[%s869 + $0x138] sm:$0xf]
    %v3174 = vld [vmem:[%s869 + $0x13c] sm:$0xf]
    %v3175 = vld [vmem:[%s869 + $0x144] sm:$0xf]
    %v3176 = vld [vmem:[%s869 + $0x148] sm:$0xf]
    %v3177 = vld [vmem:[%s869 + $0x150] sm:$0xf]
    %v3178 = vld [vmem:[%s869 + $0x154] sm:$0xf]
    %v3179 = vld [vmem:[%s869 + $0x15c] sm:$0xf]
    %v3180 = vld [vmem:[%s869 + $0x160] sm:$0xf]
    %v3181 = vld [vmem:[%s869 + $0x168] sm:$0xf]
    %v3182 = vld [vmem:[%s869 + $0x16c] sm:$0xf]
    %v3183 = vld [vmem:[%s869 + $0x174] sm:$0xf]
    %v3184 = vld [vmem:[%s869 + $0x178] sm:$0xf]
    %v3185 = vld [vmem:[%s869 + $0x180] sm:$0xf]
    %v3186 = vld [vmem:[%s869 + $0x184] sm:$0xf]
    %v3187 = vld [vmem:[%s869 + $0x18c] sm:$0xf]
    %v3188 = vld [vmem:[%s869 + $0x190] sm:$0xf]
    %v3253 = vunpack.c.l.b16 %v3125
    %v3254 = vunpack.c.l.b16 %v3126
    %v3255 = vunpack.c.l.b16 %v3127
    %v3256 = vunpack.c.l.b16 %v3128
    %v3257 = vunpack.c.l.b16 %v3129
    %v3258 = vunpack.c.l.b16 %v3130
    %v3259 = vunpack.c.l.b16 %v3131
    %v3260 = vunpack.c.l.b16 %v3132
    %v3261 = vunpack.c.l.b16 %v3133
    %v3262 = vunpack.c.l.b16 %v3134
    %v3263 = vunpack.c.l.b16 %v3135
    %v3264 = vunpack.c.l.b16 %v3136
    %v3265 = vunpack.c.l.b16 %v3137
    %v3266 = vunpack.c.l.b16 %v3138
    %v3267 = vunpack.c.l.b16 %v3139
    %v3268 = vunpack.c.l.b16 %v3140
    %v3269 = vunpack.c.l.b16 %v3141
    %v3270 = vunpack.c.l.b16 %v3142
    %v3271 = vunpack.c.l.b16 %v3143
    %v3272 = vunpack.c.l.b16 %v3144
    %v3273 = vunpack.c.l.b16 %v3145
    %v3274 = vunpack.c.l.b16 %v3146
    %v3275 = vunpack.c.l.b16 %v3147
    %v3276 = vunpack.c.l.b16 %v3148
    %v3277 = vunpack.c.l.b16 %v3149
    %v3278 = vunpack.c.l.b16 %v3150
    %v3279 = vunpack.c.l.b16 %v3151
    %v3280 = vunpack.c.l.b16 %v3152
    %v3281 = vunpack.c.l.b16 %v3153
    %v3282 = vunpack.c.l.b16 %v3154
    %v3283 = vunpack.c.l.b16 %v3155
    %v3284 = vunpack.c.l.b16 %v3156
    %v3285 = vunpack.c.l.b16 %v3157
    %v3286 = vunpack.c.l.b16 %v3158
    %v3287 = vunpack.c.l.b16 %v3159
    %v3288 = vunpack.c.l.b16 %v3160
    %v3289 = vunpack.c.l.b16 %v3161
    %v3290 = vunpack.c.l.b16 %v3162
    %v3291 = vunpack.c.l.b16 %v3163
    %v3292 = vunpack.c.l.b16 %v3164
    %v3293 = vunpack.c.l.b16 %v3165
    %v3294 = vunpack.c.l.b16 %v3166
    %v3295 = vunpack.c.l.b16 %v3167
    %v3296 = vunpack.c.l.b16 %v3168
    %v3297 = vunpack.c.l.b16 %v3169
    %v3298 = vunpack.c.l.b16 %v3170
    %v3299 = vunpack.c.l.b16 %v3171
    %v3300 = vunpack.c.l.b16 %v3172
    %v3301 = vunpack.c.l.b16 %v3173
    %v3302 = vunpack.c.l.b16 %v3174
    %v3303 = vunpack.c.l.b16 %v3175
    %v3304 = vunpack.c.l.b16 %v3176
    %v3305 = vunpack.c.l.b16 %v3177
    %v3306 = vunpack.c.l.b16 %v3178
    %v3307 = vunpack.c.l.b16 %v3179
    %v3308 = vunpack.c.l.b16 %v3180
    %v3309 = vunpack.c.l.b16 %v3181
    %v3310 = vunpack.c.l.b16 %v3182
    %v3311 = vunpack.c.l.b16 %v3183
    %v3312 = vunpack.c.l.b16 %v3184
    %v3313 = vunpack.c.l.b16 %v3185
    %v3314 = vunpack.c.l.b16 %v3186
    %v3315 = vunpack.c.l.b16 %v3187
    %v3316 = vunpack.c.l.b16 %v3188
    %v3317 = vpack.c.b16 %v3254, %v3253
    %v3318 = vpack.c.b16 %v3256, %v3255
    %v3319 = vpack.c.b16 %v3258, %v3257
    %v3320 = vpack.c.b16 %v3260, %v3259
    %v3321 = vpack.c.b16 %v3262, %v3261
    %v3322 = vpack.c.b16 %v3264, %v3263
    %v3323 = vpack.c.b16 %v3266, %v3265
    %v3324 = vpack.c.b16 %v3268, %v3267
    %v3325 = vpack.c.b16 %v3270, %v3269
    %v3326 = vpack.c.b16 %v3272, %v3271
    %v3327 = vpack.c.b16 %v3274, %v3273
    %v3328 = vpack.c.b16 %v3276, %v3275
    %v3329 = vpack.c.b16 %v3278, %v3277
    %v3330 = vpack.c.b16 %v3280, %v3279
    %v3331 = vpack.c.b16 %v3282, %v3281
    %v3332 = vpack.c.b16 %v3284, %v3283
    %v3333 = vpack.c.b16 %v3286, %v3285
    %v3334 = vpack.c.b16 %v3288, %v3287
    %v3335 = vpack.c.b16 %v3290, %v3289
    %v3336 = vpack.c.b16 %v3292, %v3291
    %v3337 = vpack.c.b16 %v3294, %v3293
    %v3338 = vpack.c.b16 %v3296, %v3295
    %v3339 = vpack.c.b16 %v3298, %v3297
    %v3340 = vpack.c.b16 %v3300, %v3299
    %v3341 = vpack.c.b16 %v3302, %v3301
    %v3342 = vpack.c.b16 %v3304, %v3303
    %v3343 = vpack.c.b16 %v3306, %v3305
    %v3344 = vpack.c.b16 %v3308, %v3307
    %v3345 = vpack.c.b16 %v3310, %v3309
    %v3346 = vpack.c.b16 %v3312, %v3311
    %v3347 = vpack.c.b16 %v3314, %v3313
    %v3348 = vpack.c.b16 %v3316, %v3315
    %3349 = vrot.lane.b32.xlu0 %v3317, 9
    %v3350 = vpop.permute.xlu0 %3349
    %3351 = vrot.lane.b32.xlu0 %v3318, 9
    %v3352 = vpop.permute.xlu0 %3351
    %3353 = vrot.lane.b32.xlu0 %v3319, 9
    %v3354 = vpop.permute.xlu0 %3353
    %3355 = vrot.lane.b32.xlu0 %v3320, 9
    %v3356 = vpop.permute.xlu0 %3355
    %3357 = vrot.lane.b32.xlu0 %v3321, 9
    %v3358 = vpop.permute.xlu0 %3357
    %3359 = vrot.lane.b32.xlu0 %v3322, 9
    %v3360 = vpop.permute.xlu0 %3359
    %3361 = vrot.lane.b32.xlu0 %v3323, 9
    %v3362 = vpop.permute.xlu0 %3361
    %3363 = vrot.lane.b32.xlu0 %v3324, 9
    %v3364 = vpop.permute.xlu0 %3363
    %3365 = vrot.lane.b32.xlu0 %v3325, 9
    %v3366 = vpop.permute.xlu0 %3365
    %3367 = vrot.lane.b32.xlu0 %v3326, 9
    %v3368 = vpop.permute.xlu0 %3367
    %3369 = vrot.lane.b32.xlu0 %v3327, 9
    %v3370 = vpop.permute.xlu0 %3369
    %3371 = vrot.lane.b32.xlu0 %v3328, 9
    %v3372 = vpop.permute.xlu0 %3371
    %3373 = vrot.lane.b32.xlu0 %v3329, 9
    %v3374 = vpop.permute.xlu0 %3373
    %3375 = vrot.lane.b32.xlu0 %v3330, 9
    %v3376 = vpop.permute.xlu0 %3375
    %3377 = vrot.lane.b32.xlu0 %v3331, 9
    %v3378 = vpop.permute.xlu0 %3377
    %3379 = vrot.lane.b32.xlu0 %v3332, 9
    %v3380 = vpop.permute.xlu0 %3379
    %3381 = vrot.lane.b32.xlu0 %v3333, 9
    %v3382 = vpop.permute.xlu0 %3381
    %3383 = vrot.lane.b32.xlu0 %v3334, 9
    %v3384 = vpop.permute.xlu0 %3383
    %3385 = vrot.lane.b32.xlu0 %v3335, 9
    %v3386 = vpop.permute.xlu0 %3385
    %3387 = vrot.lane.b32.xlu0 %v3336, 9
    %v3388 = vpop.permute.xlu0 %3387
    %3389 = vrot.lane.b32.xlu0 %v3337, 9
    %v3390 = vpop.permute.xlu0 %3389
    %3391 = vrot.lane.b32.xlu0 %v3338, 9
    %v3392 = vpop.permute.xlu0 %3391
    %3393 = vrot.lane.b32.xlu0 %v3339, 9
    %v3394 = vpop.permute.xlu0 %3393
    %3395 = vrot.lane.b32.xlu0 %v3340, 9
    %v3396 = vpop.permute.xlu0 %3395
    %3397 = vrot.lane.b32.xlu0 %v3341, 9
    %v3398 = vpop.permute.xlu0 %3397
    %3399 = vrot.lane.b32.xlu0 %v3342, 9
    %v3400 = vpop.permute.xlu0 %3399
    %3401 = vrot.lane.b32.xlu0 %v3343, 9
    %v3402 = vpop.permute.xlu0 %3401
    %3403 = vrot.lane.b32.xlu0 %v3344, 9
    %v3404 = vpop.permute.xlu0 %3403
    %3405 = vrot.lane.b32.xlu0 %v3345, 9
    %v3406 = vpop.permute.xlu0 %3405
    %3407 = vrot.lane.b32.xlu0 %v3346, 9
    %v3408 = vpop.permute.xlu0 %3407
    %3409 = vrot.lane.b32.xlu0 %v3347, 9
    %v3410 = vpop.permute.xlu0 %3409
    %3411 = vrot.lane.b32.xlu0 %v3348, 9
    %v3412 = vpop.permute.xlu0 %3411
    %vm3445 = vcmask 97352
    %3446 = vst.msk [vmem:[#allocation3] sm:$0xff] %vm3445, %v3350
    %3447 = vst.msk [vmem:[#allocation3 + $0x8] sm:$0xff] %vm3445, %v3352
    %3448 = vst.msk [vmem:[#allocation3 + $0x10] sm:$0xff] %vm3445, %v3354
    %3449 = vst.msk [vmem:[#allocation3 + $0x18] sm:$0xff] %vm3445, %v3356
    %3450 = vst.msk [vmem:[#allocation3 + $0x20] sm:$0xff] %vm3445, %v3358
    %3451 = vst.msk [vmem:[#allocation3 + $0x28] sm:$0xff] %vm3445, %v3360
    %3452 = vst.msk [vmem:[#allocation3 + $0x30] sm:$0xff] %vm3445, %v3362
    %3453 = vst.msk [vmem:[#allocation3 + $0x38] sm:$0xff] %vm3445, %v3364
    %3454 = vst.msk [vmem:[#allocation3 + $0x40] sm:$0xff] %vm3445, %v3366
    %3455 = vst.msk [vmem:[#allocation3 + $0x48] sm:$0xff] %vm3445, %v3368
    %3456 = vst.msk [vmem:[#allocation3 + $0x50] sm:$0xff] %vm3445, %v3370
    %3457 = vst.msk [vmem:[#allocation3 + $0x58] sm:$0xff] %vm3445, %v3372
    %3458 = vst.msk [vmem:[#allocation3 + $0x60] sm:$0xff] %vm3445, %v3374
    %3459 = vst.msk [vmem:[#allocation3 + $0x68] sm:$0xff] %vm3445, %v3376
    %3460 = vst.msk [vmem:[#allocation3 + $0x70] sm:$0xff] %vm3445, %v3378
    %3461 = vst.msk [vmem:[#allocation3 + $0x78] sm:$0xff] %vm3445, %v3380
    %3462 = vst.msk [vmem:[#allocation3 + $0x80] sm:$0xff] %vm3445, %v3382
    %3463 = vst.msk [vmem:[#allocation3 + $0x88] sm:$0xff] %vm3445, %v3384
    %3464 = vst.msk [vmem:[#allocation3 + $0x90] sm:$0xff] %vm3445, %v3386
    %3465 = vst.msk [vmem:[#allocation3 + $0x98] sm:$0xff] %vm3445, %v3388
    %3466 = vst.msk [vmem:[#allocation3 + $0xa0] sm:$0xff] %vm3445, %v3390
    %3467 = vst.msk [vmem:[#allocation3 + $0xa8] sm:$0xff] %vm3445, %v3392
    %3468 = vst.msk [vmem:[#allocation3 + $0xb0] sm:$0xff] %vm3445, %v3394
    %3469 = vst.msk [vmem:[#allocation3 + $0xb8] sm:$0xff] %vm3445, %v3396
    %3470 = vst.msk [vmem:[#allocation3 + $0xc0] sm:$0xff] %vm3445, %v3398
    %3471 = vst.msk [vmem:[#allocation3 + $0xc8] sm:$0xff] %vm3445, %v3400
    %3472 = vst.msk [vmem:[#allocation3 + $0xd0] sm:$0xff] %vm3445, %v3402
    %3473 = vst.msk [vmem:[#allocation3 + $0xd8] sm:$0xff] %vm3445, %v3404
    %3474 = vst.msk [vmem:[#allocation3 + $0xe0] sm:$0xff] %vm3445, %v3406
    %3475 = vst.msk [vmem:[#allocation3 + $0xe8] sm:$0xff] %vm3445, %v3408
    %3476 = vst.msk [vmem:[#allocation3 + $0xf0] sm:$0xff] %vm3445, %v3410
    %3477 = vst.msk [vmem:[#allocation3 + $0xf8] sm:$0xff] %vm3445, %v3412
    %v3478 = vld [vmem:[%s869] sm:$0xf]
    %v3479 = vld [vmem:[%s869 + $0x4] sm:$0xf]
    %v3480 = vld [vmem:[%s869 + $0x8] sm:$0x1]
    %v3481 = vld [vmem:[%s869 + $0xc] sm:$0xf]
    %v3482 = vld [vmem:[%s869 + $0x10] sm:$0xf]
    %v3483 = vld [vmem:[%s869 + $0x14] sm:$0x1]
    %v3484 = vld [vmem:[%s869 + $0x18] sm:$0xf]
    %v3485 = vld [vmem:[%s869 + $0x1c] sm:$0xf]
    %v3486 = vld [vmem:[%s869 + $0x20] sm:$0x1]
    %v3487 = vld [vmem:[%s869 + $0x24] sm:$0xf]
    %v3488 = vld [vmem:[%s869 + $0x28] sm:$0xf]
    %v3489 = vld [vmem:[%s869 + $0x2c] sm:$0x1]
    %v3490 = vld [vmem:[%s869 + $0x30] sm:$0xf]
    %v3491 = vld [vmem:[%s869 + $0x34] sm:$0xf]
    %v3492 = vld [vmem:[%s869 + $0x38] sm:$0x1]
    %v3493 = vld [vmem:[%s869 + $0x3c] sm:$0xf]
    %v3494 = vld [vmem:[%s869 + $0x40] sm:$0xf]
    %v3495 = vld [vmem:[%s869 + $0x44] sm:$0x1]
    %v3496 = vld [vmem:[%s869 + $0x48] sm:$0xf]
    %v3497 = vld [vmem:[%s869 + $0x4c] sm:$0xf]
    %v3498 = vld [vmem:[%s869 + $0x50] sm:$0x1]
    %v3499 = vld [vmem:[%s869 + $0x54] sm:$0xf]
    %v3500 = vld [vmem:[%s869 + $0x58] sm:$0xf]
    %v3501 = vld [vmem:[%s869 + $0x5c] sm:$0x1]
    %v3502 = vld [vmem:[%s869 + $0x60] sm:$0xf]
    %v3503 = vld [vmem:[%s869 + $0x64] sm:$0xf]
    %v3504 = vld [vmem:[%s869 + $0x68] sm:$0x1]
    %v3505 = vld [vmem:[%s869 + $0x6c] sm:$0xf]
    %v3506 = vld [vmem:[%s869 + $0x70] sm:$0xf]
    %v3507 = vld [vmem:[%s869 + $0x74] sm:$0x1]
    %v3508 = vld [vmem:[%s869 + $0x78] sm:$0xf]
    %v3509 = vld [vmem:[%s869 + $0x7c] sm:$0xf]
    %v3510 = vld [vmem:[%s869 + $0x80] sm:$0x1]
    %v3511 = vld [vmem:[%s869 + $0x84] sm:$0xf]
    %v3512 = vld [vmem:[%s869 + $0x88] sm:$0xf]
    %v3513 = vld [vmem:[%s869 + $0x8c] sm:$0x1]
    %v3514 = vld [vmem:[%s869 + $0x90] sm:$0xf]
    %v3515 = vld [vmem:[%s869 + $0x94] sm:$0xf]
    %v3516 = vld [vmem:[%s869 + $0x98] sm:$0x1]
    %v3517 = vld [vmem:[%s869 + $0x9c] sm:$0xf]
    %v3518 = vld [vmem:[%s869 + $0xa0] sm:$0xf]
    %v3519 = vld [vmem:[%s869 + $0xa4] sm:$0x1]
    %v3520 = vld [vmem:[%s869 + $0xa8] sm:$0xf]
    %v3521 = vld [vmem:[%s869 + $0xac] sm:$0xf]
    %v3522 = vld [vmem:[%s869 + $0xb0] sm:$0x1]
    %v3523 = vld [vmem:[%s869 + $0xb4] sm:$0xf]
    %v3524 = vld [vmem:[%s869 + $0xb8] sm:$0xf]
    %v3525 = vld [vmem:[%s869 + $0xbc] sm:$0x1]
    %v3526 = vld [vmem:[%s869 + $0xd8] sm:$0xf]
    %v3527 = vld [vmem:[%s869 + $0xdc] sm:$0xf]
    %v3528 = vld [vmem:[%s869 + $0xe0] sm:$0x1]
    %v3529 = vld [vmem:[%s869 + $0xe4] sm:$0xf]
    %v3530 = vld [vmem:[%s869 + $0xe8] sm:$0xf]
    %v3531 = vld [vmem:[%s869 + $0xec] sm:$0x1]
    %v3532 = vld [vmem:[%s869 + $0xf0] sm:$0xf]
    %v3533 = vld [vmem:[%s869 + $0xf4] sm:$0xf]
    %v3534 = vld [vmem:[%s869 + $0xf8] sm:$0x1]
    %v3535 = vld [vmem:[%s869 + $0xfc] sm:$0xf]
    %v3536 = vld [vmem:[%s869 + $0x100] sm:$0xf]
    %v3537 = vld [vmem:[%s869 + $0x104] sm:$0x1]
    %v3538 = vld [vmem:[%s869 + $0x108] sm:$0xf]
    %v3539 = vld [vmem:[%s869 + $0x10c] sm:$0xf]
    %v3540 = vld [vmem:[%s869 + $0x110] sm:$0x1]
    %v3541 = vld [vmem:[%s869 + $0x114] sm:$0xf]
    %v3542 = vld [vmem:[%s869 + $0x118] sm:$0xf]
    %v3543 = vld [vmem:[%s869 + $0x11c] sm:$0x1]
    %v3544 = vld [vmem:[%s869 + $0x120] sm:$0xf]
    %v3545 = vld [vmem:[%s869 + $0x124] sm:$0xf]
    %v3546 = vld [vmem:[%s869 + $0x128] sm:$0x1]
    %v3547 = vld [vmem:[%s869 + $0x12c] sm:$0xf]
    %v3548 = vld [vmem:[%s869 + $0x130] sm:$0xf]
    %v3549 = vld [vmem:[%s869 + $0x134] sm:$0x1]
    %v3550 = vld [vmem:[%s869 + $0x138] sm:$0xf]
    %v3551 = vld [vmem:[%s869 + $0x13c] sm:$0xf]
    %v3552 = vld [vmem:[%s869 + $0x140] sm:$0x1]
    %v3553 = vld [vmem:[%s869 + $0x144] sm:$0xf]
    %v3554 = vld [vmem:[%s869 + $0x148] sm:$0xf]
    %v3555 = vld [vmem:[%s869 + $0x14c] sm:$0x1]
    %v3556 = vld [vmem:[%s869 + $0x150] sm:$0xf]
    %v3557 = vld [vmem:[%s869 + $0x154] sm:$0xf]
    %v3558 = vld [vmem:[%s869 + $0x158] sm:$0x1]
    %v3559 = vld [vmem:[%s869 + $0x15c] sm:$0xf]
    %v3560 = vld [vmem:[%s869 + $0x160] sm:$0xf]
    %v3561 = vld [vmem:[%s869 + $0x164] sm:$0x1]
    %v3562 = vld [vmem:[%s869 + $0x168] sm:$0xf]
    %v3563 = vld [vmem:[%s869 + $0x16c] sm:$0xf]
    %v3564 = vld [vmem:[%s869 + $0x170] sm:$0x1]
    %v3565 = vld [vmem:[%s869 + $0x174] sm:$0xf]
    %v3566 = vld [vmem:[%s869 + $0x178] sm:$0xf]
    %v3567 = vld [vmem:[%s869 + $0x17c] sm:$0x1]
    %v3568 = vld [vmem:[%s869 + $0x180] sm:$0xf]
    %v3569 = vld [vmem:[%s869 + $0x184] sm:$0xf]
    %v3570 = vld [vmem:[%s869 + $0x188] sm:$0x1]
    %v3571 = vld [vmem:[%s869 + $0x18c] sm:$0xf]
    %v3572 = vld [vmem:[%s869 + $0x190] sm:$0xf]
    %v3573 = vld [vmem:[%s869 + $0x194] sm:$0x1]
    %v3575 = vshrl.u32 %v3478, 16
    %v3577 = vrot.slane %v3575, 4
    %v3578 = vshll.u32 %v3478, 16
    %v3580 = vrot.slane %v3578, 5
    %v3581 = vor.u32 %v3577, %v3580
    %v3582 = vrot.slane %v3581, 4
    %v3584 = vshll.u32 %v3479, 16
    %v3586 = vrot.slane %v3584, 5
    %v3587 = vsel %vm1487, %v3582, %v3586
    %v3588 = vshrl.u32 %v3479, 16
    %v3590 = vrot.slane %v3588, 4
    %v3591 = vor.u32 %v3590, %v3586
    %v3592 = vrot.slane %v3591, 4
    %v3594 = vshll.u32 %v3480, 16
    %v3596 = vrot.slane %v3594, 5
    %v3597 = vsel %vm1487, %v3592, %v3596
    %v3599 = vshrl.u32 %v3481, 16
    %v3601 = vrot.slane %v3599, 4
    %v3602 = vshll.u32 %v3481, 16
    %v3604 = vrot.slane %v3602, 5
    %v3605 = vor.u32 %v3601, %v3604
    %v3606 = vrot.slane %v3605, 4
    %v3608 = vshll.u32 %v3482, 16
    %v3610 = vrot.slane %v3608, 5
    %v3611 = vsel %vm1487, %v3606, %v3610
    %v3612 = vshrl.u32 %v3482, 16
    %v3614 = vrot.slane %v3612, 4
    %v3615 = vor.u32 %v3614, %v3610
    %v3616 = vrot.slane %v3615, 4
    %v3618 = vshll.u32 %v3483, 16
    %v3620 = vrot.slane %v3618, 5
    %v3621 = vsel %vm1487, %v3616, %v3620
    %v3623 = vshrl.u32 %v3484, 16
    %v3625 = vrot.slane %v3623, 4
    %v3626 = vshll.u32 %v3484, 16
    %v3628 = vrot.slane %v3626, 5
    %v3629 = vor.u32 %v3625, %v3628
    %v3630 = vrot.slane %v3629, 4
    %v3632 = vshll.u32 %v3485, 16
    %v3634 = vrot.slane %v3632, 5
    %v3635 = vsel %vm1487, %v3630, %v3634
    %v3636 = vshrl.u32 %v3485, 16
    %v3638 = vrot.slane %v3636, 4
    %v3639 = vor.u32 %v3638, %v3634
    %v3640 = vrot.slane %v3639, 4
    %v3642 = vshll.u32 %v3486, 16
    %v3644 = vrot.slane %v3642, 5
    %v3645 = vsel %vm1487, %v3640, %v3644
    %v3647 = vshrl.u32 %v3487, 16
    %v3649 = vrot.slane %v3647, 4
    %v3650 = vshll.u32 %v3487, 16
    %v3652 = vrot.slane %v3650, 5
    %v3653 = vor.u32 %v3649, %v3652
    %v3654 = vrot.slane %v3653, 4
    %v3656 = vshll.u32 %v3488, 16
    %v3658 = vrot.slane %v3656, 5
    %v3659 = vsel %vm1487, %v3654, %v3658
    %v3660 = vshrl.u32 %v3488, 16
    %v3662 = vrot.slane %v3660, 4
    %v3663 = vor.u32 %v3662, %v3658
    %v3664 = vrot.slane %v3663, 4
    %v3666 = vshll.u32 %v3489, 16
    %v3668 = vrot.slane %v3666, 5
    %v3669 = vsel %vm1487, %v3664, %v3668
    %v3671 = vshrl.u32 %v3490, 16
    %v3673 = vrot.slane %v3671, 4
    %v3674 = vshll.u32 %v3490, 16
    %v3676 = vrot.slane %v3674, 5
    %v3677 = vor.u32 %v3673, %v3676
    %v3678 = vrot.slane %v3677, 4
    %v3680 = vshll.u32 %v3491, 16
    %v3682 = vrot.slane %v3680, 5
    %v3683 = vsel %vm1487, %v3678, %v3682
    %v3684 = vshrl.u32 %v3491, 16
    %v3686 = vrot.slane %v3684, 4
    %v3687 = vor.u32 %v3686, %v3682
    %v3688 = vrot.slane %v3687, 4
    %v3690 = vshll.u32 %v3492, 16
    %v3692 = vrot.slane %v3690, 5
    %v3693 = vsel %vm1487, %v3688, %v3692
    %v3695 = vshrl.u32 %v3493, 16
    %v3697 = vrot.slane %v3695, 4
    %v3698 = vshll.u32 %v3493, 16
    %v3700 = vrot.slane %v3698, 5
    %v3701 = vor.u32 %v3697, %v3700
    %v3702 = vrot.slane %v3701, 4
    %v3704 = vshll.u32 %v3494, 16
    %v3706 = vrot.slane %v3704, 5
    %v3707 = vsel %vm1487, %v3702, %v3706
    %v3708 = vshrl.u32 %v3494, 16
    %v3710 = vrot.slane %v3708, 4
    %v3711 = vor.u32 %v3710, %v3706
    %v3712 = vrot.slane %v3711, 4
    %v3714 = vshll.u32 %v3495, 16
    %v3716 = vrot.slane %v3714, 5
    %v3717 = vsel %vm1487, %v3712, %v3716
    %v3719 = vshrl.u32 %v3496, 16
    %v3721 = vrot.slane %v3719, 4
    %v3722 = vshll.u32 %v3496, 16
    %v3724 = vrot.slane %v3722, 5
    %v3725 = vor.u32 %v3721, %v3724
    %v3726 = vrot.slane %v3725, 4
    %v3728 = vshll.u32 %v3497, 16
    %v3730 = vrot.slane %v3728, 5
    %v3731 = vsel %vm1487, %v3726, %v3730
    %v3732 = vshrl.u32 %v3497, 16
    %v3734 = vrot.slane %v3732, 4
    %v3735 = vor.u32 %v3734, %v3730
    %v3736 = vrot.slane %v3735, 4
    %v3738 = vshll.u32 %v3498, 16
    %v3740 = vrot.slane %v3738, 5
    %v3741 = vsel %vm1487, %v3736, %v3740
    %v3743 = vshrl.u32 %v3499, 16
    %v3745 = vrot.slane %v3743, 4
    %v3746 = vshll.u32 %v3499, 16
    %v3748 = vrot.slane %v3746, 5
    %v3749 = vor.u32 %v3745, %v3748
    %v3750 = vrot.slane %v3749, 4
    %v3752 = vshll.u32 %v3500, 16
    %v3754 = vrot.slane %v3752, 5
    %v3755 = vsel %vm1487, %v3750, %v3754
    %v3756 = vshrl.u32 %v3500, 16
    %v3758 = vrot.slane %v3756, 4
    %v3759 = vor.u32 %v3758, %v3754
    %v3760 = vrot.slane %v3759, 4
    %v3762 = vshll.u32 %v3501, 16
    %v3764 = vrot.slane %v3762, 5
    %v3765 = vsel %vm1487, %v3760, %v3764
    %v3767 = vshrl.u32 %v3502, 16
    %v3769 = vrot.slane %v3767, 4
    %v3770 = vshll.u32 %v3502, 16
    %v3772 = vrot.slane %v3770, 5
    %v3773 = vor.u32 %v3769, %v3772
    %v3774 = vrot.slane %v3773, 4
    %v3776 = vshll.u32 %v3503, 16
    %v3778 = vrot.slane %v3776, 5
    %v3779 = vsel %vm1487, %v3774, %v3778
    %v3780 = vshrl.u32 %v3503, 16
    %v3782 = vrot.slane %v3780, 4
    %v3783 = vor.u32 %v3782, %v3778
    %v3784 = vrot.slane %v3783, 4
    %v3786 = vshll.u32 %v3504, 16
    %v3788 = vrot.slane %v3786, 5
    %v3789 = vsel %vm1487, %v3784, %v3788
    %v3791 = vshrl.u32 %v3505, 16
    %v3793 = vrot.slane %v3791, 4
    %v3794 = vshll.u32 %v3505, 16
    %v3796 = vrot.slane %v3794, 5
    %v3797 = vor.u32 %v3793, %v3796
    %v3798 = vrot.slane %v3797, 4
    %v3800 = vshll.u32 %v3506, 16
    %v3802 = vrot.slane %v3800, 5
    %v3803 = vsel %vm1487, %v3798, %v3802
    %v3804 = vshrl.u32 %v3506, 16
    %v3806 = vrot.slane %v3804, 4
    %v3807 = vor.u32 %v3806, %v3802
    %v3808 = vrot.slane %v3807, 4
    %v3810 = vshll.u32 %v3507, 16
    %v3812 = vrot.slane %v3810, 5
    %v3813 = vsel %vm1487, %v3808, %v3812
    %v3815 = vshrl.u32 %v3508, 16
    %v3817 = vrot.slane %v3815, 4
    %v3818 = vshll.u32 %v3508, 16
    %v3820 = vrot.slane %v3818, 5
    %v3821 = vor.u32 %v3817, %v3820
    %v3822 = vrot.slane %v3821, 4
    %v3824 = vshll.u32 %v3509, 16
    %v3826 = vrot.slane %v3824, 5
    %v3827 = vsel %vm1487, %v3822, %v3826
    %v3828 = vshrl.u32 %v3509, 16
    %v3830 = vrot.slane %v3828, 4
    %v3831 = vor.u32 %v3830, %v3826
    %v3832 = vrot.slane %v3831, 4
    %v3834 = vshll.u32 %v3510, 16
    %v3836 = vrot.slane %v3834, 5
    %v3837 = vsel %vm1487, %v3832, %v3836
    %v3839 = vshrl.u32 %v3511, 16
    %v3841 = vrot.slane %v3839, 4
    %v3842 = vshll.u32 %v3511, 16
    %v3844 = vrot.slane %v3842, 5
    %v3845 = vor.u32 %v3841, %v3844
    %v3846 = vrot.slane %v3845, 4
    %v3848 = vshll.u32 %v3512, 16
    %v3850 = vrot.slane %v3848, 5
    %v3851 = vsel %vm1487, %v3846, %v3850
    %v3852 = vshrl.u32 %v3512, 16
    %v3854 = vrot.slane %v3852, 4
    %v3855 = vor.u32 %v3854, %v3850
    %v3856 = vrot.slane %v3855, 4
    %v3858 = vshll.u32 %v3513, 16
    %v3860 = vrot.slane %v3858, 5
    %v3861 = vsel %vm1487, %v3856, %v3860
    %v3863 = vshrl.u32 %v3514, 16
    %v3865 = vrot.slane %v3863, 4
    %v3866 = vshll.u32 %v3514, 16
    %v3868 = vrot.slane %v3866, 5
    %v3869 = vor.u32 %v3865, %v3868
    %v3870 = vrot.slane %v3869, 4
    %v3872 = vshll.u32 %v3515, 16
    %v3874 = vrot.slane %v3872, 5
    %v3875 = vsel %vm1487, %v3870, %v3874
    %v3876 = vshrl.u32 %v3515, 16
    %v3878 = vrot.slane %v3876, 4
    %v3879 = vor.u32 %v3878, %v3874
    %v3880 = vrot.slane %v3879, 4
    %v3882 = vshll.u32 %v3516, 16
    %v3884 = vrot.slane %v3882, 5
    %v3885 = vsel %vm1487, %v3880, %v3884
    %v3887 = vshrl.u32 %v3517, 16
    %v3889 = vrot.slane %v3887, 4
    %v3890 = vshll.u32 %v3517, 16
    %v3892 = vrot.slane %v3890, 5
    %v3893 = vor.u32 %v3889, %v3892
    %v3894 = vrot.slane %v3893, 4
    %v3896 = vshll.u32 %v3518, 16
    %v3898 = vrot.slane %v3896, 5
    %v3899 = vsel %vm1487, %v3894, %v3898
    %v3900 = vshrl.u32 %v3518, 16
    %v3902 = vrot.slane %v3900, 4
    %v3903 = vor.u32 %v3902, %v3898
    %v3904 = vrot.slane %v3903, 4
    %v3906 = vshll.u32 %v3519, 16
    %v3908 = vrot.slane %v3906, 5
    %v3909 = vsel %vm1487, %v3904, %v3908
    %v3911 = vshrl.u32 %v3520, 16
    %v3913 = vrot.slane %v3911, 4
    %v3914 = vshll.u32 %v3520, 16
    %v3916 = vrot.slane %v3914, 5
    %v3917 = vor.u32 %v3913, %v3916
    %v3918 = vrot.slane %v3917, 4
    %v3920 = vshll.u32 %v3521, 16
    %v3922 = vrot.slane %v3920, 5
    %v3923 = vsel %vm1487, %v3918, %v3922
    %v3924 = vshrl.u32 %v3521, 16
    %v3926 = vrot.slane %v3924, 4
    %v3927 = vor.u32 %v3926, %v3922
    %v3928 = vrot.slane %v3927, 4
    %v3930 = vshll.u32 %v3522, 16
    %v3932 = vrot.slane %v3930, 5
    %v3933 = vsel %vm1487, %v3928, %v3932
    %v3935 = vshrl.u32 %v3523, 16
    %v3937 = vrot.slane %v3935, 4
    %v3938 = vshll.u32 %v3523, 16
    %v3940 = vrot.slane %v3938, 5
    %v3941 = vor.u32 %v3937, %v3940
    %v3942 = vrot.slane %v3941, 4
    %v3944 = vshll.u32 %v3524, 16
    %v3946 = vrot.slane %v3944, 5
    %v3947 = vsel %vm1487, %v3942, %v3946
    %v3948 = vshrl.u32 %v3524, 16
    %v3950 = vrot.slane %v3948, 4
    %v3951 = vor.u32 %v3950, %v3946
    %v3952 = vrot.slane %v3951, 4
    %v3954 = vshll.u32 %v3525, 16
    %v3956 = vrot.slane %v3954, 5
    %v3957 = vsel %vm1487, %v3952, %v3956
    %v3959 = vshrl.u32 %v3526, 16
    %v3961 = vrot.slane %v3959, 4
    %v3962 = vshll.u32 %v3526, 16
    %v3964 = vrot.slane %v3962, 5
    %v3965 = vor.u32 %v3961, %v3964
    %v3966 = vrot.slane %v3965, 4
    %v3968 = vshll.u32 %v3527, 16
    %v3970 = vrot.slane %v3968, 5
    %v3971 = vsel %vm1487, %v3966, %v3970
    %v3972 = vshrl.u32 %v3527, 16
    %v3974 = vrot.slane %v3972, 4
    %v3975 = vor.u32 %v3974, %v3970
    %v3976 = vrot.slane %v3975, 4
    %v3978 = vshll.u32 %v3528, 16
    %v3980 = vrot.slane %v3978, 5
    %v3981 = vsel %vm1487, %v3976, %v3980
    %v3983 = vshrl.u32 %v3529, 16
    %v3985 = vrot.slane %v3983, 4
    %v3986 = vshll.u32 %v3529, 16
    %v3988 = vrot.slane %v3986, 5
    %v3989 = vor.u32 %v3985, %v3988
    %v3990 = vrot.slane %v3989, 4
    %v3992 = vshll.u32 %v3530, 16
    %v3994 = vrot.slane %v3992, 5
    %v3995 = vsel %vm1487, %v3990, %v3994
    %v3996 = vshrl.u32 %v3530, 16
    %v3998 = vrot.slane %v3996, 4
    %v3999 = vor.u32 %v3998, %v3994
    %v4000 = vrot.slane %v3999, 4
    %v4002 = vshll.u32 %v3531, 16
    %v4004 = vrot.slane %v4002, 5
    %v4005 = vsel %vm1487, %v4000, %v4004
    %v4007 = vshrl.u32 %v3532, 16
    %v4009 = vrot.slane %v4007, 4
    %v4010 = vshll.u32 %v3532, 16
    %v4012 = vrot.slane %v4010, 5
    %v4013 = vor.u32 %v4009, %v4012
    %v4014 = vrot.slane %v4013, 4
    %v4016 = vshll.u32 %v3533, 16
    %v4018 = vrot.slane %v4016, 5
    %v4019 = vsel %vm1487, %v4014, %v4018
    %v4020 = vshrl.u32 %v3533, 16
    %v4022 = vrot.slane %v4020, 4
    %v4023 = vor.u32 %v4022, %v4018
    %v4024 = vrot.slane %v4023, 4
    %v4026 = vshll.u32 %v3534, 16
    %v4028 = vrot.slane %v4026, 5
    %v4029 = vsel %vm1487, %v4024, %v4028
    %v4031 = vshrl.u32 %v3535, 16
    %v4033 = vrot.slane %v4031, 4
    %v4034 = vshll.u32 %v3535, 16
    %v4036 = vrot.slane %v4034, 5
    %v4037 = vor.u32 %v4033, %v4036
    %v4038 = vrot.slane %v4037, 4
    %v4040 = vshll.u32 %v3536, 16
    %v4042 = vrot.slane %v4040, 5
    %v4043 = vsel %vm1487, %v4038, %v4042
    %v4044 = vshrl.u32 %v3536, 16
    %v4046 = vrot.slane %v4044, 4
    %v4047 = vor.u32 %v4046, %v4042
    %v4048 = vrot.slane %v4047, 4
    %v4050 = vshll.u32 %v3537, 16
    %v4052 = vrot.slane %v4050, 5
    %v4053 = vsel %vm1487, %v4048, %v4052
    %v4055 = vshrl.u32 %v3538, 16
    %v4057 = vrot.slane %v4055, 4
    %v4058 = vshll.u32 %v3538, 16
    %v4060 = vrot.slane %v4058, 5
    %v4061 = vor.u32 %v4057, %v4060
    %v4062 = vrot.slane %v4061, 4
    %v4064 = vshll.u32 %v3539, 16
    %v4066 = vrot.slane %v4064, 5
    %v4067 = vsel %vm1487, %v4062, %v4066
    %v4068 = vshrl.u32 %v3539, 16
    %v4070 = vrot.slane %v4068, 4
    %v4071 = vor.u32 %v4070, %v4066
    %v4072 = vrot.slane %v4071, 4
    %v4074 = vshll.u32 %v3540, 16
    %v4076 = vrot.slane %v4074, 5
    %v4077 = vsel %vm1487, %v4072, %v4076
    %v4079 = vshrl.u32 %v3541, 16
    %v4081 = vrot.slane %v4079, 4
    %v4082 = vshll.u32 %v3541, 16
    %v4084 = vrot.slane %v4082, 5
    %v4085 = vor.u32 %v4081, %v4084
    %v4086 = vrot.slane %v4085, 4
    %v4088 = vshll.u32 %v3542, 16
    %v4090 = vrot.slane %v4088, 5
    %v4091 = vsel %vm1487, %v4086, %v4090
    %v4092 = vshrl.u32 %v3542, 16
    %v4094 = vrot.slane %v4092, 4
    %v4095 = vor.u32 %v4094, %v4090
    %v4096 = vrot.slane %v4095, 4
    %v4098 = vshll.u32 %v3543, 16
    %v4100 = vrot.slane %v4098, 5
    %v4101 = vsel %vm1487, %v4096, %v4100
    %v4103 = vshrl.u32 %v3544, 16
    %v4105 = vrot.slane %v4103, 4
    %v4106 = vshll.u32 %v3544, 16
    %v4108 = vrot.slane %v4106, 5
    %v4109 = vor.u32 %v4105, %v4108
    %v4110 = vrot.slane %v4109, 4
    %v4112 = vshll.u32 %v3545, 16
    %v4114 = vrot.slane %v4112, 5
    %v4115 = vsel %vm1487, %v4110, %v4114
    %v4116 = vshrl.u32 %v3545, 16
    %v4118 = vrot.slane %v4116, 4
    %v4119 = vor.u32 %v4118, %v4114
    %v4120 = vrot.slane %v4119, 4
    %v4122 = vshll.u32 %v3546, 16
    %v4124 = vrot.slane %v4122, 5
    %v4125 = vsel %vm1487, %v4120, %v4124
    %v4127 = vshrl.u32 %v3547, 16
    %v4129 = vrot.slane %v4127, 4
    %v4130 = vshll.u32 %v3547, 16
    %v4132 = vrot.slane %v4130, 5
    %v4133 = vor.u32 %v4129, %v4132
    %v4134 = vrot.slane %v4133, 4
    %v4136 = vshll.u32 %v3548, 16
    %v4138 = vrot.slane %v4136, 5
    %v4139 = vsel %vm1487, %v4134, %v4138
    %v4140 = vshrl.u32 %v3548, 16
    %v4142 = vrot.slane %v4140, 4
    %v4143 = vor.u32 %v4142, %v4138
    %v4144 = vrot.slane %v4143, 4
    %v4146 = vshll.u32 %v3549, 16
    %v4148 = vrot.slane %v4146, 5
    %v4149 = vsel %vm1487, %v4144, %v4148
    %v4151 = vshrl.u32 %v3550, 16
    %v4153 = vrot.slane %v4151, 4
    %v4154 = vshll.u32 %v3550, 16
    %v4156 = vrot.slane %v4154, 5
    %v4157 = vor.u32 %v4153, %v4156
    %v4158 = vrot.slane %v4157, 4
    %v4160 = vshll.u32 %v3551, 16
    %v4162 = vrot.slane %v4160, 5
    %v4163 = vsel %vm1487, %v4158, %v4162
    %v4164 = vshrl.u32 %v3551, 16
    %v4166 = vrot.slane %v4164, 4
    %v4167 = vor.u32 %v4166, %v4162
    %v4168 = vrot.slane %v4167, 4
    %v4170 = vshll.u32 %v3552, 16
    %v4172 = vrot.slane %v4170, 5
    %v4173 = vsel %vm1487, %v4168, %v4172
    %v4175 = vshrl.u32 %v3553, 16
    %v4177 = vrot.slane %v4175, 4
    %v4178 = vshll.u32 %v3553, 16
    %v4180 = vrot.slane %v4178, 5
    %v4181 = vor.u32 %v4177, %v4180
    %v4182 = vrot.slane %v4181, 4
    %v4184 = vshll.u32 %v3554, 16
    %v4186 = vrot.slane %v4184, 5
    %v4187 = vsel %vm1487, %v4182, %v4186
    %v4188 = vshrl.u32 %v3554, 16
    %v4190 = vrot.slane %v4188, 4
    %v4191 = vor.u32 %v4190, %v4186
    %v4192 = vrot.slane %v4191, 4
    %v4194 = vshll.u32 %v3555, 16
    %v4196 = vrot.slane %v4194, 5
    %v4197 = vsel %vm1487, %v4192, %v4196
    %v4199 = vshrl.u32 %v3556, 16
    %v4201 = vrot.slane %v4199, 4
    %v4202 = vshll.u32 %v3556, 16
    %v4204 = vrot.slane %v4202, 5
    %v4205 = vor.u32 %v4201, %v4204
    %v4206 = vrot.slane %v4205, 4
    %v4208 = vshll.u32 %v3557, 16
    %v4210 = vrot.slane %v4208, 5
    %v4211 = vsel %vm1487, %v4206, %v4210
    %v4212 = vshrl.u32 %v3557, 16
    %v4214 = vrot.slane %v4212, 4
    %v4215 = vor.u32 %v4214, %v4210
    %v4216 = vrot.slane %v4215, 4
    %v4218 = vshll.u32 %v3558, 16
    %v4220 = vrot.slane %v4218, 5
    %v4221 = vsel %vm1487, %v4216, %v4220
    %v4223 = vshrl.u32 %v3559, 16
    %v4225 = vrot.slane %v4223, 4
    %v4226 = vshll.u32 %v3559, 16
    %v4228 = vrot.slane %v4226, 5
    %v4229 = vor.u32 %v4225, %v4228
    %v4230 = vrot.slane %v4229, 4
    %v4232 = vshll.u32 %v3560, 16
    %v4234 = vrot.slane %v4232, 5
    %v4235 = vsel %vm1487, %v4230, %v4234
    %v4236 = vshrl.u32 %v3560, 16
    %v4238 = vrot.slane %v4236, 4
    %v4239 = vor.u32 %v4238, %v4234
    %v4240 = vrot.slane %v4239, 4
    %v4242 = vshll.u32 %v3561, 16
    %v4244 = vrot.slane %v4242, 5
    %v4245 = vsel %vm1487, %v4240, %v4244
    %v4247 = vshrl.u32 %v3562, 16
    %v4249 = vrot.slane %v4247, 4
    %v4250 = vshll.u32 %v3562, 16
    %v4252 = vrot.slane %v4250, 5
    %v4253 = vor.u32 %v4249, %v4252
    %v4254 = vrot.slane %v4253, 4
    %v4256 = vshll.u32 %v3563, 16
    %v4258 = vrot.slane %v4256, 5
    %v4259 = vsel %vm1487, %v4254, %v4258
    %v4260 = vshrl.u32 %v3563, 16
    %v4262 = vrot.slane %v4260, 4
    %v4263 = vor.u32 %v4262, %v4258
    %v4264 = vrot.slane %v4263, 4
    %v4266 = vshll.u32 %v3564, 16
    %v4268 = vrot.slane %v4266, 5
    %v4269 = vsel %vm1487, %v4264, %v4268
    %v4271 = vshrl.u32 %v3565, 16
    %v4273 = vrot.slane %v4271, 4
    %v4274 = vshll.u32 %v3565, 16
    %v4276 = vrot.slane %v4274, 5
    %v4277 = vor.u32 %v4273, %v4276
    %v4278 = vrot.slane %v4277, 4
    %v4280 = vshll.u32 %v3566, 16
    %v4282 = vrot.slane %v4280, 5
    %v4283 = vsel %vm1487, %v4278, %v4282
    %v4284 = vshrl.u32 %v3566, 16
    %v4286 = vrot.slane %v4284, 4
    %v4287 = vor.u32 %v4286, %v4282
    %v4288 = vrot.slane %v4287, 4
    %v4290 = vshll.u32 %v3567, 16
    %v4292 = vrot.slane %v4290, 5
    %v4293 = vsel %vm1487, %v4288, %v4292
    %v4295 = vshrl.u32 %v3568, 16
    %v4297 = vrot.slane %v4295, 4
    %v4298 = vshll.u32 %v3568, 16
    %v4300 = vrot.slane %v4298, 5
    %v4301 = vor.u32 %v4297, %v4300
    %v4302 = vrot.slane %v4301, 4
    %v4304 = vshll.u32 %v3569, 16
    %v4306 = vrot.slane %v4304, 5
    %v4307 = vsel %vm1487, %v4302, %v4306
    %v4308 = vshrl.u32 %v3569, 16
    %v4310 = vrot.slane %v4308, 4
    %v4311 = vor.u32 %v4310, %v4306
    %v4312 = vrot.slane %v4311, 4
    %v4314 = vshll.u32 %v3570, 16
    %v4316 = vrot.slane %v4314, 5
    %v4317 = vsel %vm1487, %v4312, %v4316
    %v4319 = vshrl.u32 %v3571, 16
    %v4321 = vrot.slane %v4319, 4
    %v4322 = vshll.u32 %v3571, 16
    %v4324 = vrot.slane %v4322, 5
    %v4325 = vor.u32 %v4321, %v4324
    %v4326 = vrot.slane %v4325, 4
    %v4328 = vshll.u32 %v3572, 16
    %v4330 = vrot.slane %v4328, 5
    %v4331 = vsel %vm1487, %v4326, %v4330
    %v4332 = vshrl.u32 %v3572, 16
    %v4334 = vrot.slane %v4332, 4
    %v4335 = vor.u32 %v4334, %v4330
    %v4336 = vrot.slane %v4335, 4
    %v4338 = vshll.u32 %v3573, 16
    %v4340 = vrot.slane %v4338, 5
    %v4341 = vsel %vm1487, %v4336, %v4340
    %v4342 = vunpack.c.l.b16 %v3587
    %v4343 = vunpack.c.l.b16 %v3597
    %v4344 = vunpack.c.l.b16 %v3611
    %v4345 = vunpack.c.l.b16 %v3621
    %v4346 = vunpack.c.l.b16 %v3635
    %v4347 = vunpack.c.l.b16 %v3645
    %v4348 = vunpack.c.l.b16 %v3659
    %v4349 = vunpack.c.l.b16 %v3669
    %v4350 = vunpack.c.l.b16 %v3683
    %v4351 = vunpack.c.l.b16 %v3693
    %v4352 = vunpack.c.l.b16 %v3707
    %v4353 = vunpack.c.l.b16 %v3717
    %v4354 = vunpack.c.l.b16 %v3731
    %v4355 = vunpack.c.l.b16 %v3741
    %v4356 = vunpack.c.l.b16 %v3755
    %v4357 = vunpack.c.l.b16 %v3765
    %v4358 = vunpack.c.l.b16 %v3779
    %v4359 = vunpack.c.l.b16 %v3789
    %v4360 = vunpack.c.l.b16 %v3803
    %v4361 = vunpack.c.l.b16 %v3813
    %v4362 = vunpack.c.l.b16 %v3827
    %v4363 = vunpack.c.l.b16 %v3837
    %v4364 = vunpack.c.l.b16 %v3851
    %v4365 = vunpack.c.l.b16 %v3861
    %v4366 = vunpack.c.l.b16 %v3875
    %v4367 = vunpack.c.l.b16 %v3885
    %v4368 = vunpack.c.l.b16 %v3899
    %v4369 = vunpack.c.l.b16 %v3909
    %v4370 = vunpack.c.l.b16 %v3923
    %v4371 = vunpack.c.l.b16 %v3933
    %v4372 = vunpack.c.l.b16 %v3947
    %v4373 = vunpack.c.l.b16 %v3957
    %v4374 = vunpack.c.l.b16 %v3971
    %v4375 = vunpack.c.l.b16 %v3981
    %v4376 = vunpack.c.l.b16 %v3995
    %v4377 = vunpack.c.l.b16 %v4005
    %v4378 = vunpack.c.l.b16 %v4019
    %v4379 = vunpack.c.l.b16 %v4029
    %v4380 = vunpack.c.l.b16 %v4043
    %v4381 = vunpack.c.l.b16 %v4053
    %v4382 = vunpack.c.l.b16 %v4067
    %v4383 = vunpack.c.l.b16 %v4077
    %v4384 = vunpack.c.l.b16 %v4091
    %v4385 = vunpack.c.l.b16 %v4101
    %v4386 = vunpack.c.l.b16 %v4115
    %v4387 = vunpack.c.l.b16 %v4125
    %v4388 = vunpack.c.l.b16 %v4139
    %v4389 = vunpack.c.l.b16 %v4149
    %v4390 = vunpack.c.l.b16 %v4163
    %v4391 = vunpack.c.l.b16 %v4173
    %v4392 = vunpack.c.l.b16 %v4187
    %v4393 = vunpack.c.l.b16 %v4197
    %v4394 = vunpack.c.l.b16 %v4211
    %v4395 = vunpack.c.l.b16 %v4221
    %v4396 = vunpack.c.l.b16 %v4235
    %v4397 = vunpack.c.l.b16 %v4245
    %v4398 = vunpack.c.l.b16 %v4259
    %v4399 = vunpack.c.l.b16 %v4269
    %v4400 = vunpack.c.l.b16 %v4283
    %v4401 = vunpack.c.l.b16 %v4293
    %v4402 = vunpack.c.l.b16 %v4307
    %v4403 = vunpack.c.l.b16 %v4317
    %v4404 = vunpack.c.l.b16 %v4331
    %v4405 = vunpack.c.l.b16 %v4341
    %v4406 = vpack.c.b16 %v4343, %v4342
    %v4407 = vpack.c.b16 %v4345, %v4344
    %v4408 = vpack.c.b16 %v4347, %v4346
    %v4409 = vpack.c.b16 %v4349, %v4348
    %v4410 = vpack.c.b16 %v4351, %v4350
    %v4411 = vpack.c.b16 %v4353, %v4352
    %v4412 = vpack.c.b16 %v4355, %v4354
    %v4413 = vpack.c.b16 %v4357, %v4356
    %v4414 = vpack.c.b16 %v4359, %v4358
    %v4415 = vpack.c.b16 %v4361, %v4360
    %v4416 = vpack.c.b16 %v4363, %v4362
    %v4417 = vpack.c.b16 %v4365, %v4364
    %v4418 = vpack.c.b16 %v4367, %v4366
    %v4419 = vpack.c.b16 %v4369, %v4368
    %v4420 = vpack.c.b16 %v4371, %v4370
    %v4421 = vpack.c.b16 %v4373, %v4372
    %v4422 = vpack.c.b16 %v4375, %v4374
    %v4423 = vpack.c.b16 %v4377, %v4376
    %v4424 = vpack.c.b16 %v4379, %v4378
    %v4425 = vpack.c.b16 %v4381, %v4380
    %v4426 = vpack.c.b16 %v4383, %v4382
    %v4427 = vpack.c.b16 %v4385, %v4384
    %v4428 = vpack.c.b16 %v4387, %v4386
    %v4429 = vpack.c.b16 %v4389, %v4388
    %v4430 = vpack.c.b16 %v4391, %v4390
    %v4431 = vpack.c.b16 %v4393, %v4392
    %v4432 = vpack.c.b16 %v4395, %v4394
    %v4433 = vpack.c.b16 %v4397, %v4396
    %v4434 = vpack.c.b16 %v4399, %v4398
    %v4435 = vpack.c.b16 %v4401, %v4400
    %v4436 = vpack.c.b16 %v4403, %v4402
    %v4437 = vpack.c.b16 %v4405, %v4404
    %4438 = vrot.lane.b32.xlu0 %v4406, 12
    %v4439 = vpop.permute.xlu0 %4438
    %4440 = vrot.lane.b32.xlu0 %v4407, 12
    %v4441 = vpop.permute.xlu0 %4440
    %4442 = vrot.lane.b32.xlu0 %v4408, 12
    %v4443 = vpop.permute.xlu0 %4442
    %4444 = vrot.lane.b32.xlu0 %v4409, 12
    %v4445 = vpop.permute.xlu0 %4444
    %4446 = vrot.lane.b32.xlu0 %v4410, 12
    %v4447 = vpop.permute.xlu0 %4446
    %4448 = vrot.lane.b32.xlu0 %v4411, 12
    %v4449 = vpop.permute.xlu0 %4448
    %4450 = vrot.lane.b32.xlu0 %v4412, 12
    %v4451 = vpop.permute.xlu0 %4450
    %4452 = vrot.lane.b32.xlu0 %v4413, 12
    %v4453 = vpop.permute.xlu0 %4452
    %4454 = vrot.lane.b32.xlu0 %v4414, 12
    %v4455 = vpop.permute.xlu0 %4454
    %4456 = vrot.lane.b32.xlu0 %v4415, 12
    %v4457 = vpop.permute.xlu0 %4456
    %4458 = vrot.lane.b32.xlu0 %v4416, 12
    %v4459 = vpop.permute.xlu0 %4458
    %4460 = vrot.lane.b32.xlu0 %v4417, 12
    %v4461 = vpop.permute.xlu0 %4460
    %4462 = vrot.lane.b32.xlu0 %v4418, 12
    %v4463 = vpop.permute.xlu0 %4462
    %4464 = vrot.lane.b32.xlu0 %v4419, 12
    %v4465 = vpop.permute.xlu0 %4464
    %4466 = vrot.lane.b32.xlu0 %v4420, 12
    %v4467 = vpop.permute.xlu0 %4466
    %4468 = vrot.lane.b32.xlu0 %v4421, 12
    %v4469 = vpop.permute.xlu0 %4468
    %4470 = vrot.lane.b32.xlu0 %v4422, 12
    %v4471 = vpop.permute.xlu0 %4470
    %4472 = vrot.lane.b32.xlu0 %v4423, 12
    %v4473 = vpop.permute.xlu0 %4472
    %4474 = vrot.lane.b32.xlu0 %v4424, 12
    %v4475 = vpop.permute.xlu0 %4474
    %4476 = vrot.lane.b32.xlu0 %v4425, 12
    %v4477 = vpop.permute.xlu0 %4476
    %4478 = vrot.lane.b32.xlu0 %v4426, 12
    %v4479 = vpop.permute.xlu0 %4478
    %4480 = vrot.lane.b32.xlu0 %v4427, 12
    %v4481 = vpop.permute.xlu0 %4480
    %4482 = vrot.lane.b32.xlu0 %v4428, 12
    %v4483 = vpop.permute.xlu0 %4482
    %4484 = vrot.lane.b32.xlu0 %v4429, 12
    %v4485 = vpop.permute.xlu0 %4484
    %4486 = vrot.lane.b32.xlu0 %v4430, 12
    %v4487 = vpop.permute.xlu0 %4486
    %4488 = vrot.lane.b32.xlu0 %v4431, 12
    %v4489 = vpop.permute.xlu0 %4488
    %4490 = vrot.lane.b32.xlu0 %v4432, 12
    %v4491 = vpop.permute.xlu0 %4490
    %4492 = vrot.lane.b32.xlu0 %v4433, 12
    %v4493 = vpop.permute.xlu0 %4492
    %4494 = vrot.lane.b32.xlu0 %v4434, 12
    %v4495 = vpop.permute.xlu0 %4494
    %4496 = vrot.lane.b32.xlu0 %v4435, 12
    %v4497 = vpop.permute.xlu0 %4496
    %4498 = vrot.lane.b32.xlu0 %v4436, 12
    %v4499 = vpop.permute.xlu0 %4498
    %4500 = vrot.lane.b32.xlu0 %v4437, 12
    %v4501 = vpop.permute.xlu0 %4500
    %vm4534 = vcmask 121952
    %4535 = vst.msk [vmem:[#allocation3] sm:$0xff] %vm4534, %v4439
    %4536 = vst.msk [vmem:[#allocation3 + $0x8] sm:$0xff] %vm4534, %v4441
    %4537 = vst.msk [vmem:[#allocation3 + $0x10] sm:$0xff] %vm4534, %v4443
    %4538 = vst.msk [vmem:[#allocation3 + $0x18] sm:$0xff] %vm4534, %v4445
    %4539 = vst.msk [vmem:[#allocation3 + $0x20] sm:$0xff] %vm4534, %v4447
    %4540 = vst.msk [vmem:[#allocation3 + $0x28] sm:$0xff] %vm4534, %v4449
    %4541 = vst.msk [vmem:[#allocation3 + $0x30] sm:$0xff] %vm4534, %v4451
    %4542 = vst.msk [vmem:[#allocation3 + $0x38] sm:$0xff] %vm4534, %v4453
    %4543 = vst.msk [vmem:[#allocation3 + $0x40] sm:$0xff] %vm4534, %v4455
    %4544 = vst.msk [vmem:[#allocation3 + $0x48] sm:$0xff] %vm4534, %v4457
    %4545 = vst.msk [vmem:[#allocation3 + $0x50] sm:$0xff] %vm4534, %v4459
    %4546 = vst.msk [vmem:[#allocation3 + $0x58] sm:$0xff] %vm4534, %v4461
    %4547 = vst.msk [vmem:[#allocation3 + $0x60] sm:$0xff] %vm4534, %v4463
    %4548 = vst.msk [vmem:[#allocation3 + $0x68] sm:$0xff] %vm4534, %v4465
    %4549 = vst.msk [vmem:[#allocation3 + $0x70] sm:$0xff] %vm4534, %v4467
    %4550 = vst.msk [vmem:[#allocation3 + $0x78] sm:$0xff] %vm4534, %v4469
    %4551 = vst.msk [vmem:[#allocation3 + $0x80] sm:$0xff] %vm4534, %v4471
    %4552 = vst.msk [vmem:[#allocation3 + $0x88] sm:$0xff] %vm4534, %v4473
    %4553 = vst.msk [vmem:[#allocation3 + $0x90] sm:$0xff] %vm4534, %v4475
    %4554 = vst.msk [vmem:[#allocation3 + $0x98] sm:$0xff] %vm4534, %v4477
    %4555 = vst.msk [vmem:[#allocation3 + $0xa0] sm:$0xff] %vm4534, %v4479
    %4556 = vst.msk [vmem:[#allocation3 + $0xa8] sm:$0xff] %vm4534, %v4481
    %4557 = vst.msk [vmem:[#allocation3 + $0xb0] sm:$0xff] %vm4534, %v4483
    %4558 = vst.msk [vmem:[#allocation3 + $0xb8] sm:$0xff] %vm4534, %v4485
    %4559 = vst.msk [vmem:[#allocation3 + $0xc0] sm:$0xff] %vm4534, %v4487
    %4560 = vst.msk [vmem:[#allocation3 + $0xc8] sm:$0xff] %vm4534, %v4489
    %4561 = vst.msk [vmem:[#allocation3 + $0xd0] sm:$0xff] %vm4534, %v4491
    %4562 = vst.msk [vmem:[#allocation3 + $0xd8] sm:$0xff] %vm4534, %v4493
    %4563 = vst.msk [vmem:[#allocation3 + $0xe0] sm:$0xff] %vm4534, %v4495
    %4564 = vst.msk [vmem:[#allocation3 + $0xe8] sm:$0xff] %vm4534, %v4497
    %4565 = vst.msk [vmem:[#allocation3 + $0xf0] sm:$0xff] %vm4534, %v4499
    %4566 = vst.msk [vmem:[#allocation3 + $0xf8] sm:$0xff] %vm4534, %v4501
    %v4567 = vld [vmem:[%s869] sm:$0xe]
    %v4568 = vld [vmem:[%s869 + $0x4] sm:$0xf]
    %v4569 = vld [vmem:[%s869 + $0x8] sm:$0x1]
    %v4570 = vld [vmem:[%s869 + $0xc] sm:$0xe]
    %v4571 = vld [vmem:[%s869 + $0x10] sm:$0xf]
    %v4572 = vld [vmem:[%s869 + $0x14] sm:$0x1]
    %v4573 = vld [vmem:[%s869 + $0x18] sm:$0xe]
    %v4574 = vld [vmem:[%s869 + $0x1c] sm:$0xf]
    %v4575 = vld [vmem:[%s869 + $0x20] sm:$0x1]
    %v4576 = vld [vmem:[%s869 + $0x24] sm:$0xe]
    %v4577 = vld [vmem:[%s869 + $0x28] sm:$0xf]
    %v4578 = vld [vmem:[%s869 + $0x2c] sm:$0x1]
    %v4579 = vld [vmem:[%s869 + $0x30] sm:$0xe]
    %v4580 = vld [vmem:[%s869 + $0x34] sm:$0xf]
    %v4581 = vld [vmem:[%s869 + $0x38] sm:$0x1]
    %v4582 = vld [vmem:[%s869 + $0x3c] sm:$0xe]
    %v4583 = vld [vmem:[%s869 + $0x40] sm:$0xf]
    %v4584 = vld [vmem:[%s869 + $0x44] sm:$0x1]
    %v4585 = vld [vmem:[%s869 + $0x48] sm:$0xe]
    %v4586 = vld [vmem:[%s869 + $0x4c] sm:$0xf]
    %v4587 = vld [vmem:[%s869 + $0x50] sm:$0x1]
    %v4588 = vld [vmem:[%s869 + $0x54] sm:$0xe]
    %v4589 = vld [vmem:[%s869 + $0x58] sm:$0xf]
    %v4590 = vld [vmem:[%s869 + $0x5c] sm:$0x1]
    %v4591 = vld [vmem:[%s869 + $0x60] sm:$0xe]
    %v4592 = vld [vmem:[%s869 + $0x64] sm:$0xf]
    %v4593 = vld [vmem:[%s869 + $0x68] sm:$0x1]
    %v4594 = vld [vmem:[%s869 + $0x6c] sm:$0xe]
    %v4595 = vld [vmem:[%s869 + $0x70] sm:$0xf]
    %v4596 = vld [vmem:[%s869 + $0x74] sm:$0x1]
    %v4597 = vld [vmem:[%s869 + $0x78] sm:$0xe]
    %v4598 = vld [vmem:[%s869 + $0x7c] sm:$0xf]
    %v4599 = vld [vmem:[%s869 + $0x80] sm:$0x1]
    %v4600 = vld [vmem:[%s869 + $0x84] sm:$0xe]
    %v4601 = vld [vmem:[%s869 + $0x88] sm:$0xf]
    %v4602 = vld [vmem:[%s869 + $0x8c] sm:$0x1]
    %v4603 = vld [vmem:[%s869 + $0x90] sm:$0xe]
    %v4604 = vld [vmem:[%s869 + $0x94] sm:$0xf]
    %v4605 = vld [vmem:[%s869 + $0x98] sm:$0x1]
    %v4606 = vld [vmem:[%s869 + $0x9c] sm:$0xe]
    %v4607 = vld [vmem:[%s869 + $0xa0] sm:$0xf]
    %v4608 = vld [vmem:[%s869 + $0xa4] sm:$0x1]
    %v4609 = vld [vmem:[%s869 + $0xa8] sm:$0xe]
    %v4610 = vld [vmem:[%s869 + $0xac] sm:$0xf]
    %v4611 = vld [vmem:[%s869 + $0xb0] sm:$0x1]
    %v4612 = vld [vmem:[%s869 + $0xb4] sm:$0xe]
    %v4613 = vld [vmem:[%s869 + $0xb8] sm:$0xf]
    %v4614 = vld [vmem:[%s869 + $0xbc] sm:$0x1]
    %v4615 = vld [vmem:[%s869 + $0xd8] sm:$0xe]
    %v4616 = vld [vmem:[%s869 + $0xdc] sm:$0xf]
    %v4617 = vld [vmem:[%s869 + $0xe0] sm:$0x1]
    %v4618 = vld [vmem:[%s869 + $0xe4] sm:$0xe]
    %v4619 = vld [vmem:[%s869 + $0xe8] sm:$0xf]
    %v4620 = vld [vmem:[%s869 + $0xec] sm:$0x1]
    %v4621 = vld [vmem:[%s869 + $0xf0] sm:$0xe]
    %v4622 = vld [vmem:[%s869 + $0xf4] sm:$0xf]
    %v4623 = vld [vmem:[%s869 + $0xf8] sm:$0x1]
    %v4624 = vld [vmem:[%s869 + $0xfc] sm:$0xe]
    %v4625 = vld [vmem:[%s869 + $0x100] sm:$0xf]
    %v4626 = vld [vmem:[%s869 + $0x104] sm:$0x1]
    %v4627 = vld [vmem:[%s869 + $0x108] sm:$0xe]
    %v4628 = vld [vmem:[%s869 + $0x10c] sm:$0xf]
    %v4629 = vld [vmem:[%s869 + $0x110] sm:$0x1]
    %v4630 = vld [vmem:[%s869 + $0x114] sm:$0xe]
    %v4631 = vld [vmem:[%s869 + $0x118] sm:$0xf]
    %v4632 = vld [vmem:[%s869 + $0x11c] sm:$0x1]
    %v4633 = vld [vmem:[%s869 + $0x120] sm:$0xe]
    %v4634 = vld [vmem:[%s869 + $0x124] sm:$0xf]
    %v4635 = vld [vmem:[%s869 + $0x128] sm:$0x1]
    %v4636 = vld [vmem:[%s869 + $0x12c] sm:$0xe]
    %v4637 = vld [vmem:[%s869 + $0x130] sm:$0xf]
    %v4638 = vld [vmem:[%s869 + $0x134] sm:$0x1]
    %v4639 = vld [vmem:[%s869 + $0x138] sm:$0xe]
    %v4640 = vld [vmem:[%s869 + $0x13c] sm:$0xf]
    %v4641 = vld [vmem:[%s869 + $0x140] sm:$0x1]
    %v4642 = vld [vmem:[%s869 + $0x144] sm:$0xe]
    %v4643 = vld [vmem:[%s869 + $0x148] sm:$0xf]
    %v4644 = vld [vmem:[%s869 + $0x14c] sm:$0x1]
    %v4645 = vld [vmem:[%s869 + $0x150] sm:$0xe]
    %v4646 = vld [vmem:[%s869 + $0x154] sm:$0xf]
    %v4647 = vld [vmem:[%s869 + $0x158] sm:$0x1]
    %v4648 = vld [vmem:[%s869 + $0x15c] sm:$0xe]
    %v4649 = vld [vmem:[%s869 + $0x160] sm:$0xf]
    %v4650 = vld [vmem:[%s869 + $0x164] sm:$0x1]
    %v4651 = vld [vmem:[%s869 + $0x168] sm:$0xe]
    %v4652 = vld [vmem:[%s869 + $0x16c] sm:$0xf]
    %v4653 = vld [vmem:[%s869 + $0x170] sm:$0x1]
    %v4654 = vld [vmem:[%s869 + $0x174] sm:$0xe]
    %v4655 = vld [vmem:[%s869 + $0x178] sm:$0xf]
    %v4656 = vld [vmem:[%s869 + $0x17c] sm:$0x1]
    %v4657 = vld [vmem:[%s869 + $0x180] sm:$0xe]
    %v4658 = vld [vmem:[%s869 + $0x184] sm:$0xf]
    %v4659 = vld [vmem:[%s869 + $0x188] sm:$0x1]
    %v4660 = vld [vmem:[%s869 + $0x18c] sm:$0xe]
    %v4661 = vld [vmem:[%s869 + $0x190] sm:$0xf]
    %v4662 = vld [vmem:[%s869 + $0x194] sm:$0x1]
    %v4759 = vrot.slane %v4567, 5
    %v4760 = vrot.slane %v4759, 4
    %v4761 = vrot.slane %v4568, 5
    %v4762 = vsel %vm2675, %v4760, %v4761
    %v4763 = vrot.slane %v4761, 4
    %v4764 = vrot.slane %v4569, 5
    %v4765 = vsel %vm2675, %v4763, %v4764
    %v4766 = vrot.slane %v4570, 5
    %v4767 = vrot.slane %v4766, 4
    %v4768 = vrot.slane %v4571, 5
    %v4769 = vsel %vm2675, %v4767, %v4768
    %v4770 = vrot.slane %v4768, 4
    %v4771 = vrot.slane %v4572, 5
    %v4772 = vsel %vm2675, %v4770, %v4771
    %v4773 = vrot.slane %v4573, 5
    %v4774 = vrot.slane %v4773, 4
    %v4775 = vrot.slane %v4574, 5
    %v4776 = vsel %vm2675, %v4774, %v4775
    %v4777 = vrot.slane %v4775, 4
    %v4778 = vrot.slane %v4575, 5
    %v4779 = vsel %vm2675, %v4777, %v4778
    %v4780 = vrot.slane %v4576, 5
    %v4781 = vrot.slane %v4780, 4
    %v4782 = vrot.slane %v4577, 5
    %v4783 = vsel %vm2675, %v4781, %v4782
    %v4784 = vrot.slane %v4782, 4
    %v4785 = vrot.slane %v4578, 5
    %v4786 = vsel %vm2675, %v4784, %v4785
    %v4787 = vrot.slane %v4579, 5
    %v4788 = vrot.slane %v4787, 4
    %v4789 = vrot.slane %v4580, 5
    %v4790 = vsel %vm2675, %v4788, %v4789
    %v4791 = vrot.slane %v4789, 4
    %v4792 = vrot.slane %v4581, 5
    %v4793 = vsel %vm2675, %v4791, %v4792
    %v4794 = vrot.slane %v4582, 5
    %v4795 = vrot.slane %v4794, 4
    %v4796 = vrot.slane %v4583, 5
    %v4797 = vsel %vm2675, %v4795, %v4796
    %v4798 = vrot.slane %v4796, 4
    %v4799 = vrot.slane %v4584, 5
    %v4800 = vsel %vm2675, %v4798, %v4799
    %v4801 = vrot.slane %v4585, 5
    %v4802 = vrot.slane %v4801, 4
    %v4803 = vrot.slane %v4586, 5
    %v4804 = vsel %vm2675, %v4802, %v4803
    %v4805 = vrot.slane %v4803, 4
    %v4806 = vrot.slane %v4587, 5
    %v4807 = vsel %vm2675, %v4805, %v4806
    %v4808 = vrot.slane %v4588, 5
    %v4809 = vrot.slane %v4808, 4
    %v4810 = vrot.slane %v4589, 5
    %v4811 = vsel %vm2675, %v4809, %v4810
    %v4812 = vrot.slane %v4810, 4
    %v4813 = vrot.slane %v4590, 5
    %v4814 = vsel %vm2675, %v4812, %v4813
    %v4815 = vrot.slane %v4591, 5
    %v4816 = vrot.slane %v4815, 4
    %v4817 = vrot.slane %v4592, 5
    %v4818 = vsel %vm2675, %v4816, %v4817
    %v4819 = vrot.slane %v4817, 4
    %v4820 = vrot.slane %v4593, 5
    %v4821 = vsel %vm2675, %v4819, %v4820
    %v4822 = vrot.slane %v4594, 5
    %v4823 = vrot.slane %v4822, 4
    %v4824 = vrot.slane %v4595, 5
    %v4825 = vsel %vm2675, %v4823, %v4824
    %v4826 = vrot.slane %v4824, 4
    %v4827 = vrot.slane %v4596, 5
    %v4828 = vsel %vm2675, %v4826, %v4827
    %v4829 = vrot.slane %v4597, 5
    %v4830 = vrot.slane %v4829, 4
    %v4831 = vrot.slane %v4598, 5
    %v4832 = vsel %vm2675, %v4830, %v4831
    %v4833 = vrot.slane %v4831, 4
    %v4834 = vrot.slane %v4599, 5
    %v4835 = vsel %vm2675, %v4833, %v4834
    %v4836 = vrot.slane %v4600, 5
    %v4837 = vrot.slane %v4836, 4
    %v4838 = vrot.slane %v4601, 5
    %v4839 = vsel %vm2675, %v4837, %v4838
    %v4840 = vrot.slane %v4838, 4
    %v4841 = vrot.slane %v4602, 5
    %v4842 = vsel %vm2675, %v4840, %v4841
    %v4843 = vrot.slane %v4603, 5
    %v4844 = vrot.slane %v4843, 4
    %v4845 = vrot.slane %v4604, 5
    %v4846 = vsel %vm2675, %v4844, %v4845
    %v4847 = vrot.slane %v4845, 4
    %v4848 = vrot.slane %v4605, 5
    %v4849 = vsel %vm2675, %v4847, %v4848
    %v4850 = vrot.slane %v4606, 5
    %v4851 = vrot.slane %v4850, 4
    %v4852 = vrot.slane %v4607, 5
    %v4853 = vsel %vm2675, %v4851, %v4852
    %v4854 = vrot.slane %v4852, 4
    %v4855 = vrot.slane %v4608, 5
    %v4856 = vsel %vm2675, %v4854, %v4855
    %v4857 = vrot.slane %v4609, 5
    %v4858 = vrot.slane %v4857, 4
    %v4859 = vrot.slane %v4610, 5
    %v4860 = vsel %vm2675, %v4858, %v4859
    %v4861 = vrot.slane %v4859, 4
    %v4862 = vrot.slane %v4611, 5
    %v4863 = vsel %vm2675, %v4861, %v4862
    %v4864 = vrot.slane %v4612, 5
    %v4865 = vrot.slane %v4864, 4
    %v4866 = vrot.slane %v4613, 5
    %v4867 = vsel %vm2675, %v4865, %v4866
    %v4868 = vrot.slane %v4866, 4
    %v4869 = vrot.slane %v4614, 5
    %v4870 = vsel %vm2675, %v4868, %v4869
    %v4871 = vrot.slane %v4615, 5
    %v4872 = vrot.slane %v4871, 4
    %v4873 = vrot.slane %v4616, 5
    %v4874 = vsel %vm2675, %v4872, %v4873
    %v4875 = vrot.slane %v4873, 4
    %v4876 = vrot.slane %v4617, 5
    %v4877 = vsel %vm2675, %v4875, %v4876
    %v4878 = vrot.slane %v4618, 5
    %v4879 = vrot.slane %v4878, 4
    %v4880 = vrot.slane %v4619, 5
    %v4881 = vsel %vm2675, %v4879, %v4880
    %v4882 = vrot.slane %v4880, 4
    %v4883 = vrot.slane %v4620, 5
    %v4884 = vsel %vm2675, %v4882, %v4883
    %v4885 = vrot.slane %v4621, 5
    %v4886 = vrot.slane %v4885, 4
    %v4887 = vrot.slane %v4622, 5
    %v4888 = vsel %vm2675, %v4886, %v4887
    %v4889 = vrot.slane %v4887, 4
    %v4890 = vrot.slane %v4623, 5
    %v4891 = vsel %vm2675, %v4889, %v4890
    %v4892 = vrot.slane %v4624, 5
    %v4893 = vrot.slane %v4892, 4
    %v4894 = vrot.slane %v4625, 5
    %v4895 = vsel %vm2675, %v4893, %v4894
    %v4896 = vrot.slane %v4894, 4
    %v4897 = vrot.slane %v4626, 5
    %v4898 = vsel %vm2675, %v4896, %v4897
    %v4899 = vrot.slane %v4627, 5
    %v4900 = vrot.slane %v4899, 4
    %v4901 = vrot.slane %v4628, 5
    %v4902 = vsel %vm2675, %v4900, %v4901
    %v4903 = vrot.slane %v4901, 4
    %v4904 = vrot.slane %v4629, 5
    %v4905 = vsel %vm2675, %v4903, %v4904
    %v4906 = vrot.slane %v4630, 5
    %v4907 = vrot.slane %v4906, 4
    %v4908 = vrot.slane %v4631, 5
    %v4909 = vsel %vm2675, %v4907, %v4908
    %v4910 = vrot.slane %v4908, 4
    %v4911 = vrot.slane %v4632, 5
    %v4912 = vsel %vm2675, %v4910, %v4911
    %v4913 = vrot.slane %v4633, 5
    %v4914 = vrot.slane %v4913, 4
    %v4915 = vrot.slane %v4634, 5
    %v4916 = vsel %vm2675, %v4914, %v4915
    %v4917 = vrot.slane %v4915, 4
    %v4918 = vrot.slane %v4635, 5
    %v4919 = vsel %vm2675, %v4917, %v4918
    %v4920 = vrot.slane %v4636, 5
    %v4921 = vrot.slane %v4920, 4
    %v4922 = vrot.slane %v4637, 5
    %v4923 = vsel %vm2675, %v4921, %v4922
    %v4924 = vrot.slane %v4922, 4
    %v4925 = vrot.slane %v4638, 5
    %v4926 = vsel %vm2675, %v4924, %v4925
    %v4927 = vrot.slane %v4639, 5
    %v4928 = vrot.slane %v4927, 4
    %v4929 = vrot.slane %v4640, 5
    %v4930 = vsel %vm2675, %v4928, %v4929
    %v4931 = vrot.slane %v4929, 4
    %v4932 = vrot.slane %v4641, 5
    %v4933 = vsel %vm2675, %v4931, %v4932
    %v4934 = vrot.slane %v4642, 5
    %v4935 = vrot.slane %v4934, 4
    %v4936 = vrot.slane %v4643, 5
    %v4937 = vsel %vm2675, %v4935, %v4936
    %v4938 = vrot.slane %v4936, 4
    %v4939 = vrot.slane %v4644, 5
    %v4940 = vsel %vm2675, %v4938, %v4939
    %v4941 = vrot.slane %v4645, 5
    %v4942 = vrot.slane %v4941, 4
    %v4943 = vrot.slane %v4646, 5
    %v4944 = vsel %vm2675, %v4942, %v4943
    %v4945 = vrot.slane %v4943, 4
    %v4946 = vrot.slane %v4647, 5
    %v4947 = vsel %vm2675, %v4945, %v4946
    %v4948 = vrot.slane %v4648, 5
    %v4949 = vrot.slane %v4948, 4
    %v4950 = vrot.slane %v4649, 5
    %v4951 = vsel %vm2675, %v4949, %v4950
    %v4952 = vrot.slane %v4950, 4
    %v4953 = vrot.slane %v4650, 5
    %v4954 = vsel %vm2675, %v4952, %v4953
    %v4955 = vrot.slane %v4651, 5
    %v4956 = vrot.slane %v4955, 4
    %v4957 = vrot.slane %v4652, 5
    %v4958 = vsel %vm2675, %v4956, %v4957
    %v4959 = vrot.slane %v4957, 4
    %v4960 = vrot.slane %v4653, 5
    %v4961 = vsel %vm2675, %v4959, %v4960
    %v4962 = vrot.slane %v4654, 5
    %v4963 = vrot.slane %v4962, 4
    %v4964 = vrot.slane %v4655, 5
    %v4965 = vsel %vm2675, %v4963, %v4964
    %v4966 = vrot.slane %v4964, 4
    %v4967 = vrot.slane %v4656, 5
    %v4968 = vsel %vm2675, %v4966, %v4967
    %v4969 = vrot.slane %v4657, 5
    %v4970 = vrot.slane %v4969, 4
    %v4971 = vrot.slane %v4658, 5
    %v4972 = vsel %vm2675, %v4970, %v4971
    %v4973 = vrot.slane %v4971, 4
    %v4974 = vrot.slane %v4659, 5
    %v4975 = vsel %vm2675, %v4973, %v4974
    %v4976 = vrot.slane %v4660, 5
    %v4977 = vrot.slane %v4976, 4
    %v4978 = vrot.slane %v4661, 5
    %v4979 = vsel %vm2675, %v4977, %v4978
    %v4980 = vrot.slane %v4978, 4
    %v4981 = vrot.slane %v4662, 5
    %v4982 = vsel %vm2675, %v4980, %v4981
    %v4983 = vunpack.c.l.b16 %v4762
    %v4984 = vunpack.c.l.b16 %v4765
    %v4985 = vunpack.c.l.b16 %v4769
    %v4986 = vunpack.c.l.b16 %v4772
    %v4987 = vunpack.c.l.b16 %v4776
    %v4988 = vunpack.c.l.b16 %v4779
    %v4989 = vunpack.c.l.b16 %v4783
    %v4990 = vunpack.c.l.b16 %v4786
    %v4991 = vunpack.c.l.b16 %v4790
    %v4992 = vunpack.c.l.b16 %v4793
    %v4993 = vunpack.c.l.b16 %v4797
    %v4994 = vunpack.c.l.b16 %v4800
    %v4995 = vunpack.c.l.b16 %v4804
    %v4996 = vunpack.c.l.b16 %v4807
    %v4997 = vunpack.c.l.b16 %v4811
    %v4998 = vunpack.c.l.b16 %v4814
    %v4999 = vunpack.c.l.b16 %v4818
    %v5000 = vunpack.c.l.b16 %v4821
    %v5001 = vunpack.c.l.b16 %v4825
    %v5002 = vunpack.c.l.b16 %v4828
    %v5003 = vunpack.c.l.b16 %v4832
    %v5004 = vunpack.c.l.b16 %v4835
    %v5005 = vunpack.c.l.b16 %v4839
    %v5006 = vunpack.c.l.b16 %v4842
    %v5007 = vunpack.c.l.b16 %v4846
    %v5008 = vunpack.c.l.b16 %v4849
    %v5009 = vunpack.c.l.b16 %v4853
    %v5010 = vunpack.c.l.b16 %v4856
    %v5011 = vunpack.c.l.b16 %v4860
    %v5012 = vunpack.c.l.b16 %v4863
    %v5013 = vunpack.c.l.b16 %v4867
    %v5014 = vunpack.c.l.b16 %v4870
    %v5015 = vunpack.c.l.b16 %v4874
    %v5016 = vunpack.c.l.b16 %v4877
    %v5017 = vunpack.c.l.b16 %v4881
    %v5018 = vunpack.c.l.b16 %v4884
    %v5019 = vunpack.c.l.b16 %v4888
    %v5020 = vunpack.c.l.b16 %v4891
    %v5021 = vunpack.c.l.b16 %v4895
    %v5022 = vunpack.c.l.b16 %v4898
    %v5023 = vunpack.c.l.b16 %v4902
    %v5024 = vunpack.c.l.b16 %v4905
    %v5025 = vunpack.c.l.b16 %v4909
    %v5026 = vunpack.c.l.b16 %v4912
    %v5027 = vunpack.c.l.b16 %v4916
    %v5028 = vunpack.c.l.b16 %v4919
    %v5029 = vunpack.c.l.b16 %v4923
    %v5030 = vunpack.c.l.b16 %v4926
    %v5031 = vunpack.c.l.b16 %v4930
    %v5032 = vunpack.c.l.b16 %v4933
    %v5033 = vunpack.c.l.b16 %v4937
    %v5034 = vunpack.c.l.b16 %v4940
    %v5035 = vunpack.c.l.b16 %v4944
    %v5036 = vunpack.c.l.b16 %v4947
    %v5037 = vunpack.c.l.b16 %v4951
    %v5038 = vunpack.c.l.b16 %v4954
    %v5039 = vunpack.c.l.b16 %v4958
    %v5040 = vunpack.c.l.b16 %v4961
    %v5041 = vunpack.c.l.b16 %v4965
    %v5042 = vunpack.c.l.b16 %v4968
    %v5043 = vunpack.c.l.b16 %v4972
    %v5044 = vunpack.c.l.b16 %v4975
    %v5045 = vunpack.c.l.b16 %v4979
    %v5046 = vunpack.c.l.b16 %v4982
    %v5047 = vpack.c.b16 %v4984, %v4983
    %v5048 = vpack.c.b16 %v4986, %v4985
    %v5049 = vpack.c.b16 %v4988, %v4987
    %v5050 = vpack.c.b16 %v4990, %v4989
    %v5051 = vpack.c.b16 %v4992, %v4991
    %v5052 = vpack.c.b16 %v4994, %v4993
    %v5053 = vpack.c.b16 %v4996, %v4995
    %v5054 = vpack.c.b16 %v4998, %v4997
    %v5055 = vpack.c.b16 %v5000, %v4999
    %v5056 = vpack.c.b16 %v5002, %v5001
    %v5057 = vpack.c.b16 %v5004, %v5003
    %v5058 = vpack.c.b16 %v5006, %v5005
    %v5059 = vpack.c.b16 %v5008, %v5007
    %v5060 = vpack.c.b16 %v5010, %v5009
    %v5061 = vpack.c.b16 %v5012, %v5011
    %v5062 = vpack.c.b16 %v5014, %v5013
    %v5063 = vpack.c.b16 %v5016, %v5015
    %v5064 = vpack.c.b16 %v5018, %v5017
    %v5065 = vpack.c.b16 %v5020, %v5019
    %v5066 = vpack.c.b16 %v5022, %v5021
    %v5067 = vpack.c.b16 %v5024, %v5023
    %v5068 = vpack.c.b16 %v5026, %v5025
    %v5069 = vpack.c.b16 %v5028, %v5027
    %v5070 = vpack.c.b16 %v5030, %v5029
    %v5071 = vpack.c.b16 %v5032, %v5031
    %v5072 = vpack.c.b16 %v5034, %v5033
    %v5073 = vpack.c.b16 %v5036, %v5035
    %v5074 = vpack.c.b16 %v5038, %v5037
    %v5075 = vpack.c.b16 %v5040, %v5039
    %v5076 = vpack.c.b16 %v5042, %v5041
    %v5077 = vpack.c.b16 %v5044, %v5043
    %v5078 = vpack.c.b16 %v5046, %v5045
    %5079 = vrot.lane.b32.xlu0 %v5047, 15
    %v5080 = vpop.permute.xlu0 %5079
    %5081 = vrot.lane.b32.xlu0 %v5048, 15
    %v5082 = vpop.permute.xlu0 %5081
    %5083 = vrot.lane.b32.xlu0 %v5049, 15
    %v5084 = vpop.permute.xlu0 %5083
    %5085 = vrot.lane.b32.xlu0 %v5050, 15
    %v5086 = vpop.permute.xlu0 %5085
    %5087 = vrot.lane.b32.xlu0 %v5051, 15
    %v5088 = vpop.permute.xlu0 %5087
    %5089 = vrot.lane.b32.xlu0 %v5052, 15
    %v5090 = vpop.permute.xlu0 %5089
    %5091 = vrot.lane.b32.xlu0 %v5053, 15
    %v5092 = vpop.permute.xlu0 %5091
    %5093 = vrot.lane.b32.xlu0 %v5054, 15
    %v5094 = vpop.permute.xlu0 %5093
    %5095 = vrot.lane.b32.xlu0 %v5055, 15
    %v5096 = vpop.permute.xlu0 %5095
    %5097 = vrot.lane.b32.xlu0 %v5056, 15
    %v5098 = vpop.permute.xlu0 %5097
    %5099 = vrot.lane.b32.xlu0 %v5057, 15
    %v5100 = vpop.permute.xlu0 %5099
    %5101 = vrot.lane.b32.xlu0 %v5058, 15
    %v5102 = vpop.permute.xlu0 %5101
    %5103 = vrot.lane.b32.xlu0 %v5059, 15
    %v5104 = vpop.permute.xlu0 %5103
    %5105 = vrot.lane.b32.xlu0 %v5060, 15
    %v5106 = vpop.permute.xlu0 %5105
    %5107 = vrot.lane.b32.xlu0 %v5061, 15
    %v5108 = vpop.permute.xlu0 %5107
    %5109 = vrot.lane.b32.xlu0 %v5062, 15
    %v5110 = vpop.permute.xlu0 %5109
    %5111 = vrot.lane.b32.xlu0 %v5063, 15
    %v5112 = vpop.permute.xlu0 %5111
    %5113 = vrot.lane.b32.xlu0 %v5064, 15
    %v5114 = vpop.permute.xlu0 %5113
    %5115 = vrot.lane.b32.xlu0 %v5065, 15
    %v5116 = vpop.permute.xlu0 %5115
    %5117 = vrot.lane.b32.xlu0 %v5066, 15
    %v5118 = vpop.permute.xlu0 %5117
    %5119 = vrot.lane.b32.xlu0 %v5067, 15
    %v5120 = vpop.permute.xlu0 %5119
    %5121 = vrot.lane.b32.xlu0 %v5068, 15
    %v5122 = vpop.permute.xlu0 %5121
    %5123 = vrot.lane.b32.xlu0 %v5069, 15
    %v5124 = vpop.permute.xlu0 %5123
    %5125 = vrot.lane.b32.xlu0 %v5070, 15
    %v5126 = vpop.permute.xlu0 %5125
    %5127 = vrot.lane.b32.xlu0 %v5071, 15
    %v5128 = vpop.permute.xlu0 %5127
    %5129 = vrot.lane.b32.xlu0 %v5072, 15
    %v5130 = vpop.permute.xlu0 %5129
    %5131 = vrot.lane.b32.xlu0 %v5073, 15
    %v5132 = vpop.permute.xlu0 %5131
    %5133 = vrot.lane.b32.xlu0 %v5074, 15
    %v5134 = vpop.permute.xlu0 %5133
    %5135 = vrot.lane.b32.xlu0 %v5075, 15
    %v5136 = vpop.permute.xlu0 %5135
    %5137 = vrot.lane.b32.xlu0 %v5076, 15
    %v5138 = vpop.permute.xlu0 %5137
    %5139 = vrot.lane.b32.xlu0 %v5077, 15
    %v5140 = vpop.permute.xlu0 %5139
    %5141 = vrot.lane.b32.xlu0 %v5078, 15
    %v5142 = vpop.permute.xlu0 %5141
    %vm5175 = vcmask 146552
    %5176 = vst.msk [vmem:[#allocation3] sm:$0xff] %vm5175, %v5080
    %5177 = vst.msk [vmem:[#allocation3 + $0x8] sm:$0xff] %vm5175, %v5082
    %5178 = vst.msk [vmem:[#allocation3 + $0x10] sm:$0xff] %vm5175, %v5084
    %5179 = vst.msk [vmem:[#allocation3 + $0x18] sm:$0xff] %vm5175, %v5086
    %5180 = vst.msk [vmem:[#allocation3 + $0x20] sm:$0xff] %vm5175, %v5088
    %5181 = vst.msk [vmem:[#allocation3 + $0x28] sm:$0xff] %vm5175, %v5090
    %5182 = vst.msk [vmem:[#allocation3 + $0x30] sm:$0xff] %vm5175, %v5092
    %5183 = vst.msk [vmem:[#allocation3 + $0x38] sm:$0xff] %vm5175, %v5094
    %5184 = vst.msk [vmem:[#allocation3 + $0x40] sm:$0xff] %vm5175, %v5096
    %5185 = vst.msk [vmem:[#allocation3 + $0x48] sm:$0xff] %vm5175, %v5098
    %5186 = vst.msk [vmem:[#allocation3 + $0x50] sm:$0xff] %vm5175, %v5100
    %5187 = vst.msk [vmem:[#allocation3 + $0x58] sm:$0xff] %vm5175, %v5102
    %5188 = vst.msk [vmem:[#allocation3 + $0x60] sm:$0xff] %vm5175, %v5104
    %5189 = vst.msk [vmem:[#allocation3 + $0x68] sm:$0xff] %vm5175, %v5106
    %5190 = vst.msk [vmem:[#allocation3 + $0x70] sm:$0xff] %vm5175, %v5108
    %5191 = vst.msk [vmem:[#allocation3 + $0x78] sm:$0xff] %vm5175, %v5110
    %5192 = vst.msk [vmem:[#allocation3 + $0x80] sm:$0xff] %vm5175, %v5112
    %5193 = vst.msk [vmem:[#allocation3 + $0x88] sm:$0xff] %vm5175, %v5114
    %5194 = vst.msk [vmem:[#allocation3 + $0x90] sm:$0xff] %vm5175, %v5116
    %5195 = vst.msk [vmem:[#allocation3 + $0x98] sm:$0xff] %vm5175, %v5118
    %5196 = vst.msk [vmem:[#allocation3 + $0xa0] sm:$0xff] %vm5175, %v5120
    %5197 = vst.msk [vmem:[#allocation3 + $0xa8] sm:$0xff] %vm5175, %v5122
    %5198 = vst.msk [vmem:[#allocation3 + $0xb0] sm:$0xff] %vm5175, %v5124
    %5199 = vst.msk [vmem:[#allocation3 + $0xb8] sm:$0xff] %vm5175, %v5126
    %5200 = vst.msk [vmem:[#allocation3 + $0xc0] sm:$0xff] %vm5175, %v5128
    %5201 = vst.msk [vmem:[#allocation3 + $0xc8] sm:$0xff] %vm5175, %v5130
    %5202 = vst.msk [vmem:[#allocation3 + $0xd0] sm:$0xff] %vm5175, %v5132
    %5203 = vst.msk [vmem:[#allocation3 + $0xd8] sm:$0xff] %vm5175, %v5134
    %5204 = vst.msk [vmem:[#allocation3 + $0xe0] sm:$0xff] %vm5175, %v5136
    %5205 = vst.msk [vmem:[#allocation3 + $0xe8] sm:$0xff] %vm5175, %v5138
    %5206 = vst.msk [vmem:[#allocation3 + $0xf0] sm:$0xff] %vm5175, %v5140
    %5207 = vst.msk [vmem:[#allocation3 + $0xf8] sm:$0xff] %vm5175, %v5142
    %s5208 = scalar_lea.vmem [#allocation2], 24
    %v5209 = vld [vmem:[%s5208] sm:$0xf]
    %v5210 = vld [vmem:[%s5208 + $0x4] sm:$0xf]
    %v5211 = vld [vmem:[%s5208 + $0xc] sm:$0xf]
    %v5212 = vld [vmem:[%s5208 + $0x10] sm:$0xf]
    %v5213 = vld [vmem:[%s5208 + $0x18] sm:$0xf]
    %v5214 = vld [vmem:[%s5208 + $0x1c] sm:$0xf]
    %v5215 = vld [vmem:[%s5208 + $0x24] sm:$0xf]
    %v5216 = vld [vmem:[%s5208 + $0x28] sm:$0xf]
    %v5217 = vld [vmem:[%s5208 + $0x30] sm:$0xf]
    %v5218 = vld [vmem:[%s5208 + $0x34] sm:$0xf]
    %v5219 = vld [vmem:[%s5208 + $0x3c] sm:$0xf]
    %v5220 = vld [vmem:[%s5208 + $0x40] sm:$0xf]
    %v5221 = vld [vmem:[%s5208 + $0x48] sm:$0xf]
    %v5222 = vld [vmem:[%s5208 + $0x4c] sm:$0xf]
    %v5223 = vld [vmem:[%s5208 + $0x54] sm:$0xf]
    %v5224 = vld [vmem:[%s5208 + $0x58] sm:$0xf]
    %v5225 = vld [vmem:[%s5208 + $0x60] sm:$0xf]
    %v5226 = vld [vmem:[%s5208 + $0x64] sm:$0xf]
    %v5227 = vld [vmem:[%s5208 + $0x6c] sm:$0xf]
    %v5228 = vld [vmem:[%s5208 + $0x70] sm:$0xf]
    %v5229 = vld [vmem:[%s5208 + $0x78] sm:$0xf]
    %v5230 = vld [vmem:[%s5208 + $0x7c] sm:$0xf]
    %v5231 = vld [vmem:[%s5208 + $0x84] sm:$0xf]
    %v5232 = vld [vmem:[%s5208 + $0x88] sm:$0xf]
    %v5233 = vld [vmem:[%s5208 + $0x90] sm:$0xf]
    %v5234 = vld [vmem:[%s5208 + $0x94] sm:$0xf]
    %v5235 = vld [vmem:[%s5208 + $0x9c] sm:$0xf]
    %v5236 = vld [vmem:[%s5208 + $0xa0] sm:$0xf]
    %v5237 = vld [vmem:[%s5208 + $0xa8] sm:$0xf]
    %v5238 = vld [vmem:[%s5208 + $0xac] sm:$0xf]
    %v5239 = vld [vmem:[%s5208 + $0xb4] sm:$0xf]
    %v5240 = vld [vmem:[%s5208 + $0xb8] sm:$0xf]
    %v5241 = vld [vmem:[%s5208 + $0xd8] sm:$0xf]
    %v5242 = vld [vmem:[%s5208 + $0xdc] sm:$0xf]
    %v5243 = vld [vmem:[%s5208 + $0xe4] sm:$0xf]
    %v5244 = vld [vmem:[%s5208 + $0xe8] sm:$0xf]
    %v5245 = vld [vmem:[%s5208 + $0xf0] sm:$0xf]
    %v5246 = vld [vmem:[%s5208 + $0xf4] sm:$0xf]
    %v5247 = vld [vmem:[%s5208 + $0xfc] sm:$0xf]
    %v5248 = vld [vmem:[%s5208 + $0x100] sm:$0xf]
    %v5249 = vld [vmem:[%s5208 + $0x108] sm:$0xf]
    %v5250 = vld [vmem:[%s5208 + $0x10c] sm:$0xf]
    %v5251 = vld [vmem:[%s5208 + $0x114] sm:$0xf]
    %v5252 = vld [vmem:[%s5208 + $0x118] sm:$0xf]
    %v5253 = vld [vmem:[%s5208 + $0x120] sm:$0xf]
    %v5254 = vld [vmem:[%s5208 + $0x124] sm:$0xf]
    %v5255 = vld [vmem:[%s5208 + $0x12c] sm:$0xf]
    %v5256 = vld [vmem:[%s5208 + $0x130] sm:$0xf]
    %v5257 = vld [vmem:[%s5208 + $0x138] sm:$0xf]
    %v5258 = vld [vmem:[%s5208 + $0x13c] sm:$0xf]
    %v5259 = vld [vmem:[%s5208 + $0x144] sm:$0xf]
    %v5260 = vld [vmem:[%s5208 + $0x148] sm:$0xf]
    %v5261 = vld [vmem:[%s5208 + $0x150] sm:$0xf]
    %v5262 = vld [vmem:[%s5208 + $0x154] sm:$0xf]
    %v5263 = vld [vmem:[%s5208 + $0x15c] sm:$0xf]
    %v5264 = vld [vmem:[%s5208 + $0x160] sm:$0xf]
    %v5265 = vld [vmem:[%s5208 + $0x168] sm:$0xf]
    %v5266 = vld [vmem:[%s5208 + $0x16c] sm:$0xf]
    %v5267 = vld [vmem:[%s5208 + $0x174] sm:$0xf]
    %v5268 = vld [vmem:[%s5208 + $0x178] sm:$0xf]
    %v5269 = vld [vmem:[%s5208 + $0x180] sm:$0xf]
    %v5270 = vld [vmem:[%s5208 + $0x184] sm:$0xf]
    %v5271 = vld [vmem:[%s5208 + $0x18c] sm:$0xf]
    %v5272 = vld [vmem:[%s5208 + $0x190] sm:$0xf]
    %v5337 = vunpack.c.l.b16 %v5209
    %v5338 = vunpack.c.l.b16 %v5210
    %v5339 = vunpack.c.l.b16 %v5211
    %v5340 = vunpack.c.l.b16 %v5212
    %v5341 = vunpack.c.l.b16 %v5213
    %v5342 = vunpack.c.l.b16 %v5214
    %v5343 = vunpack.c.l.b16 %v5215
    %v5344 = vunpack.c.l.b16 %v5216
    %v5345 = vunpack.c.l.b16 %v5217
    %v5346 = vunpack.c.l.b16 %v5218
    %v5347 = vunpack.c.l.b16 %v5219
    %v5348 = vunpack.c.l.b16 %v5220
    %v5349 = vunpack.c.l.b16 %v5221
    %v5350 = vunpack.c.l.b16 %v5222
    %v5351 = vunpack.c.l.b16 %v5223
    %v5352 = vunpack.c.l.b16 %v5224
    %v5353 = vunpack.c.l.b16 %v5225
    %v5354 = vunpack.c.l.b16 %v5226
    %v5355 = vunpack.c.l.b16 %v5227
    %v5356 = vunpack.c.l.b16 %v5228
    %v5357 = vunpack.c.l.b16 %v5229
    %v5358 = vunpack.c.l.b16 %v5230
    %v5359 = vunpack.c.l.b16 %v5231
    %v5360 = vunpack.c.l.b16 %v5232
    %v5361 = vunpack.c.l.b16 %v5233
    %v5362 = vunpack.c.l.b16 %v5234
    %v5363 = vunpack.c.l.b16 %v5235
    %v5364 = vunpack.c.l.b16 %v5236
    %v5365 = vunpack.c.l.b16 %v5237
    %v5366 = vunpack.c.l.b16 %v5238
    %v5367 = vunpack.c.l.b16 %v5239
    %v5368 = vunpack.c.l.b16 %v5240
    %v5369 = vunpack.c.l.b16 %v5241
    %v5370 = vunpack.c.l.b16 %v5242
    %v5371 = vunpack.c.l.b16 %v5243
    %v5372 = vunpack.c.l.b16 %v5244
    %v5373 = vunpack.c.l.b16 %v5245
    %v5374 = vunpack.c.l.b16 %v5246
    %v5375 = vunpack.c.l.b16 %v5247
    %v5376 = vunpack.c.l.b16 %v5248
    %v5377 = vunpack.c.l.b16 %v5249
    %v5378 = vunpack.c.l.b16 %v5250
    %v5379 = vunpack.c.l.b16 %v5251
    %v5380 = vunpack.c.l.b16 %v5252
    %v5381 = vunpack.c.l.b16 %v5253
    %v5382 = vunpack.c.l.b16 %v5254
    %v5383 = vunpack.c.l.b16 %v5255
    %v5384 = vunpack.c.l.b16 %v5256
    %v5385 = vunpack.c.l.b16 %v5257
    %v5386 = vunpack.c.l.b16 %v5258
    %v5387 = vunpack.c.l.b16 %v5259
    %v5388 = vunpack.c.l.b16 %v5260
    %v5389 = vunpack.c.l.b16 %v5261
    %v5390 = vunpack.c.l.b16 %v5262
    %v5391 = vunpack.c.l.b16 %v5263
    %v5392 = vunpack.c.l.b16 %v5264
    %v5393 = vunpack.c.l.b16 %v5265
    %v5394 = vunpack.c.l.b16 %v5266
    %v5395 = vunpack.c.l.b16 %v5267
    %v5396 = vunpack.c.l.b16 %v5268
    %v5397 = vunpack.c.l.b16 %v5269
    %v5398 = vunpack.c.l.b16 %v5270
    %v5399 = vunpack.c.l.b16 %v5271
    %v5400 = vunpack.c.l.b16 %v5272
    %v5401 = vpack.c.b16 %v5338, %v5337
    %v5402 = vpack.c.b16 %v5340, %v5339
    %v5403 = vpack.c.b16 %v5342, %v5341
    %v5404 = vpack.c.b16 %v5344, %v5343
    %v5405 = vpack.c.b16 %v5346, %v5345
    %v5406 = vpack.c.b16 %v5348, %v5347
    %v5407 = vpack.c.b16 %v5350, %v5349
    %v5408 = vpack.c.b16 %v5352, %v5351
    %v5409 = vpack.c.b16 %v5354, %v5353
    %v5410 = vpack.c.b16 %v5356, %v5355
    %v5411 = vpack.c.b16 %v5358, %v5357
    %v5412 = vpack.c.b16 %v5360, %v5359
    %v5413 = vpack.c.b16 %v5362, %v5361
    %v5414 = vpack.c.b16 %v5364, %v5363
    %v5415 = vpack.c.b16 %v5366, %v5365
    %v5416 = vpack.c.b16 %v5368, %v5367
    %v5417 = vpack.c.b16 %v5370, %v5369
    %v5418 = vpack.c.b16 %v5372, %v5371
    %v5419 = vpack.c.b16 %v5374, %v5373
    %v5420 = vpack.c.b16 %v5376, %v5375
    %v5421 = vpack.c.b16 %v5378, %v5377
    %v5422 = vpack.c.b16 %v5380, %v5379
    %v5423 = vpack.c.b16 %v5382, %v5381
    %v5424 = vpack.c.b16 %v5384, %v5383
    %v5425 = vpack.c.b16 %v5386, %v5385
    %v5426 = vpack.c.b16 %v5388, %v5387
    %v5427 = vpack.c.b16 %v5390, %v5389
    %v5428 = vpack.c.b16 %v5392, %v5391
    %v5429 = vpack.c.b16 %v5394, %v5393
    %v5430 = vpack.c.b16 %v5396, %v5395
    %v5431 = vpack.c.b16 %v5398, %v5397
    %v5432 = vpack.c.b16 %v5400, %v5399
    %5433 = vrot.lane.b32.xlu0 %v5401, 18
    %v5434 = vpop.permute.xlu0 %5433
    %5435 = vrot.lane.b32.xlu0 %v5402, 18
    %v5436 = vpop.permute.xlu0 %5435
    %5437 = vrot.lane.b32.xlu0 %v5403, 18
    %v5438 = vpop.permute.xlu0 %5437
    %5439 = vrot.lane.b32.xlu0 %v5404, 18
    %v5440 = vpop.permute.xlu0 %5439
    %5441 = vrot.lane.b32.xlu0 %v5405, 18
    %v5442 = vpop.permute.xlu0 %5441
    %5443 = vrot.lane.b32.xlu0 %v5406, 18
    %v5444 = vpop.permute.xlu0 %5443
    %5445 = vrot.lane.b32.xlu0 %v5407, 18
    %v5446 = vpop.permute.xlu0 %5445
    %5447 = vrot.lane.b32.xlu0 %v5408, 18
    %v5448 = vpop.permute.xlu0 %5447
    %5449 = vrot.lane.b32.xlu0 %v5409, 18
    %v5450 = vpop.permute.xlu0 %5449
    %5451 = vrot.lane.b32.xlu0 %v5410, 18
    %v5452 = vpop.permute.xlu0 %5451
    %5453 = vrot.lane.b32.xlu0 %v5411, 18
    %v5454 = vpop.permute.xlu0 %5453
    %5455 = vrot.lane.b32.xlu0 %v5412, 18
    %v5456 = vpop.permute.xlu0 %5455
    %5457 = vrot.lane.b32.xlu0 %v5413, 18
    %v5458 = vpop.permute.xlu0 %5457
    %5459 = vrot.lane.b32.xlu0 %v5414, 18
    %v5460 = vpop.permute.xlu0 %5459
    %5461 = vrot.lane.b32.xlu0 %v5415, 18
    %v5462 = vpop.permute.xlu0 %5461
    %5463 = vrot.lane.b32.xlu0 %v5416, 18
    %v5464 = vpop.permute.xlu0 %5463
    %5465 = vrot.lane.b32.xlu0 %v5417, 18
    %v5466 = vpop.permute.xlu0 %5465
    %5467 = vrot.lane.b32.xlu0 %v5418, 18
    %v5468 = vpop.permute.xlu0 %5467
    %5469 = vrot.lane.b32.xlu0 %v5419, 18
    %v5470 = vpop.permute.xlu0 %5469
    %5471 = vrot.lane.b32.xlu0 %v5420, 18
    %v5472 = vpop.permute.xlu0 %5471
    %5473 = vrot.lane.b32.xlu0 %v5421, 18
    %v5474 = vpop.permute.xlu0 %5473
    %5475 = vrot.lane.b32.xlu0 %v5422, 18
    %v5476 = vpop.permute.xlu0 %5475
    %5477 = vrot.lane.b32.xlu0 %v5423, 18
    %v5478 = vpop.permute.xlu0 %5477
    %5479 = vrot.lane.b32.xlu0 %v5424, 18
    %v5480 = vpop.permute.xlu0 %5479
    %5481 = vrot.lane.b32.xlu0 %v5425, 18
    %v5482 = vpop.permute.xlu0 %5481
    %5483 = vrot.lane.b32.xlu0 %v5426, 18
    %v5484 = vpop.permute.xlu0 %5483
    %5485 = vrot.lane.b32.xlu0 %v5427, 18
    %v5486 = vpop.permute.xlu0 %5485
    %5487 = vrot.lane.b32.xlu0 %v5428, 18
    %v5488 = vpop.permute.xlu0 %5487
    %5489 = vrot.lane.b32.xlu0 %v5429, 18
    %v5490 = vpop.permute.xlu0 %5489
    %5491 = vrot.lane.b32.xlu0 %v5430, 18
    %v5492 = vpop.permute.xlu0 %5491
    %5493 = vrot.lane.b32.xlu0 %v5431, 18
    %v5494 = vpop.permute.xlu0 %5493
    %5495 = vrot.lane.b32.xlu0 %v5432, 18
    %v5496 = vpop.permute.xlu0 %5495
    %vm5529 = vcmask 171152
    %5530 = vst.msk [vmem:[#allocation3] sm:$0xff] %vm5529, %v5434
    %5531 = vst.msk [vmem:[#allocation3 + $0x8] sm:$0xff] %vm5529, %v5436
    %5532 = vst.msk [vmem:[#allocation3 + $0x10] sm:$0xff] %vm5529, %v5438
    %5533 = vst.msk [vmem:[#allocation3 + $0x18] sm:$0xff] %vm5529, %v5440
    %5534 = vst.msk [vmem:[#allocation3 + $0x20] sm:$0xff] %vm5529, %v5442
    %5535 = vst.msk [vmem:[#allocation3 + $0x28] sm:$0xff] %vm5529, %v5444
    %5536 = vst.msk [vmem:[#allocation3 + $0x30] sm:$0xff] %vm5529, %v5446
    %5537 = vst.msk [vmem:[#allocation3 + $0x38] sm:$0xff] %vm5529, %v5448
    %5538 = vst.msk [vmem:[#allocation3 + $0x40] sm:$0xff] %vm5529, %v5450
    %5539 = vst.msk [vmem:[#allocation3 + $0x48] sm:$0xff] %vm5529, %v5452
    %5540 = vst.msk [vmem:[#allocation3 + $0x50] sm:$0xff] %vm5529, %v5454
    %5541 = vst.msk [vmem:[#allocation3 + $0x58] sm:$0xff] %vm5529, %v5456
    %5542 = vst.msk [vmem:[#allocation3 + $0x60] sm:$0xff] %vm5529, %v5458
    %5543 = vst.msk [vmem:[#allocation3 + $0x68] sm:$0xff] %vm5529, %v5460
    %5544 = vst.msk [vmem:[#allocation3 + $0x70] sm:$0xff] %vm5529, %v5462
    %5545 = vst.msk [vmem:[#allocation3 + $0x78] sm:$0xff] %vm5529, %v5464
    %5546 = vst.msk [vmem:[#allocation3 + $0x80] sm:$0xff] %vm5529, %v5466
    %5547 = vst.msk [vmem:[#allocation3 + $0x88] sm:$0xff] %vm5529, %v5468
    %5548 = vst.msk [vmem:[#allocation3 + $0x90] sm:$0xff] %vm5529, %v5470
    %5549 = vst.msk [vmem:[#allocation3 + $0x98] sm:$0xff] %vm5529, %v5472
    %5550 = vst.msk [vmem:[#allocation3 + $0xa0] sm:$0xff] %vm5529, %v5474
    %5551 = vst.msk [vmem:[#allocation3 + $0xa8] sm:$0xff] %vm5529, %v5476
    %5552 = vst.msk [vmem:[#allocation3 + $0xb0] sm:$0xff] %vm5529, %v5478
    %5553 = vst.msk [vmem:[#allocation3 + $0xb8] sm:$0xff] %vm5529, %v5480
    %5554 = vst.msk [vmem:[#allocation3 + $0xc0] sm:$0xff] %vm5529, %v5482
    %5555 = vst.msk [vmem:[#allocation3 + $0xc8] sm:$0xff] %vm5529, %v5484
    %5556 = vst.msk [vmem:[#allocation3 + $0xd0] sm:$0xff] %vm5529, %v5486
    %5557 = vst.msk [vmem:[#allocation3 + $0xd8] sm:$0xff] %vm5529, %v5488
    %5558 = vst.msk [vmem:[#allocation3 + $0xe0] sm:$0xff] %vm5529, %v5490
    %5559 = vst.msk [vmem:[#allocation3 + $0xe8] sm:$0xff] %vm5529, %v5492
    %5560 = vst.msk [vmem:[#allocation3 + $0xf0] sm:$0xff] %vm5529, %v5494
    %5561 = vst.msk [vmem:[#allocation3 + $0xf8] sm:$0xff] %vm5529, %v5496
    %v5562 = vld [vmem:[%s5208] sm:$0xf]
    %v5563 = vld [vmem:[%s5208 + $0x4] sm:$0xf]
    %v5564 = vld [vmem:[%s5208 + $0x8] sm:$0x1]
    %v5565 = vld [vmem:[%s5208 + $0xc] sm:$0xf]
    %v5566 = vld [vmem:[%s5208 + $0x10] sm:$0xf]
    %v5567 = vld [vmem:[%s5208 + $0x14] sm:$0x1]
    %v5568 = vld [vmem:[%s5208 + $0x18] sm:$0xf]
    %v5569 = vld [vmem:[%s5208 + $0x1c] sm:$0xf]
    %v5570 = vld [vmem:[%s5208 + $0x20] sm:$0x1]
    %v5571 = vld [vmem:[%s5208 + $0x24] sm:$0xf]
    %v5572 = vld [vmem:[%s5208 + $0x28] sm:$0xf]
    %v5573 = vld [vmem:[%s5208 + $0x2c] sm:$0x1]
    %v5574 = vld [vmem:[%s5208 + $0x30] sm:$0xf]
    %v5575 = vld [vmem:[%s5208 + $0x34] sm:$0xf]
    %v5576 = vld [vmem:[%s5208 + $0x38] sm:$0x1]
    %v5577 = vld [vmem:[%s5208 + $0x3c] sm:$0xf]
    %v5578 = vld [vmem:[%s5208 + $0x40] sm:$0xf]
    %v5579 = vld [vmem:[%s5208 + $0x44] sm:$0x1]
    %v5580 = vld [vmem:[%s5208 + $0x48] sm:$0xf]
    %v5581 = vld [vmem:[%s5208 + $0x4c] sm:$0xf]
    %v5582 = vld [vmem:[%s5208 + $0x50] sm:$0x1]
    %v5583 = vld [vmem:[%s5208 + $0x54] sm:$0xf]
    %v5584 = vld [vmem:[%s5208 + $0x58] sm:$0xf]
    %v5585 = vld [vmem:[%s5208 + $0x5c] sm:$0x1]
    %v5586 = vld [vmem:[%s5208 + $0x60] sm:$0xf]
    %v5587 = vld [vmem:[%s5208 + $0x64] sm:$0xf]
    %v5588 = vld [vmem:[%s5208 + $0x68] sm:$0x1]
    %v5589 = vld [vmem:[%s5208 + $0x6c] sm:$0xf]
    %v5590 = vld [vmem:[%s5208 + $0x70] sm:$0xf]
    %v5591 = vld [vmem:[%s5208 + $0x74] sm:$0x1]
    %v5592 = vld [vmem:[%s5208 + $0x78] sm:$0xf]
    %v5593 = vld [vmem:[%s5208 + $0x7c] sm:$0xf]
    %v5594 = vld [vmem:[%s5208 + $0x80] sm:$0x1]
    %v5595 = vld [vmem:[%s5208 + $0x84] sm:$0xf]
    %v5596 = vld [vmem:[%s5208 + $0x88] sm:$0xf]
    %v5597 = vld [vmem:[%s5208 + $0x8c] sm:$0x1]
    %v5598 = vld [vmem:[%s5208 + $0x90] sm:$0xf]
    %v5599 = vld [vmem:[%s5208 + $0x94] sm:$0xf]
    %v5600 = vld [vmem:[%s5208 + $0x98] sm:$0x1]
    %v5601 = vld [vmem:[%s5208 + $0x9c] sm:$0xf]
    %v5602 = vld [vmem:[%s5208 + $0xa0] sm:$0xf]
    %v5603 = vld [vmem:[%s5208 + $0xa4] sm:$0x1]
    %v5604 = vld [vmem:[%s5208 + $0xa8] sm:$0xf]
    %v5605 = vld [vmem:[%s5208 + $0xac] sm:$0xf]
    %v5606 = vld [vmem:[%s5208 + $0xb0] sm:$0x1]
    %v5607 = vld [vmem:[%s5208 + $0xb4] sm:$0xf]
    %v5608 = vld [vmem:[%s5208 + $0xb8] sm:$0xf]
    %v5609 = vld [vmem:[%s5208 + $0xbc] sm:$0x1]
    %v5610 = vld [vmem:[%s5208 + $0xd8] sm:$0xf]
    %v5611 = vld [vmem:[%s5208 + $0xdc] sm:$0xf]
    %v5612 = vld [vmem:[%s5208 + $0xe0] sm:$0x1]
    %v5613 = vld [vmem:[%s5208 + $0xe4] sm:$0xf]
    %v5614 = vld [vmem:[%s5208 + $0xe8] sm:$0xf]
    %v5615 = vld [vmem:[%s5208 + $0xec] sm:$0x1]
    %v5616 = vld [vmem:[%s5208 + $0xf0] sm:$0xf]
    %v5617 = vld [vmem:[%s5208 + $0xf4] sm:$0xf]
    %v5618 = vld [vmem:[%s5208 + $0xf8] sm:$0x1]
    %v5619 = vld [vmem:[%s5208 + $0xfc] sm:$0xf]
    %v5620 = vld [vmem:[%s5208 + $0x100] sm:$0xf]
    %v5621 = vld [vmem:[%s5208 + $0x104] sm:$0x1]
    %v5622 = vld [vmem:[%s5208 + $0x108] sm:$0xf]
    %v5623 = vld [vmem:[%s5208 + $0x10c] sm:$0xf]
    %v5624 = vld [vmem:[%s5208 + $0x110] sm:$0x1]
    %v5625 = vld [vmem:[%s5208 + $0x114] sm:$0xf]
    %v5626 = vld [vmem:[%s5208 + $0x118] sm:$0xf]
    %v5627 = vld [vmem:[%s5208 + $0x11c] sm:$0x1]
    %v5628 = vld [vmem:[%s5208 + $0x120] sm:$0xf]
    %v5629 = vld [vmem:[%s5208 + $0x124] sm:$0xf]
    %v5630 = vld [vmem:[%s5208 + $0x128] sm:$0x1]
    %v5631 = vld [vmem:[%s5208 + $0x12c] sm:$0xf]
    %v5632 = vld [vmem:[%s5208 + $0x130] sm:$0xf]
    %v5633 = vld [vmem:[%s5208 + $0x134] sm:$0x1]
    %v5634 = vld [vmem:[%s5208 + $0x138] sm:$0xf]
    %v5635 = vld [vmem:[%s5208 + $0x13c] sm:$0xf]
    %v5636 = vld [vmem:[%s5208 + $0x140] sm:$0x1]
    %v5637 = vld [vmem:[%s5208 + $0x144] sm:$0xf]
    %v5638 = vld [vmem:[%s5208 + $0x148] sm:$0xf]
    %v5639 = vld [vmem:[%s5208 + $0x14c] sm:$0x1]
    %v5640 = vld [vmem:[%s5208 + $0x150] sm:$0xf]
    %v5641 = vld [vmem:[%s5208 + $0x154] sm:$0xf]
    %v5642 = vld [vmem:[%s5208 + $0x158] sm:$0x1]
    %v5643 = vld [vmem:[%s5208 + $0x15c] sm:$0xf]
    %v5644 = vld [vmem:[%s5208 + $0x160] sm:$0xf]
    %v5645 = vld [vmem:[%s5208 + $0x164] sm:$0x1]
    %v5646 = vld [vmem:[%s5208 + $0x168] sm:$0xf]
    %v5647 = vld [vmem:[%s5208 + $0x16c] sm:$0xf]
    %v5648 = vld [vmem:[%s5208 + $0x170] sm:$0x1]
    %v5649 = vld [vmem:[%s5208 + $0x174] sm:$0xf]
    %v5650 = vld [vmem:[%s5208 + $0x178] sm:$0xf]
    %v5651 = vld [vmem:[%s5208 + $0x17c] sm:$0x1]
    %v5652 = vld [vmem:[%s5208 + $0x180] sm:$0xf]
    %v5653 = vld [vmem:[%s5208 + $0x184] sm:$0xf]
    %v5654 = vld [vmem:[%s5208 + $0x188] sm:$0x1]
    %v5655 = vld [vmem:[%s5208 + $0x18c] sm:$0xf]
    %v5656 = vld [vmem:[%s5208 + $0x190] sm:$0xf]
    %v5657 = vld [vmem:[%s5208 + $0x194] sm:$0x1]
    %v5659 = vshrl.u32 %v5562, 16
    %v5661 = vrot.slane %v5659, 4
    %v5662 = vshll.u32 %v5562, 16
    %v5664 = vrot.slane %v5662, 5
    %v5665 = vor.u32 %v5661, %v5664
    %v5666 = vrot.slane %v5665, 4
    %v5668 = vshll.u32 %v5563, 16
    %v5670 = vrot.slane %v5668, 5
    %v5671 = vsel %vm1487, %v5666, %v5670
    %v5672 = vshrl.u32 %v5563, 16
    %v5674 = vrot.slane %v5672, 4
    %v5675 = vor.u32 %v5674, %v5670
    %v5676 = vrot.slane %v5675, 4
    %v5678 = vshll.u32 %v5564, 16
    %v5680 = vrot.slane %v5678, 5
    %v5681 = vsel %vm1487, %v5676, %v5680
    %v5683 = vshrl.u32 %v5565, 16
    %v5685 = vrot.slane %v5683, 4
    %v5686 = vshll.u32 %v5565, 16
    %v5688 = vrot.slane %v5686, 5
    %v5689 = vor.u32 %v5685, %v5688
    %v5690 = vrot.slane %v5689, 4
    %v5692 = vshll.u32 %v5566, 16
    %v5694 = vrot.slane %v5692, 5
    %v5695 = vsel %vm1487, %v5690, %v5694
    %v5696 = vshrl.u32 %v5566, 16
    %v5698 = vrot.slane %v5696, 4
    %v5699 = vor.u32 %v5698, %v5694
    %v5700 = vrot.slane %v5699, 4
    %v5702 = vshll.u32 %v5567, 16
    %v5704 = vrot.slane %v5702, 5
    %v5705 = vsel %vm1487, %v5700, %v5704
    %v5707 = vshrl.u32 %v5568, 16
    %v5709 = vrot.slane %v5707, 4
    %v5710 = vshll.u32 %v5568, 16
    %v5712 = vrot.slane %v5710, 5
    %v5713 = vor.u32 %v5709, %v5712
    %v5714 = vrot.slane %v5713, 4
    %v5716 = vshll.u32 %v5569, 16
    %v5718 = vrot.slane %v5716, 5
    %v5719 = vsel %vm1487, %v5714, %v5718
    %v5720 = vshrl.u32 %v5569, 16
    %v5722 = vrot.slane %v5720, 4
    %v5723 = vor.u32 %v5722, %v5718
    %v5724 = vrot.slane %v5723, 4
    %v5726 = vshll.u32 %v5570, 16
    %v5728 = vrot.slane %v5726, 5
    %v5729 = vsel %vm1487, %v5724, %v5728
    %v5731 = vshrl.u32 %v5571, 16
    %v5733 = vrot.slane %v5731, 4
    %v5734 = vshll.u32 %v5571, 16
    %v5736 = vrot.slane %v5734, 5
    %v5737 = vor.u32 %v5733, %v5736
    %v5738 = vrot.slane %v5737, 4
    %v5740 = vshll.u32 %v5572, 16
    %v5742 = vrot.slane %v5740, 5
    %v5743 = vsel %vm1487, %v5738, %v5742
    %v5744 = vshrl.u32 %v5572, 16
    %v5746 = vrot.slane %v5744, 4
    %v5747 = vor.u32 %v5746, %v5742
    %v5748 = vrot.slane %v5747, 4
    %v5750 = vshll.u32 %v5573, 16
    %v5752 = vrot.slane %v5750, 5
    %v5753 = vsel %vm1487, %v5748, %v5752
    %v5755 = vshrl.u32 %v5574, 16
    %v5757 = vrot.slane %v5755, 4
    %v5758 = vshll.u32 %v5574, 16
    %v5760 = vrot.slane %v5758, 5
    %v5761 = vor.u32 %v5757, %v5760
    %v5762 = vrot.slane %v5761, 4
    %v5764 = vshll.u32 %v5575, 16
    %v5766 = vrot.slane %v5764, 5
    %v5767 = vsel %vm1487, %v5762, %v5766
    %v5768 = vshrl.u32 %v5575, 16
    %v5770 = vrot.slane %v5768, 4
    %v5771 = vor.u32 %v5770, %v5766
    %v5772 = vrot.slane %v5771, 4
    %v5774 = vshll.u32 %v5576, 16
    %v5776 = vrot.slane %v5774, 5
    %v5777 = vsel %vm1487, %v5772, %v5776
    %v5779 = vshrl.u32 %v5577, 16
    %v5781 = vrot.slane %v5779, 4
    %v5782 = vshll.u32 %v5577, 16
    %v5784 = vrot.slane %v5782, 5
    %v5785 = vor.u32 %v5781, %v5784
    %v5786 = vrot.slane %v5785, 4
    %v5788 = vshll.u32 %v5578, 16
    %v5790 = vrot.slane %v5788, 5
    %v5791 = vsel %vm1487, %v5786, %v5790
    %v5792 = vshrl.u32 %v5578, 16
    %v5794 = vrot.slane %v5792, 4
    %v5795 = vor.u32 %v5794, %v5790
    %v5796 = vrot.slane %v5795, 4
    %v5798 = vshll.u32 %v5579, 16
    %v5800 = vrot.slane %v5798, 5
    %v5801 = vsel %vm1487, %v5796, %v5800
    %v5803 = vshrl.u32 %v5580, 16
    %v5805 = vrot.slane %v5803, 4
    %v5806 = vshll.u32 %v5580, 16
    %v5808 = vrot.slane %v5806, 5
    %v5809 = vor.u32 %v5805, %v5808
    %v5810 = vrot.slane %v5809, 4
    %v5812 = vshll.u32 %v5581, 16
    %v5814 = vrot.slane %v5812, 5
    %v5815 = vsel %vm1487, %v5810, %v5814
    %v5816 = vshrl.u32 %v5581, 16
    %v5818 = vrot.slane %v5816, 4
    %v5819 = vor.u32 %v5818, %v5814
    %v5820 = vrot.slane %v5819, 4
    %v5822 = vshll.u32 %v5582, 16
    %v5824 = vrot.slane %v5822, 5
    %v5825 = vsel %vm1487, %v5820, %v5824
    %v5827 = vshrl.u32 %v5583, 16
    %v5829 = vrot.slane %v5827, 4
    %v5830 = vshll.u32 %v5583, 16
    %v5832 = vrot.slane %v5830, 5
    %v5833 = vor.u32 %v5829, %v5832
    %v5834 = vrot.slane %v5833, 4
    %v5836 = vshll.u32 %v5584, 16
    %v5838 = vrot.slane %v5836, 5
    %v5839 = vsel %vm1487, %v5834, %v5838
    %v5840 = vshrl.u32 %v5584, 16
    %v5842 = vrot.slane %v5840, 4
    %v5843 = vor.u32 %v5842, %v5838
    %v5844 = vrot.slane %v5843, 4
    %v5846 = vshll.u32 %v5585, 16
    %v5848 = vrot.slane %v5846, 5
    %v5849 = vsel %vm1487, %v5844, %v5848
    %v5851 = vshrl.u32 %v5586, 16
    %v5853 = vrot.slane %v5851, 4
    %v5854 = vshll.u32 %v5586, 16
    %v5856 = vrot.slane %v5854, 5
    %v5857 = vor.u32 %v5853, %v5856
    %v5858 = vrot.slane %v5857, 4
    %v5860 = vshll.u32 %v5587, 16
    %v5862 = vrot.slane %v5860, 5
    %v5863 = vsel %vm1487, %v5858, %v5862
    %v5864 = vshrl.u32 %v5587, 16
    %v5866 = vrot.slane %v5864, 4
    %v5867 = vor.u32 %v5866, %v5862
    %v5868 = vrot.slane %v5867, 4
    %v5870 = vshll.u32 %v5588, 16
    %v5872 = vrot.slane %v5870, 5
    %v5873 = vsel %vm1487, %v5868, %v5872
    %v5875 = vshrl.u32 %v5589, 16
    %v5877 = vrot.slane %v5875, 4
    %v5878 = vshll.u32 %v5589, 16
    %v5880 = vrot.slane %v5878, 5
    %v5881 = vor.u32 %v5877, %v5880
    %v5882 = vrot.slane %v5881, 4
    %v5884 = vshll.u32 %v5590, 16
    %v5886 = vrot.slane %v5884, 5
    %v5887 = vsel %vm1487, %v5882, %v5886
    %v5888 = vshrl.u32 %v5590, 16
    %v5890 = vrot.slane %v5888, 4
    %v5891 = vor.u32 %v5890, %v5886
    %v5892 = vrot.slane %v5891, 4
    %v5894 = vshll.u32 %v5591, 16
    %v5896 = vrot.slane %v5894, 5
    %v5897 = vsel %vm1487, %v5892, %v5896
    %v5899 = vshrl.u32 %v5592, 16
    %v5901 = vrot.slane %v5899, 4
    %v5902 = vshll.u32 %v5592, 16
    %v5904 = vrot.slane %v5902, 5
    %v5905 = vor.u32 %v5901, %v5904
    %v5906 = vrot.slane %v5905, 4
    %v5908 = vshll.u32 %v5593, 16
    %v5910 = vrot.slane %v5908, 5
    %v5911 = vsel %vm1487, %v5906, %v5910
    %v5912 = vshrl.u32 %v5593, 16
    %v5914 = vrot.slane %v5912, 4
    %v5915 = vor.u32 %v5914, %v5910
    %v5916 = vrot.slane %v5915, 4
    %v5918 = vshll.u32 %v5594, 16
    %v5920 = vrot.slane %v5918, 5
    %v5921 = vsel %vm1487, %v5916, %v5920
    %v5923 = vshrl.u32 %v5595, 16
    %v5925 = vrot.slane %v5923, 4
    %v5926 = vshll.u32 %v5595, 16
    %v5928 = vrot.slane %v5926, 5
    %v5929 = vor.u32 %v5925, %v5928
    %v5930 = vrot.slane %v5929, 4
    %v5932 = vshll.u32 %v5596, 16
    %v5934 = vrot.slane %v5932, 5
    %v5935 = vsel %vm1487, %v5930, %v5934
    %v5936 = vshrl.u32 %v5596, 16
    %v5938 = vrot.slane %v5936, 4
    %v5939 = vor.u32 %v5938, %v5934
    %v5940 = vrot.slane %v5939, 4
    %v5942 = vshll.u32 %v5597, 16
    %v5944 = vrot.slane %v5942, 5
    %v5945 = vsel %vm1487, %v5940, %v5944
    %v5947 = vshrl.u32 %v5598, 16
    %v5949 = vrot.slane %v5947, 4
    %v5950 = vshll.u32 %v5598, 16
    %v5952 = vrot.slane %v5950, 5
    %v5953 = vor.u32 %v5949, %v5952
    %v5954 = vrot.slane %v5953, 4
    %v5956 = vshll.u32 %v5599, 16
    %v5958 = vrot.slane %v5956, 5
    %v5959 = vsel %vm1487, %v5954, %v5958
    %v5960 = vshrl.u32 %v5599, 16
    %v5962 = vrot.slane %v5960, 4
    %v5963 = vor.u32 %v5962, %v5958
    %v5964 = vrot.slane %v5963, 4
    %v5966 = vshll.u32 %v5600, 16
    %v5968 = vrot.slane %v5966, 5
    %v5969 = vsel %vm1487, %v5964, %v5968
    %v5971 = vshrl.u32 %v5601, 16
    %v5973 = vrot.slane %v5971, 4
    %v5974 = vshll.u32 %v5601, 16
    %v5976 = vrot.slane %v5974, 5
    %v5977 = vor.u32 %v5973, %v5976
    %v5978 = vrot.slane %v5977, 4
    %v5980 = vshll.u32 %v5602, 16
    %v5982 = vrot.slane %v5980, 5
    %v5983 = vsel %vm1487, %v5978, %v5982
    %v5984 = vshrl.u32 %v5602, 16
    %v5986 = vrot.slane %v5984, 4
    %v5987 = vor.u32 %v5986, %v5982
    %v5988 = vrot.slane %v5987, 4
    %v5990 = vshll.u32 %v5603, 16
    %v5992 = vrot.slane %v5990, 5
    %v5993 = vsel %vm1487, %v5988, %v5992
    %v5995 = vshrl.u32 %v5604, 16
    %v5997 = vrot.slane %v5995, 4
    %v5998 = vshll.u32 %v5604, 16
    %v6000 = vrot.slane %v5998, 5
    %v6001 = vor.u32 %v5997, %v6000
    %v6002 = vrot.slane %v6001, 4
    %v6004 = vshll.u32 %v5605, 16
    %v6006 = vrot.slane %v6004, 5
    %v6007 = vsel %vm1487, %v6002, %v6006
    %v6008 = vshrl.u32 %v5605, 16
    %v6010 = vrot.slane %v6008, 4
    %v6011 = vor.u32 %v6010, %v6006
    %v6012 = vrot.slane %v6011, 4
    %v6014 = vshll.u32 %v5606, 16
    %v6016 = vrot.slane %v6014, 5
    %v6017 = vsel %vm1487, %v6012, %v6016
    %v6019 = vshrl.u32 %v5607, 16
    %v6021 = vrot.slane %v6019, 4
    %v6022 = vshll.u32 %v5607, 16
    %v6024 = vrot.slane %v6022, 5
    %v6025 = vor.u32 %v6021, %v6024
    %v6026 = vrot.slane %v6025, 4
    %v6028 = vshll.u32 %v5608, 16
    %v6030 = vrot.slane %v6028, 5
    %v6031 = vsel %vm1487, %v6026, %v6030
    %v6032 = vshrl.u32 %v5608, 16
    %v6034 = vrot.slane %v6032, 4
    %v6035 = vor.u32 %v6034, %v6030
    %v6036 = vrot.slane %v6035, 4
    %v6038 = vshll.u32 %v5609, 16
    %v6040 = vrot.slane %v6038, 5
    %v6041 = vsel %vm1487, %v6036, %v6040
    %v6043 = vshrl.u32 %v5610, 16
    %v6045 = vrot.slane %v6043, 4
    %v6046 = vshll.u32 %v5610, 16
    %v6048 = vrot.slane %v6046, 5
    %v6049 = vor.u32 %v6045, %v6048
    %v6050 = vrot.slane %v6049, 4
    %v6052 = vshll.u32 %v5611, 16
    %v6054 = vrot.slane %v6052, 5
    %v6055 = vsel %vm1487, %v6050, %v6054
    %v6056 = vshrl.u32 %v5611, 16
    %v6058 = vrot.slane %v6056, 4
    %v6059 = vor.u32 %v6058, %v6054
    %v6060 = vrot.slane %v6059, 4
    %v6062 = vshll.u32 %v5612, 16
    %v6064 = vrot.slane %v6062, 5
    %v6065 = vsel %vm1487, %v6060, %v6064
    %v6067 = vshrl.u32 %v5613, 16
    %v6069 = vrot.slane %v6067, 4
    %v6070 = vshll.u32 %v5613, 16
    %v6072 = vrot.slane %v6070, 5
    %v6073 = vor.u32 %v6069, %v6072
    %v6074 = vrot.slane %v6073, 4
    %v6076 = vshll.u32 %v5614, 16
    %v6078 = vrot.slane %v6076, 5
    %v6079 = vsel %vm1487, %v6074, %v6078
    %v6080 = vshrl.u32 %v5614, 16
    %v6082 = vrot.slane %v6080, 4
    %v6083 = vor.u32 %v6082, %v6078
    %v6084 = vrot.slane %v6083, 4
    %v6086 = vshll.u32 %v5615, 16
    %v6088 = vrot.slane %v6086, 5
    %v6089 = vsel %vm1487, %v6084, %v6088
    %v6091 = vshrl.u32 %v5616, 16
    %v6093 = vrot.slane %v6091, 4
    %v6094 = vshll.u32 %v5616, 16
    %v6096 = vrot.slane %v6094, 5
    %v6097 = vor.u32 %v6093, %v6096
    %v6098 = vrot.slane %v6097, 4
    %v6100 = vshll.u32 %v5617, 16
    %v6102 = vrot.slane %v6100, 5
    %v6103 = vsel %vm1487, %v6098, %v6102
    %v6104 = vshrl.u32 %v5617, 16
    %v6106 = vrot.slane %v6104, 4
    %v6107 = vor.u32 %v6106, %v6102
    %v6108 = vrot.slane %v6107, 4
    %v6110 = vshll.u32 %v5618, 16
    %v6112 = vrot.slane %v6110, 5
    %v6113 = vsel %vm1487, %v6108, %v6112
    %v6115 = vshrl.u32 %v5619, 16
    %v6117 = vrot.slane %v6115, 4
    %v6118 = vshll.u32 %v5619, 16
    %v6120 = vrot.slane %v6118, 5
    %v6121 = vor.u32 %v6117, %v6120
    %v6122 = vrot.slane %v6121, 4
    %v6124 = vshll.u32 %v5620, 16
    %v6126 = vrot.slane %v6124, 5
    %v6127 = vsel %vm1487, %v6122, %v6126
    %v6128 = vshrl.u32 %v5620, 16
    %v6130 = vrot.slane %v6128, 4
    %v6131 = vor.u32 %v6130, %v6126
    %v6132 = vrot.slane %v6131, 4
    %v6134 = vshll.u32 %v5621, 16
    %v6136 = vrot.slane %v6134, 5
    %v6137 = vsel %vm1487, %v6132, %v6136
    %v6139 = vshrl.u32 %v5622, 16
    %v6141 = vrot.slane %v6139, 4
    %v6142 = vshll.u32 %v5622, 16
    %v6144 = vrot.slane %v6142, 5
    %v6145 = vor.u32 %v6141, %v6144
    %v6146 = vrot.slane %v6145, 4
    %v6148 = vshll.u32 %v5623, 16
    %v6150 = vrot.slane %v6148, 5
    %v6151 = vsel %vm1487, %v6146, %v6150
    %v6152 = vshrl.u32 %v5623, 16
    %v6154 = vrot.slane %v6152, 4
    %v6155 = vor.u32 %v6154, %v6150
    %v6156 = vrot.slane %v6155, 4
    %v6158 = vshll.u32 %v5624, 16
    %v6160 = vrot.slane %v6158, 5
    %v6161 = vsel %vm1487, %v6156, %v6160
    %v6163 = vshrl.u32 %v5625, 16
    %v6165 = vrot.slane %v6163, 4
    %v6166 = vshll.u32 %v5625, 16
    %v6168 = vrot.slane %v6166, 5
    %v6169 = vor.u32 %v6165, %v6168
    %v6170 = vrot.slane %v6169, 4
    %v6172 = vshll.u32 %v5626, 16
    %v6174 = vrot.slane %v6172, 5
    %v6175 = vsel %vm1487, %v6170, %v6174
    %v6176 = vshrl.u32 %v5626, 16
    %v6178 = vrot.slane %v6176, 4
    %v6179 = vor.u32 %v6178, %v6174
    %v6180 = vrot.slane %v6179, 4
    %v6182 = vshll.u32 %v5627, 16
    %v6184 = vrot.slane %v6182, 5
    %v6185 = vsel %vm1487, %v6180, %v6184
    %v6187 = vshrl.u32 %v5628, 16
    %v6189 = vrot.slane %v6187, 4
    %v6190 = vshll.u32 %v5628, 16
    %v6192 = vrot.slane %v6190, 5
    %v6193 = vor.u32 %v6189, %v6192
    %v6194 = vrot.slane %v6193, 4
    %v6196 = vshll.u32 %v5629, 16
    %v6198 = vrot.slane %v6196, 5
    %v6199 = vsel %vm1487, %v6194, %v6198
    %v6200 = vshrl.u32 %v5629, 16
    %v6202 = vrot.slane %v6200, 4
    %v6203 = vor.u32 %v6202, %v6198
    %v6204 = vrot.slane %v6203, 4
    %v6206 = vshll.u32 %v5630, 16
    %v6208 = vrot.slane %v6206, 5
    %v6209 = vsel %vm1487, %v6204, %v6208
    %v6211 = vshrl.u32 %v5631, 16
    %v6213 = vrot.slane %v6211, 4
    %v6214 = vshll.u32 %v5631, 16
    %v6216 = vrot.slane %v6214, 5
    %v6217 = vor.u32 %v6213, %v6216
    %v6218 = vrot.slane %v6217, 4
    %v6220 = vshll.u32 %v5632, 16
    %v6222 = vrot.slane %v6220, 5
    %v6223 = vsel %vm1487, %v6218, %v6222
    %v6224 = vshrl.u32 %v5632, 16
    %v6226 = vrot.slane %v6224, 4
    %v6227 = vor.u32 %v6226, %v6222
    %v6228 = vrot.slane %v6227, 4
    %v6230 = vshll.u32 %v5633, 16
    %v6232 = vrot.slane %v6230, 5
    %v6233 = vsel %vm1487, %v6228, %v6232
    %v6235 = vshrl.u32 %v5634, 16
    %v6237 = vrot.slane %v6235, 4
    %v6238 = vshll.u32 %v5634, 16
    %v6240 = vrot.slane %v6238, 5
    %v6241 = vor.u32 %v6237, %v6240
    %v6242 = vrot.slane %v6241, 4
    %v6244 = vshll.u32 %v5635, 16
    %v6246 = vrot.slane %v6244, 5
    %v6247 = vsel %vm1487, %v6242, %v6246
    %v6248 = vshrl.u32 %v5635, 16
    %v6250 = vrot.slane %v6248, 4
    %v6251 = vor.u32 %v6250, %v6246
    %v6252 = vrot.slane %v6251, 4
    %v6254 = vshll.u32 %v5636, 16
    %v6256 = vrot.slane %v6254, 5
    %v6257 = vsel %vm1487, %v6252, %v6256
    %v6259 = vshrl.u32 %v5637, 16
    %v6261 = vrot.slane %v6259, 4
    %v6262 = vshll.u32 %v5637, 16
    %v6264 = vrot.slane %v6262, 5
    %v6265 = vor.u32 %v6261, %v6264
    %v6266 = vrot.slane %v6265, 4
    %v6268 = vshll.u32 %v5638, 16
    %v6270 = vrot.slane %v6268, 5
    %v6271 = vsel %vm1487, %v6266, %v6270
    %v6272 = vshrl.u32 %v5638, 16
    %v6274 = vrot.slane %v6272, 4
    %v6275 = vor.u32 %v6274, %v6270
    %v6276 = vrot.slane %v6275, 4
    %v6278 = vshll.u32 %v5639, 16
    %v6280 = vrot.slane %v6278, 5
    %v6281 = vsel %vm1487, %v6276, %v6280
    %v6283 = vshrl.u32 %v5640, 16
    %v6285 = vrot.slane %v6283, 4
    %v6286 = vshll.u32 %v5640, 16
    %v6288 = vrot.slane %v6286, 5
    %v6289 = vor.u32 %v6285, %v6288
    %v6290 = vrot.slane %v6289, 4
    %v6292 = vshll.u32 %v5641, 16
    %v6294 = vrot.slane %v6292, 5
    %v6295 = vsel %vm1487, %v6290, %v6294
    %v6296 = vshrl.u32 %v5641, 16
    %v6298 = vrot.slane %v6296, 4
    %v6299 = vor.u32 %v6298, %v6294
    %v6300 = vrot.slane %v6299, 4
    %v6302 = vshll.u32 %v5642, 16
    %v6304 = vrot.slane %v6302, 5
    %v6305 = vsel %vm1487, %v6300, %v6304
    %v6307 = vshrl.u32 %v5643, 16
    %v6309 = vrot.slane %v6307, 4
    %v6310 = vshll.u32 %v5643, 16
    %v6312 = vrot.slane %v6310, 5
    %v6313 = vor.u32 %v6309, %v6312
    %v6314 = vrot.slane %v6313, 4
    %v6316 = vshll.u32 %v5644, 16
    %v6318 = vrot.slane %v6316, 5
    %v6319 = vsel %vm1487, %v6314, %v6318
    %v6320 = vshrl.u32 %v5644, 16
    %v6322 = vrot.slane %v6320, 4
    %v6323 = vor.u32 %v6322, %v6318
    %v6324 = vrot.slane %v6323, 4
    %v6326 = vshll.u32 %v5645, 16
    %v6328 = vrot.slane %v6326, 5
    %v6329 = vsel %vm1487, %v6324, %v6328
    %v6331 = vshrl.u32 %v5646, 16
    %v6333 = vrot.slane %v6331, 4
    %v6334 = vshll.u32 %v5646, 16
    %v6336 = vrot.slane %v6334, 5
    %v6337 = vor.u32 %v6333, %v6336
    %v6338 = vrot.slane %v6337, 4
    %v6340 = vshll.u32 %v5647, 16
    %v6342 = vrot.slane %v6340, 5
    %v6343 = vsel %vm1487, %v6338, %v6342
    %v6344 = vshrl.u32 %v5647, 16
    %v6346 = vrot.slane %v6344, 4
    %v6347 = vor.u32 %v6346, %v6342
    %v6348 = vrot.slane %v6347, 4
    %v6350 = vshll.u32 %v5648, 16
    %v6352 = vrot.slane %v6350, 5
    %v6353 = vsel %vm1487, %v6348, %v6352
    %v6355 = vshrl.u32 %v5649, 16
    %v6357 = vrot.slane %v6355, 4
    %v6358 = vshll.u32 %v5649, 16
    %v6360 = vrot.slane %v6358, 5
    %v6361 = vor.u32 %v6357, %v6360
    %v6362 = vrot.slane %v6361, 4
    %v6364 = vshll.u32 %v5650, 16
    %v6366 = vrot.slane %v6364, 5
    %v6367 = vsel %vm1487, %v6362, %v6366
    %v6368 = vshrl.u32 %v5650, 16
    %v6370 = vrot.slane %v6368, 4
    %v6371 = vor.u32 %v6370, %v6366
    %v6372 = vrot.slane %v6371, 4
    %v6374 = vshll.u32 %v5651, 16
    %v6376 = vrot.slane %v6374, 5
    %v6377 = vsel %vm1487, %v6372, %v6376
    %v6379 = vshrl.u32 %v5652, 16
    %v6381 = vrot.slane %v6379, 4
    %v6382 = vshll.u32 %v5652, 16
    %v6384 = vrot.slane %v6382, 5
    %v6385 = vor.u32 %v6381, %v6384
    %v6386 = vrot.slane %v6385, 4
    %v6388 = vshll.u32 %v5653, 16
    %v6390 = vrot.slane %v6388, 5
    %v6391 = vsel %vm1487, %v6386, %v6390
    %v6392 = vshrl.u32 %v5653, 16
    %v6394 = vrot.slane %v6392, 4
    %v6395 = vor.u32 %v6394, %v6390
    %v6396 = vrot.slane %v6395, 4
    %v6398 = vshll.u32 %v5654, 16
    %v6400 = vrot.slane %v6398, 5
    %v6401 = vsel %vm1487, %v6396, %v6400
    %v6403 = vshrl.u32 %v5655, 16
    %v6405 = vrot.slane %v6403, 4
    %v6406 = vshll.u32 %v5655, 16
    %v6408 = vrot.slane %v6406, 5
    %v6409 = vor.u32 %v6405, %v6408
    %v6410 = vrot.slane %v6409, 4
    %v6412 = vshll.u32 %v5656, 16
    %v6414 = vrot.slane %v6412, 5
    %v6415 = vsel %vm1487, %v6410, %v6414
    %v6416 = vshrl.u32 %v5656, 16
    %v6418 = vrot.slane %v6416, 4
    %v6419 = vor.u32 %v6418, %v6414
    %v6420 = vrot.slane %v6419, 4
    %v6422 = vshll.u32 %v5657, 16
    %v6424 = vrot.slane %v6422, 5
    %v6425 = vsel %vm1487, %v6420, %v6424
    %v6426 = vunpack.c.l.b16 %v5671
    %v6427 = vunpack.c.l.b16 %v5681
    %v6428 = vunpack.c.l.b16 %v5695
    %v6429 = vunpack.c.l.b16 %v5705
    %v6430 = vunpack.c.l.b16 %v5719
    %v6431 = vunpack.c.l.b16 %v5729
    %v6432 = vunpack.c.l.b16 %v5743
    %v6433 = vunpack.c.l.b16 %v5753
    %v6434 = vunpack.c.l.b16 %v5767
    %v6435 = vunpack.c.l.b16 %v5777
    %v6436 = vunpack.c.l.b16 %v5791
    %v6437 = vunpack.c.l.b16 %v5801
    %v6438 = vunpack.c.l.b16 %v5815
    %v6439 = vunpack.c.l.b16 %v5825
    %v6440 = vunpack.c.l.b16 %v5839
    %v6441 = vunpack.c.l.b16 %v5849
    %v6442 = vunpack.c.l.b16 %v5863
    %v6443 = vunpack.c.l.b16 %v5873
    %v6444 = vunpack.c.l.b16 %v5887
    %v6445 = vunpack.c.l.b16 %v5897
    %v6446 = vunpack.c.l.b16 %v5911
    %v6447 = vunpack.c.l.b16 %v5921
    %v6448 = vunpack.c.l.b16 %v5935
    %v6449 = vunpack.c.l.b16 %v5945
    %v6450 = vunpack.c.l.b16 %v5959
    %v6451 = vunpack.c.l.b16 %v5969
    %v6452 = vunpack.c.l.b16 %v5983
    %v6453 = vunpack.c.l.b16 %v5993
    %v6454 = vunpack.c.l.b16 %v6007
    %v6455 = vunpack.c.l.b16 %v6017
    %v6456 = vunpack.c.l.b16 %v6031
    %v6457 = vunpack.c.l.b16 %v6041
    %v6458 = vunpack.c.l.b16 %v6055
    %v6459 = vunpack.c.l.b16 %v6065
    %v6460 = vunpack.c.l.b16 %v6079
    %v6461 = vunpack.c.l.b16 %v6089
    %v6462 = vunpack.c.l.b16 %v6103
    %v6463 = vunpack.c.l.b16 %v6113
    %v6464 = vunpack.c.l.b16 %v6127
    %v6465 = vunpack.c.l.b16 %v6137
    %v6466 = vunpack.c.l.b16 %v6151
    %v6467 = vunpack.c.l.b16 %v6161
    %v6468 = vunpack.c.l.b16 %v6175
    %v6469 = vunpack.c.l.b16 %v6185
    %v6470 = vunpack.c.l.b16 %v6199
    %v6471 = vunpack.c.l.b16 %v6209
    %v6472 = vunpack.c.l.b16 %v6223
    %v6473 = vunpack.c.l.b16 %v6233
    %v6474 = vunpack.c.l.b16 %v6247
    %v6475 = vunpack.c.l.b16 %v6257
    %v6476 = vunpack.c.l.b16 %v6271
    %v6477 = vunpack.c.l.b16 %v6281
    %v6478 = vunpack.c.l.b16 %v6295
    %v6479 = vunpack.c.l.b16 %v6305
    %v6480 = vunpack.c.l.b16 %v6319
    %v6481 = vunpack.c.l.b16 %v6329
    %v6482 = vunpack.c.l.b16 %v6343
    %v6483 = vunpack.c.l.b16 %v6353
    %v6484 = vunpack.c.l.b16 %v6367
    %v6485 = vunpack.c.l.b16 %v6377
    %v6486 = vunpack.c.l.b16 %v6391
    %v6487 = vunpack.c.l.b16 %v6401
    %v6488 = vunpack.c.l.b16 %v6415
    %v6489 = vunpack.c.l.b16 %v6425
    %v6490 = vpack.c.b16 %v6427, %v6426
    %v6491 = vpack.c.b16 %v6429, %v6428
    %v6492 = vpack.c.b16 %v6431, %v6430
    %v6493 = vpack.c.b16 %v6433, %v6432
    %v6494 = vpack.c.b16 %v6435, %v6434
    %v6495 = vpack.c.b16 %v6437, %v6436
    %v6496 = vpack.c.b16 %v6439, %v6438
    %v6497 = vpack.c.b16 %v6441, %v6440
    %v6498 = vpack.c.b16 %v6443, %v6442
    %v6499 = vpack.c.b16 %v6445, %v6444
    %v6500 = vpack.c.b16 %v6447, %v6446
    %v6501 = vpack.c.b16 %v6449, %v6448
    %v6502 = vpack.c.b16 %v6451, %v6450
    %v6503 = vpack.c.b16 %v6453, %v6452
    %v6504 = vpack.c.b16 %v6455, %v6454
    %v6505 = vpack.c.b16 %v6457, %v6456
    %v6506 = vpack.c.b16 %v6459, %v6458
    %v6507 = vpack.c.b16 %v6461, %v6460
    %v6508 = vpack.c.b16 %v6463, %v6462
    %v6509 = vpack.c.b16 %v6465, %v6464
    %v6510 = vpack.c.b16 %v6467, %v6466
    %v6511 = vpack.c.b16 %v6469, %v6468
    %v6512 = vpack.c.b16 %v6471, %v6470
    %v6513 = vpack.c.b16 %v6473, %v6472
    %v6514 = vpack.c.b16 %v6475, %v6474
    %v6515 = vpack.c.b16 %v6477, %v6476
    %v6516 = vpack.c.b16 %v6479, %v6478
    %v6517 = vpack.c.b16 %v6481, %v6480
    %v6518 = vpack.c.b16 %v6483, %v6482
    %v6519 = vpack.c.b16 %v6485, %v6484
    %v6520 = vpack.c.b16 %v6487, %v6486
    %v6521 = vpack.c.b16 %v6489, %v6488
    %6522 = vrot.lane.b32.xlu0 %v6490, 21
    %v6523 = vpop.permute.xlu0 %6522
    %6524 = vrot.lane.b32.xlu0 %v6491, 21
    %v6525 = vpop.permute.xlu0 %6524
    %6526 = vrot.lane.b32.xlu0 %v6492, 21
    %v6527 = vpop.permute.xlu0 %6526
    %6528 = vrot.lane.b32.xlu0 %v6493, 21
    %v6529 = vpop.permute.xlu0 %6528
    %6530 = vrot.lane.b32.xlu0 %v6494, 21
    %v6531 = vpop.permute.xlu0 %6530
    %6532 = vrot.lane.b32.xlu0 %v6495, 21
    %v6533 = vpop.permute.xlu0 %6532
    %6534 = vrot.lane.b32.xlu0 %v6496, 21
    %v6535 = vpop.permute.xlu0 %6534
    %6536 = vrot.lane.b32.xlu0 %v6497, 21
    %v6537 = vpop.permute.xlu0 %6536
    %6538 = vrot.lane.b32.xlu0 %v6498, 21
    %v6539 = vpop.permute.xlu0 %6538
    %6540 = vrot.lane.b32.xlu0 %v6499, 21
    %v6541 = vpop.permute.xlu0 %6540
    %6542 = vrot.lane.b32.xlu0 %v6500, 21
    %v6543 = vpop.permute.xlu0 %6542
    %6544 = vrot.lane.b32.xlu0 %v6501, 21
    %v6545 = vpop.permute.xlu0 %6544
    %6546 = vrot.lane.b32.xlu0 %v6502, 21
    %v6547 = vpop.permute.xlu0 %6546
    %6548 = vrot.lane.b32.xlu0 %v6503, 21
    %v6549 = vpop.permute.xlu0 %6548
    %6550 = vrot.lane.b32.xlu0 %v6504, 21
    %v6551 = vpop.permute.xlu0 %6550
    %6552 = vrot.lane.b32.xlu0 %v6505, 21
    %v6553 = vpop.permute.xlu0 %6552
    %6554 = vrot.lane.b32.xlu0 %v6506, 21
    %v6555 = vpop.permute.xlu0 %6554
    %6556 = vrot.lane.b32.xlu0 %v6507, 21
    %v6557 = vpop.permute.xlu0 %6556
    %6558 = vrot.lane.b32.xlu0 %v6508, 21
    %v6559 = vpop.permute.xlu0 %6558
    %6560 = vrot.lane.b32.xlu0 %v6509, 21
    %v6561 = vpop.permute.xlu0 %6560
    %6562 = vrot.lane.b32.xlu0 %v6510, 21
    %v6563 = vpop.permute.xlu0 %6562
    %6564 = vrot.lane.b32.xlu0 %v6511, 21
    %v6565 = vpop.permute.xlu0 %6564
    %6566 = vrot.lane.b32.xlu0 %v6512, 21
    %v6567 = vpop.permute.xlu0 %6566
    %6568 = vrot.lane.b32.xlu0 %v6513, 21
    %v6569 = vpop.permute.xlu0 %6568
    %6570 = vrot.lane.b32.xlu0 %v6514, 21
    %v6571 = vpop.permute.xlu0 %6570
    %6572 = vrot.lane.b32.xlu0 %v6515, 21
    %v6573 = vpop.permute.xlu0 %6572
    %6574 = vrot.lane.b32.xlu0 %v6516, 21
    %v6575 = vpop.permute.xlu0 %6574
    %6576 = vrot.lane.b32.xlu0 %v6517, 21
    %v6577 = vpop.permute.xlu0 %6576
    %6578 = vrot.lane.b32.xlu0 %v6518, 21
    %v6579 = vpop.permute.xlu0 %6578
    %6580 = vrot.lane.b32.xlu0 %v6519, 21
    %v6581 = vpop.permute.xlu0 %6580
    %6582 = vrot.lane.b32.xlu0 %v6520, 21
    %v6583 = vpop.permute.xlu0 %6582
    %6584 = vrot.lane.b32.xlu0 %v6521, 21
    %v6585 = vpop.permute.xlu0 %6584
    %vm6618 = vcmask 195752
    %6619 = vst.msk [vmem:[#allocation3] sm:$0xff] %vm6618, %v6523
    %6620 = vst.msk [vmem:[#allocation3 + $0x8] sm:$0xff] %vm6618, %v6525
    %6621 = vst.msk [vmem:[#allocation3 + $0x10] sm:$0xff] %vm6618, %v6527
    %6622 = vst.msk [vmem:[#allocation3 + $0x18] sm:$0xff] %vm6618, %v6529
    %6623 = vst.msk [vmem:[#allocation3 + $0x20] sm:$0xff] %vm6618, %v6531
    %6624 = vst.msk [vmem:[#allocation3 + $0x28] sm:$0xff] %vm6618, %v6533
    %6625 = vst.msk [vmem:[#allocation3 + $0x30] sm:$0xff] %vm6618, %v6535
    %6626 = vst.msk [vmem:[#allocation3 + $0x38] sm:$0xff] %vm6618, %v6537
    %6627 = vst.msk [vmem:[#allocation3 + $0x40] sm:$0xff] %vm6618, %v6539
    %6628 = vst.msk [vmem:[#allocation3 + $0x48] sm:$0xff] %vm6618, %v6541
    %6629 = vst.msk [vmem:[#allocation3 + $0x50] sm:$0xff] %vm6618, %v6543
    %6630 = vst.msk [vmem:[#allocation3 + $0x58] sm:$0xff] %vm6618, %v6545
    %6631 = vst.msk [vmem:[#allocation3 + $0x60] sm:$0xff] %vm6618, %v6547
    %6632 = vst.msk [vmem:[#allocation3 + $0x68] sm:$0xff] %vm6618, %v6549
    %6633 = vst.msk [vmem:[#allocation3 + $0x70] sm:$0xff] %vm6618, %v6551
    %6634 = vst.msk [vmem:[#allocation3 + $0x78] sm:$0xff] %vm6618, %v6553
    %6635 = vst.msk [vmem:[#allocation3 + $0x80] sm:$0xff] %vm6618, %v6555
    %6636 = vst.msk [vmem:[#allocation3 + $0x88] sm:$0xff] %vm6618, %v6557
    %6637 = vst.msk [vmem:[#allocation3 + $0x90] sm:$0xff] %vm6618, %v6559
    %6638 = vst.msk [vmem:[#allocation3 + $0x98] sm:$0xff] %vm6618, %v6561
    %6639 = vst.msk [vmem:[#allocation3 + $0xa0] sm:$0xff] %vm6618, %v6563
    %6640 = vst.msk [vmem:[#allocation3 + $0xa8] sm:$0xff] %vm6618, %v6565
    %6641 = vst.msk [vmem:[#allocation3 + $0xb0] sm:$0xff] %vm6618, %v6567
    %6642 = vst.msk [vmem:[#allocation3 + $0xb8] sm:$0xff] %vm6618, %v6569
    %6643 = vst.msk [vmem:[#allocation3 + $0xc0] sm:$0xff] %vm6618, %v6571
    %6644 = vst.msk [vmem:[#allocation3 + $0xc8] sm:$0xff] %vm6618, %v6573
    %6645 = vst.msk [vmem:[#allocation3 + $0xd0] sm:$0xff] %vm6618, %v6575
    %6646 = vst.msk [vmem:[#allocation3 + $0xd8] sm:$0xff] %vm6618, %v6577
    %6647 = vst.msk [vmem:[#allocation3 + $0xe0] sm:$0xff] %vm6618, %v6579
    %6648 = vst.msk [vmem:[#allocation3 + $0xe8] sm:$0xff] %vm6618, %v6581
    %6649 = vst.msk [vmem:[#allocation3 + $0xf0] sm:$0xff] %vm6618, %v6583
    %6650 = vst.msk [vmem:[#allocation3 + $0xf8] sm:$0xff] %vm6618, %v6585
    %v6651 = vld [vmem:[%s5208] sm:$0xe]
    %v6652 = vld [vmem:[%s5208 + $0x4] sm:$0xf]
    %v6653 = vld [vmem:[%s5208 + $0x8] sm:$0x1]
    %v6654 = vld [vmem:[%s5208 + $0xc] sm:$0xe]
    %v6655 = vld [vmem:[%s5208 + $0x10] sm:$0xf]
    %v6656 = vld [vmem:[%s5208 + $0x14] sm:$0x1]
    %v6657 = vld [vmem:[%s5208 + $0x18] sm:$0xe]
    %v6658 = vld [vmem:[%s5208 + $0x1c] sm:$0xf]
    %v6659 = vld [vmem:[%s5208 + $0x20] sm:$0x1]
    %v6660 = vld [vmem:[%s5208 + $0x24] sm:$0xe]
    %v6661 = vld [vmem:[%s5208 + $0x28] sm:$0xf]
    %v6662 = vld [vmem:[%s5208 + $0x2c] sm:$0x1]
    %v6663 = vld [vmem:[%s5208 + $0x30] sm:$0xe]
    %v6664 = vld [vmem:[%s5208 + $0x34] sm:$0xf]
    %v6665 = vld [vmem:[%s5208 + $0x38] sm:$0x1]
    %v6666 = vld [vmem:[%s5208 + $0x3c] sm:$0xe]
    %v6667 = vld [vmem:[%s5208 + $0x40] sm:$0xf]
    %v6668 = vld [vmem:[%s5208 + $0x44] sm:$0x1]
    %v6669 = vld [vmem:[%s5208 + $0x48] sm:$0xe]
    %v6670 = vld [vmem:[%s5208 + $0x4c] sm:$0xf]
    %v6671 = vld [vmem:[%s5208 + $0x50] sm:$0x1]
    %v6672 = vld [vmem:[%s5208 + $0x54] sm:$0xe]
    %v6673 = vld [vmem:[%s5208 + $0x58] sm:$0xf]
    %v6674 = vld [vmem:[%s5208 + $0x5c] sm:$0x1]
    %v6675 = vld [vmem:[%s5208 + $0x60] sm:$0xe]
    %v6676 = vld [vmem:[%s5208 + $0x64] sm:$0xf]
    %v6677 = vld [vmem:[%s5208 + $0x68] sm:$0x1]
    %v6678 = vld [vmem:[%s5208 + $0x6c] sm:$0xe]
    %v6679 = vld [vmem:[%s5208 + $0x70] sm:$0xf]
    %v6680 = vld [vmem:[%s5208 + $0x74] sm:$0x1]
    %v6681 = vld [vmem:[%s5208 + $0x78] sm:$0xe]
    %v6682 = vld [vmem:[%s5208 + $0x7c] sm:$0xf]
    %v6683 = vld [vmem:[%s5208 + $0x80] sm:$0x1]
    %v6684 = vld [vmem:[%s5208 + $0x84] sm:$0xe]
    %v6685 = vld [vmem:[%s5208 + $0x88] sm:$0xf]
    %v6686 = vld [vmem:[%s5208 + $0x8c] sm:$0x1]
    %v6687 = vld [vmem:[%s5208 + $0x90] sm:$0xe]
    %v6688 = vld [vmem:[%s5208 + $0x94] sm:$0xf]
    %v6689 = vld [vmem:[%s5208 + $0x98] sm:$0x1]
    %v6690 = vld [vmem:[%s5208 + $0x9c] sm:$0xe]
    %v6691 = vld [vmem:[%s5208 + $0xa0] sm:$0xf]
    %v6692 = vld [vmem:[%s5208 + $0xa4] sm:$0x1]
    %v6693 = vld [vmem:[%s5208 + $0xa8] sm:$0xe]
    %v6694 = vld [vmem:[%s5208 + $0xac] sm:$0xf]
    %v6695 = vld [vmem:[%s5208 + $0xb0] sm:$0x1]
    %v6696 = vld [vmem:[%s5208 + $0xb4] sm:$0xe]
    %v6697 = vld [vmem:[%s5208 + $0xb8] sm:$0xf]
    %v6698 = vld [vmem:[%s5208 + $0xbc] sm:$0x1]
    %v6699 = vld [vmem:[%s5208 + $0xd8] sm:$0xe]
    %v6700 = vld [vmem:[%s5208 + $0xdc] sm:$0xf]
    %v6701 = vld [vmem:[%s5208 + $0xe0] sm:$0x1]
    %v6702 = vld [vmem:[%s5208 + $0xe4] sm:$0xe]
    %v6703 = vld [vmem:[%s5208 + $0xe8] sm:$0xf]
    %v6704 = vld [vmem:[%s5208 + $0xec] sm:$0x1]
    %v6705 = vld [vmem:[%s5208 + $0xf0] sm:$0xe]
    %v6706 = vld [vmem:[%s5208 + $0xf4] sm:$0xf]
    %v6707 = vld [vmem:[%s5208 + $0xf8] sm:$0x1]
    %v6708 = vld [vmem:[%s5208 + $0xfc] sm:$0xe]
    %v6709 = vld [vmem:[%s5208 + $0x100] sm:$0xf]
    %v6710 = vld [vmem:[%s5208 + $0x104] sm:$0x1]
    %v6711 = vld [vmem:[%s5208 + $0x108] sm:$0xe]
    %v6712 = vld [vmem:[%s5208 + $0x10c] sm:$0xf]
    %v6713 = vld [vmem:[%s5208 + $0x110] sm:$0x1]
    %v6714 = vld [vmem:[%s5208 + $0x114] sm:$0xe]
    %v6715 = vld [vmem:[%s5208 + $0x118] sm:$0xf]
    %v6716 = vld [vmem:[%s5208 + $0x11c] sm:$0x1]
    %v6717 = vld [vmem:[%s5208 + $0x120] sm:$0xe]
    %v6718 = vld [vmem:[%s5208 + $0x124] sm:$0xf]
    %v6719 = vld [vmem:[%s5208 + $0x128] sm:$0x1]
    %v6720 = vld [vmem:[%s5208 + $0x12c] sm:$0xe]
    %v6721 = vld [vmem:[%s5208 + $0x130] sm:$0xf]
    %v6722 = vld [vmem:[%s5208 + $0x134] sm:$0x1]
    %v6723 = vld [vmem:[%s5208 + $0x138] sm:$0xe]
    %v6724 = vld [vmem:[%s5208 + $0x13c] sm:$0xf]
    %v6725 = vld [vmem:[%s5208 + $0x140] sm:$0x1]
    %v6726 = vld [vmem:[%s5208 + $0x144] sm:$0xe]
    %v6727 = vld [vmem:[%s5208 + $0x148] sm:$0xf]
    %v6728 = vld [vmem:[%s5208 + $0x14c] sm:$0x1]
    %v6729 = vld [vmem:[%s5208 + $0x150] sm:$0xe]
    %v6730 = vld [vmem:[%s5208 + $0x154] sm:$0xf]
    %v6731 = vld [vmem:[%s5208 + $0x158] sm:$0x1]
    %v6732 = vld [vmem:[%s5208 + $0x15c] sm:$0xe]
    %v6733 = vld [vmem:[%s5208 + $0x160] sm:$0xf]
    %v6734 = vld [vmem:[%s5208 + $0x164] sm:$0x1]
    %v6735 = vld [vmem:[%s5208 + $0x168] sm:$0xe]
    %v6736 = vld [vmem:[%s5208 + $0x16c] sm:$0xf]
    %v6737 = vld [vmem:[%s5208 + $0x170] sm:$0x1]
    %v6738 = vld [vmem:[%s5208 + $0x174] sm:$0xe]
    %v6739 = vld [vmem:[%s5208 + $0x178] sm:$0xf]
    %v6740 = vld [vmem:[%s5208 + $0x17c] sm:$0x1]
    %v6741 = vld [vmem:[%s5208 + $0x180] sm:$0xe]
    %v6742 = vld [vmem:[%s5208 + $0x184] sm:$0xf]
    %v6743 = vld [vmem:[%s5208 + $0x188] sm:$0x1]
    %v6744 = vld [vmem:[%s5208 + $0x18c] sm:$0xe]
    %v6745 = vld [vmem:[%s5208 + $0x190] sm:$0xf]
    %v6746 = vld [vmem:[%s5208 + $0x194] sm:$0x1]
    %v6843 = vrot.slane %v6651, 5
    %v6844 = vrot.slane %v6843, 4
    %v6845 = vrot.slane %v6652, 5
    %v6846 = vsel %vm2675, %v6844, %v6845
    %v6847 = vrot.slane %v6845, 4
    %v6848 = vrot.slane %v6653, 5
    %v6849 = vsel %vm2675, %v6847, %v6848
    %v6850 = vrot.slane %v6654, 5
    %v6851 = vrot.slane %v6850, 4
    %v6852 = vrot.slane %v6655, 5
    %v6853 = vsel %vm2675, %v6851, %v6852
    %v6854 = vrot.slane %v6852, 4
    %v6855 = vrot.slane %v6656, 5
    %v6856 = vsel %vm2675, %v6854, %v6855
    %v6857 = vrot.slane %v6657, 5
    %v6858 = vrot.slane %v6857, 4
    %v6859 = vrot.slane %v6658, 5
    %v6860 = vsel %vm2675, %v6858, %v6859
    %v6861 = vrot.slane %v6859, 4
    %v6862 = vrot.slane %v6659, 5
    %v6863 = vsel %vm2675, %v6861, %v6862
    %v6864 = vrot.slane %v6660, 5
    %v6865 = vrot.slane %v6864, 4
    %v6866 = vrot.slane %v6661, 5
    %v6867 = vsel %vm2675, %v6865, %v6866
    %v6868 = vrot.slane %v6866, 4
    %v6869 = vrot.slane %v6662, 5
    %v6870 = vsel %vm2675, %v6868, %v6869
    %v6871 = vrot.slane %v6663, 5
    %v6872 = vrot.slane %v6871, 4
    %v6873 = vrot.slane %v6664, 5
    %v6874 = vsel %vm2675, %v6872, %v6873
    %v6875 = vrot.slane %v6873, 4
    %v6876 = vrot.slane %v6665, 5
    %v6877 = vsel %vm2675, %v6875, %v6876
    %v6878 = vrot.slane %v6666, 5
    %v6879 = vrot.slane %v6878, 4
    %v6880 = vrot.slane %v6667, 5
    %v6881 = vsel %vm2675, %v6879, %v6880
    %v6882 = vrot.slane %v6880, 4
    %v6883 = vrot.slane %v6668, 5
    %v6884 = vsel %vm2675, %v6882, %v6883
    %v6885 = vrot.slane %v6669, 5
    %v6886 = vrot.slane %v6885, 4
    %v6887 = vrot.slane %v6670, 5
    %v6888 = vsel %vm2675, %v6886, %v6887
    %v6889 = vrot.slane %v6887, 4
    %v6890 = vrot.slane %v6671, 5
    %v6891 = vsel %vm2675, %v6889, %v6890
    %v6892 = vrot.slane %v6672, 5
    %v6893 = vrot.slane %v6892, 4
    %v6894 = vrot.slane %v6673, 5
    %v6895 = vsel %vm2675, %v6893, %v6894
    %v6896 = vrot.slane %v6894, 4
    %v6897 = vrot.slane %v6674, 5
    %v6898 = vsel %vm2675, %v6896, %v6897
    %v6899 = vrot.slane %v6675, 5
    %v6900 = vrot.slane %v6899, 4
    %v6901 = vrot.slane %v6676, 5
    %v6902 = vsel %vm2675, %v6900, %v6901
    %v6903 = vrot.slane %v6901, 4
    %v6904 = vrot.slane %v6677, 5
    %v6905 = vsel %vm2675, %v6903, %v6904
    %v6906 = vrot.slane %v6678, 5
    %v6907 = vrot.slane %v6906, 4
    %v6908 = vrot.slane %v6679, 5
    %v6909 = vsel %vm2675, %v6907, %v6908
    %v6910 = vrot.slane %v6908, 4
    %v6911 = vrot.slane %v6680, 5
    %v6912 = vsel %vm2675, %v6910, %v6911
    %v6913 = vrot.slane %v6681, 5
    %v6914 = vrot.slane %v6913, 4
    %v6915 = vrot.slane %v6682, 5
    %v6916 = vsel %vm2675, %v6914, %v6915
    %v6917 = vrot.slane %v6915, 4
    %v6918 = vrot.slane %v6683, 5
    %v6919 = vsel %vm2675, %v6917, %v6918
    %v6920 = vrot.slane %v6684, 5
    %v6921 = vrot.slane %v6920, 4
    %v6922 = vrot.slane %v6685, 5
    %v6923 = vsel %vm2675, %v6921, %v6922
    %v6924 = vrot.slane %v6922, 4
    %v6925 = vrot.slane %v6686, 5
    %v6926 = vsel %vm2675, %v6924, %v6925
    %v6927 = vrot.slane %v6687, 5
    %v6928 = vrot.slane %v6927, 4
    %v6929 = vrot.slane %v6688, 5
    %v6930 = vsel %vm2675, %v6928, %v6929
    %v6931 = vrot.slane %v6929, 4
    %v6932 = vrot.slane %v6689, 5
    %v6933 = vsel %vm2675, %v6931, %v6932
    %v6934 = vrot.slane %v6690, 5
    %v6935 = vrot.slane %v6934, 4
    %v6936 = vrot.slane %v6691, 5
    %v6937 = vsel %vm2675, %v6935, %v6936
    %v6938 = vrot.slane %v6936, 4
    %v6939 = vrot.slane %v6692, 5
    %v6940 = vsel %vm2675, %v6938, %v6939
    %v6941 = vrot.slane %v6693, 5
    %v6942 = vrot.slane %v6941, 4
    %v6943 = vrot.slane %v6694, 5
    %v6944 = vsel %vm2675, %v6942, %v6943
    %v6945 = vrot.slane %v6943, 4
    %v6946 = vrot.slane %v6695, 5
    %v6947 = vsel %vm2675, %v6945, %v6946
    %v6948 = vrot.slane %v6696, 5
    %v6949 = vrot.slane %v6948, 4
    %v6950 = vrot.slane %v6697, 5
    %v6951 = vsel %vm2675, %v6949, %v6950
    %v6952 = vrot.slane %v6950, 4
    %v6953 = vrot.slane %v6698, 5
    %v6954 = vsel %vm2675, %v6952, %v6953
    %v6955 = vrot.slane %v6699, 5
    %v6956 = vrot.slane %v6955, 4
    %v6957 = vrot.slane %v6700, 5
    %v6958 = vsel %vm2675, %v6956, %v6957
    %v6959 = vrot.slane %v6957, 4
    %v6960 = vrot.slane %v6701, 5
    %v6961 = vsel %vm2675, %v6959, %v6960
    %v6962 = vrot.slane %v6702, 5
    %v6963 = vrot.slane %v6962, 4
    %v6964 = vrot.slane %v6703, 5
    %v6965 = vsel %vm2675, %v6963, %v6964
    %v6966 = vrot.slane %v6964, 4
    %v6967 = vrot.slane %v6704, 5
    %v6968 = vsel %vm2675, %v6966, %v6967
    %v6969 = vrot.slane %v6705, 5
    %v6970 = vrot.slane %v6969, 4
    %v6971 = vrot.slane %v6706, 5
    %v6972 = vsel %vm2675, %v6970, %v6971
    %v6973 = vrot.slane %v6971, 4
    %v6974 = vrot.slane %v6707, 5
    %v6975 = vsel %vm2675, %v6973, %v6974
    %v6976 = vrot.slane %v6708, 5
    %v6977 = vrot.slane %v6976, 4
    %v6978 = vrot.slane %v6709, 5
    %v6979 = vsel %vm2675, %v6977, %v6978
    %v6980 = vrot.slane %v6978, 4
    %v6981 = vrot.slane %v6710, 5
    %v6982 = vsel %vm2675, %v6980, %v6981
    %v6983 = vrot.slane %v6711, 5
    %v6984 = vrot.slane %v6983, 4
    %v6985 = vrot.slane %v6712, 5
    %v6986 = vsel %vm2675, %v6984, %v6985
    %v6987 = vrot.slane %v6985, 4
    %v6988 = vrot.slane %v6713, 5
    %v6989 = vsel %vm2675, %v6987, %v6988
    %v6990 = vrot.slane %v6714, 5
    %v6991 = vrot.slane %v6990, 4
    %v6992 = vrot.slane %v6715, 5
    %v6993 = vsel %vm2675, %v6991, %v6992
    %v6994 = vrot.slane %v6992, 4
    %v6995 = vrot.slane %v6716, 5
    %v6996 = vsel %vm2675, %v6994, %v6995
    %v6997 = vrot.slane %v6717, 5
    %v6998 = vrot.slane %v6997, 4
    %v6999 = vrot.slane %v6718, 5
    %v7000 = vsel %vm2675, %v6998, %v6999
    %v7001 = vrot.slane %v6999, 4
    %v7002 = vrot.slane %v6719, 5
    %v7003 = vsel %vm2675, %v7001, %v7002
    %v7004 = vrot.slane %v6720, 5
    %v7005 = vrot.slane %v7004, 4
    %v7006 = vrot.slane %v6721, 5
    %v7007 = vsel %vm2675, %v7005, %v7006
    %v7008 = vrot.slane %v7006, 4
    %v7009 = vrot.slane %v6722, 5
    %v7010 = vsel %vm2675, %v7008, %v7009
    %v7011 = vrot.slane %v6723, 5
    %v7012 = vrot.slane %v7011, 4
    %v7013 = vrot.slane %v6724, 5
    %v7014 = vsel %vm2675, %v7012, %v7013
    %v7015 = vrot.slane %v7013, 4
    %v7016 = vrot.slane %v6725, 5
    %v7017 = vsel %vm2675, %v7015, %v7016
    %v7018 = vrot.slane %v6726, 5
    %v7019 = vrot.slane %v7018, 4
    %v7020 = vrot.slane %v6727, 5
    %v7021 = vsel %vm2675, %v7019, %v7020
    %v7022 = vrot.slane %v7020, 4
    %v7023 = vrot.slane %v6728, 5
    %v7024 = vsel %vm2675, %v7022, %v7023
    %v7025 = vrot.slane %v6729, 5
    %v7026 = vrot.slane %v7025, 4
    %v7027 = vrot.slane %v6730, 5
    %v7028 = vsel %vm2675, %v7026, %v7027
    %v7029 = vrot.slane %v7027, 4
    %v7030 = vrot.slane %v6731, 5
    %v7031 = vsel %vm2675, %v7029, %v7030
    %v7032 = vrot.slane %v6732, 5
    %v7033 = vrot.slane %v7032, 4
    %v7034 = vrot.slane %v6733, 5
    %v7035 = vsel %vm2675, %v7033, %v7034
    %v7036 = vrot.slane %v7034, 4
    %v7037 = vrot.slane %v6734, 5
    %v7038 = vsel %vm2675, %v7036, %v7037
    %v7039 = vrot.slane %v6735, 5
    %v7040 = vrot.slane %v7039, 4
    %v7041 = vrot.slane %v6736, 5
    %v7042 = vsel %vm2675, %v7040, %v7041
    %v7043 = vrot.slane %v7041, 4
    %v7044 = vrot.slane %v6737, 5
    %v7045 = vsel %vm2675, %v7043, %v7044
    %v7046 = vrot.slane %v6738, 5
    %v7047 = vrot.slane %v7046, 4
    %v7048 = vrot.slane %v6739, 5
    %v7049 = vsel %vm2675, %v7047, %v7048
    %v7050 = vrot.slane %v7048, 4
    %v7051 = vrot.slane %v6740, 5
    %v7052 = vsel %vm2675, %v7050, %v7051
    %v7053 = vrot.slane %v6741, 5
    %v7054 = vrot.slane %v7053, 4
    %v7055 = vrot.slane %v6742, 5
    %v7056 = vsel %vm2675, %v7054, %v7055
    %v7057 = vrot.slane %v7055, 4
    %v7058 = vrot.slane %v6743, 5
    %v7059 = vsel %vm2675, %v7057, %v7058
    %v7060 = vrot.slane %v6744, 5
    %v7061 = vrot.slane %v7060, 4
    %v7062 = vrot.slane %v6745, 5
    %v7063 = vsel %vm2675, %v7061, %v7062
    %v7064 = vrot.slane %v7062, 4
    %v7065 = vrot.slane %v6746, 5
    %v7066 = vsel %vm2675, %v7064, %v7065
    %v7067 = vunpack.c.l.b16 %v6846
    %v7068 = vunpack.c.l.b16 %v6849
    %v7069 = vunpack.c.l.b16 %v6853
    %v7070 = vunpack.c.l.b16 %v6856
    %v7071 = vunpack.c.l.b16 %v6860
    %v7072 = vunpack.c.l.b16 %v6863
    %v7073 = vunpack.c.l.b16 %v6867
    %v7074 = vunpack.c.l.b16 %v6870
    %v7075 = vunpack.c.l.b16 %v6874
    %v7076 = vunpack.c.l.b16 %v6877
    %v7077 = vunpack.c.l.b16 %v6881
    %v7078 = vunpack.c.l.b16 %v6884
    %v7079 = vunpack.c.l.b16 %v6888
    %v7080 = vunpack.c.l.b16 %v6891
    %v7081 = vunpack.c.l.b16 %v6895
    %v7082 = vunpack.c.l.b16 %v6898
    %v7083 = vunpack.c.l.b16 %v6902
    %v7084 = vunpack.c.l.b16 %v6905
    %v7085 = vunpack.c.l.b16 %v6909
    %v7086 = vunpack.c.l.b16 %v6912
    %v7087 = vunpack.c.l.b16 %v6916
    %v7088 = vunpack.c.l.b16 %v6919
    %v7089 = vunpack.c.l.b16 %v6923
    %v7090 = vunpack.c.l.b16 %v6926
    %v7091 = vunpack.c.l.b16 %v6930
    %v7092 = vunpack.c.l.b16 %v6933
    %v7093 = vunpack.c.l.b16 %v6937
    %v7094 = vunpack.c.l.b16 %v6940
    %v7095 = vunpack.c.l.b16 %v6944
    %v7096 = vunpack.c.l.b16 %v6947
    %v7097 = vunpack.c.l.b16 %v6951
    %v7098 = vunpack.c.l.b16 %v6954
    %v7099 = vunpack.c.l.b16 %v6958
    %v7100 = vunpack.c.l.b16 %v6961
    %v7101 = vunpack.c.l.b16 %v6965
    %v7102 = vunpack.c.l.b16 %v6968
    %v7103 = vunpack.c.l.b16 %v6972
    %v7104 = vunpack.c.l.b16 %v6975
    %v7105 = vunpack.c.l.b16 %v6979
    %v7106 = vunpack.c.l.b16 %v6982
    %v7107 = vunpack.c.l.b16 %v6986
    %v7108 = vunpack.c.l.b16 %v6989
    %v7109 = vunpack.c.l.b16 %v6993
    %v7110 = vunpack.c.l.b16 %v6996
    %v7111 = vunpack.c.l.b16 %v7000
    %v7112 = vunpack.c.l.b16 %v7003
    %v7113 = vunpack.c.l.b16 %v7007
    %v7114 = vunpack.c.l.b16 %v7010
    %v7115 = vunpack.c.l.b16 %v7014
    %v7116 = vunpack.c.l.b16 %v7017
    %v7117 = vunpack.c.l.b16 %v7021
    %v7118 = vunpack.c.l.b16 %v7024
    %v7119 = vunpack.c.l.b16 %v7028
    %v7120 = vunpack.c.l.b16 %v7031
    %v7121 = vunpack.c.l.b16 %v7035
    %v7122 = vunpack.c.l.b16 %v7038
    %v7123 = vunpack.c.l.b16 %v7042
    %v7124 = vunpack.c.l.b16 %v7045
    %v7125 = vunpack.c.l.b16 %v7049
    %v7126 = vunpack.c.l.b16 %v7052
    %v7127 = vunpack.c.l.b16 %v7056
    %v7128 = vunpack.c.l.b16 %v7059
    %v7129 = vunpack.c.l.b16 %v7063
    %v7130 = vunpack.c.l.b16 %v7066
    %v7131 = vpack.c.b16 %v7068, %v7067
    %v7132 = vpack.c.b16 %v7070, %v7069
    %v7133 = vpack.c.b16 %v7072, %v7071
    %v7134 = vpack.c.b16 %v7074, %v7073
    %v7135 = vpack.c.b16 %v7076, %v7075
    %v7136 = vpack.c.b16 %v7078, %v7077
    %v7137 = vpack.c.b16 %v7080, %v7079
    %v7138 = vpack.c.b16 %v7082, %v7081
    %v7139 = vpack.c.b16 %v7084, %v7083
    %v7140 = vpack.c.b16 %v7086, %v7085
    %v7141 = vpack.c.b16 %v7088, %v7087
    %v7142 = vpack.c.b16 %v7090, %v7089
    %v7143 = vpack.c.b16 %v7092, %v7091
    %v7144 = vpack.c.b16 %v7094, %v7093
    %v7145 = vpack.c.b16 %v7096, %v7095
    %v7146 = vpack.c.b16 %v7098, %v7097
    %v7147 = vpack.c.b16 %v7100, %v7099
    %v7148 = vpack.c.b16 %v7102, %v7101
    %v7149 = vpack.c.b16 %v7104, %v7103
    %v7150 = vpack.c.b16 %v7106, %v7105
    %v7151 = vpack.c.b16 %v7108, %v7107
    %v7152 = vpack.c.b16 %v7110, %v7109
    %v7153 = vpack.c.b16 %v7112, %v7111
    %v7154 = vpack.c.b16 %v7114, %v7113
    %v7155 = vpack.c.b16 %v7116, %v7115
    %v7156 = vpack.c.b16 %v7118, %v7117
    %v7157 = vpack.c.b16 %v7120, %v7119
    %v7158 = vpack.c.b16 %v7122, %v7121
    %v7159 = vpack.c.b16 %v7124, %v7123
    %v7160 = vpack.c.b16 %v7126, %v7125
    %v7161 = vpack.c.b16 %v7128, %v7127
    %v7162 = vpack.c.b16 %v7130, %v7129
    %7163 = vrot.lane.b32.xlu0 %v7131, 24
    %v7164 = vpop.permute.xlu0 %7163
    %7165 = vrot.lane.b32.xlu0 %v7132, 24
    %v7166 = vpop.permute.xlu0 %7165
    %7167 = vrot.lane.b32.xlu0 %v7133, 24
    %v7168 = vpop.permute.xlu0 %7167
    %7169 = vrot.lane.b32.xlu0 %v7134, 24
    %v7170 = vpop.permute.xlu0 %7169
    %7171 = vrot.lane.b32.xlu0 %v7135, 24
    %v7172 = vpop.permute.xlu0 %7171
    %7173 = vrot.lane.b32.xlu0 %v7136, 24
    %v7174 = vpop.permute.xlu0 %7173
    %7175 = vrot.lane.b32.xlu0 %v7137, 24
    %v7176 = vpop.permute.xlu0 %7175
    %7177 = vrot.lane.b32.xlu0 %v7138, 24
    %v7178 = vpop.permute.xlu0 %7177
    %7179 = vrot.lane.b32.xlu0 %v7139, 24
    %v7180 = vpop.permute.xlu0 %7179
    %7181 = vrot.lane.b32.xlu0 %v7140, 24
    %v7182 = vpop.permute.xlu0 %7181
    %7183 = vrot.lane.b32.xlu0 %v7141, 24
    %v7184 = vpop.permute.xlu0 %7183
    %7185 = vrot.lane.b32.xlu0 %v7142, 24
    %v7186 = vpop.permute.xlu0 %7185
    %7187 = vrot.lane.b32.xlu0 %v7143, 24
    %v7188 = vpop.permute.xlu0 %7187
    %7189 = vrot.lane.b32.xlu0 %v7144, 24
    %v7190 = vpop.permute.xlu0 %7189
    %7191 = vrot.lane.b32.xlu0 %v7145, 24
    %v7192 = vpop.permute.xlu0 %7191
    %7193 = vrot.lane.b32.xlu0 %v7146, 24
    %v7194 = vpop.permute.xlu0 %7193
    %7195 = vrot.lane.b32.xlu0 %v7147, 24
    %v7196 = vpop.permute.xlu0 %7195
    %7197 = vrot.lane.b32.xlu0 %v7148, 24
    %v7198 = vpop.permute.xlu0 %7197
    %7199 = vrot.lane.b32.xlu0 %v7149, 24
    %v7200 = vpop.permute.xlu0 %7199
    %7201 = vrot.lane.b32.xlu0 %v7150, 24
    %v7202 = vpop.permute.xlu0 %7201
    %7203 = vrot.lane.b32.xlu0 %v7151, 24
    %v7204 = vpop.permute.xlu0 %7203
    %7205 = vrot.lane.b32.xlu0 %v7152, 24
    %v7206 = vpop.permute.xlu0 %7205
    %7207 = vrot.lane.b32.xlu0 %v7153, 24
    %v7208 = vpop.permute.xlu0 %7207
    %7209 = vrot.lane.b32.xlu0 %v7154, 24
    %v7210 = vpop.permute.xlu0 %7209
    %7211 = vrot.lane.b32.xlu0 %v7155, 24
    %v7212 = vpop.permute.xlu0 %7211
    %7213 = vrot.lane.b32.xlu0 %v7156, 24
    %v7214 = vpop.permute.xlu0 %7213
    %7215 = vrot.lane.b32.xlu0 %v7157, 24
    %v7216 = vpop.permute.xlu0 %7215
    %7217 = vrot.lane.b32.xlu0 %v7158, 24
    %v7218 = vpop.permute.xlu0 %7217
    %7219 = vrot.lane.b32.xlu0 %v7159, 24
    %v7220 = vpop.permute.xlu0 %7219
    %7221 = vrot.lane.b32.xlu0 %v7160, 24
    %v7222 = vpop.permute.xlu0 %7221
    %7223 = vrot.lane.b32.xlu0 %v7161, 24
    %v7224 = vpop.permute.xlu0 %7223
    %7225 = vrot.lane.b32.xlu0 %v7162, 24
    %v7226 = vpop.permute.xlu0 %7225
    %vm7259 = vcmask 220352
    %7260 = vst.msk [vmem:[#allocation3] sm:$0xff] %vm7259, %v7164
    %7261 = vst.msk [vmem:[#allocation3 + $0x8] sm:$0xff] %vm7259, %v7166
    %7262 = vst.msk [vmem:[#allocation3 + $0x10] sm:$0xff] %vm7259, %v7168
    %7263 = vst.msk [vmem:[#allocation3 + $0x18] sm:$0xff] %vm7259, %v7170
    %7264 = vst.msk [vmem:[#allocation3 + $0x20] sm:$0xff] %vm7259, %v7172
    %7265 = vst.msk [vmem:[#allocation3 + $0x28] sm:$0xff] %vm7259, %v7174
    %7266 = vst.msk [vmem:[#allocation3 + $0x30] sm:$0xff] %vm7259, %v7176
    %7267 = vst.msk [vmem:[#allocation3 + $0x38] sm:$0xff] %vm7259, %v7178
    %7268 = vst.msk [vmem:[#allocation3 + $0x40] sm:$0xff] %vm7259, %v7180
    %7269 = vst.msk [vmem:[#allocation3 + $0x48] sm:$0xff] %vm7259, %v7182
    %7270 = vst.msk [vmem:[#allocation3 + $0x50] sm:$0xff] %vm7259, %v7184
    %7271 = vst.msk [vmem:[#allocation3 + $0x58] sm:$0xff] %vm7259, %v7186
    %7272 = vst.msk [vmem:[#allocation3 + $0x60] sm:$0xff] %vm7259, %v7188
    %7273 = vst.msk [vmem:[#allocation3 + $0x68] sm:$0xff] %vm7259, %v7190
    %7274 = vst.msk [vmem:[#allocation3 + $0x70] sm:$0xff] %vm7259, %v7192
    %7275 = vst.msk [vmem:[#allocation3 + $0x78] sm:$0xff] %vm7259, %v7194
    %7276 = vst.msk [vmem:[#allocation3 + $0x80] sm:$0xff] %vm7259, %v7196
    %7277 = vst.msk [vmem:[#allocation3 + $0x88] sm:$0xff] %vm7259, %v7198
    %7278 = vst.msk [vmem:[#allocation3 + $0x90] sm:$0xff] %vm7259, %v7200
    %7279 = vst.msk [vmem:[#allocation3 + $0x98] sm:$0xff] %vm7259, %v7202
    %7280 = vst.msk [vmem:[#allocation3 + $0xa0] sm:$0xff] %vm7259, %v7204
    %7281 = vst.msk [vmem:[#allocation3 + $0xa8] sm:$0xff] %vm7259, %v7206
    %7282 = vst.msk [vmem:[#allocation3 + $0xb0] sm:$0xff] %vm7259, %v7208
    %7283 = vst.msk [vmem:[#allocation3 + $0xb8] sm:$0xff] %vm7259, %v7210
    %7284 = vst.msk [vmem:[#allocation3 + $0xc0] sm:$0xff] %vm7259, %v7212
    %7285 = vst.msk [vmem:[#allocation3 + $0xc8] sm:$0xff] %vm7259, %v7214
    %7286 = vst.msk [vmem:[#allocation3 + $0xd0] sm:$0xff] %vm7259, %v7216
    %7287 = vst.msk [vmem:[#allocation3 + $0xd8] sm:$0xff] %vm7259, %v7218
    %7288 = vst.msk [vmem:[#allocation3 + $0xe0] sm:$0xff] %vm7259, %v7220
    %7289 = vst.msk [vmem:[#allocation3 + $0xe8] sm:$0xff] %vm7259, %v7222
    %7290 = vst.msk [vmem:[#allocation3 + $0xf0] sm:$0xff] %vm7259, %v7224
    %7291 = vst.msk [vmem:[#allocation3 + $0xf8] sm:$0xff] %vm7259, %v7226
    %v7292 = vld [vmem:[#allocation3] sm:$0xff]
    %v7293 = vld [vmem:[#allocation3 + $0x8] sm:$0xff]
    %v7294 = vld [vmem:[#allocation3 + $0x10] sm:$0xff]
    %v7295 = vld [vmem:[#allocation3 + $0x18] sm:$0xff]
    %v7296 = vld [vmem:[#allocation3 + $0x20] sm:$0xff]
    %v7297 = vld [vmem:[#allocation3 + $0x28] sm:$0xff]
    %v7298 = vld [vmem:[#allocation3 + $0x30] sm:$0xff]
    %v7299 = vld [vmem:[#allocation3 + $0x38] sm:$0xff]
    %v7300 = vld [vmem:[#allocation3 + $0x40] sm:$0xff]
    %v7301 = vld [vmem:[#allocation3 + $0x48] sm:$0xff]
    %v7302 = vld [vmem:[#allocation3 + $0x50] sm:$0xff]
    %v7303 = vld [vmem:[#allocation3 + $0x58] sm:$0xff]
    %v7304 = vld [vmem:[#allocation3 + $0x60] sm:$0xff]
    %v7305 = vld [vmem:[#allocation3 + $0x68] sm:$0xff]
    %v7306 = vld [vmem:[#allocation3 + $0x70] sm:$0xff]
    %v7307 = vld [vmem:[#allocation3 + $0x78] sm:$0xff]
    %v7308 = vld [vmem:[#allocation3 + $0x80] sm:$0xff]
    %v7309 = vld [vmem:[#allocation3 + $0x88] sm:$0xff]
    %v7310 = vld [vmem:[#allocation3 + $0x90] sm:$0xff]
    %v7311 = vld [vmem:[#allocation3 + $0x98] sm:$0xff]
    %v7312 = vld [vmem:[#allocation3 + $0xa0] sm:$0xff]
    %v7313 = vld [vmem:[#allocation3 + $0xa8] sm:$0xff]
    %v7314 = vld [vmem:[#allocation3 + $0xb0] sm:$0xff]
    %v7315 = vld [vmem:[#allocation3 + $0xb8] sm:$0xff]
    %v7316 = vld [vmem:[#allocation3 + $0xc0] sm:$0xff]
    %v7317 = vld [vmem:[#allocation3 + $0xc8] sm:$0xff]
    %v7318 = vld [vmem:[#allocation3 + $0xd0] sm:$0xff]
    %v7319 = vld [vmem:[#allocation3 + $0xd8] sm:$0xff]
    %v7320 = vld [vmem:[#allocation3 + $0xe0] sm:$0xff]
    %v7321 = vld [vmem:[#allocation3 + $0xe8] sm:$0xff]
    %v7322 = vld [vmem:[#allocation3 + $0xf0] sm:$0xff]
    %v7323 = vld [vmem:[#allocation3 + $0xf8] sm:$0xff]
    %v7324 = vld [vmem:[%s1] sm:$0xf]
    %v7325 = vld [vmem:[%s1 + $0x4] sm:$0xf]
    %v7326 = vld [vmem:[%s1 + $0x8] sm:$0xf]
    %v7327 = vld [vmem:[%s1 + $0xc] sm:$0x3]
    %v7328 = vld [vmem:[%s2] sm:$0x1]
    %v7330 = vlaneseq
    %v7331 = vshrl.u32 %v7330, 7
    %v7332 = vsub.s32 0, %v7331
    %v7333 = vrot.slane %v7328, %v7332
    %v7339 = vunpack.c.l.b16 %v7324
    %v7340 = vunpack.c.l.b16 %v7325
    %v7341 = vunpack.c.l.b16 %v7326
    %v7342 = vunpack.c.l.b16 %v7327
    %v7343 = vpack.c.b16 %v7340, %v7339
    %v7344 = vpack.c.b16 %v7342, %v7341
    %vm7346 = vcmask 220160
    %v7348 = vsel %vm7346, %v7292, 0
    %v7351 = vsel %vm7346, %v7293, 0
    %v7354 = vsel %vm7346, %v7294, 0
    %v7357 = vsel %vm7346, %v7295, 0
    %v7360 = vsel %vm7346, %v7296, 0
    %v7363 = vsel %vm7346, %v7297, 0
    %v7366 = vsel %vm7346, %v7298, 0
    %v7369 = vsel %vm7346, %v7299, 0
    %v7372 = vsel %vm7346, %v7300, 0
    %v7375 = vsel %vm7346, %v7301, 0
    %v7378 = vsel %vm7346, %v7302, 0
    %v7381 = vsel %vm7346, %v7303, 0
    %v7384 = vsel %vm7346, %v7304, 0
    %v7387 = vsel %vm7346, %v7305, 0
    %v7390 = vsel %vm7346, %v7306, 0
    %v7393 = vsel %vm7346, %v7307, 0
    %v7396 = vsel %vm7346, %v7308, 0
    %v7399 = vsel %vm7346, %v7309, 0
    %v7402 = vsel %vm7346, %v7310, 0
    %v7405 = vsel %vm7346, %v7311, 0
    %v7408 = vsel %vm7346, %v7312, 0
    %v7411 = vsel %vm7346, %v7313, 0
    %v7414 = vsel %vm7346, %v7314, 0
    %v7417 = vsel %vm7346, %v7315, 0
    %v7420 = vsel %vm7346, %v7316, 0
    %v7423 = vsel %vm7346, %v7317, 0
    %v7426 = vsel %vm7346, %v7318, 0
    %v7429 = vsel %vm7346, %v7319, 0
    %v7432 = vsel %vm7346, %v7320, 0
    %v7435 = vsel %vm7346, %v7321, 0
    %v7438 = vsel %vm7346, %v7322, 0
    %v7441 = vsel %vm7346, %v7323, 0
    %vm7443 = vcmask 1044480
    %vm7444 = vcmask 1045504
    %v7445 = vsel %vm7443, 4294967295, 65535
    %v7446 = vsel %vm7444, %v7445, 0
    %v7448 = vand.u32 %v7344, %v7446
    %7450 = vmatprep.subr.bf16.mxu0 0
    %7451 = vmatpush1.bf16.msra.mxu0 %v7343
    %7452 = vmatprep.subr.bf16.mxu0 0
    %7453 = vmatpush1.bf16.msra.mxu0 %v7448
    %7454 = vmatprep.subr.bf16.mxu0 0
    %7455 = vmatpush1.bf16.msra.mxu0 0
    %7456 = vmatprep.subr.bf16.mxu0 0
    %7457 = vmatpush1.bf16.msra.mxu0 0
    %7458 = vmatprep.subr.bf16.mxu0 0
    %7459 = vmatpush1.bf16.msra.mxu0 0
    %7460 = vmatprep.subr.bf16.mxu0 0
    %7461 = vmatpush1.bf16.msra.mxu0 0
    %7462 = vmatprep.subr.bf16.mxu0 0
    %7463 = vmatpush1.bf16.msra.mxu0 0
    %7464 = vmatprep.subr.bf16.mxu0 0
    %7465 = vmatpush1.bf16.msra.mxu0 0
    %7466 = vmatprep.subr.bf16.mxu0 0
    %7467 = vmatpush1.bf16.msra.mxu0 0
    %7468 = vmatprep.subr.bf16.mxu0 0
    %7469 = vmatpush1.bf16.msra.mxu0 0
    %7470 = vmatprep.subr.bf16.mxu0 0
    %7471 = vmatpush1.bf16.msra.mxu0 0
    %7472 = vmatprep.subr.bf16.mxu0 0
    %7473 = vmatpush1.bf16.msra.mxu0 0
    %7474 = vmatprep.subr.bf16.mxu0 0
    %7475 = vmatpush1.bf16.msra.mxu0 0
    %7476 = vmatprep.subr.bf16.mxu0 0
    %7477 = vmatpush1.bf16.msra.mxu0 0
    %7478 = vmatprep.subr.bf16.mxu0 0
    %7479 = vmatpush1.bf16.msra.mxu0 0
    %7480 = vmatprep.subr.bf16.mxu0 0
    %7481 = vmatpush1.bf16.msra.mxu0 0
    %7482 = vmatprep.mubr.bf16.mxu0 0
    %7483 = vmatmul.mubr.bf16.gmra.mrb[0].mxu0 %v7348
    %v7484 = vpop.f32.mrb[0].mxu0
    %v7485 = vadd.f32 %v7333, %v7484
    %v7486 = vpop.f32.mrb[0].mxu0
    %v7487 = vpop.f32.mrb[0].mxu0
    %v7488 = vadd.f32 %v7333, %v7487
    %v7489 = vpop.f32.mrb[0].mxu0
    %7490 = vmatprep.mubr.bf16.mxu0 0
    %7491 = vmatmul.mubr.bf16.gmra.mrb[0].mxu0 %v7351
    %v7492 = vpop.f32.mrb[0].mxu0
    %v7493 = vadd.f32 %v7333, %v7492
    %v7494 = vpop.f32.mrb[0].mxu0
    %v7495 = vpop.f32.mrb[0].mxu0
    %v7496 = vadd.f32 %v7333, %v7495
    %v7497 = vpop.f32.mrb[0].mxu0
    %7498 = vmatprep.mubr.bf16.mxu0 0
    %7499 = vmatmul.mubr.bf16.gmra.mrb[0].mxu0 %v7354
    %v7500 = vpop.f32.mrb[0].mxu0
    %v7501 = vadd.f32 %v7333, %v7500
    %v7502 = vpop.f32.mrb[0].mxu0
    %v7503 = vpop.f32.mrb[0].mxu0
    %v7504 = vadd.f32 %v7333, %v7503
    %v7505 = vpop.f32.mrb[0].mxu0
    %7506 = vmatprep.mubr.bf16.mxu0 0
    %7507 = vmatmul.mubr.bf16.gmra.mrb[0].mxu0 %v7357
    %v7508 = vpop.f32.mrb[0].mxu0
    %v7509 = vadd.f32 %v7333, %v7508
    %v7510 = vpop.f32.mrb[0].mxu0
    %v7511 = vpop.f32.mrb[0].mxu0
    %v7512 = vadd.f32 %v7333, %v7511
    %v7513 = vpop.f32.mrb[0].mxu0
    %7514 = vmatprep.mubr.bf16.mxu0 0
    %7515 = vmatmul.mubr.bf16.gmra.mrb[0].mxu0 %v7360
    %v7516 = vpop.f32.mrb[0].mxu0
    %v7517 = vadd.f32 %v7333, %v7516
    %v7518 = vpop.f32.mrb[0].mxu0
    %v7519 = vpop.f32.mrb[0].mxu0
    %v7520 = vadd.f32 %v7333, %v7519
    %v7521 = vpop.f32.mrb[0].mxu0
    %7522 = vmatprep.mubr.bf16.mxu0 0
    %7523 = vmatmul.mubr.bf16.gmra.mrb[0].mxu0 %v7363
    %v7524 = vpop.f32.mrb[0].mxu0
    %v7525 = vadd.f32 %v7333, %v7524
    %v7526 = vpop.f32.mrb[0].mxu0
    %v7527 = vpop.f32.mrb[0].mxu0
    %v7528 = vadd.f32 %v7333, %v7527
    %v7529 = vpop.f32.mrb[0].mxu0
    %7530 = vmatprep.mubr.bf16.mxu0 0
    %7531 = vmatmul.mubr.bf16.gmra.mrb[0].mxu0 %v7366
    %v7532 = vpop.f32.mrb[0].mxu0
    %v7533 = vadd.f32 %v7333, %v7532
    %v7534 = vpop.f32.mrb[0].mxu0
    %v7535 = vpop.f32.mrb[0].mxu0
    %v7536 = vadd.f32 %v7333, %v7535
    %v7537 = vpop.f32.mrb[0].mxu0
    %7538 = vmatprep.mubr.bf16.mxu0 0
    %7539 = vmatmul.mubr.bf16.gmra.mrb[0].mxu0 %v7369
    %v7540 = vpop.f32.mrb[0].mxu0
    %v7541 = vadd.f32 %v7333, %v7540
    %v7542 = vpop.f32.mrb[0].mxu0
    %v7543 = vpop.f32.mrb[0].mxu0
    %v7544 = vadd.f32 %v7333, %v7543
    %v7545 = vpop.f32.mrb[0].mxu0
    %7546 = vmatprep.mubr.bf16.mxu0 0
    %7547 = vmatmul.mubr.bf16.gmra.mrb[0].mxu0 %v7372
    %v7548 = vpop.f32.mrb[0].mxu0
    %v7549 = vadd.f32 %v7333, %v7548
    %v7550 = vpop.f32.mrb[0].mxu0
    %v7551 = vpop.f32.mrb[0].mxu0
    %v7552 = vadd.f32 %v7333, %v7551
    %v7553 = vpop.f32.mrb[0].mxu0
    %7554 = vmatprep.mubr.bf16.mxu0 0
    %7555 = vmatmul.mubr.bf16.gmra.mrb[0].mxu0 %v7375
    %v7556 = vpop.f32.mrb[0].mxu0
    %v7557 = vadd.f32 %v7333, %v7556
    %v7558 = vpop.f32.mrb[0].mxu0
    %v7559 = vpop.f32.mrb[0].mxu0
    %v7560 = vadd.f32 %v7333, %v7559
    %v7561 = vpop.f32.mrb[0].mxu0
    %7562 = vmatprep.mubr.bf16.mxu0 0
    %7563 = vmatmul.mubr.bf16.gmra.mrb[0].mxu0 %v7378
    %v7564 = vpop.f32.mrb[0].mxu0
    %v7565 = vadd.f32 %v7333, %v7564
    %v7566 = vpop.f32.mrb[0].mxu0
    %v7567 = vpop.f32.mrb[0].mxu0
    %v7568 = vadd.f32 %v7333, %v7567
    %v7569 = vpop.f32.mrb[0].mxu0
    %7570 = vmatprep.mubr.bf16.mxu0 0
    %7571 = vmatmul.mubr.bf16.gmra.mrb[0].mxu0 %v7381
    %v7572 = vpop.f32.mrb[0].mxu0
    %v7573 = vadd.f32 %v7333, %v7572
    %v7574 = vpop.f32.mrb[0].mxu0
    %v7575 = vpop.f32.mrb[0].mxu0
    %v7576 = vadd.f32 %v7333, %v7575
    %v7577 = vpop.f32.mrb[0].mxu0
    %7578 = vmatprep.mubr.bf16.mxu0 0
    %7579 = vmatmul.mubr.bf16.gmra.mrb[0].mxu0 %v7384
    %v7580 = vpop.f32.mrb[0].mxu0
    %v7581 = vadd.f32 %v7333, %v7580
    %v7582 = vpop.f32.mrb[0].mxu0
    %v7583 = vpop.f32.mrb[0].mxu0
    %v7584 = vadd.f32 %v7333, %v7583
    %v7585 = vpop.f32.mrb[0].mxu0
    %7586 = vmatprep.mubr.bf16.mxu0 0
    %7587 = vmatmul.mubr.bf16.gmra.mrb[0].mxu0 %v7387
    %v7588 = vpop.f32.mrb[0].mxu0
    %v7589 = vadd.f32 %v7333, %v7588
    %v7590 = vpop.f32.mrb[0].mxu0
    %v7591 = vpop.f32.mrb[0].mxu0
    %v7592 = vadd.f32 %v7333, %v7591
    %v7593 = vpop.f32.mrb[0].mxu0
    %7594 = vmatprep.mubr.bf16.mxu0 0
    %7595 = vmatmul.mubr.bf16.gmra.mrb[0].mxu0 %v7390
    %v7596 = vpop.f32.mrb[0].mxu0
    %v7597 = vadd.f32 %v7333, %v7596
    %v7598 = vpop.f32.mrb[0].mxu0
    %v7599 = vpop.f32.mrb[0].mxu0
    %v7600 = vadd.f32 %v7333, %v7599
    %v7601 = vpop.f32.mrb[0].mxu0
    %7602 = vmatprep.mubr.bf16.mxu0 0
    %7603 = vmatmul.mubr.bf16.gmra.mrb[0].mxu0 %v7393
    %v7604 = vpop.f32.mrb[0].mxu0
    %v7605 = vadd.f32 %v7333, %v7604
    %v7606 = vpop.f32.mrb[0].mxu0
    %v7607 = vpop.f32.mrb[0].mxu0
    %v7608 = vadd.f32 %v7333, %v7607
    %v7609 = vpop.f32.mrb[0].mxu0
    %7610 = vmatprep.mubr.bf16.mxu0 0
    %7611 = vmatmul.mubr.bf16.gmra.mrb[0].mxu0 %v7396
    %v7612 = vpop.f32.mrb[0].mxu0
    %v7613 = vadd.f32 %v7333, %v7612
    %v7614 = vpop.f32.mrb[0].mxu0
    %v7615 = vpop.f32.mrb[0].mxu0
    %v7616 = vadd.f32 %v7333, %v7615
    %v7617 = vpop.f32.mrb[0].mxu0
    %7618 = vmatprep.mubr.bf16.mxu0 0
    %7619 = vmatmul.mubr.bf16.gmra.mrb[0].mxu0 %v7399
    %v7620 = vpop.f32.mrb[0].mxu0
    %v7621 = vadd.f32 %v7333, %v7620
    %v7622 = vpop.f32.mrb[0].mxu0
    %v7623 = vpop.f32.mrb[0].mxu0
    %v7624 = vadd.f32 %v7333, %v7623
    %v7625 = vpop.f32.mrb[0].mxu0
    %7626 = vmatprep.mubr.bf16.mxu0 0
    %7627 = vmatmul.mubr.bf16.gmra.mrb[0].mxu0 %v7402
    %v7628 = vpop.f32.mrb[0].mxu0
    %v7629 = vadd.f32 %v7333, %v7628
    %v7630 = vpop.f32.mrb[0].mxu0
    %v7631 = vpop.f32.mrb[0].mxu0
    %v7632 = vadd.f32 %v7333, %v7631
    %v7633 = vpop.f32.mrb[0].mxu0
    %7634 = vmatprep.mubr.bf16.mxu0 0
    %7635 = vmatmul.mubr.bf16.gmra.mrb[0].mxu0 %v7405
    %v7636 = vpop.f32.mrb[0].mxu0
    %v7637 = vadd.f32 %v7333, %v7636
    %v7638 = vpop.f32.mrb[0].mxu0
    %v7639 = vpop.f32.mrb[0].mxu0
    %v7640 = vadd.f32 %v7333, %v7639
    %v7641 = vpop.f32.mrb[0].mxu0
    %7642 = vmatprep.mubr.bf16.mxu0 0
    %7643 = vmatmul.mubr.bf16.gmra.mrb[0].mxu0 %v7408
    %v7644 = vpop.f32.mrb[0].mxu0
    %v7645 = vadd.f32 %v7333, %v7644
    %v7646 = vpop.f32.mrb[0].mxu0
    %v7647 = vpop.f32.mrb[0].mxu0
    %v7648 = vadd.f32 %v7333, %v7647
    %v7649 = vpop.f32.mrb[0].mxu0
    %7650 = vmatprep.mubr.bf16.mxu0 0
    %7651 = vmatmul.mubr.bf16.gmra.mrb[0].mxu0 %v7411
    %v7652 = vpop.f32.mrb[0].mxu0
    %v7653 = vadd.f32 %v7333, %v7652
    %v7654 = vpop.f32.mrb[0].mxu0
    %v7655 = vpop.f32.mrb[0].mxu0
    %v7656 = vadd.f32 %v7333, %v7655
    %v7657 = vpop.f32.mrb[0].mxu0
    %7658 = vmatprep.mubr.bf16.mxu0 0
    %7659 = vmatmul.mubr.bf16.gmra.mrb[0].mxu0 %v7414
    %v7660 = vpop.f32.mrb[0].mxu0
    %v7661 = vadd.f32 %v7333, %v7660
    %v7662 = vpop.f32.mrb[0].mxu0
    %v7663 = vpop.f32.mrb[0].mxu0
    %v7664 = vadd.f32 %v7333, %v7663
    %v7665 = vpop.f32.mrb[0].mxu0
    %7666 = vmatprep.mubr.bf16.mxu0 0
    %7667 = vmatmul.mubr.bf16.gmra.mrb[0].mxu0 %v7417
    %v7668 = vpop.f32.mrb[0].mxu0
    %v7669 = vadd.f32 %v7333, %v7668
    %v7670 = vpop.f32.mrb[0].mxu0
    %v7671 = vpop.f32.mrb[0].mxu0
    %v7672 = vadd.f32 %v7333, %v7671
    %v7673 = vpop.f32.mrb[0].mxu0
    %7674 = vmatprep.mubr.bf16.mxu0 0
    %7675 = vmatmul.mubr.bf16.gmra.mrb[0].mxu0 %v7420
    %v7676 = vpop.f32.mrb[0].mxu0
    %v7677 = vadd.f32 %v7333, %v7676
    %v7678 = vpop.f32.mrb[0].mxu0
    %v7679 = vpop.f32.mrb[0].mxu0
    %v7680 = vadd.f32 %v7333, %v7679
    %v7681 = vpop.f32.mrb[0].mxu0
    %7682 = vmatprep.mubr.bf16.mxu0 0
    %7683 = vmatmul.mubr.bf16.gmra.mrb[0].mxu0 %v7423
    %v7684 = vpop.f32.mrb[0].mxu0
    %v7685 = vadd.f32 %v7333, %v7684
    %v7686 = vpop.f32.mrb[0].mxu0
    %v7687 = vpop.f32.mrb[0].mxu0
    %v7688 = vadd.f32 %v7333, %v7687
    %v7689 = vpop.f32.mrb[0].mxu0
    %7690 = vmatprep.mubr.bf16.mxu0 0
    %7691 = vmatmul.mubr.bf16.gmra.mrb[0].mxu0 %v7426
    %v7692 = vpop.f32.mrb[0].mxu0
    %v7693 = vadd.f32 %v7333, %v7692
    %v7694 = vpop.f32.mrb[0].mxu0
    %v7695 = vpop.f32.mrb[0].mxu0
    %v7696 = vadd.f32 %v7333, %v7695
    %v7697 = vpop.f32.mrb[0].mxu0
    %7698 = vmatprep.mubr.bf16.mxu0 0
    %7699 = vmatmul.mubr.bf16.gmra.mrb[0].mxu0 %v7429
    %v7700 = vpop.f32.mrb[0].mxu0
    %v7701 = vadd.f32 %v7333, %v7700
    %v7702 = vpop.f32.mrb[0].mxu0
    %v7703 = vpop.f32.mrb[0].mxu0
    %v7704 = vadd.f32 %v7333, %v7703
    %v7705 = vpop.f32.mrb[0].mxu0
    %7706 = vmatprep.mubr.bf16.mxu0 0
    %7707 = vmatmul.mubr.bf16.gmra.mrb[0].mxu0 %v7432
    %v7708 = vpop.f32.mrb[0].mxu0
    %v7709 = vadd.f32 %v7333, %v7708
    %v7710 = vpop.f32.mrb[0].mxu0
    %v7711 = vpop.f32.mrb[0].mxu0
    %v7712 = vadd.f32 %v7333, %v7711
    %v7713 = vpop.f32.mrb[0].mxu0
    %7714 = vmatprep.mubr.bf16.mxu0 0
    %7715 = vmatmul.mubr.bf16.gmra.mrb[0].mxu0 %v7435
    %v7716 = vpop.f32.mrb[0].mxu0
    %v7717 = vadd.f32 %v7333, %v7716
    %v7718 = vpop.f32.mrb[0].mxu0
    %v7719 = vpop.f32.mrb[0].mxu0
    %v7720 = vadd.f32 %v7333, %v7719
    %v7721 = vpop.f32.mrb[0].mxu0
    %7722 = vmatprep.mubr.bf16.mxu0 0
    %7723 = vmatmul.mubr.bf16.gmra.mrb[0].mxu0 %v7438
    %v7724 = vpop.f32.mrb[0].mxu0
    %v7725 = vadd.f32 %v7333, %v7724
    %v7726 = vpop.f32.mrb[0].mxu0
    %v7727 = vpop.f32.mrb[0].mxu0
    %v7728 = vadd.f32 %v7333, %v7727
    %v7729 = vpop.f32.mrb[0].mxu0
    %7730 = vmatprep.mubr.bf16.mxu0 0
    %7731 = vmatmul.mubr.bf16.gmra.mrb[0].mxu0 %v7441
    %v7732 = vpop.f32.mrb[0].mxu0
    %v7733 = vadd.f32 %v7333, %v7732
    %v7734 = vpop.f32.mrb[0].mxu0
    %v7735 = vpop.f32.mrb[0].mxu0
    %v7736 = vadd.f32 %v7333, %v7735
    %v7737 = vpop.f32.mrb[0].mxu0
    %7738 = vdwg.mxu0
    %v7739 = vmax.f32 %v7485, 0.0
    %v7740 = vmax.f32 %v7488, 0.0
    %v7741 = vmax.f32 %v7493, 0.0
    %v7742 = vmax.f32 %v7496, 0.0
    %v7743 = vmax.f32 %v7501, 0.0
    %v7744 = vmax.f32 %v7504, 0.0
    %v7745 = vmax.f32 %v7509, 0.0
    %v7746 = vmax.f32 %v7512, 0.0
    %v7747 = vmax.f32 %v7517, 0.0
    %v7748 = vmax.f32 %v7520, 0.0
    %v7749 = vmax.f32 %v7525, 0.0
    %v7750 = vmax.f32 %v7528, 0.0
    %v7751 = vmax.f32 %v7533, 0.0
    %v7752 = vmax.f32 %v7536, 0.0
    %v7753 = vmax.f32 %v7541, 0.0
    %v7754 = vmax.f32 %v7544, 0.0
    %v7755 = vmax.f32 %v7549, 0.0
    %v7756 = vmax.f32 %v7552, 0.0
    %v7757 = vmax.f32 %v7557, 0.0
    %v7758 = vmax.f32 %v7560, 0.0
    %v7759 = vmax.f32 %v7565, 0.0
    %v7760 = vmax.f32 %v7568, 0.0
    %v7761 = vmax.f32 %v7573, 0.0
    %v7762 = vmax.f32 %v7576, 0.0
    %v7763 = vmax.f32 %v7581, 0.0
    %v7764 = vmax.f32 %v7584, 0.0
    %v7765 = vmax.f32 %v7589, 0.0
    %v7766 = vmax.f32 %v7592, 0.0
    %v7767 = vmax.f32 %v7597, 0.0
    %v7768 = vmax.f32 %v7600, 0.0
    %v7769 = vmax.f32 %v7605, 0.0
    %v7770 = vmax.f32 %v7608, 0.0
    %v7771 = vmax.f32 %v7613, 0.0
    %v7772 = vmax.f32 %v7616, 0.0
    %v7773 = vmax.f32 %v7621, 0.0
    %v7774 = vmax.f32 %v7624, 0.0
    %v7775 = vmax.f32 %v7629, 0.0
    %v7776 = vmax.f32 %v7632, 0.0
    %v7777 = vmax.f32 %v7637, 0.0
    %v7778 = vmax.f32 %v7640, 0.0
    %v7779 = vmax.f32 %v7645, 0.0
    %v7780 = vmax.f32 %v7648, 0.0
    %v7781 = vmax.f32 %v7653, 0.0
    %v7782 = vmax.f32 %v7656, 0.0
    %v7783 = vmax.f32 %v7661, 0.0
    %v7784 = vmax.f32 %v7664, 0.0
    %v7785 = vmax.f32 %v7669, 0.0
    %v7786 = vmax.f32 %v7672, 0.0
    %v7787 = vmax.f32 %v7677, 0.0
    %v7788 = vmax.f32 %v7680, 0.0
    %v7789 = vmax.f32 %v7685, 0.0
    %v7790 = vmax.f32 %v7688, 0.0
    %v7791 = vmax.f32 %v7693, 0.0
    %v7792 = vmax.f32 %v7696, 0.0
    %v7793 = vmax.f32 %v7701, 0.0
    %v7794 = vmax.f32 %v7704, 0.0
    %v7795 = vmax.f32 %v7709, 0.0
    %v7796 = vmax.f32 %v7712, 0.0
    %v7797 = vmax.f32 %v7717, 0.0
    %v7798 = vmax.f32 %v7720, 0.0
    %v7799 = vmax.f32 %v7725, 0.0
    %v7800 = vmax.f32 %v7728, 0.0
    %v7801 = vmax.f32 %v7733, 0.0
    %v7802 = vmax.f32 %v7736, 0.0
    %vm7803 = vcmask 130048
    %7804 = vst.msk [vmem:[#allocation4] sm:$0xff] %vm7803, %v7739
    %7805 = vst.msk [vmem:[#allocation4 + $0x8] sm:$0xff] %vm7803, %v7740
    %7806 = vst.msk [vmem:[#allocation4 + $0x10] sm:$0xff] %vm7803, %v7741
    %7807 = vst.msk [vmem:[#allocation4 + $0x18] sm:$0xff] %vm7803, %v7742
    %7808 = vst.msk [vmem:[#allocation4 + $0x20] sm:$0xff] %vm7803, %v7743
    %7809 = vst.msk [vmem:[#allocation4 + $0x28] sm:$0xff] %vm7803, %v7744
    %7810 = vst.msk [vmem:[#allocation4 + $0x30] sm:$0xff] %vm7803, %v7745
    %7811 = vst.msk [vmem:[#allocation4 + $0x38] sm:$0xff] %vm7803, %v7746
    %7812 = vst.msk [vmem:[#allocation4 + $0x40] sm:$0xff] %vm7803, %v7747
    %7813 = vst.msk [vmem:[#allocation4 + $0x48] sm:$0xff] %vm7803, %v7748
    %7814 = vst.msk [vmem:[#allocation4 + $0x50] sm:$0xff] %vm7803, %v7749
    %7815 = vst.msk [vmem:[#allocation4 + $0x58] sm:$0xff] %vm7803, %v7750
    %7816 = vst.msk [vmem:[#allocation4 + $0x60] sm:$0xff] %vm7803, %v7751
    %7817 = vst.msk [vmem:[#allocation4 + $0x68] sm:$0xff] %vm7803, %v7752
    %7818 = vst.msk [vmem:[#allocation4 + $0x70] sm:$0xff] %vm7803, %v7753
    %7819 = vst.msk [vmem:[#allocation4 + $0x78] sm:$0xff] %vm7803, %v7754
    %7820 = vst.msk [vmem:[#allocation4 + $0x80] sm:$0xff] %vm7803, %v7755
    %7821 = vst.msk [vmem:[#allocation4 + $0x88] sm:$0xff] %vm7803, %v7756
    %7822 = vst.msk [vmem:[#allocation4 + $0x90] sm:$0xff] %vm7803, %v7757
    %7823 = vst.msk [vmem:[#allocation4 + $0x98] sm:$0xff] %vm7803, %v7758
    %7824 = vst.msk [vmem:[#allocation4 + $0xa0] sm:$0xff] %vm7803, %v7759
    %7825 = vst.msk [vmem:[#allocation4 + $0xa8] sm:$0xff] %vm7803, %v7760
    %7826 = vst.msk [vmem:[#allocation4 + $0xb0] sm:$0xff] %vm7803, %v7761
    %7827 = vst.msk [vmem:[#allocation4 + $0xb8] sm:$0xff] %vm7803, %v7762
    %7828 = vst.msk [vmem:[#allocation4 + $0xc0] sm:$0xff] %vm7803, %v7763
    %7829 = vst.msk [vmem:[#allocation4 + $0xc8] sm:$0xff] %vm7803, %v7764
    %7830 = vst.msk [vmem:[#allocation4 + $0xd0] sm:$0xff] %vm7803, %v7765
    %7831 = vst.msk [vmem:[#allocation4 + $0xd8] sm:$0xff] %vm7803, %v7766
    %7832 = vst.msk [vmem:[#allocation4 + $0xe0] sm:$0xff] %vm7803, %v7767
    %7833 = vst.msk [vmem:[#allocation4 + $0xe8] sm:$0xff] %vm7803, %v7768
    %7834 = vst.msk [vmem:[#allocation4 + $0xf0] sm:$0xff] %vm7803, %v7769
    %7835 = vst.msk [vmem:[#allocation4 + $0xf8] sm:$0xff] %vm7803, %v7770
    %7836 = vst.msk [vmem:[#allocation4 + $0x100] sm:$0xff] %vm7803, %v7771
    %7837 = vst.msk [vmem:[#allocation4 + $0x108] sm:$0xff] %vm7803, %v7772
    %7838 = vst.msk [vmem:[#allocation4 + $0x110] sm:$0xff] %vm7803, %v7773
    %7839 = vst.msk [vmem:[#allocation4 + $0x118] sm:$0xff] %vm7803, %v7774
    %7840 = vst.msk [vmem:[#allocation4 + $0x120] sm:$0xff] %vm7803, %v7775
    %7841 = vst.msk [vmem:[#allocation4 + $0x128] sm:$0xff] %vm7803, %v7776
    %7842 = vst.msk [vmem:[#allocation4 + $0x130] sm:$0xff] %vm7803, %v7777
    %7843 = vst.msk [vmem:[#allocation4 + $0x138] sm:$0xff] %vm7803, %v7778
    %7844 = vst.msk [vmem:[#allocation4 + $0x140] sm:$0xff] %vm7803, %v7779
    %7845 = vst.msk [vmem:[#allocation4 + $0x148] sm:$0xff] %vm7803, %v7780
    %7846 = vst.msk [vmem:[#allocation4 + $0x150] sm:$0xff] %vm7803, %v7781
    %7847 = vst.msk [vmem:[#allocation4 + $0x158] sm:$0xff] %vm7803, %v7782
    %7848 = vst.msk [vmem:[#allocation4 + $0x160] sm:$0xff] %vm7803, %v7783
    %7849 = vst.msk [vmem:[#allocation4 + $0x168] sm:$0xff] %vm7803, %v7784
    %7850 = vst.msk [vmem:[#allocation4 + $0x170] sm:$0xff] %vm7803, %v7785
    %7851 = vst.msk [vmem:[#allocation4 + $0x178] sm:$0xff] %vm7803, %v7786
    %7852 = vst.msk [vmem:[#allocation4 + $0x180] sm:$0xff] %vm7803, %v7787
    %7853 = vst.msk [vmem:[#allocation4 + $0x188] sm:$0xff] %vm7803, %v7788
    %7854 = vst.msk [vmem:[#allocation4 + $0x190] sm:$0xff] %vm7803, %v7789
    %7855 = vst.msk [vmem:[#allocation4 + $0x198] sm:$0xff] %vm7803, %v7790
    %7856 = vst.msk [vmem:[#allocation4 + $0x1a0] sm:$0xff] %vm7803, %v7791
    %7857 = vst.msk [vmem:[#allocation4 + $0x1a8] sm:$0xff] %vm7803, %v7792
    %7858 = vst.msk [vmem:[#allocation4 + $0x1b0] sm:$0xff] %vm7803, %v7793
    %7859 = vst.msk [vmem:[#allocation4 + $0x1b8] sm:$0xff] %vm7803, %v7794
    %7860 = vst.msk [vmem:[#allocation4 + $0x1c0] sm:$0xff] %vm7803, %v7795
    %7861 = vst.msk [vmem:[#allocation4 + $0x1c8] sm:$0xff] %vm7803, %v7796
    %7862 = vst.msk [vmem:[#allocation4 + $0x1d0] sm:$0xff] %vm7803, %v7797
    %7863 = vst.msk [vmem:[#allocation4 + $0x1d8] sm:$0xff] %vm7803, %v7798
    %7864 = vst.msk [vmem:[#allocation4 + $0x1e0] sm:$0xff] %vm7803, %v7799
    %7865 = vst.msk [vmem:[#allocation4 + $0x1e8] sm:$0xff] %vm7803, %v7800
    %7866 = vst.msk [vmem:[#allocation4 + $0x1f0] sm:$0xff] %vm7803, %v7801
    %7867 = vst.msk [vmem:[#allocation4 + $0x1f8] sm:$0xff] %vm7803, %v7802
    %v7868 = vld [vmem:[#allocation4] ss:$2 sm:$0xff]
    %s7869 = scalar_lea.vmem [#allocation4], 16
    %v7870 = vld [vmem:[%s7869] ss:$2 sm:$0xff]
    %s7871 = scalar_lea.vmem [#allocation4], 32
    %v7872 = vld [vmem:[%s7871] ss:$2 sm:$0xff]
    %s7873 = scalar_lea.vmem [#allocation4], 48
    %v7874 = vld [vmem:[%s7873] ss:$2 sm:$0xff]
    %s7875 = scalar_lea.vmem [#allocation4], 64
    %v7876 = vld [vmem:[%s7875] ss:$2 sm:$0xff]
    %s7877 = scalar_lea.vmem [#allocation4], 80
    %v7878 = vld [vmem:[%s7877] ss:$2 sm:$0xff]
    %s7879 = scalar_lea.vmem [#allocation4], 96
    %v7880 = vld [vmem:[%s7879] ss:$2 sm:$0xff]
    %s7881 = scalar_lea.vmem [#allocation4], 112
    %v7882 = vld [vmem:[%s7881] ss:$2 sm:$0xff]
    %s7883 = scalar_lea.vmem [#allocation4], 128
    %v7884 = vld [vmem:[%s7883] ss:$2 sm:$0xff]
    %s7885 = scalar_lea.vmem [#allocation4], 144
    %v7886 = vld [vmem:[%s7885] ss:$2 sm:$0xff]
    %s7887 = scalar_lea.vmem [#allocation4], 160
    %v7888 = vld [vmem:[%s7887] ss:$2 sm:$0xff]
    %s7889 = scalar_lea.vmem [#allocation4], 176
    %v7890 = vld [vmem:[%s7889] ss:$2 sm:$0xff]
    %s7891 = scalar_lea.vmem [#allocation4], 192
    %v7892 = vld [vmem:[%s7891] ss:$2 sm:$0xff]
    %s7893 = scalar_lea.vmem [#allocation4], 208
    %v7894 = vld [vmem:[%s7893] ss:$2 sm:$0xff]
    %s7895 = scalar_lea.vmem [#allocation4], 224
    %v7896 = vld [vmem:[%s7895] ss:$2 sm:$0xff]
    %s7897 = scalar_lea.vmem [#allocation4], 240
    %v7898 = vld [vmem:[%s7897] ss:$2 sm:$0xff]
    %s7899 = scalar_lea.vmem [#allocation4], 256
    %v7900 = vld [vmem:[%s7899] ss:$2 sm:$0xff]
    %s7901 = scalar_lea.vmem [#allocation4], 272
    %v7902 = vld [vmem:[%s7901] ss:$2 sm:$0xff]
    %s7903 = scalar_lea.vmem [#allocation4], 288
    %v7904 = vld [vmem:[%s7903] ss:$2 sm:$0xff]
    %s7905 = scalar_lea.vmem [#allocation4], 304
    %v7906 = vld [vmem:[%s7905] ss:$2 sm:$0xff]
    %s7907 = scalar_lea.vmem [#allocation4], 320
    %v7908 = vld [vmem:[%s7907] ss:$2 sm:$0xff]
    %s7909 = scalar_lea.vmem [#allocation4], 336
    %v7910 = vld [vmem:[%s7909] ss:$2 sm:$0xff]
    %s7911 = scalar_lea.vmem [#allocation4], 352
    %v7912 = vld [vmem:[%s7911] ss:$2 sm:$0xff]
    %s7913 = scalar_lea.vmem [#allocation4], 368
    %v7914 = vld [vmem:[%s7913] ss:$2 sm:$0xff]
    %s7915 = scalar_lea.vmem [#allocation4], 384
    %v7916 = vld [vmem:[%s7915] ss:$2 sm:$0xff]
    %s7917 = scalar_lea.vmem [#allocation4], 400
    %v7918 = vld [vmem:[%s7917] ss:$2 sm:$0xff]
    %s7919 = scalar_lea.vmem [#allocation4], 416
    %v7920 = vld [vmem:[%s7919] ss:$2 sm:$0xff]
    %s7921 = scalar_lea.vmem [#allocation4], 432
    %v7922 = vld [vmem:[%s7921] ss:$2 sm:$0xff]
    %s7923 = scalar_lea.vmem [#allocation4], 448
    %v7924 = vld [vmem:[%s7923] ss:$2 sm:$0xff]
    %s7925 = scalar_lea.vmem [#allocation4], 464
    %v7926 = vld [vmem:[%s7925] ss:$2 sm:$0xff]
    %s7927 = scalar_lea.vmem [#allocation4], 480
    %v7928 = vld [vmem:[%s7927] ss:$2 sm:$0xff]
    %s7929 = scalar_lea.vmem [#allocation4], 496
    %v7930 = vld [vmem:[%s7929] ss:$2 sm:$0xff]
    %s7931 = scalar_lea.vmem [#allocation4], 1
    %v7932 = vld [vmem:[%s7931] ss:$2 sm:$0xff]
    %s7933 = scalar_lea.vmem [#allocation4], 17
    %v7934 = vld [vmem:[%s7933] ss:$2 sm:$0xff]
    %s7935 = scalar_lea.vmem [#allocation4], 33
    %v7936 = vld [vmem:[%s7935] ss:$2 sm:$0xff]
    %s7937 = scalar_lea.vmem [#allocation4], 49
    %v7938 = vld [vmem:[%s7937] ss:$2 sm:$0xff]
    %s7939 = scalar_lea.vmem [#allocation4], 65
    %v7940 = vld [vmem:[%s7939] ss:$2 sm:$0xff]
    %s7941 = scalar_lea.vmem [#allocation4], 81
    %v7942 = vld [vmem:[%s7941] ss:$2 sm:$0xff]
    %s7943 = scalar_lea.vmem [#allocation4], 97
    %v7944 = vld [vmem:[%s7943] ss:$2 sm:$0xff]
    %s7945 = scalar_lea.vmem [#allocation4], 113
    %v7946 = vld [vmem:[%s7945] ss:$2 sm:$0xff]
    %s7947 = scalar_lea.vmem [#allocation4], 129
    %v7948 = vld [vmem:[%s7947] ss:$2 sm:$0xff]
    %s7949 = scalar_lea.vmem [#allocation4], 145
    %v7950 = vld [vmem:[%s7949] ss:$2 sm:$0xff]
    %s7951 = scalar_lea.vmem [#allocation4], 161
    %v7952 = vld [vmem:[%s7951] ss:$2 sm:$0xff]
    %s7953 = scalar_lea.vmem [#allocation4], 177
    %v7954 = vld [vmem:[%s7953] ss:$2 sm:$0xff]
    %s7955 = scalar_lea.vmem [#allocation4], 193
    %v7956 = vld [vmem:[%s7955] ss:$2 sm:$0xff]
    %s7957 = scalar_lea.vmem [#allocation4], 209
    %v7958 = vld [vmem:[%s7957] ss:$2 sm:$0xff]
    %s7959 = scalar_lea.vmem [#allocation4], 225
    %v7960 = vld [vmem:[%s7959] ss:$2 sm:$0xff]
    %s7961 = scalar_lea.vmem [#allocation4], 241
    %v7962 = vld [vmem:[%s7961] ss:$2 sm:$0xff]
    %s7963 = scalar_lea.vmem [#allocation4], 257
    %v7964 = vld [vmem:[%s7963] ss:$2 sm:$0xff]
    %s7965 = scalar_lea.vmem [#allocation4], 273
    %v7966 = vld [vmem:[%s7965] ss:$2 sm:$0xff]
    %s7967 = scalar_lea.vmem [#allocation4], 289
    %v7968 = vld [vmem:[%s7967] ss:$2 sm:$0xff]
    %s7969 = scalar_lea.vmem [#allocation4], 305
    %v7970 = vld [vmem:[%s7969] ss:$2 sm:$0xff]
    %s7971 = scalar_lea.vmem [#allocation4], 321
    %v7972 = vld [vmem:[%s7971] ss:$2 sm:$0xff]
    %s7973 = scalar_lea.vmem [#allocation4], 337
    %v7974 = vld [vmem:[%s7973] ss:$2 sm:$0xff]
    %s7975 = scalar_lea.vmem [#allocation4], 353
    %v7976 = vld [vmem:[%s7975] ss:$2 sm:$0xff]
    %s7977 = scalar_lea.vmem [#allocation4], 369
    %v7978 = vld [vmem:[%s7977] ss:$2 sm:$0xff]
    %s7979 = scalar_lea.vmem [#allocation4], 385
    %v7980 = vld [vmem:[%s7979] ss:$2 sm:$0xff]
    %s7981 = scalar_lea.vmem [#allocation4], 401
    %v7982 = vld [vmem:[%s7981] ss:$2 sm:$0xff]
    %s7983 = scalar_lea.vmem [#allocation4], 417
    %v7984 = vld [vmem:[%s7983] ss:$2 sm:$0xff]
    %s7985 = scalar_lea.vmem [#allocation4], 433
    %v7986 = vld [vmem:[%s7985] ss:$2 sm:$0xff]
    %s7987 = scalar_lea.vmem [#allocation4], 449
    %v7988 = vld [vmem:[%s7987] ss:$2 sm:$0xff]
    %s7989 = scalar_lea.vmem [#allocation4], 465
    %v7990 = vld [vmem:[%s7989] ss:$2 sm:$0xff]
    %s7991 = scalar_lea.vmem [#allocation4], 481
    %v7992 = vld [vmem:[%s7991] ss:$2 sm:$0xff]
    %s7993 = scalar_lea.vmem [#allocation4], 497
    %v7994 = vld [vmem:[%s7993] ss:$2 sm:$0xff]
    %v7995 = vmax.f32 %v7868, %v7932
    %v7996 = vmax.f32 %v7870, %v7934
    %v7997 = vmax.f32 %v7872, %v7936
    %v7998 = vmax.f32 %v7874, %v7938
    %v7999 = vmax.f32 %v7876, %v7940
    %v8000 = vmax.f32 %v7878, %v7942
    %v8001 = vmax.f32 %v7880, %v7944
    %v8002 = vmax.f32 %v7882, %v7946
    %v8003 = vmax.f32 %v7884, %v7948
    %v8004 = vmax.f32 %v7886, %v7950
    %v8005 = vmax.f32 %v7888, %v7952
    %v8006 = vmax.f32 %v7890, %v7954
    %v8007 = vmax.f32 %v7892, %v7956
    %v8008 = vmax.f32 %v7894, %v7958
    %v8009 = vmax.f32 %v7896, %v7960
    %v8010 = vmax.f32 %v7898, %v7962
    %v8011 = vmax.f32 %v7900, %v7964
    %v8012 = vmax.f32 %v7902, %v7966
    %v8013 = vmax.f32 %v7904, %v7968
    %v8014 = vmax.f32 %v7906, %v7970
    %v8015 = vmax.f32 %v7908, %v7972
    %v8016 = vmax.f32 %v7910, %v7974
    %v8017 = vmax.f32 %v7912, %v7976
    %v8018 = vmax.f32 %v7914, %v7978
    %v8019 = vmax.f32 %v7916, %v7980
    %v8020 = vmax.f32 %v7918, %v7982
    %v8021 = vmax.f32 %v7920, %v7984
    %v8022 = vmax.f32 %v7922, %v7986
    %v8023 = vmax.f32 %v7924, %v7988
    %v8024 = vmax.f32 %v7926, %v7990
    %v8025 = vmax.f32 %v7928, %v7992
    %v8026 = vmax.f32 %v7930, %v7994
    %v8027 = vmax.f32 %v7995, %v7996
    %v8028 = vmax.f32 %v7997, %v7998
    %v8029 = vmax.f32 %v7999, %v8000
    %v8030 = vmax.f32 %v8001, %v8002
    %v8031 = vmax.f32 %v8003, %v8004
    %v8032 = vmax.f32 %v8005, %v8006
    %v8033 = vmax.f32 %v8007, %v8008
    %v8034 = vmax.f32 %v8009, %v8010
    %v8035 = vmax.f32 %v8011, %v8012
    %v8036 = vmax.f32 %v8013, %v8014
    %v8037 = vmax.f32 %v8015, %v8016
    %v8038 = vmax.f32 %v8017, %v8018
    %v8039 = vmax.f32 %v8019, %v8020
    %v8040 = vmax.f32 %v8021, %v8022
    %v8041 = vmax.f32 %v8023, %v8024
    %v8042 = vmax.f32 %v8025, %v8026
    %v8043 = vpack.c.bf16 %v8027, %v8027
    %v8044 = vpack.c.bf16 %v8028, %v8028
    %v8045 = vpack.c.bf16 %v8029, %v8029
    %v8046 = vpack.c.bf16 %v8030, %v8030
    %v8047 = vpack.c.bf16 %v8031, %v8031
    %v8048 = vpack.c.bf16 %v8032, %v8032
    %v8049 = vpack.c.bf16 %v8033, %v8033
    %v8050 = vpack.c.bf16 %v8034, %v8034
    %v8051 = vpack.c.bf16 %v8035, %v8035
    %v8052 = vpack.c.bf16 %v8036, %v8036
    %v8053 = vpack.c.bf16 %v8037, %v8037
    %v8054 = vpack.c.bf16 %v8038, %v8038
    %v8055 = vpack.c.bf16 %v8039, %v8039
    %v8056 = vpack.c.bf16 %v8040, %v8040
    %v8057 = vpack.c.bf16 %v8041, %v8041
    %v8058 = vpack.c.bf16 %v8042, %v8042
    %v8060 = vshrl.u32 %v8043, 16
    %v8062 = vrot.slane %v8060, 7
    %v8063 = vshll.u32 %v8043, 16
    %v8065 = vor.u32 %v8062, %v8063
    %v8067 = vshrl.u32 %v8044, 16
    %v8069 = vrot.slane %v8067, 7
    %v8070 = vshll.u32 %v8044, 16
    %v8072 = vor.u32 %v8069, %v8070
    %v8074 = vshrl.u32 %v8045, 16
    %v8076 = vrot.slane %v8074, 7
    %v8077 = vshll.u32 %v8045, 16
    %v8079 = vor.u32 %v8076, %v8077
    %v8081 = vshrl.u32 %v8046, 16
    %v8083 = vrot.slane %v8081, 7
    %v8084 = vshll.u32 %v8046, 16
    %v8086 = vor.u32 %v8083, %v8084
    %v8088 = vshrl.u32 %v8047, 16
    %v8090 = vrot.slane %v8088, 7
    %v8091 = vshll.u32 %v8047, 16
    %v8093 = vor.u32 %v8090, %v8091
    %v8095 = vshrl.u32 %v8048, 16
    %v8097 = vrot.slane %v8095, 7
    %v8098 = vshll.u32 %v8048, 16
    %v8100 = vor.u32 %v8097, %v8098
    %v8102 = vshrl.u32 %v8049, 16
    %v8104 = vrot.slane %v8102, 7
    %v8105 = vshll.u32 %v8049, 16
    %v8107 = vor.u32 %v8104, %v8105
    %v8109 = vshrl.u32 %v8050, 16
    %v8111 = vrot.slane %v8109, 7
    %v8112 = vshll.u32 %v8050, 16
    %v8114 = vor.u32 %v8111, %v8112
    %v8116 = vshrl.u32 %v8051, 16
    %v8118 = vrot.slane %v8116, 7
    %v8119 = vshll.u32 %v8051, 16
    %v8121 = vor.u32 %v8118, %v8119
    %v8123 = vshrl.u32 %v8052, 16
    %v8125 = vrot.slane %v8123, 7
    %v8126 = vshll.u32 %v8052, 16
    %v8128 = vor.u32 %v8125, %v8126
    %v8130 = vshrl.u32 %v8053, 16
    %v8132 = vrot.slane %v8130, 7
    %v8133 = vshll.u32 %v8053, 16
    %v8135 = vor.u32 %v8132, %v8133
    %v8137 = vshrl.u32 %v8054, 16
    %v8139 = vrot.slane %v8137, 7
    %v8140 = vshll.u32 %v8054, 16
    %v8142 = vor.u32 %v8139, %v8140
    %v8144 = vshrl.u32 %v8055, 16
    %v8146 = vrot.slane %v8144, 7
    %v8147 = vshll.u32 %v8055, 16
    %v8149 = vor.u32 %v8146, %v8147
    %v8151 = vshrl.u32 %v8056, 16
    %v8153 = vrot.slane %v8151, 7
    %v8154 = vshll.u32 %v8056, 16
    %v8156 = vor.u32 %v8153, %v8154
    %v8158 = vshrl.u32 %v8057, 16
    %v8160 = vrot.slane %v8158, 7
    %v8161 = vshll.u32 %v8057, 16
    %v8163 = vor.u32 %v8160, %v8161
    %v8165 = vshrl.u32 %v8058, 16
    %v8167 = vrot.slane %v8165, 7
    %v8168 = vshll.u32 %v8058, 16
    %v8170 = vor.u32 %v8167, %v8168
    %s8187 = scalar_lea.vmem [#allocation5], 8
    %vm8188 = vcmask 126976
    %vm8189 = vsmask.f32 4354
    %vm8190 = vmand %vm8188, %vm8189
    %v8191 = vld [vmem:[%s8187] sm:$0x1f]
    %v8192 = vsel %vm8190, %v8065, %v8191
    %8193 = vst [vmem:[%s8187] sm:$0x1f] %v8192
    %v8194 = vld [vmem:[%s8187 + $0x8] sm:$0x1f]
    %v8195 = vsel %vm8190, %v8072, %v8194
    %8196 = vst [vmem:[%s8187 + $0x8] sm:$0x1f] %v8195
    %v8197 = vld [vmem:[%s8187 + $0x10] sm:$0x1f]
    %v8198 = vsel %vm8190, %v8079, %v8197
    %8199 = vst [vmem:[%s8187 + $0x10] sm:$0x1f] %v8198
    %v8200 = vld [vmem:[%s8187 + $0x18] sm:$0x1f]
    %v8201 = vsel %vm8190, %v8086, %v8200
    %8202 = vst [vmem:[%s8187 + $0x18] sm:$0x1f] %v8201
    %v8203 = vld [vmem:[%s8187 + $0x20] sm:$0x1f]
    %v8204 = vsel %vm8190, %v8093, %v8203
    %8205 = vst [vmem:[%s8187 + $0x20] sm:$0x1f] %v8204
    %v8206 = vld [vmem:[%s8187 + $0x28] sm:$0x1f]
    %v8207 = vsel %vm8190, %v8100, %v8206
    %8208 = vst [vmem:[%s8187 + $0x28] sm:$0x1f] %v8207
    %v8209 = vld [vmem:[%s8187 + $0x30] sm:$0x1f]
    %v8210 = vsel %vm8190, %v8107, %v8209
    %8211 = vst [vmem:[%s8187 + $0x30] sm:$0x1f] %v8210
    %v8212 = vld [vmem:[%s8187 + $0x38] sm:$0x1f]
    %v8213 = vsel %vm8190, %v8114, %v8212
    %8214 = vst [vmem:[%s8187 + $0x38] sm:$0x1f] %v8213
    %v8215 = vld [vmem:[%s8187 + $0x50] sm:$0x1f]
    %v8216 = vsel %vm8190, %v8121, %v8215
    %8217 = vst [vmem:[%s8187 + $0x50] sm:$0x1f] %v8216
    %v8218 = vld [vmem:[%s8187 + $0x58] sm:$0x1f]
    %v8219 = vsel %vm8190, %v8128, %v8218
    %8220 = vst [vmem:[%s8187 + $0x58] sm:$0x1f] %v8219
    %v8221 = vld [vmem:[%s8187 + $0x60] sm:$0x1f]
    %v8222 = vsel %vm8190, %v8135, %v8221
    %8223 = vst [vmem:[%s8187 + $0x60] sm:$0x1f] %v8222
    %v8224 = vld [vmem:[%s8187 + $0x68] sm:$0x1f]
    %v8225 = vsel %vm8190, %v8142, %v8224
    %8226 = vst [vmem:[%s8187 + $0x68] sm:$0x1f] %v8225
    %v8227 = vld [vmem:[%s8187 + $0x70] sm:$0x1f]
    %v8228 = vsel %vm8190, %v8149, %v8227
    %8229 = vst [vmem:[%s8187 + $0x70] sm:$0x1f] %v8228
    %v8230 = vld [vmem:[%s8187 + $0x78] sm:$0x1f]
    %v8231 = vsel %vm8190, %v8156, %v8230
    %8232 = vst [vmem:[%s8187 + $0x78] sm:$0x1f] %v8231
    %v8233 = vld [vmem:[%s8187 + $0x80] sm:$0x1f]
    %v8234 = vsel %vm8190, %v8163, %v8233
    %8235 = vst [vmem:[%s8187 + $0x80] sm:$0x1f] %v8234
    %v8236 = vld [vmem:[%s8187 + $0x88] sm:$0x1f]
    %v8237 = vsel %vm8190, %v8170, %v8236
    %8238 = vst [vmem:[%s8187 + $0x88] sm:$0x1f] %v8237
    %v8239 = vld [vmem:[#allocation5] sm:$0xf]
    %v8240 = vld [vmem:[#allocation5 + $0x8] sm:$0xf]
    %v8241 = vld [vmem:[#allocation5 + $0x10] sm:$0xf]
    %v8242 = vld [vmem:[#allocation5 + $0x18] sm:$0xf]
    %v8243 = vld [vmem:[#allocation5 + $0x20] sm:$0xf]
    %v8244 = vld [vmem:[#allocation5 + $0x28] sm:$0xf]
    %v8245 = vld [vmem:[#allocation5 + $0x30] sm:$0xf]
    %v8246 = vld [vmem:[#allocation5 + $0x38] sm:$0xf]
    %v8247 = vld [vmem:[#allocation5 + $0x50] sm:$0xf]
    %v8248 = vld [vmem:[#allocation5 + $0x58] sm:$0xf]
    %v8249 = vld [vmem:[#allocation5 + $0x60] sm:$0xf]
    %v8250 = vld [vmem:[#allocation5 + $0x68] sm:$0xf]
    %v8251 = vld [vmem:[#allocation5 + $0x70] sm:$0xf]
    %v8252 = vld [vmem:[#allocation5 + $0x78] sm:$0xf]
    %v8253 = vld [vmem:[#allocation5 + $0x80] sm:$0xf]
    %v8254 = vld [vmem:[#allocation5 + $0x88] sm:$0xf]
    %v8271 = vunpack.c.l.b16 %v8239
    %v8272 = vunpack.c.l.b16 %v8240
    %v8273 = vunpack.c.l.b16 %v8241
    %v8274 = vunpack.c.l.b16 %v8242
    %v8275 = vunpack.c.l.b16 %v8243
    %v8276 = vunpack.c.l.b16 %v8244
    %v8277 = vunpack.c.l.b16 %v8245
    %v8278 = vunpack.c.l.b16 %v8246
    %v8279 = vunpack.c.l.b16 %v8247
    %v8280 = vunpack.c.l.b16 %v8248
    %v8281 = vunpack.c.l.b16 %v8249
    %v8282 = vunpack.c.l.b16 %v8250
    %v8283 = vunpack.c.l.b16 %v8251
    %v8284 = vunpack.c.l.b16 %v8252
    %v8285 = vunpack.c.l.b16 %v8253
    %v8286 = vunpack.c.l.b16 %v8254
    %v8287 = vpack.c.b16 %v8272, %v8271
    %v8288 = vpack.c.b16 %v8274, %v8273
    %v8289 = vpack.c.b16 %v8276, %v8275
    %v8290 = vpack.c.b16 %v8278, %v8277
    %v8291 = vpack.c.b16 %v8280, %v8279
    %v8292 = vpack.c.b16 %v8282, %v8281
    %v8293 = vpack.c.b16 %v8284, %v8283
    %v8294 = vpack.c.b16 %v8286, %v8285
    %8303 = vst.msk [vmem:[#allocation6] sm:$0xff] %vm7803, %v8287
    %8304 = vst.msk [vmem:[#allocation6 + $0x10] sm:$0xff] %vm7803, %v8288
    %8305 = vst.msk [vmem:[#allocation6 + $0x20] sm:$0xff] %vm7803, %v8289
    %8306 = vst.msk [vmem:[#allocation6 + $0x30] sm:$0xff] %vm7803, %v8290
    %8307 = vst.msk [vmem:[#allocation6 + $0x40] sm:$0xff] %vm7803, %v8291
    %8308 = vst.msk [vmem:[#allocation6 + $0x50] sm:$0xff] %vm7803, %v8292
    %8309 = vst.msk [vmem:[#allocation6 + $0x60] sm:$0xff] %vm7803, %v8293
    %8310 = vst.msk [vmem:[#allocation6 + $0x70] sm:$0xff] %vm7803, %v8294
    %v8311 = vld [vmem:[#allocation5] sm:$0x1f]
    %v8312 = vld [vmem:[#allocation5 + $0x8] sm:$0x1f]
    %v8313 = vld [vmem:[#allocation5 + $0x10] sm:$0x1f]
    %v8314 = vld [vmem:[#allocation5 + $0x18] sm:$0x1f]
    %v8315 = vld [vmem:[#allocation5 + $0x20] sm:$0x1f]
    %v8316 = vld [vmem:[#allocation5 + $0x28] sm:$0x1f]
    %v8317 = vld [vmem:[#allocation5 + $0x30] sm:$0x1f]
    %v8318 = vld [vmem:[#allocation5 + $0x38] sm:$0x1f]
    %v8319 = vld [vmem:[#allocation5 + $0x50] sm:$0x1f]
    %v8320 = vld [vmem:[#allocation5 + $0x58] sm:$0x1f]
    %v8321 = vld [vmem:[#allocation5 + $0x60] sm:$0x1f]
    %v8322 = vld [vmem:[#allocation5 + $0x68] sm:$0x1f]
    %v8323 = vld [vmem:[#allocation5 + $0x70] sm:$0x1f]
    %v8324 = vld [vmem:[#allocation5 + $0x78] sm:$0x1f]
    %v8325 = vld [vmem:[#allocation5 + $0x80] sm:$0x1f]
    %v8326 = vld [vmem:[#allocation5 + $0x88] sm:$0x1f]
    %v8343 = vunpack.c.l.b16 %v8311
    %v8344 = vunpack.c.h.b16 %v8311
    %v8345 = vunpack.c.l.b16 %v8312
    %v8346 = vunpack.c.h.b16 %v8312
    %v8347 = vunpack.c.l.b16 %v8313
    %v8348 = vunpack.c.h.b16 %v8313
    %v8349 = vunpack.c.l.b16 %v8314
    %v8350 = vunpack.c.h.b16 %v8314
    %v8351 = vunpack.c.l.b16 %v8315
    %v8352 = vunpack.c.h.b16 %v8315
    %v8353 = vunpack.c.l.b16 %v8316
    %v8354 = vunpack.c.h.b16 %v8316
    %v8355 = vunpack.c.l.b16 %v8317
    %v8356 = vunpack.c.h.b16 %v8317
    %v8357 = vunpack.c.l.b16 %v8318
    %v8358 = vunpack.c.h.b16 %v8318
    %v8359 = vunpack.c.l.b16 %v8319
    %v8360 = vunpack.c.h.b16 %v8319
    %v8361 = vunpack.c.l.b16 %v8320
    %v8362 = vunpack.c.h.b16 %v8320
    %v8363 = vunpack.c.l.b16 %v8321
    %v8364 = vunpack.c.h.b16 %v8321
    %v8365 = vunpack.c.l.b16 %v8322
    %v8366 = vunpack.c.h.b16 %v8322
    %v8367 = vunpack.c.l.b16 %v8323
    %v8368 = vunpack.c.h.b16 %v8323
    %v8369 = vunpack.c.l.b16 %v8324
    %v8370 = vunpack.c.h.b16 %v8324
    %v8371 = vunpack.c.l.b16 %v8325
    %v8372 = vunpack.c.h.b16 %v8325
    %v8373 = vunpack.c.l.b16 %v8326
    %v8374 = vunpack.c.h.b16 %v8326
    %v8375 = vpack.c.b16 %v8343, %v8343
    %v8376 = vpack.c.b16 %v8344, %v8344
    %v8377 = vpack.c.b16 %v8345, %v8345
    %v8378 = vpack.c.b16 %v8346, %v8346
    %v8379 = vpack.c.b16 %v8347, %v8347
    %v8380 = vpack.c.b16 %v8348, %v8348
    %v8381 = vpack.c.b16 %v8349, %v8349
    %v8382 = vpack.c.b16 %v8350, %v8350
    %v8383 = vpack.c.b16 %v8351, %v8351
    %v8384 = vpack.c.b16 %v8352, %v8352
    %v8385 = vpack.c.b16 %v8353, %v8353
    %v8386 = vpack.c.b16 %v8354, %v8354
    %v8387 = vpack.c.b16 %v8355, %v8355
    %v8388 = vpack.c.b16 %v8356, %v8356
    %v8389 = vpack.c.b16 %v8357, %v8357
    %v8390 = vpack.c.b16 %v8358, %v8358
    %v8391 = vpack.c.b16 %v8359, %v8359
    %v8392 = vpack.c.b16 %v8360, %v8360
    %v8393 = vpack.c.b16 %v8361, %v8361
    %v8394 = vpack.c.b16 %v8362, %v8362
    %v8395 = vpack.c.b16 %v8363, %v8363
    %v8396 = vpack.c.b16 %v8364, %v8364
    %v8397 = vpack.c.b16 %v8365, %v8365
    %v8398 = vpack.c.b16 %v8366, %v8366
    %v8399 = vpack.c.b16 %v8367, %v8367
    %v8400 = vpack.c.b16 %v8368, %v8368
    %v8401 = vpack.c.b16 %v8369, %v8369
    %v8402 = vpack.c.b16 %v8370, %v8370
    %v8403 = vpack.c.b16 %v8371, %v8371
    %v8404 = vpack.c.b16 %v8372, %v8372
    %v8405 = vpack.c.b16 %v8373, %v8373
    %v8406 = vpack.c.b16 %v8374, %v8374
    %v8408 = vshrl.u32 %v8375, 16
    %v8410 = vrot.slane %v8408, 4
    %v8411 = vshll.u32 %v8375, 16
    %v8413 = vrot.slane %v8411, 5
    %v8414 = vor.u32 %v8410, %v8413
    %v8415 = vrot.slane %v8414, 4
    %v8417 = vshll.u32 %v8376, 16
    %v8419 = vrot.slane %v8417, 5
    %v8420 = vsel %vm1487, %v8415, %v8419
    %v8422 = vshrl.u32 %v8377, 16
    %v8424 = vrot.slane %v8422, 4
    %v8425 = vshll.u32 %v8377, 16
    %v8427 = vrot.slane %v8425, 5
    %v8428 = vor.u32 %v8424, %v8427
    %v8429 = vrot.slane %v8428, 4
    %v8431 = vshll.u32 %v8378, 16
    %v8433 = vrot.slane %v8431, 5
    %v8434 = vsel %vm1487, %v8429, %v8433
    %v8436 = vshrl.u32 %v8379, 16
    %v8438 = vrot.slane %v8436, 4
    %v8439 = vshll.u32 %v8379, 16
    %v8441 = vrot.slane %v8439, 5
    %v8442 = vor.u32 %v8438, %v8441
    %v8443 = vrot.slane %v8442, 4
    %v8445 = vshll.u32 %v8380, 16
    %v8447 = vrot.slane %v8445, 5
    %v8448 = vsel %vm1487, %v8443, %v8447
    %v8450 = vshrl.u32 %v8381, 16
    %v8452 = vrot.slane %v8450, 4
    %v8453 = vshll.u32 %v8381, 16
    %v8455 = vrot.slane %v8453, 5
    %v8456 = vor.u32 %v8452, %v8455
    %v8457 = vrot.slane %v8456, 4
    %v8459 = vshll.u32 %v8382, 16
    %v8461 = vrot.slane %v8459, 5
    %v8462 = vsel %vm1487, %v8457, %v8461
    %v8464 = vshrl.u32 %v8383, 16
    %v8466 = vrot.slane %v8464, 4
    %v8467 = vshll.u32 %v8383, 16
    %v8469 = vrot.slane %v8467, 5
    %v8470 = vor.u32 %v8466, %v8469
    %v8471 = vrot.slane %v8470, 4
    %v8473 = vshll.u32 %v8384, 16
    %v8475 = vrot.slane %v8473, 5
    %v8476 = vsel %vm1487, %v8471, %v8475
    %v8478 = vshrl.u32 %v8385, 16
    %v8480 = vrot.slane %v8478, 4
    %v8481 = vshll.u32 %v8385, 16
    %v8483 = vrot.slane %v8481, 5
    %v8484 = vor.u32 %v8480, %v8483
    %v8485 = vrot.slane %v8484, 4
    %v8487 = vshll.u32 %v8386, 16
    %v8489 = vrot.slane %v8487, 5
    %v8490 = vsel %vm1487, %v8485, %v8489
    %v8492 = vshrl.u32 %v8387, 16
    %v8494 = vrot.slane %v8492, 4
    %v8495 = vshll.u32 %v8387, 16
    %v8497 = vrot.slane %v8495, 5
    %v8498 = vor.u32 %v8494, %v8497
    %v8499 = vrot.slane %v8498, 4
    %v8501 = vshll.u32 %v8388, 16
    %v8503 = vrot.slane %v8501, 5
    %v8504 = vsel %vm1487, %v8499, %v8503
    %v8506 = vshrl.u32 %v8389, 16
    %v8508 = vrot.slane %v8506, 4
    %v8509 = vshll.u32 %v8389, 16
    %v8511 = vrot.slane %v8509, 5
    %v8512 = vor.u32 %v8508, %v8511
    %v8513 = vrot.slane %v8512, 4
    %v8515 = vshll.u32 %v8390, 16
    %v8517 = vrot.slane %v8515, 5
    %v8518 = vsel %vm1487, %v8513, %v8517
    %v8520 = vshrl.u32 %v8391, 16
    %v8522 = vrot.slane %v8520, 4
    %v8523 = vshll.u32 %v8391, 16
    %v8525 = vrot.slane %v8523, 5
    %v8526 = vor.u32 %v8522, %v8525
    %v8527 = vrot.slane %v8526, 4
    %v8529 = vshll.u32 %v8392, 16
    %v8531 = vrot.slane %v8529, 5
    %v8532 = vsel %vm1487, %v8527, %v8531
    %v8534 = vshrl.u32 %v8393, 16
    %v8536 = vrot.slane %v8534, 4
    %v8537 = vshll.u32 %v8393, 16
    %v8539 = vrot.slane %v8537, 5
    %v8540 = vor.u32 %v8536, %v8539
    %v8541 = vrot.slane %v8540, 4
    %v8543 = vshll.u32 %v8394, 16
    %v8545 = vrot.slane %v8543, 5
    %v8546 = vsel %vm1487, %v8541, %v8545
    %v8548 = vshrl.u32 %v8395, 16
    %v8550 = vrot.slane %v8548, 4
    %v8551 = vshll.u32 %v8395, 16
    %v8553 = vrot.slane %v8551, 5
    %v8554 = vor.u32 %v8550, %v8553
    %v8555 = vrot.slane %v8554, 4
    %v8557 = vshll.u32 %v8396, 16
    %v8559 = vrot.slane %v8557, 5
    %v8560 = vsel %vm1487, %v8555, %v8559
    %v8562 = vshrl.u32 %v8397, 16
    %v8564 = vrot.slane %v8562, 4
    %v8565 = vshll.u32 %v8397, 16
    %v8567 = vrot.slane %v8565, 5
    %v8568 = vor.u32 %v8564, %v8567
    %v8569 = vrot.slane %v8568, 4
    %v8571 = vshll.u32 %v8398, 16
    %v8573 = vrot.slane %v8571, 5
    %v8574 = vsel %vm1487, %v8569, %v8573
    %v8576 = vshrl.u32 %v8399, 16
    %v8578 = vrot.slane %v8576, 4
    %v8579 = vshll.u32 %v8399, 16
    %v8581 = vrot.slane %v8579, 5
    %v8582 = vor.u32 %v8578, %v8581
    %v8583 = vrot.slane %v8582, 4
    %v8585 = vshll.u32 %v8400, 16
    %v8587 = vrot.slane %v8585, 5
    %v8588 = vsel %vm1487, %v8583, %v8587
    %v8590 = vshrl.u32 %v8401, 16
    %v8592 = vrot.slane %v8590, 4
    %v8593 = vshll.u32 %v8401, 16
    %v8595 = vrot.slane %v8593, 5
    %v8596 = vor.u32 %v8592, %v8595
    %v8597 = vrot.slane %v8596, 4
    %v8599 = vshll.u32 %v8402, 16
    %v8601 = vrot.slane %v8599, 5
    %v8602 = vsel %vm1487, %v8597, %v8601
    %v8604 = vshrl.u32 %v8403, 16
    %v8606 = vrot.slane %v8604, 4
    %v8607 = vshll.u32 %v8403, 16
    %v8609 = vrot.slane %v8607, 5
    %v8610 = vor.u32 %v8606, %v8609
    %v8611 = vrot.slane %v8610, 4
    %v8613 = vshll.u32 %v8404, 16
    %v8615 = vrot.slane %v8613, 5
    %v8616 = vsel %vm1487, %v8611, %v8615
    %v8618 = vshrl.u32 %v8405, 16
    %v8620 = vrot.slane %v8618, 4
    %v8621 = vshll.u32 %v8405, 16
    %v8623 = vrot.slane %v8621, 5
    %v8624 = vor.u32 %v8620, %v8623
    %v8625 = vrot.slane %v8624, 4
    %v8627 = vshll.u32 %v8406, 16
    %v8629 = vrot.slane %v8627, 5
    %v8630 = vsel %vm1487, %v8625, %v8629
    %v8631 = vunpack.c.l.b16 %v8420
    %v8632 = vunpack.c.l.b16 %v8434
    %v8633 = vunpack.c.l.b16 %v8448
    %v8634 = vunpack.c.l.b16 %v8462
    %v8635 = vunpack.c.l.b16 %v8476
    %v8636 = vunpack.c.l.b16 %v8490
    %v8637 = vunpack.c.l.b16 %v8504
    %v8638 = vunpack.c.l.b16 %v8518
    %v8639 = vunpack.c.l.b16 %v8532
    %v8640 = vunpack.c.l.b16 %v8546
    %v8641 = vunpack.c.l.b16 %v8560
    %v8642 = vunpack.c.l.b16 %v8574
    %v8643 = vunpack.c.l.b16 %v8588
    %v8644 = vunpack.c.l.b16 %v8602
    %v8645 = vunpack.c.l.b16 %v8616
    %v8646 = vunpack.c.l.b16 %v8630
    %v8647 = vpack.c.b16 %v8632, %v8631
    %v8648 = vpack.c.b16 %v8634, %v8633
    %v8649 = vpack.c.b16 %v8636, %v8635
    %v8650 = vpack.c.b16 %v8638, %v8637
    %v8651 = vpack.c.b16 %v8640, %v8639
    %v8652 = vpack.c.b16 %v8642, %v8641
    %v8653 = vpack.c.b16 %v8644, %v8643
    %v8654 = vpack.c.b16 %v8646, %v8645
    %8655 = vrot.lane.b32.xlu0 %v8647, 16
    %v8656 = vpop.permute.xlu0 %8655
    %8657 = vrot.lane.b32.xlu0 %v8648, 16
    %v8658 = vpop.permute.xlu0 %8657
    %8659 = vrot.lane.b32.xlu0 %v8649, 16
    %v8660 = vpop.permute.xlu0 %8659
    %8661 = vrot.lane.b32.xlu0 %v8650, 16
    %v8662 = vpop.permute.xlu0 %8661
    %8663 = vrot.lane.b32.xlu0 %v8651, 16
    %v8664 = vpop.permute.xlu0 %8663
    %8665 = vrot.lane.b32.xlu0 %v8652, 16
    %v8666 = vpop.permute.xlu0 %8665
    %8667 = vrot.lane.b32.xlu0 %v8653, 16
    %v8668 = vpop.permute.xlu0 %8667
    %8669 = vrot.lane.b32.xlu0 %v8654, 16
    %v8670 = vpop.permute.xlu0 %8669
    %vm8679 = vcmask 261248
    %8680 = vst.msk [vmem:[#allocation6] sm:$0xff] %vm8679, %v8656
    %8681 = vst.msk [vmem:[#allocation6 + $0x10] sm:$0xff] %vm8679, %v8658
    %8682 = vst.msk [vmem:[#allocation6 + $0x20] sm:$0xff] %vm8679, %v8660
    %8683 = vst.msk [vmem:[#allocation6 + $0x30] sm:$0xff] %vm8679, %v8662
    %8684 = vst.msk [vmem:[#allocation6 + $0x40] sm:$0xff] %vm8679, %v8664
    %8685 = vst.msk [vmem:[#allocation6 + $0x50] sm:$0xff] %vm8679, %v8666
    %8686 = vst.msk [vmem:[#allocation6 + $0x60] sm:$0xff] %vm8679, %v8668
    %8687 = vst.msk [vmem:[#allocation6 + $0x70] sm:$0xff] %vm8679, %v8670
    %v8688 = vld [vmem:[#allocation5] sm:$0x1e]
    %v8689 = vld [vmem:[#allocation5 + $0x8] sm:$0x1e]
    %v8690 = vld [vmem:[#allocation5 + $0x10] sm:$0x1e]
    %v8691 = vld [vmem:[#allocation5 + $0x18] sm:$0x1e]
    %v8692 = vld [vmem:[#allocation5 + $0x20] sm:$0x1e]
    %v8693 = vld [vmem:[#allocation5 + $0x28] sm:$0x1e]
    %v8694 = vld [vmem:[#allocation5 + $0x30] sm:$0x1e]
    %v8695 = vld [vmem:[#allocation5 + $0x38] sm:$0x1e]
    %v8696 = vld [vmem:[#allocation5 + $0x50] sm:$0x1e]
    %v8697 = vld [vmem:[#allocation5 + $0x58] sm:$0x1e]
    %v8698 = vld [vmem:[#allocation5 + $0x60] sm:$0x1e]
    %v8699 = vld [vmem:[#allocation5 + $0x68] sm:$0x1e]
    %v8700 = vld [vmem:[#allocation5 + $0x70] sm:$0x1e]
    %v8701 = vld [vmem:[#allocation5 + $0x78] sm:$0x1e]
    %v8702 = vld [vmem:[#allocation5 + $0x80] sm:$0x1e]
    %v8703 = vld [vmem:[#allocation5 + $0x88] sm:$0x1e]
    %v8720 = vunpack.c.l.b16 %v8688
    %v8721 = vunpack.c.h.b16 %v8688
    %v8722 = vunpack.c.l.b16 %v8689
    %v8723 = vunpack.c.h.b16 %v8689
    %v8724 = vunpack.c.l.b16 %v8690
    %v8725 = vunpack.c.h.b16 %v8690
    %v8726 = vunpack.c.l.b16 %v8691
    %v8727 = vunpack.c.h.b16 %v8691
    %v8728 = vunpack.c.l.b16 %v8692
    %v8729 = vunpack.c.h.b16 %v8692
    %v8730 = vunpack.c.l.b16 %v8693
    %v8731 = vunpack.c.h.b16 %v8693
    %v8732 = vunpack.c.l.b16 %v8694
    %v8733 = vunpack.c.h.b16 %v8694
    %v8734 = vunpack.c.l.b16 %v8695
    %v8735 = vunpack.c.h.b16 %v8695
    %v8736 = vunpack.c.l.b16 %v8696
    %v8737 = vunpack.c.h.b16 %v8696
    %v8738 = vunpack.c.l.b16 %v8697
    %v8739 = vunpack.c.h.b16 %v8697
    %v8740 = vunpack.c.l.b16 %v8698
    %v8741 = vunpack.c.h.b16 %v8698
    %v8742 = vunpack.c.l.b16 %v8699
    %v8743 = vunpack.c.h.b16 %v8699
    %v8744 = vunpack.c.l.b16 %v8700
    %v8745 = vunpack.c.h.b16 %v8700
    %v8746 = vunpack.c.l.b16 %v8701
    %v8747 = vunpack.c.h.b16 %v8701
    %v8748 = vunpack.c.l.b16 %v8702
    %v8749 = vunpack.c.h.b16 %v8702
    %v8750 = vunpack.c.l.b16 %v8703
    %v8751 = vunpack.c.h.b16 %v8703
    %v8752 = vpack.c.b16 %v8720, %v8720
    %v8753 = vpack.c.b16 %v8721, %v8721
    %v8754 = vpack.c.b16 %v8722, %v8722
    %v8755 = vpack.c.b16 %v8723, %v8723
    %v8756 = vpack.c.b16 %v8724, %v8724
    %v8757 = vpack.c.b16 %v8725, %v8725
    %v8758 = vpack.c.b16 %v8726, %v8726
    %v8759 = vpack.c.b16 %v8727, %v8727
    %v8760 = vpack.c.b16 %v8728, %v8728
    %v8761 = vpack.c.b16 %v8729, %v8729
    %v8762 = vpack.c.b16 %v8730, %v8730
    %v8763 = vpack.c.b16 %v8731, %v8731
    %v8764 = vpack.c.b16 %v8732, %v8732
    %v8765 = vpack.c.b16 %v8733, %v8733
    %v8766 = vpack.c.b16 %v8734, %v8734
    %v8767 = vpack.c.b16 %v8735, %v8735
    %v8768 = vpack.c.b16 %v8736, %v8736
    %v8769 = vpack.c.b16 %v8737, %v8737
    %v8770 = vpack.c.b16 %v8738, %v8738
    %v8771 = vpack.c.b16 %v8739, %v8739
    %v8772 = vpack.c.b16 %v8740, %v8740
    %v8773 = vpack.c.b16 %v8741, %v8741
    %v8774 = vpack.c.b16 %v8742, %v8742
    %v8775 = vpack.c.b16 %v8743, %v8743
    %v8776 = vpack.c.b16 %v8744, %v8744
    %v8777 = vpack.c.b16 %v8745, %v8745
    %v8778 = vpack.c.b16 %v8746, %v8746
    %v8779 = vpack.c.b16 %v8747, %v8747
    %v8780 = vpack.c.b16 %v8748, %v8748
    %v8781 = vpack.c.b16 %v8749, %v8749
    %v8782 = vpack.c.b16 %v8750, %v8750
    %v8783 = vpack.c.b16 %v8751, %v8751
    %v8784 = vrot.slane %v8752, 5
    %v8785 = vrot.slane %v8784, 4
    %v8786 = vrot.slane %v8753, 5
    %v8787 = vsel %vm2675, %v8785, %v8786
    %v8788 = vrot.slane %v8754, 5
    %v8789 = vrot.slane %v8788, 4
    %v8790 = vrot.slane %v8755, 5
    %v8791 = vsel %vm2675, %v8789, %v8790
    %v8792 = vrot.slane %v8756, 5
    %v8793 = vrot.slane %v8792, 4
    %v8794 = vrot.slane %v8757, 5
    %v8795 = vsel %vm2675, %v8793, %v8794
    %v8796 = vrot.slane %v8758, 5
    %v8797 = vrot.slane %v8796, 4
    %v8798 = vrot.slane %v8759, 5
    %v8799 = vsel %vm2675, %v8797, %v8798
    %v8800 = vrot.slane %v8760, 5
    %v8801 = vrot.slane %v8800, 4
    %v8802 = vrot.slane %v8761, 5
    %v8803 = vsel %vm2675, %v8801, %v8802
    %v8804 = vrot.slane %v8762, 5
    %v8805 = vrot.slane %v8804, 4
    %v8806 = vrot.slane %v8763, 5
    %v8807 = vsel %vm2675, %v8805, %v8806
    %v8808 = vrot.slane %v8764, 5
    %v8809 = vrot.slane %v8808, 4
    %v8810 = vrot.slane %v8765, 5
    %v8811 = vsel %vm2675, %v8809, %v8810
    %v8812 = vrot.slane %v8766, 5
    %v8813 = vrot.slane %v8812, 4
    %v8814 = vrot.slane %v8767, 5
    %v8815 = vsel %vm2675, %v8813, %v8814
    %v8816 = vrot.slane %v8768, 5
    %v8817 = vrot.slane %v8816, 4
    %v8818 = vrot.slane %v8769, 5
    %v8819 = vsel %vm2675, %v8817, %v8818
    %v8820 = vrot.slane %v8770, 5
    %v8821 = vrot.slane %v8820, 4
    %v8822 = vrot.slane %v8771, 5
    %v8823 = vsel %vm2675, %v8821, %v8822
    %v8824 = vrot.slane %v8772, 5
    %v8825 = vrot.slane %v8824, 4
    %v8826 = vrot.slane %v8773, 5
    %v8827 = vsel %vm2675, %v8825, %v8826
    %v8828 = vrot.slane %v8774, 5
    %v8829 = vrot.slane %v8828, 4
    %v8830 = vrot.slane %v8775, 5
    %v8831 = vsel %vm2675, %v8829, %v8830
    %v8832 = vrot.slane %v8776, 5
    %v8833 = vrot.slane %v8832, 4
    %v8834 = vrot.slane %v8777, 5
    %v8835 = vsel %vm2675, %v8833, %v8834
    %v8836 = vrot.slane %v8778, 5
    %v8837 = vrot.slane %v8836, 4
    %v8838 = vrot.slane %v8779, 5
    %v8839 = vsel %vm2675, %v8837, %v8838
    %v8840 = vrot.slane %v8780, 5
    %v8841 = vrot.slane %v8840, 4
    %v8842 = vrot.slane %v8781, 5
    %v8843 = vsel %vm2675, %v8841, %v8842
    %v8844 = vrot.slane %v8782, 5
    %v8845 = vrot.slane %v8844, 4
    %v8846 = vrot.slane %v8783, 5
    %v8847 = vsel %vm2675, %v8845, %v8846
    %v8848 = vunpack.c.l.b16 %v8787
    %v8849 = vunpack.c.l.b16 %v8791
    %v8850 = vunpack.c.l.b16 %v8795
    %v8851 = vunpack.c.l.b16 %v8799
    %v8852 = vunpack.c.l.b16 %v8803
    %v8853 = vunpack.c.l.b16 %v8807
    %v8854 = vunpack.c.l.b16 %v8811
    %v8855 = vunpack.c.l.b16 %v8815
    %v8856 = vunpack.c.l.b16 %v8819
    %v8857 = vunpack.c.l.b16 %v8823
    %v8858 = vunpack.c.l.b16 %v8827
    %v8859 = vunpack.c.l.b16 %v8831
    %v8860 = vunpack.c.l.b16 %v8835
    %v8861 = vunpack.c.l.b16 %v8839
    %v8862 = vunpack.c.l.b16 %v8843
    %v8863 = vunpack.c.l.b16 %v8847
    %v8864 = vpack.c.b16 %v8849, %v8848
    %v8865 = vpack.c.b16 %v8851, %v8850
    %v8866 = vpack.c.b16 %v8853, %v8852
    %v8867 = vpack.c.b16 %v8855, %v8854
    %v8868 = vpack.c.b16 %v8857, %v8856
    %v8869 = vpack.c.b16 %v8859, %v8858
    %v8870 = vpack.c.b16 %v8861, %v8860
    %v8871 = vpack.c.b16 %v8863, %v8862
    %8872 = vrot.lane.b32.xlu0 %v8864, 32
    %v8873 = vpop.permute.xlu0 %8872
    %8874 = vrot.lane.b32.xlu0 %v8865, 32
    %v8875 = vpop.permute.xlu0 %8874
    %8876 = vrot.lane.b32.xlu0 %v8866, 32
    %v8877 = vpop.permute.xlu0 %8876
    %8878 = vrot.lane.b32.xlu0 %v8867, 32
    %v8879 = vpop.permute.xlu0 %8878
    %8880 = vrot.lane.b32.xlu0 %v8868, 32
    %v8881 = vpop.permute.xlu0 %8880
    %8882 = vrot.lane.b32.xlu0 %v8869, 32
    %v8883 = vpop.permute.xlu0 %8882
    %8884 = vrot.lane.b32.xlu0 %v8870, 32
    %v8885 = vpop.permute.xlu0 %8884
    %8886 = vrot.lane.b32.xlu0 %v8871, 32
    %v8887 = vpop.permute.xlu0 %8886
    %vm8896 = vcmask 392448
    %8897 = vst.msk [vmem:[#allocation6] sm:$0xff] %vm8896, %v8873
    %8898 = vst.msk [vmem:[#allocation6 + $0x10] sm:$0xff] %vm8896, %v8875
    %8899 = vst.msk [vmem:[#allocation6 + $0x20] sm:$0xff] %vm8896, %v8877
    %8900 = vst.msk [vmem:[#allocation6 + $0x30] sm:$0xff] %vm8896, %v8879
    %8901 = vst.msk [vmem:[#allocation6 + $0x40] sm:$0xff] %vm8896, %v8881
    %8902 = vst.msk [vmem:[#allocation6 + $0x50] sm:$0xff] %vm8896, %v8883
    %8903 = vst.msk [vmem:[#allocation6 + $0x60] sm:$0xff] %vm8896, %v8885
    %8904 = vst.msk [vmem:[#allocation6 + $0x70] sm:$0xff] %vm8896, %v8887
    %v8905 = vld [vmem:[%s8187] sm:$0xf]
    %v8906 = vld [vmem:[%s8187 + $0x8] sm:$0xf]
    %v8907 = vld [vmem:[%s8187 + $0x10] sm:$0xf]
    %v8908 = vld [vmem:[%s8187 + $0x18] sm:$0xf]
    %v8909 = vld [vmem:[%s8187 + $0x20] sm:$0xf]
    %v8910 = vld [vmem:[%s8187 + $0x28] sm:$0xf]
    %v8911 = vld [vmem:[%s8187 + $0x30] sm:$0xf]
    %v8912 = vld [vmem:[%s8187 + $0x38] sm:$0xf]
    %v8913 = vld [vmem:[%s8187 + $0x50] sm:$0xf]
    %v8914 = vld [vmem:[%s8187 + $0x58] sm:$0xf]
    %v8915 = vld [vmem:[%s8187 + $0x60] sm:$0xf]
    %v8916 = vld [vmem:[%s8187 + $0x68] sm:$0xf]
    %v8917 = vld [vmem:[%s8187 + $0x70] sm:$0xf]
    %v8918 = vld [vmem:[%s8187 + $0x78] sm:$0xf]
    %v8919 = vld [vmem:[%s8187 + $0x80] sm:$0xf]
    %v8920 = vld [vmem:[%s8187 + $0x88] sm:$0xf]
    %v8937 = vunpack.c.l.b16 %v8905
    %v8938 = vunpack.c.l.b16 %v8906
    %v8939 = vunpack.c.l.b16 %v8907
    %v8940 = vunpack.c.l.b16 %v8908
    %v8941 = vunpack.c.l.b16 %v8909
    %v8942 = vunpack.c.l.b16 %v8910
    %v8943 = vunpack.c.l.b16 %v8911
    %v8944 = vunpack.c.l.b16 %v8912
    %v8945 = vunpack.c.l.b16 %v8913
    %v8946 = vunpack.c.l.b16 %v8914
    %v8947 = vunpack.c.l.b16 %v8915
    %v8948 = vunpack.c.l.b16 %v8916
    %v8949 = vunpack.c.l.b16 %v8917
    %v8950 = vunpack.c.l.b16 %v8918
    %v8951 = vunpack.c.l.b16 %v8919
    %v8952 = vunpack.c.l.b16 %v8920
    %v8953 = vpack.c.b16 %v8938, %v8937
    %v8954 = vpack.c.b16 %v8940, %v8939
    %v8955 = vpack.c.b16 %v8942, %v8941
    %v8956 = vpack.c.b16 %v8944, %v8943
    %v8957 = vpack.c.b16 %v8946, %v8945
    %v8958 = vpack.c.b16 %v8948, %v8947
    %v8959 = vpack.c.b16 %v8950, %v8949
    %v8960 = vpack.c.b16 %v8952, %v8951
    %8961 = vrot.lane.b32.xlu0 %v8953, 48
    %v8962 = vpop.permute.xlu0 %8961
    %8963 = vrot.lane.b32.xlu0 %v8954, 48
    %v8964 = vpop.permute.xlu0 %8963
    %8965 = vrot.lane.b32.xlu0 %v8955, 48
    %v8966 = vpop.permute.xlu0 %8965
    %8967 = vrot.lane.b32.xlu0 %v8956, 48
    %v8968 = vpop.permute.xlu0 %8967
    %8969 = vrot.lane.b32.xlu0 %v8957, 48
    %v8970 = vpop.permute.xlu0 %8969
    %8971 = vrot.lane.b32.xlu0 %v8958, 48
    %v8972 = vpop.permute.xlu0 %8971
    %8973 = vrot.lane.b32.xlu0 %v8959, 48
    %v8974 = vpop.permute.xlu0 %8973
    %8975 = vrot.lane.b32.xlu0 %v8960, 48
    %v8976 = vpop.permute.xlu0 %8975
    %vm8985 = vcmask 523648
    %8986 = vst.msk [vmem:[#allocation6] sm:$0xff] %vm8985, %v8962
    %8987 = vst.msk [vmem:[#allocation6 + $0x10] sm:$0xff] %vm8985, %v8964
    %8988 = vst.msk [vmem:[#allocation6 + $0x20] sm:$0xff] %vm8985, %v8966
    %8989 = vst.msk [vmem:[#allocation6 + $0x30] sm:$0xff] %vm8985, %v8968
    %8990 = vst.msk [vmem:[#allocation6 + $0x40] sm:$0xff] %vm8985, %v8970
    %8991 = vst.msk [vmem:[#allocation6 + $0x50] sm:$0xff] %vm8985, %v8972
    %8992 = vst.msk [vmem:[#allocation6 + $0x60] sm:$0xff] %vm8985, %v8974
    %8993 = vst.msk [vmem:[#allocation6 + $0x70] sm:$0xff] %vm8985, %v8976
    %v8994 = vld [vmem:[%s8187] sm:$0x1f]
    %v8995 = vld [vmem:[%s8187 + $0x8] sm:$0x1f]
    %v8996 = vld [vmem:[%s8187 + $0x10] sm:$0x1f]
    %v8997 = vld [vmem:[%s8187 + $0x18] sm:$0x1f]
    %v8998 = vld [vmem:[%s8187 + $0x20] sm:$0x1f]
    %v8999 = vld [vmem:[%s8187 + $0x28] sm:$0x1f]
    %v9000 = vld [vmem:[%s8187 + $0x30] sm:$0x1f]
    %v9001 = vld [vmem:[%s8187 + $0x38] sm:$0x1f]
    %v9002 = vld [vmem:[%s8187 + $0x50] sm:$0x1f]
    %v9003 = vld [vmem:[%s8187 + $0x58] sm:$0x1f]
    %v9004 = vld [vmem:[%s8187 + $0x60] sm:$0x1f]
    %v9005 = vld [vmem:[%s8187 + $0x68] sm:$0x1f]
    %v9006 = vld [vmem:[%s8187 + $0x70] sm:$0x1f]
    %v9007 = vld [vmem:[%s8187 + $0x78] sm:$0x1f]
    %v9008 = vld [vmem:[%s8187 + $0x80] sm:$0x1f]
    %v9009 = vld [vmem:[%s8187 + $0x88] sm:$0x1f]
    %v9026 = vunpack.c.l.b16 %v8994
    %v9027 = vunpack.c.h.b16 %v8994
    %v9028 = vunpack.c.l.b16 %v8995
    %v9029 = vunpack.c.h.b16 %v8995
    %v9030 = vunpack.c.l.b16 %v8996
    %v9031 = vunpack.c.h.b16 %v8996
    %v9032 = vunpack.c.l.b16 %v8997
    %v9033 = vunpack.c.h.b16 %v8997
    %v9034 = vunpack.c.l.b16 %v8998
    %v9035 = vunpack.c.h.b16 %v8998
    %v9036 = vunpack.c.l.b16 %v8999
    %v9037 = vunpack.c.h.b16 %v8999
    %v9038 = vunpack.c.l.b16 %v9000
    %v9039 = vunpack.c.h.b16 %v9000
    %v9040 = vunpack.c.l.b16 %v9001
    %v9041 = vunpack.c.h.b16 %v9001
    %v9042 = vunpack.c.l.b16 %v9002
    %v9043 = vunpack.c.h.b16 %v9002
    %v9044 = vunpack.c.l.b16 %v9003
    %v9045 = vunpack.c.h.b16 %v9003
    %v9046 = vunpack.c.l.b16 %v9004
    %v9047 = vunpack.c.h.b16 %v9004
    %v9048 = vunpack.c.l.b16 %v9005
    %v9049 = vunpack.c.h.b16 %v9005
    %v9050 = vunpack.c.l.b16 %v9006
    %v9051 = vunpack.c.h.b16 %v9006
    %v9052 = vunpack.c.l.b16 %v9007
    %v9053 = vunpack.c.h.b16 %v9007
    %v9054 = vunpack.c.l.b16 %v9008
    %v9055 = vunpack.c.h.b16 %v9008
    %v9056 = vunpack.c.l.b16 %v9009
    %v9057 = vunpack.c.h.b16 %v9009
    %v9058 = vpack.c.b16 %v9026, %v9026
    %v9059 = vpack.c.b16 %v9027, %v9027
    %v9060 = vpack.c.b16 %v9028, %v9028
    %v9061 = vpack.c.b16 %v9029, %v9029
    %v9062 = vpack.c.b16 %v9030, %v9030
    %v9063 = vpack.c.b16 %v9031, %v9031
    %v9064 = vpack.c.b16 %v9032, %v9032
    %v9065 = vpack.c.b16 %v9033, %v9033
    %v9066 = vpack.c.b16 %v9034, %v9034
    %v9067 = vpack.c.b16 %v9035, %v9035
    %v9068 = vpack.c.b16 %v9036, %v9036
    %v9069 = vpack.c.b16 %v9037, %v9037
    %v9070 = vpack.c.b16 %v9038, %v9038
    %v9071 = vpack.c.b16 %v9039, %v9039
    %v9072 = vpack.c.b16 %v9040, %v9040
    %v9073 = vpack.c.b16 %v9041, %v9041
    %v9074 = vpack.c.b16 %v9042, %v9042
    %v9075 = vpack.c.b16 %v9043, %v9043
    %v9076 = vpack.c.b16 %v9044, %v9044
    %v9077 = vpack.c.b16 %v9045, %v9045
    %v9078 = vpack.c.b16 %v9046, %v9046
    %v9079 = vpack.c.b16 %v9047, %v9047
    %v9080 = vpack.c.b16 %v9048, %v9048
    %v9081 = vpack.c.b16 %v9049, %v9049
    %v9082 = vpack.c.b16 %v9050, %v9050
    %v9083 = vpack.c.b16 %v9051, %v9051
    %v9084 = vpack.c.b16 %v9052, %v9052
    %v9085 = vpack.c.b16 %v9053, %v9053
    %v9086 = vpack.c.b16 %v9054, %v9054
    %v9087 = vpack.c.b16 %v9055, %v9055
    %v9088 = vpack.c.b16 %v9056, %v9056
    %v9089 = vpack.c.b16 %v9057, %v9057
    %v9091 = vshrl.u32 %v9058, 16
    %v9093 = vrot.slane %v9091, 4
    %v9094 = vshll.u32 %v9058, 16
    %v9096 = vrot.slane %v9094, 5
    %v9097 = vor.u32 %v9093, %v9096
    %v9098 = vrot.slane %v9097, 4
    %v9100 = vshll.u32 %v9059, 16
    %v9102 = vrot.slane %v9100, 5
    %v9103 = vsel %vm1487, %v9098, %v9102
    %v9105 = vshrl.u32 %v9060, 16
    %v9107 = vrot.slane %v9105, 4
    %v9108 = vshll.u32 %v9060, 16
    %v9110 = vrot.slane %v9108, 5
    %v9111 = vor.u32 %v9107, %v9110
    %v9112 = vrot.slane %v9111, 4
    %v9114 = vshll.u32 %v9061, 16
    %v9116 = vrot.slane %v9114, 5
    %v9117 = vsel %vm1487, %v9112, %v9116
    %v9119 = vshrl.u32 %v9062, 16
    %v9121 = vrot.slane %v9119, 4
    %v9122 = vshll.u32 %v9062, 16
    %v9124 = vrot.slane %v9122, 5
    %v9125 = vor.u32 %v9121, %v9124
    %v9126 = vrot.slane %v9125, 4
    %v9128 = vshll.u32 %v9063, 16
    %v9130 = vrot.slane %v9128, 5
    %v9131 = vsel %vm1487, %v9126, %v9130
    %v9133 = vshrl.u32 %v9064, 16
    %v9135 = vrot.slane %v9133, 4
    %v9136 = vshll.u32 %v9064, 16
    %v9138 = vrot.slane %v9136, 5
    %v9139 = vor.u32 %v9135, %v9138
    %v9140 = vrot.slane %v9139, 4
    %v9142 = vshll.u32 %v9065, 16
    %v9144 = vrot.slane %v9142, 5
    %v9145 = vsel %vm1487, %v9140, %v9144
    %v9147 = vshrl.u32 %v9066, 16
    %v9149 = vrot.slane %v9147, 4
    %v9150 = vshll.u32 %v9066, 16
    %v9152 = vrot.slane %v9150, 5
    %v9153 = vor.u32 %v9149, %v9152
    %v9154 = vrot.slane %v9153, 4
    %v9156 = vshll.u32 %v9067, 16
    %v9158 = vrot.slane %v9156, 5
    %v9159 = vsel %vm1487, %v9154, %v9158
    %v9161 = vshrl.u32 %v9068, 16
    %v9163 = vrot.slane %v9161, 4
    %v9164 = vshll.u32 %v9068, 16
    %v9166 = vrot.slane %v9164, 5
    %v9167 = vor.u32 %v9163, %v9166
    %v9168 = vrot.slane %v9167, 4
    %v9170 = vshll.u32 %v9069, 16
    %v9172 = vrot.slane %v9170, 5
    %v9173 = vsel %vm1487, %v9168, %v9172
    %v9175 = vshrl.u32 %v9070, 16
    %v9177 = vrot.slane %v9175, 4
    %v9178 = vshll.u32 %v9070, 16
    %v9180 = vrot.slane %v9178, 5
    %v9181 = vor.u32 %v9177, %v9180
    %v9182 = vrot.slane %v9181, 4
    %v9184 = vshll.u32 %v9071, 16
    %v9186 = vrot.slane %v9184, 5
    %v9187 = vsel %vm1487, %v9182, %v9186
    %v9189 = vshrl.u32 %v9072, 16
    %v9191 = vrot.slane %v9189, 4
    %v9192 = vshll.u32 %v9072, 16
    %v9194 = vrot.slane %v9192, 5
    %v9195 = vor.u32 %v9191, %v9194
    %v9196 = vrot.slane %v9195, 4
    %v9198 = vshll.u32 %v9073, 16
    %v9200 = vrot.slane %v9198, 5
    %v9201 = vsel %vm1487, %v9196, %v9200
    %v9203 = vshrl.u32 %v9074, 16
    %v9205 = vrot.slane %v9203, 4
    %v9206 = vshll.u32 %v9074, 16
    %v9208 = vrot.slane %v9206, 5
    %v9209 = vor.u32 %v9205, %v9208
    %v9210 = vrot.slane %v9209, 4
    %v9212 = vshll.u32 %v9075, 16
    %v9214 = vrot.slane %v9212, 5
    %v9215 = vsel %vm1487, %v9210, %v9214
    %v9217 = vshrl.u32 %v9076, 16
    %v9219 = vrot.slane %v9217, 4
    %v9220 = vshll.u32 %v9076, 16
    %v9222 = vrot.slane %v9220, 5
    %v9223 = vor.u32 %v9219, %v9222
    %v9224 = vrot.slane %v9223, 4
    %v9226 = vshll.u32 %v9077, 16
    %v9228 = vrot.slane %v9226, 5
    %v9229 = vsel %vm1487, %v9224, %v9228
    %v9231 = vshrl.u32 %v9078, 16
    %v9233 = vrot.slane %v9231, 4
    %v9234 = vshll.u32 %v9078, 16
    %v9236 = vrot.slane %v9234, 5
    %v9237 = vor.u32 %v9233, %v9236
    %v9238 = vrot.slane %v9237, 4
    %v9240 = vshll.u32 %v9079, 16
    %v9242 = vrot.slane %v9240, 5
    %v9243 = vsel %vm1487, %v9238, %v9242
    %v9245 = vshrl.u32 %v9080, 16
    %v9247 = vrot.slane %v9245, 4
    %v9248 = vshll.u32 %v9080, 16
    %v9250 = vrot.slane %v9248, 5
    %v9251 = vor.u32 %v9247, %v9250
    %v9252 = vrot.slane %v9251, 4
    %v9254 = vshll.u32 %v9081, 16
    %v9256 = vrot.slane %v9254, 5
    %v9257 = vsel %vm1487, %v9252, %v9256
    %v9259 = vshrl.u32 %v9082, 16
    %v9261 = vrot.slane %v9259, 4
    %v9262 = vshll.u32 %v9082, 16
    %v9264 = vrot.slane %v9262, 5
    %v9265 = vor.u32 %v9261, %v9264
    %v9266 = vrot.slane %v9265, 4
    %v9268 = vshll.u32 %v9083, 16
    %v9270 = vrot.slane %v9268, 5
    %v9271 = vsel %vm1487, %v9266, %v9270
    %v9273 = vshrl.u32 %v9084, 16
    %v9275 = vrot.slane %v9273, 4
    %v9276 = vshll.u32 %v9084, 16
    %v9278 = vrot.slane %v9276, 5
    %v9279 = vor.u32 %v9275, %v9278
    %v9280 = vrot.slane %v9279, 4
    %v9282 = vshll.u32 %v9085, 16
    %v9284 = vrot.slane %v9282, 5
    %v9285 = vsel %vm1487, %v9280, %v9284
    %v9287 = vshrl.u32 %v9086, 16
    %v9289 = vrot.slane %v9287, 4
    %v9290 = vshll.u32 %v9086, 16
    %v9292 = vrot.slane %v9290, 5
    %v9293 = vor.u32 %v9289, %v9292
    %v9294 = vrot.slane %v9293, 4
    %v9296 = vshll.u32 %v9087, 16
    %v9298 = vrot.slane %v9296, 5
    %v9299 = vsel %vm1487, %v9294, %v9298
    %v9301 = vshrl.u32 %v9088, 16
    %v9303 = vrot.slane %v9301, 4
    %v9304 = vshll.u32 %v9088, 16
    %v9306 = vrot.slane %v9304, 5
    %v9307 = vor.u32 %v9303, %v9306
    %v9308 = vrot.slane %v9307, 4
    %v9310 = vshll.u32 %v9089, 16
    %v9312 = vrot.slane %v9310, 5
    %v9313 = vsel %vm1487, %v9308, %v9312
    %v9314 = vunpack.c.l.b16 %v9103
    %v9315 = vunpack.c.l.b16 %v9117
    %v9316 = vunpack.c.l.b16 %v9131
    %v9317 = vunpack.c.l.b16 %v9145
    %v9318 = vunpack.c.l.b16 %v9159
    %v9319 = vunpack.c.l.b16 %v9173
    %v9320 = vunpack.c.l.b16 %v9187
    %v9321 = vunpack.c.l.b16 %v9201
    %v9322 = vunpack.c.l.b16 %v9215
    %v9323 = vunpack.c.l.b16 %v9229
    %v9324 = vunpack.c.l.b16 %v9243
    %v9325 = vunpack.c.l.b16 %v9257
    %v9326 = vunpack.c.l.b16 %v9271
    %v9327 = vunpack.c.l.b16 %v9285
    %v9328 = vunpack.c.l.b16 %v9299
    %v9329 = vunpack.c.l.b16 %v9313
    %v9330 = vpack.c.b16 %v9315, %v9314
    %v9331 = vpack.c.b16 %v9317, %v9316
    %v9332 = vpack.c.b16 %v9319, %v9318
    %v9333 = vpack.c.b16 %v9321, %v9320
    %v9334 = vpack.c.b16 %v9323, %v9322
    %v9335 = vpack.c.b16 %v9325, %v9324
    %v9336 = vpack.c.b16 %v9327, %v9326
    %v9337 = vpack.c.b16 %v9329, %v9328
    %9338 = vrot.lane.b32.xlu0 %v9330, 64
    %v9339 = vpop.permute.xlu0 %9338
    %9340 = vrot.lane.b32.xlu0 %v9331, 64
    %v9341 = vpop.permute.xlu0 %9340
    %9342 = vrot.lane.b32.xlu0 %v9332, 64
    %v9343 = vpop.permute.xlu0 %9342
    %9344 = vrot.lane.b32.xlu0 %v9333, 64
    %v9345 = vpop.permute.xlu0 %9344
    %9346 = vrot.lane.b32.xlu0 %v9334, 64
    %v9347 = vpop.permute.xlu0 %9346
    %9348 = vrot.lane.b32.xlu0 %v9335, 64
    %v9349 = vpop.permute.xlu0 %9348
    %9350 = vrot.lane.b32.xlu0 %v9336, 64
    %v9351 = vpop.permute.xlu0 %9350
    %9352 = vrot.lane.b32.xlu0 %v9337, 64
    %v9353 = vpop.permute.xlu0 %9352
    %vm9362 = vcmask 654848
    %9363 = vst.msk [vmem:[#allocation6] sm:$0xff] %vm9362, %v9339
    %9364 = vst.msk [vmem:[#allocation6 + $0x10] sm:$0xff] %vm9362, %v9341
    %9365 = vst.msk [vmem:[#allocation6 + $0x20] sm:$0xff] %vm9362, %v9343
    %9366 = vst.msk [vmem:[#allocation6 + $0x30] sm:$0xff] %vm9362, %v9345
    %9367 = vst.msk [vmem:[#allocation6 + $0x40] sm:$0xff] %vm9362, %v9347
    %9368 = vst.msk [vmem:[#allocation6 + $0x50] sm:$0xff] %vm9362, %v9349
    %9369 = vst.msk [vmem:[#allocation6 + $0x60] sm:$0xff] %vm9362, %v9351
    %9370 = vst.msk [vmem:[#allocation6 + $0x70] sm:$0xff] %vm9362, %v9353
    %v9371 = vld [vmem:[%s8187] sm:$0x1e]
    %v9372 = vld [vmem:[%s8187 + $0x8] sm:$0x1e]
    %v9373 = vld [vmem:[%s8187 + $0x10] sm:$0x1e]
    %v9374 = vld [vmem:[%s8187 + $0x18] sm:$0x1e]
    %v9375 = vld [vmem:[%s8187 + $0x20] sm:$0x1e]
    %v9376 = vld [vmem:[%s8187 + $0x28] sm:$0x1e]
    %v9377 = vld [vmem:[%s8187 + $0x30] sm:$0x1e]
    %v9378 = vld [vmem:[%s8187 + $0x38] sm:$0x1e]
    %v9379 = vld [vmem:[%s8187 + $0x50] sm:$0x1e]
    %v9380 = vld [vmem:[%s8187 + $0x58] sm:$0x1e]
    %v9381 = vld [vmem:[%s8187 + $0x60] sm:$0x1e]
    %v9382 = vld [vmem:[%s8187 + $0x68] sm:$0x1e]
    %v9383 = vld [vmem:[%s8187 + $0x70] sm:$0x1e]
    %v9384 = vld [vmem:[%s8187 + $0x78] sm:$0x1e]
    %v9385 = vld [vmem:[%s8187 + $0x80] sm:$0x1e]
    %v9386 = vld [vmem:[%s8187 + $0x88] sm:$0x1e]
    %v9403 = vunpack.c.l.b16 %v9371
    %v9404 = vunpack.c.h.b16 %v9371
    %v9405 = vunpack.c.l.b16 %v9372
    %v9406 = vunpack.c.h.b16 %v9372
    %v9407 = vunpack.c.l.b16 %v9373
    %v9408 = vunpack.c.h.b16 %v9373
    %v9409 = vunpack.c.l.b16 %v9374
    %v9410 = vunpack.c.h.b16 %v9374
    %v9411 = vunpack.c.l.b16 %v9375
    %v9412 = vunpack.c.h.b16 %v9375
    %v9413 = vunpack.c.l.b16 %v9376
    %v9414 = vunpack.c.h.b16 %v9376
    %v9415 = vunpack.c.l.b16 %v9377
    %v9416 = vunpack.c.h.b16 %v9377
    %v9417 = vunpack.c.l.b16 %v9378
    %v9418 = vunpack.c.h.b16 %v9378
    %v9419 = vunpack.c.l.b16 %v9379
    %v9420 = vunpack.c.h.b16 %v9379
    %v9421 = vunpack.c.l.b16 %v9380
    %v9422 = vunpack.c.h.b16 %v9380
    %v9423 = vunpack.c.l.b16 %v9381
    %v9424 = vunpack.c.h.b16 %v9381
    %v9425 = vunpack.c.l.b16 %v9382
    %v9426 = vunpack.c.h.b16 %v9382
    %v9427 = vunpack.c.l.b16 %v9383
    %v9428 = vunpack.c.h.b16 %v9383
    %v9429 = vunpack.c.l.b16 %v9384
    %v9430 = vunpack.c.h.b16 %v9384
    %v9431 = vunpack.c.l.b16 %v9385
    %v9432 = vunpack.c.h.b16 %v9385
    %v9433 = vunpack.c.l.b16 %v9386
    %v9434 = vunpack.c.h.b16 %v9386
    %v9435 = vpack.c.b16 %v9403, %v9403
    %v9436 = vpack.c.b16 %v9404, %v9404
    %v9437 = vpack.c.b16 %v9405, %v9405
    %v9438 = vpack.c.b16 %v9406, %v9406
    %v9439 = vpack.c.b16 %v9407, %v9407
    %v9440 = vpack.c.b16 %v9408, %v9408
    %v9441 = vpack.c.b16 %v9409, %v9409
    %v9442 = vpack.c.b16 %v9410, %v9410
    %v9443 = vpack.c.b16 %v9411, %v9411
    %v9444 = vpack.c.b16 %v9412, %v9412
    %v9445 = vpack.c.b16 %v9413, %v9413
    %v9446 = vpack.c.b16 %v9414, %v9414
    %v9447 = vpack.c.b16 %v9415, %v9415
    %v9448 = vpack.c.b16 %v9416, %v9416
    %v9449 = vpack.c.b16 %v9417, %v9417
    %v9450 = vpack.c.b16 %v9418, %v9418
    %v9451 = vpack.c.b16 %v9419, %v9419
    %v9452 = vpack.c.b16 %v9420, %v9420
    %v9453 = vpack.c.b16 %v9421, %v9421
    %v9454 = vpack.c.b16 %v9422, %v9422
    %v9455 = vpack.c.b16 %v9423, %v9423
    %v9456 = vpack.c.b16 %v9424, %v9424
    %v9457 = vpack.c.b16 %v9425, %v9425
    %v9458 = vpack.c.b16 %v9426, %v9426
    %v9459 = vpack.c.b16 %v9427, %v9427
    %v9460 = vpack.c.b16 %v9428, %v9428
    %v9461 = vpack.c.b16 %v9429, %v9429
    %v9462 = vpack.c.b16 %v9430, %v9430
    %v9463 = vpack.c.b16 %v9431, %v9431
    %v9464 = vpack.c.b16 %v9432, %v9432
    %v9465 = vpack.c.b16 %v9433, %v9433
    %v9466 = vpack.c.b16 %v9434, %v9434
    %v9467 = vrot.slane %v9435, 5
    %v9468 = vrot.slane %v9467, 4
    %v9469 = vrot.slane %v9436, 5
    %v9470 = vsel %vm2675, %v9468, %v9469
    %v9471 = vrot.slane %v9437, 5
    %v9472 = vrot.slane %v9471, 4
    %v9473 = vrot.slane %v9438, 5
    %v9474 = vsel %vm2675, %v9472, %v9473
    %v9475 = vrot.slane %v9439, 5
    %v9476 = vrot.slane %v9475, 4
    %v9477 = vrot.slane %v9440, 5
    %v9478 = vsel %vm2675, %v9476, %v9477
    %v9479 = vrot.slane %v9441, 5
    %v9480 = vrot.slane %v9479, 4
    %v9481 = vrot.slane %v9442, 5
    %v9482 = vsel %vm2675, %v9480, %v9481
    %v9483 = vrot.slane %v9443, 5
    %v9484 = vrot.slane %v9483, 4
    %v9485 = vrot.slane %v9444, 5
    %v9486 = vsel %vm2675, %v9484, %v9485
    %v9487 = vrot.slane %v9445, 5
    %v9488 = vrot.slane %v9487, 4
    %v9489 = vrot.slane %v9446, 5
    %v9490 = vsel %vm2675, %v9488, %v9489
    %v9491 = vrot.slane %v9447, 5
    %v9492 = vrot.slane %v9491, 4
    %v9493 = vrot.slane %v9448, 5
    %v9494 = vsel %vm2675, %v9492, %v9493
    %v9495 = vrot.slane %v9449, 5
    %v9496 = vrot.slane %v9495, 4
    %v9497 = vrot.slane %v9450, 5
    %v9498 = vsel %vm2675, %v9496, %v9497
    %v9499 = vrot.slane %v9451, 5
    %v9500 = vrot.slane %v9499, 4
    %v9501 = vrot.slane %v9452, 5
    %v9502 = vsel %vm2675, %v9500, %v9501
    %v9503 = vrot.slane %v9453, 5
    %v9504 = vrot.slane %v9503, 4
    %v9505 = vrot.slane %v9454, 5
    %v9506 = vsel %vm2675, %v9504, %v9505
    %v9507 = vrot.slane %v9455, 5
    %v9508 = vrot.slane %v9507, 4
    %v9509 = vrot.slane %v9456, 5
    %v9510 = vsel %vm2675, %v9508, %v9509
    %v9511 = vrot.slane %v9457, 5
    %v9512 = vrot.slane %v9511, 4
    %v9513 = vrot.slane %v9458, 5
    %v9514 = vsel %vm2675, %v9512, %v9513
    %v9515 = vrot.slane %v9459, 5
    %v9516 = vrot.slane %v9515, 4
    %v9517 = vrot.slane %v9460, 5
    %v9518 = vsel %vm2675, %v9516, %v9517
    %v9519 = vrot.slane %v9461, 5
    %v9520 = vrot.slane %v9519, 4
    %v9521 = vrot.slane %v9462, 5
    %v9522 = vsel %vm2675, %v9520, %v9521
    %v9523 = vrot.slane %v9463, 5
    %v9524 = vrot.slane %v9523, 4
    %v9525 = vrot.slane %v9464, 5
    %v9526 = vsel %vm2675, %v9524, %v9525
    %v9527 = vrot.slane %v9465, 5
    %v9528 = vrot.slane %v9527, 4
    %v9529 = vrot.slane %v9466, 5
    %v9530 = vsel %vm2675, %v9528, %v9529
    %v9531 = vunpack.c.l.b16 %v9470
    %v9532 = vunpack.c.l.b16 %v9474
    %v9533 = vunpack.c.l.b16 %v9478
    %v9534 = vunpack.c.l.b16 %v9482
    %v9535 = vunpack.c.l.b16 %v9486
    %v9536 = vunpack.c.l.b16 %v9490
    %v9537 = vunpack.c.l.b16 %v9494
    %v9538 = vunpack.c.l.b16 %v9498
    %v9539 = vunpack.c.l.b16 %v9502
    %v9540 = vunpack.c.l.b16 %v9506
    %v9541 = vunpack.c.l.b16 %v9510
    %v9542 = vunpack.c.l.b16 %v9514
    %v9543 = vunpack.c.l.b16 %v9518
    %v9544 = vunpack.c.l.b16 %v9522
    %v9545 = vunpack.c.l.b16 %v9526
    %v9546 = vunpack.c.l.b16 %v9530
    %v9547 = vpack.c.b16 %v9532, %v9531
    %v9548 = vpack.c.b16 %v9534, %v9533
    %v9549 = vpack.c.b16 %v9536, %v9535
    %v9550 = vpack.c.b16 %v9538, %v9537
    %v9551 = vpack.c.b16 %v9540, %v9539
    %v9552 = vpack.c.b16 %v9542, %v9541
    %v9553 = vpack.c.b16 %v9544, %v9543
    %v9554 = vpack.c.b16 %v9546, %v9545
    %9555 = vrot.lane.b32.xlu0 %v9547, 80
    %v9556 = vpop.permute.xlu0 %9555
    %9557 = vrot.lane.b32.xlu0 %v9548, 80
    %v9558 = vpop.permute.xlu0 %9557
    %9559 = vrot.lane.b32.xlu0 %v9549, 80
    %v9560 = vpop.permute.xlu0 %9559
    %9561 = vrot.lane.b32.xlu0 %v9550, 80
    %v9562 = vpop.permute.xlu0 %9561
    %9563 = vrot.lane.b32.xlu0 %v9551, 80
    %v9564 = vpop.permute.xlu0 %9563
    %9565 = vrot.lane.b32.xlu0 %v9552, 80
    %v9566 = vpop.permute.xlu0 %9565
    %9567 = vrot.lane.b32.xlu0 %v9553, 80
    %v9568 = vpop.permute.xlu0 %9567
    %9569 = vrot.lane.b32.xlu0 %v9554, 80
    %v9570 = vpop.permute.xlu0 %9569
    %vm9579 = vcmask 786048
    %9580 = vst.msk [vmem:[#allocation6] sm:$0xff] %vm9579, %v9556
    %9581 = vst.msk [vmem:[#allocation6 + $0x10] sm:$0xff] %vm9579, %v9558
    %9582 = vst.msk [vmem:[#allocation6 + $0x20] sm:$0xff] %vm9579, %v9560
    %9583 = vst.msk [vmem:[#allocation6 + $0x30] sm:$0xff] %vm9579, %v9562
    %9584 = vst.msk [vmem:[#allocation6 + $0x40] sm:$0xff] %vm9579, %v9564
    %9585 = vst.msk [vmem:[#allocation6 + $0x50] sm:$0xff] %vm9579, %v9566
    %9586 = vst.msk [vmem:[#allocation6 + $0x60] sm:$0xff] %vm9579, %v9568
    %9587 = vst.msk [vmem:[#allocation6 + $0x70] sm:$0xff] %vm9579, %v9570
    %s9588 = scalar_lea.vmem [#allocation5], 16
    %v9589 = vld [vmem:[%s9588] sm:$0xf]
    %v9590 = vld [vmem:[%s9588 + $0x8] sm:$0xf]
    %v9591 = vld [vmem:[%s9588 + $0x10] sm:$0xf]
    %v9592 = vld [vmem:[%s9588 + $0x18] sm:$0xf]
    %v9593 = vld [vmem:[%s9588 + $0x20] sm:$0xf]
    %v9594 = vld [vmem:[%s9588 + $0x28] sm:$0xf]
    %v9595 = vld [vmem:[%s9588 + $0x30] sm:$0xf]
    %v9596 = vld [vmem:[%s9588 + $0x38] sm:$0xf]
    %v9597 = vld [vmem:[%s9588 + $0x50] sm:$0xf]
    %v9598 = vld [vmem:[%s9588 + $0x58] sm:$0xf]
    %v9599 = vld [vmem:[%s9588 + $0x60] sm:$0xf]
    %v9600 = vld [vmem:[%s9588 + $0x68] sm:$0xf]
    %v9601 = vld [vmem:[%s9588 + $0x70] sm:$0xf]
    %v9602 = vld [vmem:[%s9588 + $0x78] sm:$0xf]
    %v9603 = vld [vmem:[%s9588 + $0x80] sm:$0xf]
    %v9604 = vld [vmem:[%s9588 + $0x88] sm:$0xf]
    %v9621 = vunpack.c.l.b16 %v9589
    %v9622 = vunpack.c.l.b16 %v9590
    %v9623 = vunpack.c.l.b16 %v9591
    %v9624 = vunpack.c.l.b16 %v9592
    %v9625 = vunpack.c.l.b16 %v9593
    %v9626 = vunpack.c.l.b16 %v9594
    %v9627 = vunpack.c.l.b16 %v9595
    %v9628 = vunpack.c.l.b16 %v9596
    %v9629 = vunpack.c.l.b16 %v9597
    %v9630 = vunpack.c.l.b16 %v9598
    %v9631 = vunpack.c.l.b16 %v9599
    %v9632 = vunpack.c.l.b16 %v9600
    %v9633 = vunpack.c.l.b16 %v9601
    %v9634 = vunpack.c.l.b16 %v9602
    %v9635 = vunpack.c.l.b16 %v9603
    %v9636 = vunpack.c.l.b16 %v9604
    %v9637 = vpack.c.b16 %v9622, %v9621
    %v9638 = vpack.c.b16 %v9624, %v9623
    %v9639 = vpack.c.b16 %v9626, %v9625
    %v9640 = vpack.c.b16 %v9628, %v9627
    %v9641 = vpack.c.b16 %v9630, %v9629
    %v9642 = vpack.c.b16 %v9632, %v9631
    %v9643 = vpack.c.b16 %v9634, %v9633
    %v9644 = vpack.c.b16 %v9636, %v9635
    %9645 = vrot.lane.b32.xlu0 %v9637, 96
    %v9646 = vpop.permute.xlu0 %9645
    %9647 = vrot.lane.b32.xlu0 %v9638, 96
    %v9648 = vpop.permute.xlu0 %9647
    %9649 = vrot.lane.b32.xlu0 %v9639, 96
    %v9650 = vpop.permute.xlu0 %9649
    %9651 = vrot.lane.b32.xlu0 %v9640, 96
    %v9652 = vpop.permute.xlu0 %9651
    %9653 = vrot.lane.b32.xlu0 %v9641, 96
    %v9654 = vpop.permute.xlu0 %9653
    %9655 = vrot.lane.b32.xlu0 %v9642, 96
    %v9656 = vpop.permute.xlu0 %9655
    %9657 = vrot.lane.b32.xlu0 %v9643, 96
    %v9658 = vpop.permute.xlu0 %9657
    %9659 = vrot.lane.b32.xlu0 %v9644, 96
    %v9660 = vpop.permute.xlu0 %9659
    %vm9669 = vcmask 917248
    %9670 = vst.msk [vmem:[#allocation6] sm:$0xff] %vm9669, %v9646
    %9671 = vst.msk [vmem:[#allocation6 + $0x10] sm:$0xff] %vm9669, %v9648
    %9672 = vst.msk [vmem:[#allocation6 + $0x20] sm:$0xff] %vm9669, %v9650
    %9673 = vst.msk [vmem:[#allocation6 + $0x30] sm:$0xff] %vm9669, %v9652
    %9674 = vst.msk [vmem:[#allocation6 + $0x40] sm:$0xff] %vm9669, %v9654
    %9675 = vst.msk [vmem:[#allocation6 + $0x50] sm:$0xff] %vm9669, %v9656
    %9676 = vst.msk [vmem:[#allocation6 + $0x60] sm:$0xff] %vm9669, %v9658
    %9677 = vst.msk [vmem:[#allocation6 + $0x70] sm:$0xff] %vm9669, %v9660
    %v9678 = vld [vmem:[%s9588] sm:$0x1f]
    %v9679 = vld [vmem:[%s9588 + $0x8] sm:$0x1f]
    %v9680 = vld [vmem:[%s9588 + $0x10] sm:$0x1f]
    %v9681 = vld [vmem:[%s9588 + $0x18] sm:$0x1f]
    %v9682 = vld [vmem:[%s9588 + $0x20] sm:$0x1f]
    %v9683 = vld [vmem:[%s9588 + $0x28] sm:$0x1f]
    %v9684 = vld [vmem:[%s9588 + $0x30] sm:$0x1f]
    %v9685 = vld [vmem:[%s9588 + $0x38] sm:$0x1f]
    %v9686 = vld [vmem:[%s9588 + $0x50] sm:$0x1f]
    %v9687 = vld [vmem:[%s9588 + $0x58] sm:$0x1f]
    %v9688 = vld [vmem:[%s9588 + $0x60] sm:$0x1f]
    %v9689 = vld [vmem:[%s9588 + $0x68] sm:$0x1f]
    %v9690 = vld [vmem:[%s9588 + $0x70] sm:$0x1f]
    %v9691 = vld [vmem:[%s9588 + $0x78] sm:$0x1f]
    %v9692 = vld [vmem:[%s9588 + $0x80] sm:$0x1f]
    %v9693 = vld [vmem:[%s9588 + $0x88] sm:$0x1f]
    %v9710 = vunpack.c.l.b16 %v9678
    %v9711 = vunpack.c.h.b16 %v9678
    %v9712 = vunpack.c.l.b16 %v9679
    %v9713 = vunpack.c.h.b16 %v9679
    %v9714 = vunpack.c.l.b16 %v9680
    %v9715 = vunpack.c.h.b16 %v9680
    %v9716 = vunpack.c.l.b16 %v9681
    %v9717 = vunpack.c.h.b16 %v9681
    %v9718 = vunpack.c.l.b16 %v9682
    %v9719 = vunpack.c.h.b16 %v9682
    %v9720 = vunpack.c.l.b16 %v9683
    %v9721 = vunpack.c.h.b16 %v9683
    %v9722 = vunpack.c.l.b16 %v9684
    %v9723 = vunpack.c.h.b16 %v9684
    %v9724 = vunpack.c.l.b16 %v9685
    %v9725 = vunpack.c.h.b16 %v9685
    %v9726 = vunpack.c.l.b16 %v9686
    %v9727 = vunpack.c.h.b16 %v9686
    %v9728 = vunpack.c.l.b16 %v9687
    %v9729 = vunpack.c.h.b16 %v9687
    %v9730 = vunpack.c.l.b16 %v9688
    %v9731 = vunpack.c.h.b16 %v9688
    %v9732 = vunpack.c.l.b16 %v9689
    %v9733 = vunpack.c.h.b16 %v9689
    %v9734 = vunpack.c.l.b16 %v9690
    %v9735 = vunpack.c.h.b16 %v9690
    %v9736 = vunpack.c.l.b16 %v9691
    %v9737 = vunpack.c.h.b16 %v9691
    %v9738 = vunpack.c.l.b16 %v9692
    %v9739 = vunpack.c.h.b16 %v9692
    %v9740 = vunpack.c.l.b16 %v9693
    %v9741 = vunpack.c.h.b16 %v9693
    %v9742 = vpack.c.b16 %v9710, %v9710
    %v9743 = vpack.c.b16 %v9711, %v9711
    %v9744 = vpack.c.b16 %v9712, %v9712
    %v9745 = vpack.c.b16 %v9713, %v9713
    %v9746 = vpack.c.b16 %v9714, %v9714
    %v9747 = vpack.c.b16 %v9715, %v9715
    %v9748 = vpack.c.b16 %v9716, %v9716
    %v9749 = vpack.c.b16 %v9717, %v9717
    %v9750 = vpack.c.b16 %v9718, %v9718
    %v9751 = vpack.c.b16 %v9719, %v9719
    %v9752 = vpack.c.b16 %v9720, %v9720
    %v9753 = vpack.c.b16 %v9721, %v9721
    %v9754 = vpack.c.b16 %v9722, %v9722
    %v9755 = vpack.c.b16 %v9723, %v9723
    %v9756 = vpack.c.b16 %v9724, %v9724
    %v9757 = vpack.c.b16 %v9725, %v9725
    %v9758 = vpack.c.b16 %v9726, %v9726
    %v9759 = vpack.c.b16 %v9727, %v9727
    %v9760 = vpack.c.b16 %v9728, %v9728
    %v9761 = vpack.c.b16 %v9729, %v9729
    %v9762 = vpack.c.b16 %v9730, %v9730
    %v9763 = vpack.c.b16 %v9731, %v9731
    %v9764 = vpack.c.b16 %v9732, %v9732
    %v9765 = vpack.c.b16 %v9733, %v9733
    %v9766 = vpack.c.b16 %v9734, %v9734
    %v9767 = vpack.c.b16 %v9735, %v9735
    %v9768 = vpack.c.b16 %v9736, %v9736
    %v9769 = vpack.c.b16 %v9737, %v9737
    %v9770 = vpack.c.b16 %v9738, %v9738
    %v9771 = vpack.c.b16 %v9739, %v9739
    %v9772 = vpack.c.b16 %v9740, %v9740
    %v9773 = vpack.c.b16 %v9741, %v9741
    %v9775 = vshrl.u32 %v9742, 16
    %v9777 = vrot.slane %v9775, 4
    %v9778 = vshll.u32 %v9742, 16
    %v9780 = vrot.slane %v9778, 5
    %v9781 = vor.u32 %v9777, %v9780
    %v9782 = vrot.slane %v9781, 4
    %v9784 = vshll.u32 %v9743, 16
    %v9786 = vrot.slane %v9784, 5
    %v9787 = vsel %vm1487, %v9782, %v9786
    %v9789 = vshrl.u32 %v9744, 16
    %v9791 = vrot.slane %v9789, 4
    %v9792 = vshll.u32 %v9744, 16
    %v9794 = vrot.slane %v9792, 5
    %v9795 = vor.u32 %v9791, %v9794
    %v9796 = vrot.slane %v9795, 4
    %v9798 = vshll.u32 %v9745, 16
    %v9800 = vrot.slane %v9798, 5
    %v9801 = vsel %vm1487, %v9796, %v9800
    %v9803 = vshrl.u32 %v9746, 16
    %v9805 = vrot.slane %v9803, 4
    %v9806 = vshll.u32 %v9746, 16
    %v9808 = vrot.slane %v9806, 5
    %v9809 = vor.u32 %v9805, %v9808
    %v9810 = vrot.slane %v9809, 4
    %v9812 = vshll.u32 %v9747, 16
    %v9814 = vrot.slane %v9812, 5
    %v9815 = vsel %vm1487, %v9810, %v9814
    %v9817 = vshrl.u32 %v9748, 16
    %v9819 = vrot.slane %v9817, 4
    %v9820 = vshll.u32 %v9748, 16
    %v9822 = vrot.slane %v9820, 5
    %v9823 = vor.u32 %v9819, %v9822
    %v9824 = vrot.slane %v9823, 4
    %v9826 = vshll.u32 %v9749, 16
    %v9828 = vrot.slane %v9826, 5
    %v9829 = vsel %vm1487, %v9824, %v9828
    %v9831 = vshrl.u32 %v9750, 16
    %v9833 = vrot.slane %v9831, 4
    %v9834 = vshll.u32 %v9750, 16
    %v9836 = vrot.slane %v9834, 5
    %v9837 = vor.u32 %v9833, %v9836
    %v9838 = vrot.slane %v9837, 4
    %v9840 = vshll.u32 %v9751, 16
    %v9842 = vrot.slane %v9840, 5
    %v9843 = vsel %vm1487, %v9838, %v9842
    %v9845 = vshrl.u32 %v9752, 16
    %v9847 = vrot.slane %v9845, 4
    %v9848 = vshll.u32 %v9752, 16
    %v9850 = vrot.slane %v9848, 5
    %v9851 = vor.u32 %v9847, %v9850
    %v9852 = vrot.slane %v9851, 4
    %v9854 = vshll.u32 %v9753, 16
    %v9856 = vrot.slane %v9854, 5
    %v9857 = vsel %vm1487, %v9852, %v9856
    %v9859 = vshrl.u32 %v9754, 16
    %v9861 = vrot.slane %v9859, 4
    %v9862 = vshll.u32 %v9754, 16
    %v9864 = vrot.slane %v9862, 5
    %v9865 = vor.u32 %v9861, %v9864
    %v9866 = vrot.slane %v9865, 4
    %v9868 = vshll.u32 %v9755, 16
    %v9870 = vrot.slane %v9868, 5
    %v9871 = vsel %vm1487, %v9866, %v9870
    %v9873 = vshrl.u32 %v9756, 16
    %v9875 = vrot.slane %v9873, 4
    %v9876 = vshll.u32 %v9756, 16
    %v9878 = vrot.slane %v9876, 5
    %v9879 = vor.u32 %v9875, %v9878
    %v9880 = vrot.slane %v9879, 4
    %v9882 = vshll.u32 %v9757, 16
    %v9884 = vrot.slane %v9882, 5
    %v9885 = vsel %vm1487, %v9880, %v9884
    %v9887 = vshrl.u32 %v9758, 16
    %v9889 = vrot.slane %v9887, 4
    %v9890 = vshll.u32 %v9758, 16
    %v9892 = vrot.slane %v9890, 5
    %v9893 = vor.u32 %v9889, %v9892
    %v9894 = vrot.slane %v9893, 4
    %v9896 = vshll.u32 %v9759, 16
    %v9898 = vrot.slane %v9896, 5
    %v9899 = vsel %vm1487, %v9894, %v9898
    %v9901 = vshrl.u32 %v9760, 16
    %v9903 = vrot.slane %v9901, 4
    %v9904 = vshll.u32 %v9760, 16
    %v9906 = vrot.slane %v9904, 5
    %v9907 = vor.u32 %v9903, %v9906
    %v9908 = vrot.slane %v9907, 4
    %v9910 = vshll.u32 %v9761, 16
    %v9912 = vrot.slane %v9910, 5
    %v9913 = vsel %vm1487, %v9908, %v9912
    %v9915 = vshrl.u32 %v9762, 16
    %v9917 = vrot.slane %v9915, 4
    %v9918 = vshll.u32 %v9762, 16
    %v9920 = vrot.slane %v9918, 5
    %v9921 = vor.u32 %v9917, %v9920
    %v9922 = vrot.slane %v9921, 4
    %v9924 = vshll.u32 %v9763, 16
    %v9926 = vrot.slane %v9924, 5
    %v9927 = vsel %vm1487, %v9922, %v9926
    %v9929 = vshrl.u32 %v9764, 16
    %v9931 = vrot.slane %v9929, 4
    %v9932 = vshll.u32 %v9764, 16
    %v9934 = vrot.slane %v9932, 5
    %v9935 = vor.u32 %v9931, %v9934
    %v9936 = vrot.slane %v9935, 4
    %v9938 = vshll.u32 %v9765, 16
    %v9940 = vrot.slane %v9938, 5
    %v9941 = vsel %vm1487, %v9936, %v9940
    %v9943 = vshrl.u32 %v9766, 16
    %v9945 = vrot.slane %v9943, 4
    %v9946 = vshll.u32 %v9766, 16
    %v9948 = vrot.slane %v9946, 5
    %v9949 = vor.u32 %v9945, %v9948
    %v9950 = vrot.slane %v9949, 4
    %v9952 = vshll.u32 %v9767, 16
    %v9954 = vrot.slane %v9952, 5
    %v9955 = vsel %vm1487, %v9950, %v9954
    %v9957 = vshrl.u32 %v9768, 16
    %v9959 = vrot.slane %v9957, 4
    %v9960 = vshll.u32 %v9768, 16
    %v9962 = vrot.slane %v9960, 5
    %v9963 = vor.u32 %v9959, %v9962
    %v9964 = vrot.slane %v9963, 4
    %v9966 = vshll.u32 %v9769, 16
    %v9968 = vrot.slane %v9966, 5
    %v9969 = vsel %vm1487, %v9964, %v9968
    %v9971 = vshrl.u32 %v9770, 16
    %v9973 = vrot.slane %v9971, 4
    %v9974 = vshll.u32 %v9770, 16
    %v9976 = vrot.slane %v9974, 5
    %v9977 = vor.u32 %v9973, %v9976
    %v9978 = vrot.slane %v9977, 4
    %v9980 = vshll.u32 %v9771, 16
    %v9982 = vrot.slane %v9980, 5
    %v9983 = vsel %vm1487, %v9978, %v9982
    %v9985 = vshrl.u32 %v9772, 16
    %v9987 = vrot.slane %v9985, 4
    %v9988 = vshll.u32 %v9772, 16
    %v9990 = vrot.slane %v9988, 5
    %v9991 = vor.u32 %v9987, %v9990
    %v9992 = vrot.slane %v9991, 4
    %v9994 = vshll.u32 %v9773, 16
    %v9996 = vrot.slane %v9994, 5
    %v9997 = vsel %vm1487, %v9992, %v9996
    %v9998 = vunpack.c.l.b16 %v9787
    %v9999 = vunpack.c.l.b16 %v9801
    %v10000 = vunpack.c.l.b16 %v9815
    %v10001 = vunpack.c.l.b16 %v9829
    %v10002 = vunpack.c.l.b16 %v9843
    %v10003 = vunpack.c.l.b16 %v9857
    %v10004 = vunpack.c.l.b16 %v9871
    %v10005 = vunpack.c.l.b16 %v9885
    %v10006 = vunpack.c.l.b16 %v9899
    %v10007 = vunpack.c.l.b16 %v9913
    %v10008 = vunpack.c.l.b16 %v9927
    %v10009 = vunpack.c.l.b16 %v9941
    %v10010 = vunpack.c.l.b16 %v9955
    %v10011 = vunpack.c.l.b16 %v9969
    %v10012 = vunpack.c.l.b16 %v9983
    %v10013 = vunpack.c.l.b16 %v9997
    %v10014 = vpack.c.b16 %v9999, %v9998
    %v10015 = vpack.c.b16 %v10001, %v10000
    %v10016 = vpack.c.b16 %v10003, %v10002
    %v10017 = vpack.c.b16 %v10005, %v10004
    %v10018 = vpack.c.b16 %v10007, %v10006
    %v10019 = vpack.c.b16 %v10009, %v10008
    %v10020 = vpack.c.b16 %v10011, %v10010
    %v10021 = vpack.c.b16 %v10013, %v10012
    %10022 = vrot.lane.b32.xlu0 %v10014, 112
    %v10023 = vpop.permute.xlu0 %10022
    %10024 = vrot.lane.b32.xlu0 %v10015, 112
    %v10025 = vpop.permute.xlu0 %10024
    %10026 = vrot.lane.b32.xlu0 %v10016, 112
    %v10027 = vpop.permute.xlu0 %10026
    %10028 = vrot.lane.b32.xlu0 %v10017, 112
    %v10029 = vpop.permute.xlu0 %10028
    %10030 = vrot.lane.b32.xlu0 %v10018, 112
    %v10031 = vpop.permute.xlu0 %10030
    %10032 = vrot.lane.b32.xlu0 %v10019, 112
    %v10033 = vpop.permute.xlu0 %10032
    %10034 = vrot.lane.b32.xlu0 %v10020, 112
    %v10035 = vpop.permute.xlu0 %10034
    %10036 = vrot.lane.b32.xlu0 %v10021, 112
    %v10037 = vpop.permute.xlu0 %10036
    %vm10046 = vcmask 1048448
    %10047 = vst.msk [vmem:[#allocation6] sm:$0xff] %vm10046, %v10023
    %10048 = vst.msk [vmem:[#allocation6 + $0x10] sm:$0xff] %vm10046, %v10025
    %10049 = vst.msk [vmem:[#allocation6 + $0x20] sm:$0xff] %vm10046, %v10027
    %10050 = vst.msk [vmem:[#allocation6 + $0x30] sm:$0xff] %vm10046, %v10029
    %10051 = vst.msk [vmem:[#allocation6 + $0x40] sm:$0xff] %vm10046, %v10031
    %10052 = vst.msk [vmem:[#allocation6 + $0x50] sm:$0xff] %vm10046, %v10033
    %10053 = vst.msk [vmem:[#allocation6 + $0x60] sm:$0xff] %vm10046, %v10035
    %10054 = vst.msk [vmem:[#allocation6 + $0x70] sm:$0xff] %vm10046, %v10037
    %v10055 = vld [vmem:[%s9588] sm:$0x1e]
    %v10056 = vld [vmem:[%s9588 + $0x8] sm:$0x1e]
    %v10057 = vld [vmem:[%s9588 + $0x10] sm:$0x1e]
    %v10058 = vld [vmem:[%s9588 + $0x18] sm:$0x1e]
    %v10059 = vld [vmem:[%s9588 + $0x20] sm:$0x1e]
    %v10060 = vld [vmem:[%s9588 + $0x28] sm:$0x1e]
    %v10061 = vld [vmem:[%s9588 + $0x30] sm:$0x1e]
    %v10062 = vld [vmem:[%s9588 + $0x38] sm:$0x1e]
    %v10063 = vld [vmem:[%s9588 + $0x50] sm:$0x1e]
    %v10064 = vld [vmem:[%s9588 + $0x58] sm:$0x1e]
    %v10065 = vld [vmem:[%s9588 + $0x60] sm:$0x1e]
    %v10066 = vld [vmem:[%s9588 + $0x68] sm:$0x1e]
    %v10067 = vld [vmem:[%s9588 + $0x70] sm:$0x1e]
    %v10068 = vld [vmem:[%s9588 + $0x78] sm:$0x1e]
    %v10069 = vld [vmem:[%s9588 + $0x80] sm:$0x1e]
    %v10070 = vld [vmem:[%s9588 + $0x88] sm:$0x1e]
    %v10087 = vunpack.c.l.b16 %v10055
    %v10088 = vunpack.c.h.b16 %v10055
    %v10089 = vunpack.c.l.b16 %v10056
    %v10090 = vunpack.c.h.b16 %v10056
    %v10091 = vunpack.c.l.b16 %v10057
    %v10092 = vunpack.c.h.b16 %v10057
    %v10093 = vunpack.c.l.b16 %v10058
    %v10094 = vunpack.c.h.b16 %v10058
    %v10095 = vunpack.c.l.b16 %v10059
    %v10096 = vunpack.c.h.b16 %v10059
    %v10097 = vunpack.c.l.b16 %v10060
    %v10098 = vunpack.c.h.b16 %v10060
    %v10099 = vunpack.c.l.b16 %v10061
    %v10100 = vunpack.c.h.b16 %v10061
    %v10101 = vunpack.c.l.b16 %v10062
    %v10102 = vunpack.c.h.b16 %v10062
    %v10103 = vunpack.c.l.b16 %v10063
    %v10104 = vunpack.c.h.b16 %v10063
    %v10105 = vunpack.c.l.b16 %v10064
    %v10106 = vunpack.c.h.b16 %v10064
    %v10107 = vunpack.c.l.b16 %v10065
    %v10108 = vunpack.c.h.b16 %v10065
    %v10109 = vunpack.c.l.b16 %v10066
    %v10110 = vunpack.c.h.b16 %v10066
    %v10111 = vunpack.c.l.b16 %v10067
    %v10112 = vunpack.c.h.b16 %v10067
    %v10113 = vunpack.c.l.b16 %v10068
    %v10114 = vunpack.c.h.b16 %v10068
    %v10115 = vunpack.c.l.b16 %v10069
    %v10116 = vunpack.c.h.b16 %v10069
    %v10117 = vunpack.c.l.b16 %v10070
    %v10118 = vunpack.c.h.b16 %v10070
    %v10119 = vpack.c.b16 %v10087, %v10087
    %v10120 = vpack.c.b16 %v10088, %v10088
    %v10121 = vpack.c.b16 %v10089, %v10089
    %v10122 = vpack.c.b16 %v10090, %v10090
    %v10123 = vpack.c.b16 %v10091, %v10091
    %v10124 = vpack.c.b16 %v10092, %v10092
    %v10125 = vpack.c.b16 %v10093, %v10093
    %v10126 = vpack.c.b16 %v10094, %v10094
    %v10127 = vpack.c.b16 %v10095, %v10095
    %v10128 = vpack.c.b16 %v10096, %v10096
    %v10129 = vpack.c.b16 %v10097, %v10097
    %v10130 = vpack.c.b16 %v10098, %v10098
    %v10131 = vpack.c.b16 %v10099, %v10099
    %v10132 = vpack.c.b16 %v10100, %v10100
    %v10133 = vpack.c.b16 %v10101, %v10101
    %v10134 = vpack.c.b16 %v10102, %v10102
    %v10135 = vpack.c.b16 %v10103, %v10103
    %v10136 = vpack.c.b16 %v10104, %v10104
    %v10137 = vpack.c.b16 %v10105, %v10105
    %v10138 = vpack.c.b16 %v10106, %v10106
    %v10139 = vpack.c.b16 %v10107, %v10107
    %v10140 = vpack.c.b16 %v10108, %v10108
    %v10141 = vpack.c.b16 %v10109, %v10109
    %v10142 = vpack.c.b16 %v10110, %v10110
    %v10143 = vpack.c.b16 %v10111, %v10111
    %v10144 = vpack.c.b16 %v10112, %v10112
    %v10145 = vpack.c.b16 %v10113, %v10113
    %v10146 = vpack.c.b16 %v10114, %v10114
    %v10147 = vpack.c.b16 %v10115, %v10115
    %v10148 = vpack.c.b16 %v10116, %v10116
    %v10149 = vpack.c.b16 %v10117, %v10117
    %v10150 = vpack.c.b16 %v10118, %v10118
    %v10151 = vrot.slane %v10119, 5
    %v10152 = vrot.slane %v10151, 4
    %v10153 = vrot.slane %v10120, 5
    %v10154 = vsel %vm2675, %v10152, %v10153
    %v10155 = vrot.slane %v10121, 5
    %v10156 = vrot.slane %v10155, 4
    %v10157 = vrot.slane %v10122, 5
    %v10158 = vsel %vm2675, %v10156, %v10157
    %v10159 = vrot.slane %v10123, 5
    %v10160 = vrot.slane %v10159, 4
    %v10161 = vrot.slane %v10124, 5
    %v10162 = vsel %vm2675, %v10160, %v10161
    %v10163 = vrot.slane %v10125, 5
    %v10164 = vrot.slane %v10163, 4
    %v10165 = vrot.slane %v10126, 5
    %v10166 = vsel %vm2675, %v10164, %v10165
    %v10167 = vrot.slane %v10127, 5
    %v10168 = vrot.slane %v10167, 4
    %v10169 = vrot.slane %v10128, 5
    %v10170 = vsel %vm2675, %v10168, %v10169
    %v10171 = vrot.slane %v10129, 5
    %v10172 = vrot.slane %v10171, 4
    %v10173 = vrot.slane %v10130, 5
    %v10174 = vsel %vm2675, %v10172, %v10173
    %v10175 = vrot.slane %v10131, 5
    %v10176 = vrot.slane %v10175, 4
    %v10177 = vrot.slane %v10132, 5
    %v10178 = vsel %vm2675, %v10176, %v10177
    %v10179 = vrot.slane %v10133, 5
    %v10180 = vrot.slane %v10179, 4
    %v10181 = vrot.slane %v10134, 5
    %v10182 = vsel %vm2675, %v10180, %v10181
    %v10183 = vrot.slane %v10135, 5
    %v10184 = vrot.slane %v10183, 4
    %v10185 = vrot.slane %v10136, 5
    %v10186 = vsel %vm2675, %v10184, %v10185
    %v10187 = vrot.slane %v10137, 5
    %v10188 = vrot.slane %v10187, 4
    %v10189 = vrot.slane %v10138, 5
    %v10190 = vsel %vm2675, %v10188, %v10189
    %v10191 = vrot.slane %v10139, 5
    %v10192 = vrot.slane %v10191, 4
    %v10193 = vrot.slane %v10140, 5
    %v10194 = vsel %vm2675, %v10192, %v10193
    %v10195 = vrot.slane %v10141, 5
    %v10196 = vrot.slane %v10195, 4
    %v10197 = vrot.slane %v10142, 5
    %v10198 = vsel %vm2675, %v10196, %v10197
    %v10199 = vrot.slane %v10143, 5
    %v10200 = vrot.slane %v10199, 4
    %v10201 = vrot.slane %v10144, 5
    %v10202 = vsel %vm2675, %v10200, %v10201
    %v10203 = vrot.slane %v10145, 5
    %v10204 = vrot.slane %v10203, 4
    %v10205 = vrot.slane %v10146, 5
    %v10206 = vsel %vm2675, %v10204, %v10205
    %v10207 = vrot.slane %v10147, 5
    %v10208 = vrot.slane %v10207, 4
    %v10209 = vrot.slane %v10148, 5
    %v10210 = vsel %vm2675, %v10208, %v10209
    %v10211 = vrot.slane %v10149, 5
    %v10212 = vrot.slane %v10211, 4
    %v10213 = vrot.slane %v10150, 5
    %v10214 = vsel %vm2675, %v10212, %v10213
    %v10215 = vunpack.c.l.b16 %v10154
    %v10216 = vunpack.c.l.b16 %v10158
    %v10217 = vunpack.c.l.b16 %v10162
    %v10218 = vunpack.c.l.b16 %v10166
    %v10219 = vunpack.c.l.b16 %v10170
    %v10220 = vunpack.c.l.b16 %v10174
    %v10221 = vunpack.c.l.b16 %v10178
    %v10222 = vunpack.c.l.b16 %v10182
    %v10223 = vunpack.c.l.b16 %v10186
    %v10224 = vunpack.c.l.b16 %v10190
    %v10225 = vunpack.c.l.b16 %v10194
    %v10226 = vunpack.c.l.b16 %v10198
    %v10227 = vunpack.c.l.b16 %v10202
    %v10228 = vunpack.c.l.b16 %v10206
    %v10229 = vunpack.c.l.b16 %v10210
    %v10230 = vunpack.c.l.b16 %v10214
    %v10231 = vpack.c.b16 %v10216, %v10215
    %v10232 = vpack.c.b16 %v10218, %v10217
    %v10233 = vpack.c.b16 %v10220, %v10219
    %v10234 = vpack.c.b16 %v10222, %v10221
    %v10235 = vpack.c.b16 %v10224, %v10223
    %v10236 = vpack.c.b16 %v10226, %v10225
    %v10237 = vpack.c.b16 %v10228, %v10227
    %v10238 = vpack.c.b16 %v10230, %v10229
    %10247 = vst.msk [vmem:[#allocation6 + $0x8] sm:$0xff] %vm7803, %v10231
    %10248 = vst.msk [vmem:[#allocation6 + $0x18] sm:$0xff] %vm7803, %v10232
    %10249 = vst.msk [vmem:[#allocation6 + $0x28] sm:$0xff] %vm7803, %v10233
    %10250 = vst.msk [vmem:[#allocation6 + $0x38] sm:$0xff] %vm7803, %v10234
    %10251 = vst.msk [vmem:[#allocation6 + $0x48] sm:$0xff] %vm7803, %v10235
    %10252 = vst.msk [vmem:[#allocation6 + $0x58] sm:$0xff] %vm7803, %v10236
    %10253 = vst.msk [vmem:[#allocation6 + $0x68] sm:$0xff] %vm7803, %v10237
    %10254 = vst.msk [vmem:[#allocation6 + $0x78] sm:$0xff] %vm7803, %v10238
    %v10255 = vld [vmem:[#allocation6] sm:$0xff]
    %v10256 = vld [vmem:[#allocation6 + $0x8] sm:$0xff]
    %v10257 = vld [vmem:[#allocation6 + $0x10] sm:$0xff]
    %v10258 = vld [vmem:[#allocation6 + $0x18] sm:$0xff]
    %v10259 = vld [vmem:[#allocation6 + $0x20] sm:$0xff]
    %v10260 = vld [vmem:[#allocation6 + $0x28] sm:$0xff]
    %v10261 = vld [vmem:[#allocation6 + $0x30] sm:$0xff]
    %v10262 = vld [vmem:[#allocation6 + $0x38] sm:$0xff]
    %v10263 = vld [vmem:[#allocation6 + $0x40] sm:$0xff]
    %v10264 = vld [vmem:[#allocation6 + $0x48] sm:$0xff]
    %v10265 = vld [vmem:[#allocation6 + $0x50] sm:$0xff]
    %v10266 = vld [vmem:[#allocation6 + $0x58] sm:$0xff]
    %v10267 = vld [vmem:[#allocation6 + $0x60] sm:$0xff]
    %v10268 = vld [vmem:[#allocation6 + $0x68] sm:$0xff]
    %v10269 = vld [vmem:[#allocation6 + $0x70] sm:$0xff]
    %v10270 = vld [vmem:[#allocation6 + $0x78] sm:$0xff]
    %v10271 = vld [vmem:[%s3] sm:$0xf]
    %v10272 = vld [vmem:[%s3 + $0x4] sm:$0xf]
    %v10273 = vld [vmem:[%s3 + $0x8] sm:$0xf]
    %v10274 = vld [vmem:[%s3 + $0xc] sm:$0xf]
    %v10275 = vld [vmem:[%s3 + $0x10] sm:$0xf]
    %v10276 = vld [vmem:[%s3 + $0x14] sm:$0xf]
    %v10277 = vld [vmem:[%s3 + $0x18] sm:$0xf]
    %v10278 = vld [vmem:[%s3 + $0x1c] sm:$0xf]
    %v10279 = vld [vmem:[%s3 + $0x20] sm:$0xf]
    %v10280 = vld [vmem:[%s3 + $0x24] sm:$0xf]
    %v10281 = vld [vmem:[%s3 + $0x28] sm:$0xf]
    %v10282 = vld [vmem:[%s3 + $0x2c] sm:$0xf]
    %v10283 = vld [vmem:[%s3 + $0x30] sm:$0xf]
    %v10284 = vld [vmem:[%s3 + $0x34] sm:$0xf]
    %v10285 = vld [vmem:[%s3 + $0x38] sm:$0xf]
    %v10286 = vld [vmem:[%s3 + $0x3c] sm:$0xf]
    %v10287 = vld [vmem:[%s3 + $0x40] sm:$0xf]
    %v10288 = vld [vmem:[%s3 + $0x44] sm:$0xf]
    %v10289 = vld [vmem:[%s4] sm:$0x1]
    %v10291 = vlaneseq
    %v10292 = vshrl.u32 %v10291, 7
    %v10293 = vsub.s32 0, %v10292
    %v10294 = vrot.slane %v10289, %v10293
    %v10314 = vunpack.c.l.b16 %v10271
    %v10315 = vunpack.c.l.b16 %v10272
    %v10316 = vunpack.c.l.b16 %v10273
    %v10317 = vunpack.c.l.b16 %v10274
    %v10318 = vunpack.c.l.b16 %v10275
    %v10319 = vunpack.c.l.b16 %v10276
    %v10320 = vunpack.c.l.b16 %v10277
    %v10321 = vunpack.c.l.b16 %v10278
    %v10322 = vunpack.c.l.b16 %v10279
    %v10323 = vunpack.c.l.b16 %v10280
    %v10324 = vunpack.c.l.b16 %v10281
    %v10325 = vunpack.c.l.b16 %v10282
    %v10326 = vunpack.c.l.b16 %v10283
    %v10327 = vunpack.c.l.b16 %v10284
    %v10328 = vunpack.c.l.b16 %v10285
    %v10329 = vunpack.c.l.b16 %v10286
    %v10330 = vunpack.c.l.b16 %v10287
    %v10331 = vunpack.c.l.b16 %v10288
    %v10332 = vpack.c.b16 %v10315, %v10314
    %v10333 = vpack.c.b16 %v10317, %v10316
    %v10334 = vpack.c.b16 %v10319, %v10318
    %v10335 = vpack.c.b16 %v10321, %v10320
    %v10336 = vpack.c.b16 %v10323, %v10322
    %v10337 = vpack.c.b16 %v10325, %v10324
    %v10338 = vpack.c.b16 %v10327, %v10326
    %v10339 = vpack.c.b16 %v10329, %v10328
    %v10340 = vpack.c.b16 %v10331, %v10330
    %v10351 = vsel %vm7803, %v10256, 0
    %v10354 = vsel %vm7803, %v10258, 0
    %v10357 = vsel %vm7803, %v10260, 0
    %v10360 = vsel %vm7803, %v10262, 0
    %v10363 = vsel %vm7803, %v10264, 0
    %v10366 = vsel %vm7803, %v10266, 0
    %v10369 = vsel %vm7803, %v10268, 0
    %v10372 = vsel %vm7803, %v10270, 0
    %10374 = vmatprep.subr.bf16.mxu0 0
    %10375 = vmatpush1.bf16.msra.mxu0 %v10332
    %10376 = vmatprep.subr.bf16.mxu0 0
    %10377 = vmatpush1.bf16.msra.mxu0 %v10333
    %10378 = vmatprep.subr.bf16.mxu0 0
    %10379 = vmatpush1.bf16.msra.mxu0 %v10334
    %10380 = vmatprep.subr.bf16.mxu0 0
    %10381 = vmatpush1.bf16.msra.mxu0 %v10335
    %10382 = vmatprep.subr.bf16.mxu0 0
    %10383 = vmatpush1.bf16.msra.mxu0 %v10336
    %10384 = vmatprep.subr.bf16.mxu0 0
    %10385 = vmatpush1.bf16.msra.mxu0 %v10337
    %10386 = vmatprep.subr.bf16.mxu0 0
    %10387 = vmatpush1.bf16.msra.mxu0 %v10338
    %10388 = vmatprep.subr.bf16.mxu0 0
    %10389 = vmatpush1.bf16.msra.mxu0 %v10339
    %10390 = vmatprep.subr.bf16.mxu0 0
    %10391 = vmatpush1.bf16.msra.mxu0 %v10340
    %10392 = vmatprep.subr.bf16.mxu0 0
    %10393 = vmatpush1.bf16.msra.mxu0 0
    %10394 = vmatprep.subr.bf16.mxu0 0
    %10395 = vmatpush1.bf16.msra.mxu0 0
    %10396 = vmatprep.subr.bf16.mxu0 0
    %10397 = vmatpush1.bf16.msra.mxu0 0
    %10398 = vmatprep.subr.bf16.mxu0 0
    %10399 = vmatpush1.bf16.msra.mxu0 0
    %10400 = vmatprep.subr.bf16.mxu0 0
    %10401 = vmatpush1.bf16.msra.mxu0 0
    %10402 = vmatprep.subr.bf16.mxu0 0
    %10403 = vmatpush1.bf16.msra.mxu0 0
    %10404 = vmatprep.subr.bf16.mxu0 0
    %10405 = vmatpush1.bf16.msra.mxu0 0
    %10406 = vmatprep.mubr.bf16.mxu0 %v10351
    %10407 = vmatmul.mubr.bf16.gmra.mrb[0].mxu0 %v10255
    %v10408 = vpop.f32.mrb[0].mxu0
    %v10409 = vadd.f32 %v10294, %v10408
    %v10410 = vpop.f32.mrb[0].mxu0
    %v10411 = vpop.f32.mrb[0].mxu0
    %v10412 = vadd.f32 %v10294, %v10411
    %v10413 = vpop.f32.mrb[0].mxu0
    %10414 = vmatprep.mubr.bf16.mxu0 %v10354
    %10415 = vmatmul.mubr.bf16.gmra.mrb[0].mxu0 %v10257
    %v10416 = vpop.f32.mrb[0].mxu0
    %v10417 = vadd.f32 %v10294, %v10416
    %v10418 = vpop.f32.mrb[0].mxu0
    %v10419 = vpop.f32.mrb[0].mxu0
    %v10420 = vadd.f32 %v10294, %v10419
    %v10421 = vpop.f32.mrb[0].mxu0
    %10422 = vmatprep.mubr.bf16.mxu0 %v10357
    %10423 = vmatmul.mubr.bf16.gmra.mrb[0].mxu0 %v10259
    %v10424 = vpop.f32.mrb[0].mxu0
    %v10425 = vadd.f32 %v10294, %v10424
    %v10426 = vpop.f32.mrb[0].mxu0
    %v10427 = vpop.f32.mrb[0].mxu0
    %v10428 = vadd.f32 %v10294, %v10427
    %v10429 = vpop.f32.mrb[0].mxu0
    %10430 = vmatprep.mubr.bf16.mxu0 %v10360
    %10431 = vmatmul.mubr.bf16.gmra.mrb[0].mxu0 %v10261
    %v10432 = vpop.f32.mrb[0].mxu0
    %v10433 = vadd.f32 %v10294, %v10432
    %v10434 = vpop.f32.mrb[0].mxu0
    %v10435 = vpop.f32.mrb[0].mxu0
    %v10436 = vadd.f32 %v10294, %v10435
    %v10437 = vpop.f32.mrb[0].mxu0
    %10438 = vmatprep.mubr.bf16.mxu0 %v10363
    %10439 = vmatmul.mubr.bf16.gmra.mrb[0].mxu0 %v10263
    %v10440 = vpop.f32.mrb[0].mxu0
    %v10441 = vadd.f32 %v10294, %v10440
    %v10442 = vpop.f32.mrb[0].mxu0
    %v10443 = vpop.f32.mrb[0].mxu0
    %v10444 = vadd.f32 %v10294, %v10443
    %v10445 = vpop.f32.mrb[0].mxu0
    %10446 = vmatprep.mubr.bf16.mxu0 %v10366
    %10447 = vmatmul.mubr.bf16.gmra.mrb[0].mxu0 %v10265
    %v10448 = vpop.f32.mrb[0].mxu0
    %v10449 = vadd.f32 %v10294, %v10448
    %v10450 = vpop.f32.mrb[0].mxu0
    %v10451 = vpop.f32.mrb[0].mxu0
    %v10452 = vadd.f32 %v10294, %v10451
    %v10453 = vpop.f32.mrb[0].mxu0
    %10454 = vmatprep.mubr.bf16.mxu0 %v10369
    %10455 = vmatmul.mubr.bf16.gmra.mrb[0].mxu0 %v10267
    %v10456 = vpop.f32.mrb[0].mxu0
    %v10457 = vadd.f32 %v10294, %v10456
    %v10458 = vpop.f32.mrb[0].mxu0
    %v10459 = vpop.f32.mrb[0].mxu0
    %v10460 = vadd.f32 %v10294, %v10459
    %v10461 = vpop.f32.mrb[0].mxu0
    %10462 = vmatprep.mubr.bf16.mxu0 %v10372
    %10463 = vmatmul.mubr.bf16.gmra.mrb[0].mxu0 %v10269
    %v10464 = vpop.f32.mrb[0].mxu0
    %v10465 = vadd.f32 %v10294, %v10464
    %v10466 = vpop.f32.mrb[0].mxu0
    %v10467 = vpop.f32.mrb[0].mxu0
    %v10468 = vadd.f32 %v10294, %v10467
    %v10469 = vpop.f32.mrb[0].mxu0
    %10470 = vdwg.mxu0
    %v10471 = vmax.f32 %v10409, 0.0
    %v10472 = vmax.f32 %v10412, 0.0
    %v10473 = vmax.f32 %v10417, 0.0
    %v10474 = vmax.f32 %v10420, 0.0
    %v10475 = vmax.f32 %v10425, 0.0
    %v10476 = vmax.f32 %v10428, 0.0
    %v10477 = vmax.f32 %v10433, 0.0
    %v10478 = vmax.f32 %v10436, 0.0
    %v10479 = vmax.f32 %v10441, 0.0
    %v10480 = vmax.f32 %v10444, 0.0
    %v10481 = vmax.f32 %v10449, 0.0
    %v10482 = vmax.f32 %v10452, 0.0
    %v10483 = vmax.f32 %v10457, 0.0
    %v10484 = vmax.f32 %v10460, 0.0
    %v10485 = vmax.f32 %v10465, 0.0
    %v10486 = vmax.f32 %v10468, 0.0
    %vm10487 = vcmask 261120
    %10488 = vst.msk [vmem:[#allocation7] sm:$0xff] %vm10487, %v10471
    %10489 = vst.msk [vmem:[#allocation7 + $0x8] sm:$0xff] %vm10487, %v10472
    %10490 = vst.msk [vmem:[#allocation7 + $0x10] sm:$0xff] %vm10487, %v10473
    %10491 = vst.msk [vmem:[#allocation7 + $0x18] sm:$0xff] %vm10487, %v10474
    %10492 = vst.msk [vmem:[#allocation7 + $0x20] sm:$0xff] %vm10487, %v10475
    %10493 = vst.msk [vmem:[#allocation7 + $0x28] sm:$0xff] %vm10487, %v10476
    %10494 = vst.msk [vmem:[#allocation7 + $0x30] sm:$0xff] %vm10487, %v10477
    %10495 = vst.msk [vmem:[#allocation7 + $0x38] sm:$0xff] %vm10487, %v10478
    %10496 = vst.msk [vmem:[#allocation7 + $0x40] sm:$0xff] %vm10487, %v10479
    %10497 = vst.msk [vmem:[#allocation7 + $0x48] sm:$0xff] %vm10487, %v10480
    %10498 = vst.msk [vmem:[#allocation7 + $0x50] sm:$0xff] %vm10487, %v10481
    %10499 = vst.msk [vmem:[#allocation7 + $0x58] sm:$0xff] %vm10487, %v10482
    %10500 = vst.msk [vmem:[#allocation7 + $0x60] sm:$0xff] %vm10487, %v10483
    %10501 = vst.msk [vmem:[#allocation7 + $0x68] sm:$0xff] %vm10487, %v10484
    %10502 = vst.msk [vmem:[#allocation7 + $0x70] sm:$0xff] %vm10487, %v10485
    %10503 = vst.msk [vmem:[#allocation7 + $0x78] sm:$0xff] %vm10487, %v10486
    %v10504 = vld [vmem:[#allocation7] ss:$2 sm:$0xf]
    %s10505 = scalar_lea.vmem [#allocation7], 8
    %v10506 = vld [vmem:[%s10505] ss:$2 sm:$0xf]
    %s10507 = scalar_lea.vmem [#allocation7], 16
    %v10508 = vld [vmem:[%s10507] ss:$2 sm:$0xf]
    %s10509 = scalar_lea.vmem [#allocation7], 24
    %v10510 = vld [vmem:[%s10509] ss:$2 sm:$0xf]
    %s10511 = scalar_lea.vmem [#allocation7], 32
    %v10512 = vld [vmem:[%s10511] ss:$2 sm:$0xf]
    %s10513 = scalar_lea.vmem [#allocation7], 40
    %v10514 = vld [vmem:[%s10513] ss:$2 sm:$0xf]
    %s10515 = scalar_lea.vmem [#allocation7], 48
    %v10516 = vld [vmem:[%s10515] ss:$2 sm:$0xf]
    %s10517 = scalar_lea.vmem [#allocation7], 56
    %v10518 = vld [vmem:[%s10517] ss:$2 sm:$0xf]
    %s10519 = scalar_lea.vmem [#allocation7], 64
    %v10520 = vld [vmem:[%s10519] ss:$2 sm:$0xf]
    %s10521 = scalar_lea.vmem [#allocation7], 72
    %v10522 = vld [vmem:[%s10521] ss:$2 sm:$0xf]
    %s10523 = scalar_lea.vmem [#allocation7], 80
    %v10524 = vld [vmem:[%s10523] ss:$2 sm:$0xf]
    %s10525 = scalar_lea.vmem [#allocation7], 88
    %v10526 = vld [vmem:[%s10525] ss:$2 sm:$0xf]
    %s10527 = scalar_lea.vmem [#allocation7], 96
    %v10528 = vld [vmem:[%s10527] ss:$2 sm:$0xf]
    %s10529 = scalar_lea.vmem [#allocation7], 104
    %v10530 = vld [vmem:[%s10529] ss:$2 sm:$0xf]
    %s10531 = scalar_lea.vmem [#allocation7], 112
    %v10532 = vld [vmem:[%s10531] ss:$2 sm:$0xf]
    %s10533 = scalar_lea.vmem [#allocation7], 120
    %v10534 = vld [vmem:[%s10533] ss:$2 sm:$0xf]
    %s10535 = scalar_lea.vmem [#allocation7], 1
    %v10536 = vld [vmem:[%s10535] ss:$2 sm:$0xf]
    %s10537 = scalar_lea.vmem [#allocation7], 9
    %v10538 = vld [vmem:[%s10537] ss:$2 sm:$0xf]
    %s10539 = scalar_lea.vmem [#allocation7], 17
    %v10540 = vld [vmem:[%s10539] ss:$2 sm:$0xf]
    %s10541 = scalar_lea.vmem [#allocation7], 25
    %v10542 = vld [vmem:[%s10541] ss:$2 sm:$0xf]
    %s10543 = scalar_lea.vmem [#allocation7], 33
    %v10544 = vld [vmem:[%s10543] ss:$2 sm:$0xf]
    %s10545 = scalar_lea.vmem [#allocation7], 41
    %v10546 = vld [vmem:[%s10545] ss:$2 sm:$0xf]
    %s10547 = scalar_lea.vmem [#allocation7], 49
    %v10548 = vld [vmem:[%s10547] ss:$2 sm:$0xf]
    %s10549 = scalar_lea.vmem [#allocation7], 57
    %v10550 = vld [vmem:[%s10549] ss:$2 sm:$0xf]
    %s10551 = scalar_lea.vmem [#allocation7], 65
    %v10552 = vld [vmem:[%s10551] ss:$2 sm:$0xf]
    %s10553 = scalar_lea.vmem [#allocation7], 73
    %v10554 = vld [vmem:[%s10553] ss:$2 sm:$0xf]
    %s10555 = scalar_lea.vmem [#allocation7], 81
    %v10556 = vld [vmem:[%s10555] ss:$2 sm:$0xf]
    %s10557 = scalar_lea.vmem [#allocation7], 89
    %v10558 = vld [vmem:[%s10557] ss:$2 sm:$0xf]
    %s10559 = scalar_lea.vmem [#allocation7], 97
    %v10560 = vld [vmem:[%s10559] ss:$2 sm:$0xf]
    %s10561 = scalar_lea.vmem [#allocation7], 105
    %v10562 = vld [vmem:[%s10561] ss:$2 sm:$0xf]
    %s10563 = scalar_lea.vmem [#allocation7], 113
    %v10564 = vld [vmem:[%s10563] ss:$2 sm:$0xf]
    %s10565 = scalar_lea.vmem [#allocation7], 121
    %v10566 = vld [vmem:[%s10565] ss:$2 sm:$0xf]
    %v10567 = vmax.f32 %v10504, %v10536
    %v10568 = vmax.f32 %v10506, %v10538
    %v10569 = vmax.f32 %v10508, %v10540
    %v10570 = vmax.f32 %v10510, %v10542
    %v10571 = vmax.f32 %v10512, %v10544
    %v10572 = vmax.f32 %v10514, %v10546
    %v10573 = vmax.f32 %v10516, %v10548
    %v10574 = vmax.f32 %v10518, %v10550
    %v10575 = vmax.f32 %v10520, %v10552
    %v10576 = vmax.f32 %v10522, %v10554
    %v10577 = vmax.f32 %v10524, %v10556
    %v10578 = vmax.f32 %v10526, %v10558
    %v10579 = vmax.f32 %v10528, %v10560
    %v10580 = vmax.f32 %v10530, %v10562
    %v10581 = vmax.f32 %v10532, %v10564
    %v10582 = vmax.f32 %v10534, %v10566
    %v10583 = vmax.f32 %v10567, %v10568
    %v10584 = vmax.f32 %v10569, %v10570
    %v10585 = vmax.f32 %v10571, %v10572
    %v10586 = vmax.f32 %v10573, %v10574
    %v10587 = vmax.f32 %v10575, %v10576
    %v10588 = vmax.f32 %v10577, %v10578
    %v10589 = vmax.f32 %v10579, %v10580
    %v10590 = vmax.f32 %v10581, %v10582
    %v10591 = vpack.c.bf16 %v10583, %v10583
    %v10592 = vpack.c.bf16 %v10584, %v10584
    %v10593 = vpack.c.bf16 %v10585, %v10585
    %v10594 = vpack.c.bf16 %v10586, %v10586
    %v10595 = vpack.c.bf16 %v10587, %v10587
    %v10596 = vpack.c.bf16 %v10588, %v10588
    %v10597 = vpack.c.bf16 %v10589, %v10589
    %v10598 = vpack.c.bf16 %v10590, %v10590
    %v10602 = vunpack.c.l.s4 1966171168
    %v10603 = vunpack.c.0.s8 %v10602
    %v10604 = vlaneseq
    %v10605 = vshrl.u32 %v10604, 7
    %v10606 = vsub.s32 %v10603, %v10605
    %v10607 = vrot.slane %v10591, %v10606
    %v10609 = vunpack.c.l.s4 1966171168
    %v10610 = vunpack.c.0.s8 %v10609
    %v10611 = vlaneseq
    %v10612 = vshrl.u32 %v10611, 7
    %v10613 = vsub.s32 %v10610, %v10612
    %v10614 = vrot.slane %v10607, %v10613
    %v10616 = vunpack.c.l.s4 1966171168
    %v10617 = vunpack.c.0.s8 %v10616
    %v10618 = vlaneseq
    %v10619 = vshrl.u32 %v10618, 7
    %v10620 = vsub.s32 %v10617, %v10619
    %v10621 = vrot.slane %v10595, %v10620
    %v10623 = vunpack.c.l.s4 1966171168
    %v10624 = vunpack.c.0.s8 %v10623
    %v10625 = vlaneseq
    %v10626 = vshrl.u32 %v10625, 7
    %v10627 = vsub.s32 %v10624, %v10626
    %v10628 = vrot.slane %v10621, %v10627
    %v10630 = vunpack.c.l.s4 1935823168
    %v10631 = vunpack.c.0.s8 %v10630
    %v10632 = vlaneseq
    %v10633 = vshrl.u32 %v10632, 7
    %v10634 = vsub.s32 %v10631, %v10633
    %v10635 = vrot.slane %v10614, %v10634
    %v10637 = vunpack.c.l.s4 1935823168
    %v10638 = vunpack.c.0.s8 %v10637
    %v10639 = vlaneseq
    %v10640 = vshrl.u32 %v10639, 7
    %v10641 = vsub.s32 %v10638, %v10640
    %v10642 = vrot.slane %v10635, %v10641
    %v10644 = vunpack.c.l.s4 1935823168
    %v10645 = vunpack.c.0.s8 %v10644
    %v10646 = vlaneseq
    %v10647 = vshrl.u32 %v10646, 7
    %v10648 = vsub.s32 %v10645, %v10647
    %v10649 = vrot.slane %v10628, %v10648
    %v10651 = vunpack.c.l.s4 1935823168
    %v10652 = vunpack.c.0.s8 %v10651
    %v10653 = vlaneseq
    %v10654 = vshrl.u32 %v10653, 7
    %v10655 = vsub.s32 %v10652, %v10654
    %v10656 = vrot.slane %v10649, %v10655
    %v10657 = vunpack.c.l.b16 %v10642
    %v10658 = vunpack.c.l.b16 %v10656
    %v10659 = vrot.slane %v10658, 7
    %vm10660 = vcmask 1041409
    %v10661 = vsel %vm10660, %v10659, %v10657
    %v10662 = vpack.c.b16 %v10661, %v10661
    %v10664 = vunpack.c.l.s4 1966171168
    %v10665 = vunpack.c.0.s8 %v10664
    %v10666 = vlaneseq
    %v10667 = vshrl.u32 %v10666, 7
    %v10668 = vsub.s32 %v10665, %v10667
    %v10669 = vrot.slane %v10662, %v10668
    %v10671 = vunpack.c.l.s4 1966171168
    %v10672 = vunpack.c.0.s8 %v10671
    %v10673 = vlaneseq
    %v10674 = vshrl.u32 %v10673, 7
    %v10675 = vsub.s32 %v10672, %v10674
    %v10676 = vrot.slane %v10669, %v10675
    %vm10678 = vcmask 253952
    %10679 = vst.msk [vmem:[#allocation8] sm:$0x1] %vm10678, %v10676
    %v10680 = vrot.slane %v10657, 1
    %v10681 = vsel %vm10660, %v10658, %v10680
    %v10682 = vpack.c.b16 %v10681, %v10681
    %v10684 = vunpack.c.l.s4 1966171168
    %v10685 = vunpack.c.0.s8 %v10684
    %v10686 = vlaneseq
    %v10687 = vshrl.u32 %v10686, 7
    %v10688 = vsub.s32 %v10685, %v10687
    %v10689 = vrot.slane %v10682, %v10688
    %v10691 = vunpack.c.l.s4 1966171168
    %v10692 = vunpack.c.0.s8 %v10691
    %v10693 = vlaneseq
    %v10694 = vshrl.u32 %v10693, 7
    %v10695 = vsub.s32 %v10692, %v10694
    %v10696 = vrot.slane %v10689, %v10695
    %10697 = vrot.lane.b32.xlu0 %v10696, 32
    %v10698 = vpop.permute.xlu0 %10697
    %vm10700 = vcmask 516352
    %10701 = vst.msk [vmem:[#allocation8] sm:$0x1] %vm10700, %v10698
    %v10702 = vcombine.high %v10607, %v10607
    %v10704 = vunpack.c.l.s4 1966171168
    %v10705 = vunpack.c.0.s8 %v10704
    %v10706 = vlaneseq
    %v10707 = vshrl.u32 %v10706, 7
    %v10708 = vsub.s32 %v10705, %v10707
    %v10709 = vrot.slane %v10702, %v10708
    %v10710 = vcombine.high %v10621, %v10621
    %v10712 = vunpack.c.l.s4 1966171168
    %v10713 = vunpack.c.0.s8 %v10712
    %v10714 = vlaneseq
    %v10715 = vshrl.u32 %v10714, 7
    %v10716 = vsub.s32 %v10713, %v10715
    %v10717 = vrot.slane %v10710, %v10716
    %v10719 = vunpack.c.l.s4 1935823168
    %v10720 = vunpack.c.0.s8 %v10719
    %v10721 = vlaneseq
    %v10722 = vshrl.u32 %v10721, 7
    %v10723 = vsub.s32 %v10720, %v10722
    %v10724 = vrot.slane %v10709, %v10723
    %v10726 = vunpack.c.l.s4 1935823168
    %v10727 = vunpack.c.0.s8 %v10726
    %v10728 = vlaneseq
    %v10729 = vshrl.u32 %v10728, 7
    %v10730 = vsub.s32 %v10727, %v10729
    %v10731 = vrot.slane %v10724, %v10730
    %v10733 = vunpack.c.l.s4 1935823168
    %v10734 = vunpack.c.0.s8 %v10733
    %v10735 = vlaneseq
    %v10736 = vshrl.u32 %v10735, 7
    %v10737 = vsub.s32 %v10734, %v10736
    %v10738 = vrot.slane %v10717, %v10737
    %v10740 = vunpack.c.l.s4 1935823168
    %v10741 = vunpack.c.0.s8 %v10740
    %v10742 = vlaneseq
    %v10743 = vshrl.u32 %v10742, 7
    %v10744 = vsub.s32 %v10741, %v10743
    %v10745 = vrot.slane %v10738, %v10744
    %v10746 = vunpack.c.l.b16 %v10731
    %v10747 = vunpack.c.l.b16 %v10745
    %v10748 = vrot.slane %v10747, 7
    %v10749 = vsel %vm10660, %v10748, %v10746
    %v10750 = vpack.c.b16 %v10749, %v10749
    %v10752 = vunpack.c.l.s4 1966171168
    %v10753 = vunpack.c.0.s8 %v10752
    %v10754 = vlaneseq
    %v10755 = vshrl.u32 %v10754, 7
    %v10756 = vsub.s32 %v10753, %v10755
    %v10757 = vrot.slane %v10750, %v10756
    %v10759 = vunpack.c.l.s4 1966171168
    %v10760 = vunpack.c.0.s8 %v10759
    %v10761 = vlaneseq
    %v10762 = vshrl.u32 %v10761, 7
    %v10763 = vsub.s32 %v10760, %v10762
    %v10764 = vrot.slane %v10757, %v10763
    %10765 = vrot.lane.b32.xlu0 %v10764, 64
    %v10766 = vpop.permute.xlu0 %10765
    %vm10768 = vcmask 778752
    %10769 = vst.msk [vmem:[#allocation8] sm:$0x1] %vm10768, %v10766
    %v10770 = vrot.slane %v10746, 1
    %v10771 = vsel %vm10660, %v10747, %v10770
    %v10772 = vpack.c.b16 %v10771, %v10771
    %v10774 = vunpack.c.l.s4 1966171168
    %v10775 = vunpack.c.0.s8 %v10774
    %v10776 = vlaneseq
    %v10777 = vshrl.u32 %v10776, 7
    %v10778 = vsub.s32 %v10775, %v10777
    %v10779 = vrot.slane %v10772, %v10778
    %v10781 = vunpack.c.l.s4 1966171168
    %v10782 = vunpack.c.0.s8 %v10781
    %v10783 = vlaneseq
    %v10784 = vshrl.u32 %v10783, 7
    %v10785 = vsub.s32 %v10782, %v10784
    %v10786 = vrot.slane %v10779, %v10785
    %10787 = vrot.lane.b32.xlu0 %v10786, 96
    %v10788 = vpop.permute.xlu0 %10787
    %vm10790 = vcmask 1041152
    %10791 = vst.msk [vmem:[#allocation8] sm:$0x1] %vm10790, %v10788
    %v10795 = vunpack.c.l.s4 1966171168
    %v10796 = vunpack.c.0.s8 %v10795
    %v10797 = vlaneseq
    %v10798 = vshrl.u32 %v10797, 7
    %v10799 = vsub.s32 %v10796, %v10798
    %v10800 = vrot.slane %v10592, %v10799
    %v10802 = vunpack.c.l.s4 1966171168
    %v10803 = vunpack.c.0.s8 %v10802
    %v10804 = vlaneseq
    %v10805 = vshrl.u32 %v10804, 7
    %v10806 = vsub.s32 %v10803, %v10805
    %v10807 = vrot.slane %v10800, %v10806
    %v10809 = vunpack.c.l.s4 1966171168
    %v10810 = vunpack.c.0.s8 %v10809
    %v10811 = vlaneseq
    %v10812 = vshrl.u32 %v10811, 7
    %v10813 = vsub.s32 %v10810, %v10812
    %v10814 = vrot.slane %v10596, %v10813
    %v10816 = vunpack.c.l.s4 1966171168
    %v10817 = vunpack.c.0.s8 %v10816
    %v10818 = vlaneseq
    %v10819 = vshrl.u32 %v10818, 7
    %v10820 = vsub.s32 %v10817, %v10819
    %v10821 = vrot.slane %v10814, %v10820
    %v10823 = vunpack.c.l.s4 1935823168
    %v10824 = vunpack.c.0.s8 %v10823
    %v10825 = vlaneseq
    %v10826 = vshrl.u32 %v10825, 7
    %v10827 = vsub.s32 %v10824, %v10826
    %v10828 = vrot.slane %v10807, %v10827
    %v10830 = vunpack.c.l.s4 1935823168
    %v10831 = vunpack.c.0.s8 %v10830
    %v10832 = vlaneseq
    %v10833 = vshrl.u32 %v10832, 7
    %v10834 = vsub.s32 %v10831, %v10833
    %v10835 = vrot.slane %v10828, %v10834
    %v10837 = vunpack.c.l.s4 1935823168
    %v10838 = vunpack.c.0.s8 %v10837
    %v10839 = vlaneseq
    %v10840 = vshrl.u32 %v10839, 7
    %v10841 = vsub.s32 %v10838, %v10840
    %v10842 = vrot.slane %v10821, %v10841
    %v10844 = vunpack.c.l.s4 1935823168
    %v10845 = vunpack.c.0.s8 %v10844
    %v10846 = vlaneseq
    %v10847 = vshrl.u32 %v10846, 7
    %v10848 = vsub.s32 %v10845, %v10847
    %v10849 = vrot.slane %v10842, %v10848
    %v10850 = vunpack.c.l.b16 %v10835
    %v10851 = vunpack.c.l.b16 %v10849
    %v10852 = vrot.slane %v10851, 7
    %v10853 = vsel %vm10660, %v10852, %v10850
    %v10854 = vpack.c.b16 %v10853, %v10853
    %v10856 = vunpack.c.l.s4 1966171168
    %v10857 = vunpack.c.0.s8 %v10856
    %v10858 = vlaneseq
    %v10859 = vshrl.u32 %v10858, 7
    %v10860 = vsub.s32 %v10857, %v10859
    %v10861 = vrot.slane %v10854, %v10860
    %v10863 = vunpack.c.l.s4 1966171168
    %v10864 = vunpack.c.0.s8 %v10863
    %v10865 = vlaneseq
    %v10866 = vshrl.u32 %v10865, 7
    %v10867 = vsub.s32 %v10864, %v10866
    %v10868 = vrot.slane %v10861, %v10867
    %10870 = vst.msk [vmem:[#allocation8 + $0x1] sm:$0x1] %vm10678, %v10868
    %v10871 = vrot.slane %v10850, 1
    %v10872 = vsel %vm10660, %v10851, %v10871
    %v10873 = vpack.c.b16 %v10872, %v10872
    %v10875 = vunpack.c.l.s4 1966171168
    %v10876 = vunpack.c.0.s8 %v10875
    %v10877 = vlaneseq
    %v10878 = vshrl.u32 %v10877, 7
    %v10879 = vsub.s32 %v10876, %v10878
    %v10880 = vrot.slane %v10873, %v10879
    %v10882 = vunpack.c.l.s4 1966171168
    %v10883 = vunpack.c.0.s8 %v10882
    %v10884 = vlaneseq
    %v10885 = vshrl.u32 %v10884, 7
    %v10886 = vsub.s32 %v10883, %v10885
    %v10887 = vrot.slane %v10880, %v10886
    %10888 = vrot.lane.b32.xlu0 %v10887, 32
    %v10889 = vpop.permute.xlu0 %10888
    %10891 = vst.msk [vmem:[#allocation8 + $0x1] sm:$0x1] %vm10700, %v10889
    %v10892 = vcombine.high %v10800, %v10800
    %v10894 = vunpack.c.l.s4 1966171168
    %v10895 = vunpack.c.0.s8 %v10894
    %v10896 = vlaneseq
    %v10897 = vshrl.u32 %v10896, 7
    %v10898 = vsub.s32 %v10895, %v10897
    %v10899 = vrot.slane %v10892, %v10898
    %v10900 = vcombine.high %v10814, %v10814
    %v10902 = vunpack.c.l.s4 1966171168
    %v10903 = vunpack.c.0.s8 %v10902
    %v10904 = vlaneseq
    %v10905 = vshrl.u32 %v10904, 7
    %v10906 = vsub.s32 %v10903, %v10905
    %v10907 = vrot.slane %v10900, %v10906
    %v10909 = vunpack.c.l.s4 1935823168
    %v10910 = vunpack.c.0.s8 %v10909
    %v10911 = vlaneseq
    %v10912 = vshrl.u32 %v10911, 7
    %v10913 = vsub.s32 %v10910, %v10912
    %v10914 = vrot.slane %v10899, %v10913
    %v10916 = vunpack.c.l.s4 1935823168
    %v10917 = vunpack.c.0.s8 %v10916
    %v10918 = vlaneseq
    %v10919 = vshrl.u32 %v10918, 7
    %v10920 = vsub.s32 %v10917, %v10919
    %v10921 = vrot.slane %v10914, %v10920
    %v10923 = vunpack.c.l.s4 1935823168
    %v10924 = vunpack.c.0.s8 %v10923
    %v10925 = vlaneseq
    %v10926 = vshrl.u32 %v10925, 7
    %v10927 = vsub.s32 %v10924, %v10926
    %v10928 = vrot.slane %v10907, %v10927
    %v10930 = vunpack.c.l.s4 1935823168
    %v10931 = vunpack.c.0.s8 %v10930
    %v10932 = vlaneseq
    %v10933 = vshrl.u32 %v10932, 7
    %v10934 = vsub.s32 %v10931, %v10933
    %v10935 = vrot.slane %v10928, %v10934
    %v10936 = vunpack.c.l.b16 %v10921
    %v10937 = vunpack.c.l.b16 %v10935
    %v10938 = vrot.slane %v10937, 7
    %v10939 = vsel %vm10660, %v10938, %v10936
    %v10940 = vpack.c.b16 %v10939, %v10939
    %v10942 = vunpack.c.l.s4 1966171168
    %v10943 = vunpack.c.0.s8 %v10942
    %v10944 = vlaneseq
    %v10945 = vshrl.u32 %v10944, 7
    %v10946 = vsub.s32 %v10943, %v10945
    %v10947 = vrot.slane %v10940, %v10946
    %v10949 = vunpack.c.l.s4 1966171168
    %v10950 = vunpack.c.0.s8 %v10949
    %v10951 = vlaneseq
    %v10952 = vshrl.u32 %v10951, 7
    %v10953 = vsub.s32 %v10950, %v10952
    %v10954 = vrot.slane %v10947, %v10953
    %10955 = vrot.lane.b32.xlu0 %v10954, 64
    %v10956 = vpop.permute.xlu0 %10955
    %10958 = vst.msk [vmem:[#allocation8 + $0x1] sm:$0x1] %vm10768, %v10956
    %v10959 = vrot.slane %v10936, 1
    %v10960 = vsel %vm10660, %v10937, %v10959
    %v10961 = vpack.c.b16 %v10960, %v10960
    %v10963 = vunpack.c.l.s4 1966171168
    %v10964 = vunpack.c.0.s8 %v10963
    %v10965 = vlaneseq
    %v10966 = vshrl.u32 %v10965, 7
    %v10967 = vsub.s32 %v10964, %v10966
    %v10968 = vrot.slane %v10961, %v10967
    %v10970 = vunpack.c.l.s4 1966171168
    %v10971 = vunpack.c.0.s8 %v10970
    %v10972 = vlaneseq
    %v10973 = vshrl.u32 %v10972, 7
    %v10974 = vsub.s32 %v10971, %v10973
    %v10975 = vrot.slane %v10968, %v10974
    %10976 = vrot.lane.b32.xlu0 %v10975, 96
    %v10977 = vpop.permute.xlu0 %10976
    %10979 = vst.msk [vmem:[#allocation8 + $0x1] sm:$0x1] %vm10790, %v10977
    %v10983 = vunpack.c.l.s4 1966171168
    %v10984 = vunpack.c.0.s8 %v10983
    %v10985 = vlaneseq
    %v10986 = vshrl.u32 %v10985, 7
    %v10987 = vsub.s32 %v10984, %v10986
    %v10988 = vrot.slane %v10593, %v10987
    %v10990 = vunpack.c.l.s4 1966171168
    %v10991 = vunpack.c.0.s8 %v10990
    %v10992 = vlaneseq
    %v10993 = vshrl.u32 %v10992, 7
    %v10994 = vsub.s32 %v10991, %v10993
    %v10995 = vrot.slane %v10988, %v10994
    %v10997 = vunpack.c.l.s4 1966171168
    %v10998 = vunpack.c.0.s8 %v10997
    %v10999 = vlaneseq
    %v11000 = vshrl.u32 %v10999, 7
    %v11001 = vsub.s32 %v10998, %v11000
    %v11002 = vrot.slane %v10597, %v11001
    %v11004 = vunpack.c.l.s4 1966171168
    %v11005 = vunpack.c.0.s8 %v11004
    %v11006 = vlaneseq
    %v11007 = vshrl.u32 %v11006, 7
    %v11008 = vsub.s32 %v11005, %v11007
    %v11009 = vrot.slane %v11002, %v11008
    %v11011 = vunpack.c.l.s4 1935823168
    %v11012 = vunpack.c.0.s8 %v11011
    %v11013 = vlaneseq
    %v11014 = vshrl.u32 %v11013, 7
    %v11015 = vsub.s32 %v11012, %v11014
    %v11016 = vrot.slane %v10995, %v11015
    %v11018 = vunpack.c.l.s4 1935823168
    %v11019 = vunpack.c.0.s8 %v11018
    %v11020 = vlaneseq
    %v11021 = vshrl.u32 %v11020, 7
    %v11022 = vsub.s32 %v11019, %v11021
    %v11023 = vrot.slane %v11016, %v11022
    %v11025 = vunpack.c.l.s4 1935823168
    %v11026 = vunpack.c.0.s8 %v11025
    %v11027 = vlaneseq
    %v11028 = vshrl.u32 %v11027, 7
    %v11029 = vsub.s32 %v11026, %v11028
    %v11030 = vrot.slane %v11009, %v11029
    %v11032 = vunpack.c.l.s4 1935823168
    %v11033 = vunpack.c.0.s8 %v11032
    %v11034 = vlaneseq
    %v11035 = vshrl.u32 %v11034, 7
    %v11036 = vsub.s32 %v11033, %v11035
    %v11037 = vrot.slane %v11030, %v11036
    %v11038 = vunpack.c.l.b16 %v11023
    %v11039 = vunpack.c.l.b16 %v11037
    %v11040 = vrot.slane %v11039, 7
    %v11041 = vsel %vm10660, %v11040, %v11038
    %v11042 = vpack.c.b16 %v11041, %v11041
    %v11044 = vunpack.c.l.s4 1966171168
    %v11045 = vunpack.c.0.s8 %v11044
    %v11046 = vlaneseq
    %v11047 = vshrl.u32 %v11046, 7
    %v11048 = vsub.s32 %v11045, %v11047
    %v11049 = vrot.slane %v11042, %v11048
    %v11051 = vunpack.c.l.s4 1966171168
    %v11052 = vunpack.c.0.s8 %v11051
    %v11053 = vlaneseq
    %v11054 = vshrl.u32 %v11053, 7
    %v11055 = vsub.s32 %v11052, %v11054
    %v11056 = vrot.slane %v11049, %v11055
    %11058 = vst.msk [vmem:[#allocation8 + $0x2] sm:$0x1] %vm10678, %v11056
    %v11059 = vrot.slane %v11038, 1
    %v11060 = vsel %vm10660, %v11039, %v11059
    %v11061 = vpack.c.b16 %v11060, %v11060
    %v11063 = vunpack.c.l.s4 1966171168
    %v11064 = vunpack.c.0.s8 %v11063
    %v11065 = vlaneseq
    %v11066 = vshrl.u32 %v11065, 7
    %v11067 = vsub.s32 %v11064, %v11066
    %v11068 = vrot.slane %v11061, %v11067
    %v11070 = vunpack.c.l.s4 1966171168
    %v11071 = vunpack.c.0.s8 %v11070
    %v11072 = vlaneseq
    %v11073 = vshrl.u32 %v11072, 7
    %v11074 = vsub.s32 %v11071, %v11073
    %v11075 = vrot.slane %v11068, %v11074
    %11076 = vrot.lane.b32.xlu0 %v11075, 32
    %v11077 = vpop.permute.xlu0 %11076
    %11079 = vst.msk [vmem:[#allocation8 + $0x2] sm:$0x1] %vm10700, %v11077
    %v11080 = vcombine.high %v10988, %v10988
    %v11082 = vunpack.c.l.s4 1966171168
    %v11083 = vunpack.c.0.s8 %v11082
    %v11084 = vlaneseq
    %v11085 = vshrl.u32 %v11084, 7
    %v11086 = vsub.s32 %v11083, %v11085
    %v11087 = vrot.slane %v11080, %v11086
    %v11088 = vcombine.high %v11002, %v11002
    %v11090 = vunpack.c.l.s4 1966171168
    %v11091 = vunpack.c.0.s8 %v11090
    %v11092 = vlaneseq
    %v11093 = vshrl.u32 %v11092, 7
    %v11094 = vsub.s32 %v11091, %v11093
    %v11095 = vrot.slane %v11088, %v11094
    %v11097 = vunpack.c.l.s4 1935823168
    %v11098 = vunpack.c.0.s8 %v11097
    %v11099 = vlaneseq
    %v11100 = vshrl.u32 %v11099, 7
    %v11101 = vsub.s32 %v11098, %v11100
    %v11102 = vrot.slane %v11087, %v11101
    %v11104 = vunpack.c.l.s4 1935823168
    %v11105 = vunpack.c.0.s8 %v11104
    %v11106 = vlaneseq
    %v11107 = vshrl.u32 %v11106, 7
    %v11108 = vsub.s32 %v11105, %v11107
    %v11109 = vrot.slane %v11102, %v11108
    %v11111 = vunpack.c.l.s4 1935823168
    %v11112 = vunpack.c.0.s8 %v11111
    %v11113 = vlaneseq
    %v11114 = vshrl.u32 %v11113, 7
    %v11115 = vsub.s32 %v11112, %v11114
    %v11116 = vrot.slane %v11095, %v11115
    %v11118 = vunpack.c.l.s4 1935823168
    %v11119 = vunpack.c.0.s8 %v11118
    %v11120 = vlaneseq
    %v11121 = vshrl.u32 %v11120, 7
    %v11122 = vsub.s32 %v11119, %v11121
    %v11123 = vrot.slane %v11116, %v11122
    %v11124 = vunpack.c.l.b16 %v11109
    %v11125 = vunpack.c.l.b16 %v11123
    %v11126 = vrot.slane %v11125, 7
    %v11127 = vsel %vm10660, %v11126, %v11124
    %v11128 = vpack.c.b16 %v11127, %v11127
    %v11130 = vunpack.c.l.s4 1966171168
    %v11131 = vunpack.c.0.s8 %v11130
    %v11132 = vlaneseq
    %v11133 = vshrl.u32 %v11132, 7
    %v11134 = vsub.s32 %v11131, %v11133
    %v11135 = vrot.slane %v11128, %v11134
    %v11137 = vunpack.c.l.s4 1966171168
    %v11138 = vunpack.c.0.s8 %v11137
    %v11139 = vlaneseq
    %v11140 = vshrl.u32 %v11139, 7
    %v11141 = vsub.s32 %v11138, %v11140
    %v11142 = vrot.slane %v11135, %v11141
    %11143 = vrot.lane.b32.xlu0 %v11142, 64
    %v11144 = vpop.permute.xlu0 %11143
    %11146 = vst.msk [vmem:[#allocation8 + $0x2] sm:$0x1] %vm10768, %v11144
    %v11147 = vrot.slane %v11124, 1
    %v11148 = vsel %vm10660, %v11125, %v11147
    %v11149 = vpack.c.b16 %v11148, %v11148
    %v11151 = vunpack.c.l.s4 1966171168
    %v11152 = vunpack.c.0.s8 %v11151
    %v11153 = vlaneseq
    %v11154 = vshrl.u32 %v11153, 7
    %v11155 = vsub.s32 %v11152, %v11154
    %v11156 = vrot.slane %v11149, %v11155
    %v11158 = vunpack.c.l.s4 1966171168
    %v11159 = vunpack.c.0.s8 %v11158
    %v11160 = vlaneseq
    %v11161 = vshrl.u32 %v11160, 7
    %v11162 = vsub.s32 %v11159, %v11161
    %v11163 = vrot.slane %v11156, %v11162
    %11164 = vrot.lane.b32.xlu0 %v11163, 96
    %v11165 = vpop.permute.xlu0 %11164
    %11167 = vst.msk [vmem:[#allocation8 + $0x2] sm:$0x1] %vm10790, %v11165
    %v11171 = vunpack.c.l.s4 1966171168
    %v11172 = vunpack.c.0.s8 %v11171
    %v11173 = vlaneseq
    %v11174 = vshrl.u32 %v11173, 7
    %v11175 = vsub.s32 %v11172, %v11174
    %v11176 = vrot.slane %v10594, %v11175
    %v11178 = vunpack.c.l.s4 1966171168
    %v11179 = vunpack.c.0.s8 %v11178
    %v11180 = vlaneseq
    %v11181 = vshrl.u32 %v11180, 7
    %v11182 = vsub.s32 %v11179, %v11181
    %v11183 = vrot.slane %v11176, %v11182
    %v11185 = vunpack.c.l.s4 1966171168
    %v11186 = vunpack.c.0.s8 %v11185
    %v11187 = vlaneseq
    %v11188 = vshrl.u32 %v11187, 7
    %v11189 = vsub.s32 %v11186, %v11188
    %v11190 = vrot.slane %v10598, %v11189
    %v11192 = vunpack.c.l.s4 1966171168
    %v11193 = vunpack.c.0.s8 %v11192
    %v11194 = vlaneseq
    %v11195 = vshrl.u32 %v11194, 7
    %v11196 = vsub.s32 %v11193, %v11195
    %v11197 = vrot.slane %v11190, %v11196
    %v11199 = vunpack.c.l.s4 1935823168
    %v11200 = vunpack.c.0.s8 %v11199
    %v11201 = vlaneseq
    %v11202 = vshrl.u32 %v11201, 7
    %v11203 = vsub.s32 %v11200, %v11202
    %v11204 = vrot.slane %v11183, %v11203
    %v11206 = vunpack.c.l.s4 1935823168
    %v11207 = vunpack.c.0.s8 %v11206
    %v11208 = vlaneseq
    %v11209 = vshrl.u32 %v11208, 7
    %v11210 = vsub.s32 %v11207, %v11209
    %v11211 = vrot.slane %v11204, %v11210
    %v11213 = vunpack.c.l.s4 1935823168
    %v11214 = vunpack.c.0.s8 %v11213
    %v11215 = vlaneseq
    %v11216 = vshrl.u32 %v11215, 7
    %v11217 = vsub.s32 %v11214, %v11216
    %v11218 = vrot.slane %v11197, %v11217
    %v11220 = vunpack.c.l.s4 1935823168
    %v11221 = vunpack.c.0.s8 %v11220
    %v11222 = vlaneseq
    %v11223 = vshrl.u32 %v11222, 7
    %v11224 = vsub.s32 %v11221, %v11223
    %v11225 = vrot.slane %v11218, %v11224
    %v11226 = vunpack.c.l.b16 %v11211
    %v11227 = vunpack.c.l.b16 %v11225
    %v11228 = vrot.slane %v11227, 7
    %v11229 = vsel %vm10660, %v11228, %v11226
    %v11230 = vpack.c.b16 %v11229, %v11229
    %v11232 = vunpack.c.l.s4 1966171168
    %v11233 = vunpack.c.0.s8 %v11232
    %v11234 = vlaneseq
    %v11235 = vshrl.u32 %v11234, 7
    %v11236 = vsub.s32 %v11233, %v11235
    %v11237 = vrot.slane %v11230, %v11236
    %v11239 = vunpack.c.l.s4 1966171168
    %v11240 = vunpack.c.0.s8 %v11239
    %v11241 = vlaneseq
    %v11242 = vshrl.u32 %v11241, 7
    %v11243 = vsub.s32 %v11240, %v11242
    %v11244 = vrot.slane %v11237, %v11243
    %11246 = vst.msk [vmem:[#allocation8 + $0x3] sm:$0x1] %vm10678, %v11244
    %v11247 = vrot.slane %v11226, 1
    %v11248 = vsel %vm10660, %v11227, %v11247
    %v11249 = vpack.c.b16 %v11248, %v11248
    %v11251 = vunpack.c.l.s4 1966171168
    %v11252 = vunpack.c.0.s8 %v11251
    %v11253 = vlaneseq
    %v11254 = vshrl.u32 %v11253, 7
    %v11255 = vsub.s32 %v11252, %v11254
    %v11256 = vrot.slane %v11249, %v11255
    %v11258 = vunpack.c.l.s4 1966171168
    %v11259 = vunpack.c.0.s8 %v11258
    %v11260 = vlaneseq
    %v11261 = vshrl.u32 %v11260, 7
    %v11262 = vsub.s32 %v11259, %v11261
    %v11263 = vrot.slane %v11256, %v11262
    %11264 = vrot.lane.b32.xlu0 %v11263, 32
    %v11265 = vpop.permute.xlu0 %11264
    %11267 = vst.msk [vmem:[#allocation8 + $0x3] sm:$0x1] %vm10700, %v11265
    %v11268 = vcombine.high %v11176, %v11176
    %v11270 = vunpack.c.l.s4 1966171168
    %v11271 = vunpack.c.0.s8 %v11270
    %v11272 = vlaneseq
    %v11273 = vshrl.u32 %v11272, 7
    %v11274 = vsub.s32 %v11271, %v11273
    %v11275 = vrot.slane %v11268, %v11274
    %v11276 = vcombine.high %v11190, %v11190
    %v11278 = vunpack.c.l.s4 1966171168
    %v11279 = vunpack.c.0.s8 %v11278
    %v11280 = vlaneseq
    %v11281 = vshrl.u32 %v11280, 7
    %v11282 = vsub.s32 %v11279, %v11281
    %v11283 = vrot.slane %v11276, %v11282
    %v11285 = vunpack.c.l.s4 1935823168
    %v11286 = vunpack.c.0.s8 %v11285
    %v11287 = vlaneseq
    %v11288 = vshrl.u32 %v11287, 7
    %v11289 = vsub.s32 %v11286, %v11288
    %v11290 = vrot.slane %v11275, %v11289
    %v11292 = vunpack.c.l.s4 1935823168
    %v11293 = vunpack.c.0.s8 %v11292
    %v11294 = vlaneseq
    %v11295 = vshrl.u32 %v11294, 7
    %v11296 = vsub.s32 %v11293, %v11295
    %v11297 = vrot.slane %v11290, %v11296
    %v11299 = vunpack.c.l.s4 1935823168
    %v11300 = vunpack.c.0.s8 %v11299
    %v11301 = vlaneseq
    %v11302 = vshrl.u32 %v11301, 7
    %v11303 = vsub.s32 %v11300, %v11302
    %v11304 = vrot.slane %v11283, %v11303
    %v11306 = vunpack.c.l.s4 1935823168
    %v11307 = vunpack.c.0.s8 %v11306
    %v11308 = vlaneseq
    %v11309 = vshrl.u32 %v11308, 7
    %v11310 = vsub.s32 %v11307, %v11309
    %v11311 = vrot.slane %v11304, %v11310
    %v11312 = vunpack.c.l.b16 %v11297
    %v11313 = vunpack.c.l.b16 %v11311
    %v11314 = vrot.slane %v11313, 7
    %v11315 = vsel %vm10660, %v11314, %v11312
    %v11316 = vpack.c.b16 %v11315, %v11315
    %v11318 = vunpack.c.l.s4 1966171168
    %v11319 = vunpack.c.0.s8 %v11318
    %v11320 = vlaneseq
    %v11321 = vshrl.u32 %v11320, 7
    %v11322 = vsub.s32 %v11319, %v11321
    %v11323 = vrot.slane %v11316, %v11322
    %v11325 = vunpack.c.l.s4 1966171168
    %v11326 = vunpack.c.0.s8 %v11325
    %v11327 = vlaneseq
    %v11328 = vshrl.u32 %v11327, 7
    %v11329 = vsub.s32 %v11326, %v11328
    %v11330 = vrot.slane %v11323, %v11329
    %11331 = vrot.lane.b32.xlu0 %v11330, 64
    %v11332 = vpop.permute.xlu0 %11331
    %11334 = vst.msk [vmem:[#allocation8 + $0x3] sm:$0x1] %vm10768, %v11332
    %v11335 = vrot.slane %v11312, 1
    %v11336 = vsel %vm10660, %v11313, %v11335
    %v11337 = vpack.c.b16 %v11336, %v11336
    %v11339 = vunpack.c.l.s4 1966171168
    %v11340 = vunpack.c.0.s8 %v11339
    %v11341 = vlaneseq
    %v11342 = vshrl.u32 %v11341, 7
    %v11343 = vsub.s32 %v11340, %v11342
    %v11344 = vrot.slane %v11337, %v11343
    %v11346 = vunpack.c.l.s4 1966171168
    %v11347 = vunpack.c.0.s8 %v11346
    %v11348 = vlaneseq
    %v11349 = vshrl.u32 %v11348, 7
    %v11350 = vsub.s32 %v11347, %v11349
    %v11351 = vrot.slane %v11344, %v11350
    %11352 = vrot.lane.b32.xlu0 %v11351, 96
    %v11353 = vpop.permute.xlu0 %11352
    %11355 = vst.msk [vmem:[#allocation8 + $0x3] sm:$0x1] %vm10790, %v11353
    %v11356 = vld [vmem:[#allocation8] sm:$0xf]
    %v11357 = vld [vmem:[%s5] sm:$0xf]
    %v11358 = vld [vmem:[%s5 + $0x4] sm:$0xf]
    %v11359 = vld [vmem:[%s5 + $0x8] sm:$0xf]
    %v11360 = vld [vmem:[%s5 + $0xc] sm:$0xf]
    %v11361 = vld [vmem:[%s5 + $0x10] sm:$0xf]
    %v11362 = vld [vmem:[%s5 + $0x14] sm:$0xf]
    %v11363 = vld [vmem:[%s5 + $0x18] sm:$0xf]
    %v11364 = vld [vmem:[%s5 + $0x1c] sm:$0xf]
    %v11365 = vld [vmem:[%s5 + $0x20] sm:$0xf]
    %v11366 = vld [vmem:[%s5 + $0x24] sm:$0xf]
    %v11367 = vld [vmem:[%s5 + $0x28] sm:$0xf]
    %v11368 = vld [vmem:[%s5 + $0x2c] sm:$0xf]
    %v11369 = vld [vmem:[%s5 + $0x30] sm:$0xf]
    %v11370 = vld [vmem:[%s5 + $0x34] sm:$0xf]
    %v11371 = vld [vmem:[%s5 + $0x38] sm:$0xf]
    %v11372 = vld [vmem:[%s5 + $0x3c] sm:$0xf]
    %v11373 = vld [vmem:[%s5 + $0x40] sm:$0xf]
    %v11374 = vld [vmem:[%s5 + $0x44] sm:$0xf]
    %v11375 = vld [vmem:[%s5 + $0x48] sm:$0xf]
    %v11376 = vld [vmem:[%s5 + $0x4c] sm:$0xf]
    %v11377 = vld [vmem:[%s5 + $0x50] sm:$0xf]
    %v11378 = vld [vmem:[%s5 + $0x54] sm:$0xf]
    %v11379 = vld [vmem:[%s5 + $0x58] sm:$0xf]
    %v11380 = vld [vmem:[%s5 + $0x5c] sm:$0xf]
    %v11381 = vld [vmem:[%s5 + $0x60] sm:$0xf]
    %v11382 = vld [vmem:[%s5 + $0x64] sm:$0xf]
    %v11383 = vld [vmem:[%s5 + $0x68] sm:$0xf]
    %v11384 = vld [vmem:[%s5 + $0x6c] sm:$0xf]
    %v11385 = vld [vmem:[%s5 + $0x70] sm:$0xf]
    %v11386 = vld [vmem:[%s5 + $0x74] sm:$0xf]
    %v11387 = vld [vmem:[%s5 + $0x78] sm:$0xf]
    %v11388 = vld [vmem:[%s5 + $0x7c] sm:$0xf]
    %v11389 = vld [vmem:[%s5 + $0x80] sm:$0xf]
    %v11390 = vld [vmem:[%s5 + $0x84] sm:$0xf]
    %v11391 = vld [vmem:[%s5 + $0x88] sm:$0xf]
    %v11392 = vld [vmem:[%s5 + $0x8c] sm:$0xf]
    %v11393 = vld [vmem:[%s5 + $0x90] sm:$0xf]
    %v11394 = vld [vmem:[%s5 + $0x94] sm:$0xf]
    %v11395 = vld [vmem:[%s5 + $0x98] sm:$0xf]
    %v11396 = vld [vmem:[%s5 + $0x9c] sm:$0xf]
    %v11397 = vld [vmem:[%s5 + $0xa0] sm:$0xf]
    %v11398 = vld [vmem:[%s5 + $0xa4] sm:$0xf]
    %v11399 = vld [vmem:[%s5 + $0xa8] sm:$0xf]
    %v11400 = vld [vmem:[%s5 + $0xac] sm:$0xf]
    %v11401 = vld [vmem:[%s5 + $0xb0] sm:$0xf]
    %v11402 = vld [vmem:[%s5 + $0xb4] sm:$0xf]
    %v11403 = vld [vmem:[%s5 + $0xb8] sm:$0xf]
    %v11404 = vld [vmem:[%s5 + $0xbc] sm:$0xf]
    %v11405 = vld [vmem:[%s5 + $0xc0] sm:$0xf]
    %v11406 = vld [vmem:[%s5 + $0xc4] sm:$0xf]
    %v11407 = vld [vmem:[%s5 + $0xc8] sm:$0xf]
    %v11408 = vld [vmem:[%s5 + $0xcc] sm:$0xf]
    %v11409 = vld [vmem:[%s5 + $0xd0] sm:$0xf]
    %v11410 = vld [vmem:[%s5 + $0xd4] sm:$0xf]
    %v11411 = vld [vmem:[%s5 + $0xd8] sm:$0xf]
    %v11412 = vld [vmem:[%s5 + $0xdc] sm:$0xf]
    %v11413 = vld [vmem:[%s5 + $0xe0] sm:$0xf]
    %v11414 = vld [vmem:[%s5 + $0xe4] sm:$0xf]
    %v11415 = vld [vmem:[%s5 + $0xe8] sm:$0xf]
    %v11416 = vld [vmem:[%s5 + $0xec] sm:$0xf]
    %v11417 = vld [vmem:[%s5 + $0xf0] sm:$0xf]
    %v11418 = vld [vmem:[%s5 + $0xf4] sm:$0xf]
    %v11419 = vld [vmem:[%s5 + $0xf8] sm:$0xf]
    %v11420 = vld [vmem:[%s5 + $0xfc] sm:$0xf]
    %v11421 = vld [vmem:[%s6] sm:$0x1]
    %v11423 = vlaneseq
    %v11424 = vshrl.u32 %v11423, 7
    %v11425 = vsub.s32 0, %v11424
    %v11426 = vrot.slane %v11421, %v11425
    %v11430 = vunpack.c.l.s4 1966171168
    %v11431 = vunpack.c.0.s8 %v11430
    %v11432 = vlaneseq
    %v11433 = vshrl.u32 %v11432, 7
    %v11434 = vsub.s32 %v11431, %v11433
    %v11435 = vrot.slane %v11356, %v11434
    %v11436 = vcombine.high %v11435, %v11435
    %v11438 = vunpack.c.l.s4 1966171168
    %v11439 = vunpack.c.0.s8 %v11438
    %v11440 = vlaneseq
    %v11441 = vshrl.u32 %v11440, 7
    %v11442 = vsub.s32 %v11439, %v11441
    %v11443 = vrot.slane %v11435, %v11442
    %v11445 = vunpack.c.l.s4 1966171168
    %v11446 = vunpack.c.0.s8 %v11445
    %v11447 = vlaneseq
    %v11448 = vshrl.u32 %v11447, 7
    %v11449 = vsub.s32 %v11446, %v11448
    %v11450 = vrot.slane %v11436, %v11449
    %v11451 = vcombine.high %v11443, %v11443
    %v11452 = vcombine.high %v11450, %v11450
    %v11521 = vunpack.c.l.b16 %v11357
    %v11522 = vunpack.c.l.b16 %v11358
    %v11523 = vunpack.c.l.b16 %v11359
    %v11524 = vunpack.c.l.b16 %v11360
    %v11525 = vunpack.c.l.b16 %v11361
    %v11526 = vunpack.c.l.b16 %v11362
    %v11527 = vunpack.c.l.b16 %v11363
    %v11528 = vunpack.c.l.b16 %v11364
    %v11529 = vunpack.c.l.b16 %v11365
    %v11530 = vunpack.c.l.b16 %v11366
    %v11531 = vunpack.c.l.b16 %v11367
    %v11532 = vunpack.c.l.b16 %v11368
    %v11533 = vunpack.c.l.b16 %v11369
    %v11534 = vunpack.c.l.b16 %v11370
    %v11535 = vunpack.c.l.b16 %v11371
    %v11536 = vunpack.c.l.b16 %v11372
    %v11537 = vunpack.c.l.b16 %v11373
    %v11538 = vunpack.c.l.b16 %v11374
    %v11539 = vunpack.c.l.b16 %v11375
    %v11540 = vunpack.c.l.b16 %v11376
    %v11541 = vunpack.c.l.b16 %v11377
    %v11542 = vunpack.c.l.b16 %v11378
    %v11543 = vunpack.c.l.b16 %v11379
    %v11544 = vunpack.c.l.b16 %v11380
    %v11545 = vunpack.c.l.b16 %v11381
    %v11546 = vunpack.c.l.b16 %v11382
    %v11547 = vunpack.c.l.b16 %v11383
    %v11548 = vunpack.c.l.b16 %v11384
    %v11549 = vunpack.c.l.b16 %v11385
    %v11550 = vunpack.c.l.b16 %v11386
    %v11551 = vunpack.c.l.b16 %v11387
    %v11552 = vunpack.c.l.b16 %v11388
    %v11553 = vunpack.c.l.b16 %v11389
    %v11554 = vunpack.c.l.b16 %v11390
    %v11555 = vunpack.c.l.b16 %v11391
    %v11556 = vunpack.c.l.b16 %v11392
    %v11557 = vunpack.c.l.b16 %v11393
    %v11558 = vunpack.c.l.b16 %v11394
    %v11559 = vunpack.c.l.b16 %v11395
    %v11560 = vunpack.c.l.b16 %v11396
    %v11561 = vunpack.c.l.b16 %v11397
    %v11562 = vunpack.c.l.b16 %v11398
    %v11563 = vunpack.c.l.b16 %v11399
    %v11564 = vunpack.c.l.b16 %v11400
    %v11565 = vunpack.c.l.b16 %v11401
    %v11566 = vunpack.c.l.b16 %v11402
    %v11567 = vunpack.c.l.b16 %v11403
    %v11568 = vunpack.c.l.b16 %v11404
    %v11569 = vunpack.c.l.b16 %v11405
    %v11570 = vunpack.c.l.b16 %v11406
    %v11571 = vunpack.c.l.b16 %v11407
    %v11572 = vunpack.c.l.b16 %v11408
    %v11573 = vunpack.c.l.b16 %v11409
    %v11574 = vunpack.c.l.b16 %v11410
    %v11575 = vunpack.c.l.b16 %v11411
    %v11576 = vunpack.c.l.b16 %v11412
    %v11577 = vunpack.c.l.b16 %v11413
    %v11578 = vunpack.c.l.b16 %v11414
    %v11579 = vunpack.c.l.b16 %v11415
    %v11580 = vunpack.c.l.b16 %v11416
    %v11581 = vunpack.c.l.b16 %v11417
    %v11582 = vunpack.c.l.b16 %v11418
    %v11583 = vunpack.c.l.b16 %v11419
    %v11584 = vunpack.c.l.b16 %v11420
    %v11585 = vpack.c.b16 %v11522, %v11521
    %v11586 = vpack.c.b16 %v11524, %v11523
    %v11587 = vpack.c.b16 %v11526, %v11525
    %v11588 = vpack.c.b16 %v11528, %v11527
    %v11589 = vpack.c.b16 %v11530, %v11529
    %v11590 = vpack.c.b16 %v11532, %v11531
    %v11591 = vpack.c.b16 %v11534, %v11533
    %v11592 = vpack.c.b16 %v11536, %v11535
    %v11593 = vpack.c.b16 %v11538, %v11537
    %v11594 = vpack.c.b16 %v11540, %v11539
    %v11595 = vpack.c.b16 %v11542, %v11541
    %v11596 = vpack.c.b16 %v11544, %v11543
    %v11597 = vpack.c.b16 %v11546, %v11545
    %v11598 = vpack.c.b16 %v11548, %v11547
    %v11599 = vpack.c.b16 %v11550, %v11549
    %v11600 = vpack.c.b16 %v11552, %v11551
    %v11601 = vpack.c.b16 %v11554, %v11553
    %v11602 = vpack.c.b16 %v11556, %v11555
    %v11603 = vpack.c.b16 %v11558, %v11557
    %v11604 = vpack.c.b16 %v11560, %v11559
    %v11605 = vpack.c.b16 %v11562, %v11561
    %v11606 = vpack.c.b16 %v11564, %v11563
    %v11607 = vpack.c.b16 %v11566, %v11565
    %v11608 = vpack.c.b16 %v11568, %v11567
    %v11609 = vpack.c.b16 %v11570, %v11569
    %v11610 = vpack.c.b16 %v11572, %v11571
    %v11611 = vpack.c.b16 %v11574, %v11573
    %v11612 = vpack.c.b16 %v11576, %v11575
    %v11613 = vpack.c.b16 %v11578, %v11577
    %v11614 = vpack.c.b16 %v11580, %v11579
    %v11615 = vpack.c.b16 %v11582, %v11581
    %v11616 = vpack.c.b16 %v11584, %v11583
    %11649 = vmatprep.subr.bf16.mxu0 0
    %11650 = vmatpush1.bf16.msra.mxu0 %v11585
    %11651 = vmatprep.subr.bf16.mxu0 0
    %11652 = vmatpush1.bf16.msra.mxu0 %v11586
    %11653 = vmatprep.subr.bf16.mxu0 0
    %11654 = vmatpush1.bf16.msra.mxu0 %v11587
    %11655 = vmatprep.subr.bf16.mxu0 0
    %11656 = vmatpush1.bf16.msra.mxu0 %v11588
    %11657 = vmatprep.subr.bf16.mxu0 0
    %11658 = vmatpush1.bf16.msra.mxu0 %v11589
    %11659 = vmatprep.subr.bf16.mxu0 0
    %11660 = vmatpush1.bf16.msra.mxu0 %v11590
    %11661 = vmatprep.subr.bf16.mxu0 0
    %11662 = vmatpush1.bf16.msra.mxu0 %v11591
    %11663 = vmatprep.subr.bf16.mxu0 0
    %11664 = vmatpush1.bf16.msra.mxu0 %v11592
    %11665 = vmatprep.subr.bf16.mxu0 0
    %11666 = vmatpush1.bf16.msra.mxu0 %v11593
    %11667 = vmatprep.subr.bf16.mxu0 0
    %11668 = vmatpush1.bf16.msra.mxu0 %v11594
    %11669 = vmatprep.subr.bf16.mxu0 0
    %11670 = vmatpush1.bf16.msra.mxu0 %v11595
    %11671 = vmatprep.subr.bf16.mxu0 0
    %11672 = vmatpush1.bf16.msra.mxu0 %v11596
    %11673 = vmatprep.subr.bf16.mxu0 0
    %11674 = vmatpush1.bf16.msra.mxu0 %v11597
    %11675 = vmatprep.subr.bf16.mxu0 0
    %11676 = vmatpush1.bf16.msra.mxu0 %v11598
    %11677 = vmatprep.subr.bf16.mxu0 0
    %11678 = vmatpush1.bf16.msra.mxu0 %v11599
    %11679 = vmatprep.subr.bf16.mxu0 0
    %11680 = vmatpush1.bf16.msra.mxu0 %v11600
    %11681 = vmatprep.mubr.bf16.mxu0 %v11450
    %11682 = vmatmul.mubr.bf16.gmra.mrb[0].mxu0 %v11443
    %v11683 = vpop.f32.mrb[0].mxu0
    %v11684 = vadd.f32 %v11426, %v11683
    %v11685 = vpop.f32.mrb[0].mxu0
    %v11686 = vpop.f32.mrb[0].mxu0
    %v11687 = vpop.f32.mrb[0].mxu0
    %11688 = vdwg.mxu0
    %11689 = vmatprep.subr.bf16.mxu0 0
    %11690 = vmatpush1.bf16.msra.mxu0 %v11601
    %11691 = vmatprep.subr.bf16.mxu0 0
    %11692 = vmatpush1.bf16.msra.mxu0 %v11602
    %11693 = vmatprep.subr.bf16.mxu0 0
    %11694 = vmatpush1.bf16.msra.mxu0 %v11603
    %11695 = vmatprep.subr.bf16.mxu0 0
    %11696 = vmatpush1.bf16.msra.mxu0 %v11604
    %11697 = vmatprep.subr.bf16.mxu0 0
    %11698 = vmatpush1.bf16.msra.mxu0 %v11605
    %11699 = vmatprep.subr.bf16.mxu0 0
    %11700 = vmatpush1.bf16.msra.mxu0 %v11606
    %11701 = vmatprep.subr.bf16.mxu0 0
    %11702 = vmatpush1.bf16.msra.mxu0 %v11607
    %11703 = vmatprep.subr.bf16.mxu0 0
    %11704 = vmatpush1.bf16.msra.mxu0 %v11608
    %11705 = vmatprep.subr.bf16.mxu0 0
    %11706 = vmatpush1.bf16.msra.mxu0 %v11609
    %11707 = vmatprep.subr.bf16.mxu0 0
    %11708 = vmatpush1.bf16.msra.mxu0 %v11610
    %11709 = vmatprep.subr.bf16.mxu0 0
    %11710 = vmatpush1.bf16.msra.mxu0 %v11611
    %11711 = vmatprep.subr.bf16.mxu0 0
    %11712 = vmatpush1.bf16.msra.mxu0 %v11612
    %11713 = vmatprep.subr.bf16.mxu0 0
    %11714 = vmatpush1.bf16.msra.mxu0 %v11613
    %11715 = vmatprep.subr.bf16.mxu0 0
    %11716 = vmatpush1.bf16.msra.mxu0 %v11614
    %11717 = vmatprep.subr.bf16.mxu0 0
    %11718 = vmatpush1.bf16.msra.mxu0 %v11615
    %11719 = vmatprep.subr.bf16.mxu0 0
    %11720 = vmatpush1.bf16.msra.mxu0 %v11616
    %11721 = vmatprep.mubr.bf16.mxu0 %v11452
    %11722 = vmatmul.mubr.bf16.gmra.mrb[0].mxu0 %v11451
    %v11723 = vpop.f32.mrb[0].mxu0
    %v11724 = vadd.f32 %v11684, %v11723
    %v11725 = vpop.f32.mrb[0].mxu0
    %v11726 = vpop.f32.mrb[0].mxu0
    %v11727 = vpop.f32.mrb[0].mxu0
    %11728 = vdwg.mxu0
    %11729 = vst [vmem:[#allocation9] sm:$0x3] %v11724
    // Predicated region
    $region34: #{vgg_forward.1} parent=1 // pred_check
      _
    $region35: #{vgg_forward.1} parent=1 // pred_check_branch
      %11731 = sbr.rel (0) target = $region37
    $region36: #{vgg_forward.1} parent=1 // pred_region
      %s11733 = ssub.s32 32, 32
      %11734 = vsyncadd [#allocation10], %s11733
      %s11736 = sshll.u32 [#allocation9], 4
      %s11737 = int_to_ptr.vmem [resolvable:$true] %s11736
      %11739 = dma.vmem_to_hbm [thread:$0]  %s11737, 32, %s7, [#allocation10]
    $region37: #{vgg_forward.1} parent=1 // pred_fallthru
      _
    // Predicated region
    $region38: #{vgg_forward.1} parent=1 // pred_check
      _
    $region39: #{vgg_forward.1} parent=1 // pred_check_branch
      %11741 = sbr.rel (0) target = $region41
    $region40: #{vgg_forward.1} parent=1 // pred_region
      %11742 = dma.done [#allocation10], 32
    $region41: #{vgg_forward.1} parent=1 // pred_fallthru
      _
    %11743 = vsyncpa [#allocation10], 1

</llo_original>
